<compile_context>
chip_gen: v5e
topology: v5e:2x2
jax: 0.10.0
libtpu: 0.0.40
codegen_flags: <defaults>
</compile_context>

<pallas_src>
import functools

import numpy as np
import jax
import jax.numpy as jnp
from jax import lax
from jax.experimental import pallas as pl
from jax.experimental.pallas import tpu as pltpu

MAX_TM = 2048  # max GEMM rows per grid step


def _round_up(x, m):
    return ((x + m - 1) // m) * m


# --------------------------- Pallas kernels ---------------------------------

def _conv_gemm_kernel(x_ref, w_ref, b_ref, o_ref, *, apply_relu):
    acc = jnp.dot(x_ref[...], w_ref[...], preferred_element_type=jnp.float32)
    acc = acc + b_ref[...]
    if apply_relu:
        acc = jnp.maximum(acc, 0.0)
    o_ref[...] = acc


def _bn_act_conv_gemm_kernel(x_ref, s_ref, t_ref, w_ref, b_ref, o_ref,
                             *, apply_relu):
    # Previous layer's BatchNorm affine + ReLU, applied per K-column of the
    # im2col patches (channel pattern tiled kh*kw times), then the conv GEMM.
    xact = jnp.maximum(x_ref[...] * s_ref[...] + t_ref[...], 0.0)
    acc = jnp.dot(xact.astype(jnp.bfloat16), w_ref[...],
                  preferred_element_type=jnp.float32)
    acc = acc + b_ref[...]
    if apply_relu:
        acc = jnp.maximum(acc, 0.0)
    o_ref[...] = acc


def _head_kernel(p_ref, w6_ref, b6_ref, wl_ref, o_ref):
    # conv6 (single 4x2 patch per batch element) + ReLU + final Linear (as a
    # lane reduction), all fused.
    y6 = jnp.dot(p_ref[...], w6_ref[...], preferred_element_type=jnp.float32)
    y6 = jnp.maximum(y6 + b6_ref[...], 0.0)
    o_ref[...] = jnp.sum(y6 * wl_ref[...], axis=1, keepdims=True)


# --------------------------- pallas_call wrappers ----------------------------

def _gemm_call(xp, wp, bp, sp, tp, *, apply_relu, tm):
    Mp, Kp = xp.shape
    C = wp.shape[1]
    if sp is None:
        kernel = functools.partial(_conv_gemm_kernel, apply_relu=apply_relu)
        in_specs = [
            pl.BlockSpec((tm, Kp), lambda i: (i, 0)),
            pl.BlockSpec((Kp, C), lambda i: (0, 0)),
            pl.BlockSpec((1, C), lambda i: (0, 0)),
        ]
        args = (xp, wp, bp)
    else:
        kernel = functools.partial(_bn_act_conv_gemm_kernel, apply_relu=apply_relu)
        in_specs = [
            pl.BlockSpec((tm, Kp), lambda i: (i, 0)),
            pl.BlockSpec((1, Kp), lambda i: (0, 0)),
            pl.BlockSpec((1, Kp), lambda i: (0, 0)),
            pl.BlockSpec((Kp, C), lambda i: (0, 0)),
            pl.BlockSpec((1, C), lambda i: (0, 0)),
        ]
        args = (xp, sp, tp, wp, bp)
    return pl.pallas_call(
        kernel,
        out_shape=jax.ShapeDtypeStruct((Mp, C), jnp.float32),
        grid_spec=pltpu.PrefetchScalarGridSpec(
            num_scalar_prefetch=0,
            grid=(Mp // tm,),
            in_specs=in_specs,
            out_specs=pl.BlockSpec((tm, C), lambda i: (i, 0)),
        ),
        compiler_params=pltpu.CompilerParams(
            dimension_semantics=("parallel",)),
    )(*args)


# ----------------------------- conv layer glue --------------------------------

def _im2col(x, kh, kw, s):
    """x: (N,H,W,C) -> (N*OH*OW, kh*kw*C) patches (VALID padding, square stride)."""
    N, H, W, C = x.shape
    OH = (H - kh) // s + 1
    OW = (W - kw) // s + 1
    cols = []
    for i in range(kh):
        for j in range(kw):
            cols.append(x[:, i:i + s * OH:s, j:j + s * OW:s, :])
    patches = jnp.stack(cols, axis=3)            # (N, OH, OW, kh*kw, C)
    return patches.reshape(N * OH * OW, kh * kw * C), OH, OW


def _conv_as_gemm(x, w, b, stride, *, apply_relu, pre_scale=None, pre_shift=None):
    """VALID conv as an im2col GEMM with bf16 operands / f32 accumulation.

    If pre_scale/pre_shift are given, relu(pre_scale*x + pre_shift) (the
    previous layer's BatchNorm + ReLU, per input channel) is applied to the
    patches inside the kernel before the matmul.

    Returns the *row-padded* (Mp, cout) f32 GEMM output plus geometry so
    callers can avoid extra pad/slice HBM passes.
    """
    kh, kw, cin, cout = w.shape
    patches, OH, OW = _im2col(x.astype(jnp.bfloat16), kh, kw, stride)
    M, K = patches.shape
    Kp = _round_up(K, 8)
    tm = min(MAX_TM, _round_up(M, 8))
    Mp = _round_up(M, tm)
    xp = jnp.pad(patches, ((0, Mp - M), (0, Kp - K)))
    wp = jnp.pad(w.reshape(K, cout).astype(jnp.bfloat16), ((0, Kp - K), (0, 0)))
    bp = b.reshape(1, cout)
    if pre_scale is not None:
        sp = jnp.pad(jnp.tile(pre_scale, kh * kw), (0, Kp - K)).reshape(1, Kp)
        tp = jnp.pad(jnp.tile(pre_shift, kh * kw), (0, Kp - K)).reshape(1, Kp)
    else:
        sp = tp = None
    y = _gemm_call(xp, wp, bp, sp, tp, apply_relu=apply_relu, tm=tm)
    return y, M, OH, OW


def conv_relu(x, w, b, stride, pre_scale=None, pre_shift=None):
    cout = w.shape[3]
    N = x.shape[0]
    y, M, OH, OW = _conv_as_gemm(x, w, b, stride, apply_relu=True,
                                 pre_scale=pre_scale, pre_shift=pre_shift)
    return y[:M].reshape(N, OH, OW, cout)


def conv_bn_stats(x, w, b, stride, gamma, beta, eps=1e-5):
    """Conv (bias, no activation). Returns the raw conv output and the folded
    training-mode BatchNorm scale/shift (batch stats, biased variance).
    The normalize + ReLU is applied inside the *next* conv's kernel."""
    cout = w.shape[3]
    N = x.shape[0]
    y, M, OH, OW = _conv_as_gemm(x, w, b, stride, apply_relu=False)
    Mp = y.shape[0]
    # Padded patch rows are exactly zero -> padded output rows equal the bias
    # exactly, so the batch statistics over the real M rows can be recovered
    # from sums over the padded buffer without slicing / re-reading it.
    pad_rows = float(Mp - M)
    col_sum = jnp.sum(y, axis=0)
    col_sumsq = jnp.sum(y * y, axis=0)
    mean = (col_sum - pad_rows * b) / M
    ex2 = (col_sumsq - pad_rows * b * b) / M
    var = jnp.maximum(ex2 - mean * mean, 0.0)        # biased variance
    scale = gamma / jnp.sqrt(var + eps)
    shift = beta - scale * mean
    return y[:M].reshape(N, OH, OW, cout), scale, shift


def head_conv6_linear(x, w6, b6, wl, bl):
    """Fused conv6 (spatially 1x1 output) + .view(d1, 32) + Linear(32, 1)."""
    N = x.shape[0]
    kh, kw, cin, cout = w6.shape
    K = kh * kw * cin
    p = x.reshape(N, K).astype(jnp.bfloat16)         # the single 4x2 patch / batch
    Mp = _round_up(N, 8)
    pp = jnp.pad(p, ((0, Mp - N), (0, 0)))
    w6r = w6.reshape(K, cout).astype(jnp.bfloat16)
    b6r = b6.reshape(1, cout)
    wlr = wl.reshape(1, cout)                        # (32,1) -> (1,32)
    out = pl.pallas_call(
        _head_kernel,
        out_shape=jax.ShapeDtypeStruct((Mp, 1), jnp.float32),
        grid_spec=pltpu.PrefetchScalarGridSpec(
            num_scalar_prefetch=0,
            grid=(1,),
            in_specs=[
                pl.BlockSpec((Mp, K), lambda i: (0, 0)),
                pl.BlockSpec((K, cout), lambda i: (0, 0)),
                pl.BlockSpec((1, cout), lambda i: (0, 0)),
                pl.BlockSpec((1, cout), lambda i: (0, 0)),
            ],
            out_specs=pl.BlockSpec((Mp, 1), lambda i: (0, 0)),
        ),
        compiler_params=pltpu.CompilerParams(
            dimension_semantics=("arbitrary",)),
    )(pp, w6r, b6r, wlr)
    return out[:N] + bl.reshape(1, 1)


# --------------------------------- forward -----------------------------------

def assault_value_forward(x_nchw, p):
    x = jnp.transpose(x_nchw, (0, 2, 3, 1))                                 # NCHW -> NHWC
    x = conv_relu(x, p['w1'], p['b1'], 2)                                   # layer1
    x, s1, t1 = conv_bn_stats(x, p['w2'], p['b2'], 2, p['g1'], p['be1'])    # conv2 + bn1 stats
    x = conv_relu(x, p['w3'], p['b3'], 2, pre_scale=s1, pre_shift=t1)       # bn1+relu fused into layer3
    x, s2, t2 = conv_bn_stats(x, p['w4'], p['b4'], 2, p['g2'], p['be2'])    # conv4 + bn2 stats
    x = conv_relu(x, p['w5'], p['b5'], 3, pre_scale=s2, pre_shift=t2)       # bn2+relu fused into layer5
    return head_conv6_linear(x, p['w6'], p['b6'], p['wl'], p['bl'])         # layer6 + view + linear


# ------------------------ deterministic parameters ---------------------------

def init_params(key):
    keys = jax.random.split(key, 14)

    def conv_init(kw_key, kb_key, kh, kw, cin, cout):
        bound = 1.0 / np.sqrt(kh * kw * cin)
        w = jax.random.uniform(kw_key, (kh, kw, cin, cout), jnp.float32, -bound, bound)
        b = jax.random.uniform(kb_key, (cout,), jnp.float32, -bound, bound)
        return w, b

    p = {}
    p['w1'], p['b1'] = conv_init(keys[0], keys[1], 3, 3, 3, 8)
    p['w2'], p['b2'] = conv_init(keys[2], keys[3], 3, 3, 8, 16)
    p['w3'], p['b3'] = conv_init(keys[4], keys[5], 3, 3, 16, 32)
    p['w4'], p['b4'] = conv_init(keys[6], keys[7], 3, 3, 32, 32)
    p['w5'], p['b5'] = conv_init(keys[8], keys[9], 5, 5, 32, 32)
    p['w6'], p['b6'] = conv_init(keys[10], keys[11], 4, 2, 32, 32)
    bound = 1.0 / np.sqrt(32.0)
    p['wl'] = jax.random.uniform(keys[12], (32, 1), jnp.float32, -bound, bound)
    p['bl'] = jax.random.uniform(keys[13], (1,), jnp.float32, -bound, bound)
    # BatchNorm affine params at PyTorch init (gamma=1, beta=0).
    p['g1'] = jnp.ones((16,), jnp.float32)
    p['be1'] = jnp.zeros((16,), jnp.float32)
    p['g2'] = jnp.ones((32,), jnp.float32)
    p['be2'] = jnp.zeros((32,), jnp.float32)
    return p


# ----------------------------- pure-JAX reference ----------------------------

def reference_forward(x_nchw, p):
    x = jnp.transpose(x_nchw, (0, 2, 3, 1))

    def conv(x, w, b, s):
        y = lax.conv_general_dilated(
            x, w, (s, s), 'VALID',
            dimension_numbers=('NHWC', 'HWIO', 'NHWC'),
            precision=lax.Precision.HIGHEST)
        return y + b

    def bn(y, g, beta, eps=1e-5):
        mean = jnp.mean(y, axis=(0, 1, 2))
        var = jnp.mean((y - mean) ** 2, axis=(0, 1, 2))
        return g * (y - mean) / jnp.sqrt(var + eps) + beta

    relu = lambda t: jnp.maximum(t, 0.0)
    x = relu(conv(x, p['w1'], p['b1'], 2))
    x = relu(bn(conv(x, p['w2'], p['b2'], 2), p['g1'], p['be1']))
    x = relu(conv(x, p['w3'], p['b3'], 2))
    x = relu(bn(conv(x, p['w4'], p['b4'], 2), p['g2'], p['be2']))
    x = relu(conv(x, p['w5'], p['b5'], 3))
    x = relu(conv(x, p['w6'], p['b6'], 1))
    feat = x.reshape(x.shape[0], 32)
    return feat @ p['wl'] + p['bl']


# ----------------------------------- main ------------------------------------

if __name__ == "__main__":
    key = jax.random.PRNGKey(0)
    kx, kp = jax.random.split(key)
    # Assault screen: (N, 3, 250, 160).  The conv stack (3x3/s2 x4, 5x5/s3,
    # 4x2/s1) reduces 250x160 exactly to 1x1 spatially, which the PyTorch
    # `.view(d1, 32)` requires; smaller spatial sizes would break that reshape,
    # so the batch is kept small (2) instead.
    x = jax.random.uniform(kx, (2, 3, 250, 160), jnp.float32)
    params = init_params(kp)

    fwd = jax.jit(assault_value_forward)
    out = jax.block_until_ready(fwd(x, params))
    assert out.shape == (2, 1) and out.dtype == jnp.float32

    ref = jax.block_until_ready(reference_forward(x, params))
    np.testing.assert_allclose(np.asarray(out), np.asarray(ref),
                               rtol=2e-2, atol=2e-2)
    print("KERNEL_OK")
</pallas_src>

<mosaic_0001>
module attributes {stable_mosaic.version = 11 : i64} {
  func.func @_conv_gemm_kernel(%arg0: i32, %arg1: memref<2048x32xbf16, #tpu.memory_space<vmem>>, %arg2: memref<32x8xbf16, #tpu.memory_space<vmem>>, %arg3: memref<1x8xf32, #tpu.memory_space<vmem>>, %arg4: memref<2048x8xf32, #tpu.memory_space<vmem>>) attributes {dimension_semantics = [#tpu.dimension_semantics<parallel>], iteration_bounds = array<i64: 10>, scalar_prefetch = 0 : i64, scratch_operands = 0 : i64, tpu.core_type = #tpu.core_type<tc>, window_params = [{transform_indices = @transform_0, window_bounds = array<i64: 2048, 32>}, {pipeline_mode = #tpu.pipeline_mode<synchronous>, transform_indices = @transform_1, window_bounds = array<i64: 32, 8>}, {pipeline_mode = #tpu.pipeline_mode<synchronous>, transform_indices = @transform_2, window_bounds = array<i64: 1, 8>}, {transform_indices = @transform_3, window_bounds = array<i64: 2048, 8>}]} {
    %c0 = arith.constant 0 : index
    %c0_0 = arith.constant 0 : index
    %0 = vector.load %arg1[%c0, %c0_0] : memref<2048x32xbf16, #tpu.memory_space<vmem>>, vector<2048x32xbf16>
    %c0_1 = arith.constant 0 : index
    %c0_2 = arith.constant 0 : index
    %1 = vector.load %arg2[%c0_1, %c0_2] : memref<32x8xbf16, #tpu.memory_space<vmem>>, vector<32x8xbf16>
    %cst = arith.constant dense<0.000000e+00> : vector<2048x8xf32>
    %2 = tpu.matmul %0, %1, %cst {dimension_numbers = #tpu.dot_dimension_numbers<[1], [0], [0], [1], [0, 0, 1, 1], [], []>} : vector<2048x32xbf16>, vector<32x8xbf16>, vector<2048x8xf32> -> vector<2048x8xf32>
    %c0_3 = arith.constant 0 : index
    %c0_4 = arith.constant 0 : index
    %3 = vector.load %arg3[%c0_3, %c0_4] : memref<1x8xf32, #tpu.memory_space<vmem>>, vector<1x8xf32>
    %4 = vector.broadcast %3 : vector<1x8xf32> to vector<2048x8xf32>
    %5 = arith.addf %2, %4 : vector<2048x8xf32>
    %cst_5 = arith.constant 0.000000e+00 : f32
    %6 = vector.broadcast %cst_5 : f32 to vector<2048x8xf32>
    %7 = arith.maximumf %5, %6 : vector<2048x8xf32>
    %c0_6 = arith.constant 0 : index
    %c0_7 = arith.constant 0 : index
    %8 = vector.load %arg4[%c0_6, %c0_7] : memref<2048x8xf32, #tpu.memory_space<vmem>>, vector<2048x8xf32>
    tpu.vector_store %arg4[%c0_6, %c0_7], %7 {strides = array<i32>} : memref<2048x8xf32, #tpu.memory_space<vmem>>, vector<2048x8xf32>,
    return
  }
  func.func @transform_0(%arg0: i32) -> (i32, i32) {
    %c0_i32 = arith.constant 0 : i32
    %c0_i32_0 = arith.constant 0 : i32
    return %arg0, %c0_i32 : i32, i32
  }
  func.func @transform_1(%arg0: i32) -> (i32, i32) {
    %c0_i32 = arith.constant 0 : i32
    %c0_i32_0 = arith.constant 0 : i32
    %c0_i32_1 = arith.constant 0 : i32
    return %c0_i32, %c0_i32_0 : i32, i32
  }
  func.func @transform_2(%arg0: i32) -> (i32, i32) {
    %c0_i32 = arith.constant 0 : i32
    %c0_i32_0 = arith.constant 0 : i32
    %c0_i32_1 = arith.constant 0 : i32
    return %c0_i32, %c0_i32_0 : i32, i32
  }
  func.func @transform_3(%arg0: i32) -> (i32, i32) {
    %c0_i32 = arith.constant 0 : i32
    %c0_i32_0 = arith.constant 0 : i32
    return %arg0, %c0_i32 : i32, i32
  }
}

module attributes {stable_mosaic.version = 11 : i64} {
  func.func @_conv_gemm_kernel(%arg0: i32, %arg1: memref<2048x72xbf16, #tpu.memory_space<vmem>>, %arg2: memref<72x16xbf16, #tpu.memory_space<vmem>>, %arg3: memref<1x16xf32, #tpu.memory_space<vmem>>, %arg4: memref<2048x16xf32, #tpu.memory_space<vmem>>) attributes {dimension_semantics = [#tpu.dimension_semantics<parallel>], iteration_bounds = array<i64: 3>, scalar_prefetch = 0 : i64, scratch_operands = 0 : i64, tpu.core_type = #tpu.core_type<tc>, window_params = [{transform_indices = @transform_0, window_bounds = array<i64: 2048, 72>}, {pipeline_mode = #tpu.pipeline_mode<synchronous>, transform_indices = @transform_1, window_bounds = array<i64: 72, 16>}, {pipeline_mode = #tpu.pipeline_mode<synchronous>, transform_indices = @transform_2, window_bounds = array<i64: 1, 16>}, {transform_indices = @transform_3, window_bounds = array<i64: 2048, 16>}]} {
    %c0 = arith.constant 0 : index
    %c0_0 = arith.constant 0 : index
    %0 = vector.load %arg1[%c0, %c0_0] : memref<2048x72xbf16, #tpu.memory_space<vmem>>, vector<2048x72xbf16>
    %c0_1 = arith.constant 0 : index
    %c0_2 = arith.constant 0 : index
    %1 = vector.load %arg2[%c0_1, %c0_2] : memref<72x16xbf16, #tpu.memory_space<vmem>>, vector<72x16xbf16>
    %cst = arith.constant dense<0.000000e+00> : vector<2048x16xf32>
    %2 = tpu.matmul %0, %1, %cst {dimension_numbers = #tpu.dot_dimension_numbers<[1], [0], [0], [1], [0, 0, 1, 1], [], []>} : vector<2048x72xbf16>, vector<72x16xbf16>, vector<2048x16xf32> -> vector<2048x16xf32>
    %c0_3 = arith.constant 0 : index
    %c0_4 = arith.constant 0 : index
    %3 = vector.load %arg3[%c0_3, %c0_4] : memref<1x16xf32, #tpu.memory_space<vmem>>, vector<1x16xf32>
    %4 = vector.broadcast %3 : vector<1x16xf32> to vector<2048x16xf32>
    %5 = arith.addf %2, %4 : vector<2048x16xf32>
    %c0_5 = arith.constant 0 : index
    %c0_6 = arith.constant 0 : index
    %6 = vector.load %arg4[%c0_5, %c0_6] : memref<2048x16xf32, #tpu.memory_space<vmem>>, vector<2048x16xf32>
    tpu.vector_store %arg4[%c0_5, %c0_6], %5 {strides = array<i32>} : memref<2048x16xf32, #tpu.memory_space<vmem>>, vector<2048x16xf32>,
    return
  }
  func.func @transform_0(%arg0: i32) -> (i32, i32) {
    %c0_i32 = arith.constant 0 : i32
    %c0_i32_0 = arith.constant 0 : i32
    return %arg0, %c0_i32 : i32, i32
  }
  func.func @transform_1(%arg0: i32) -> (i32, i32) {
    %c0_i32 = arith.constant 0 : i32
    %c0_i32_0 = arith.constant 0 : i32
    %c0_i32_1 = arith.constant 0 : i32
    return %c0_i32, %c0_i32_0 : i32, i32
  }
  func.func @transform_2(%arg0: i32) -> (i32, i32) {
    %c0_i32 = arith.constant 0 : i32
    %c0_i32_0 = arith.constant 0 : i32
    %c0_i32_1 = arith.constant 0 : i32
    return %c0_i32, %c0_i32_0 : i32, i32
  }
  func.func @transform_3(%arg0: i32) -> (i32, i32) {
    %c0_i32 = arith.constant 0 : i32
    %c0_i32_0 = arith.constant 0 : i32
    return %arg0, %c0_i32 : i32, i32
  }
}

module attributes {stable_mosaic.version = 11 : i64} {
  func.func @_bn_act_conv_gemm_kernel(%arg0: i32, %arg1: memref<1144x144xbf16, #tpu.memory_space<vmem>>, %arg2: memref<1x144xf32, #tpu.memory_space<vmem>>, %arg3: memref<1x144xf32, #tpu.memory_space<vmem>>, %arg4: memref<144x32xbf16, #tpu.memory_space<vmem>>, %arg5: memref<1x32xf32, #tpu.memory_space<vmem>>, %arg6: memref<1144x32xf32, #tpu.memory_space<vmem>>) attributes {dimension_semantics = [#tpu.dimension_semantics<parallel>], iteration_bounds = array<i64: 1>, scalar_prefetch = 0 : i64, scratch_operands = 0 : i64, tpu.core_type = #tpu.core_type<tc>, window_params = [{transform_indices = @transform_0, window_bounds = array<i64: 1144, 144>}, {pipeline_mode = #tpu.pipeline_mode<synchronous>, transform_indices = @transform_1, window_bounds = array<i64: 1, 144>}, {pipeline_mode = #tpu.pipeline_mode<synchronous>, transform_indices = @transform_2, window_bounds = array<i64: 1, 144>}, {pipeline_mode = #tpu.pipeline_mode<synchronous>, transform_indices = @transform_3, window_bounds = array<i64: 144, 32>}, {pipeline_mode = #tpu.pipeline_mode<synchronous>, transform_indices = @transform_4, window_bounds = array<i64: 1, 32>}, {transform_indices = @transform_5, window_bounds = array<i64: 1144, 32>}]} {
    %c0 = arith.constant 0 : index
    %c0_0 = arith.constant 0 : index
    %0 = vector.load %arg1[%c0, %c0_0] : memref<1144x144xbf16, #tpu.memory_space<vmem>>, vector<1144x144xbf16>
    %c0_1 = arith.constant 0 : index
    %c0_2 = arith.constant 0 : index
    %1 = vector.load %arg2[%c0_1, %c0_2] : memref<1x144xf32, #tpu.memory_space<vmem>>, vector<1x144xf32>
    %2 = arith.extf %0 : vector<1144x144xbf16> to vector<1144x144xf32>
    %3 = vector.broadcast %1 : vector<1x144xf32> to vector<1144x144xf32>
    %4 = arith.mulf %2, %3 : vector<1144x144xf32>
    %c0_3 = arith.constant 0 : index
    %c0_4 = arith.constant 0 : index
    %5 = vector.load %arg3[%c0_3, %c0_4] : memref<1x144xf32, #tpu.memory_space<vmem>>, vector<1x144xf32>
    %6 = vector.broadcast %5 : vector<1x144xf32> to vector<1144x144xf32>
    %7 = arith.addf %4, %6 : vector<1144x144xf32>
    %cst = arith.constant 0.000000e+00 : f32
    %8 = vector.broadcast %cst : f32 to vector<1144x144xf32>
    %9 = arith.maximumf %7, %8 : vector<1144x144xf32>
    %10 = arith.truncf %9 : vector<1144x144xf32> to vector<1144x144xbf16>
    %c0_5 = arith.constant 0 : index
    %c0_6 = arith.constant 0 : index
    %11 = vector.load %arg4[%c0_5, %c0_6] : memref<144x32xbf16, #tpu.memory_space<vmem>>, vector<144x32xbf16>
    %cst_7 = arith.constant dense<0.000000e+00> : vector<1144x32xf32>
    %12 = tpu.matmul %10, %11, %cst_7 {dimension_numbers = #tpu.dot_dimension_numbers<[1], [0], [0], [1], [0, 0, 1, 1], [], []>} : vector<1144x144xbf16>, vector<144x32xbf16>, vector<1144x32xf32> -> vector<1144x32xf32>
    %c0_8 = arith.constant 0 : index
    %c0_9 = arith.constant 0 : index
    %13 = vector.load %arg5[%c0_8, %c0_9] : memref<1x32xf32, #tpu.memory_space<vmem>>, vector<1x32xf32>
    %14 = vector.broadcast %13 : vector<1x32xf32> to vector<1144x32xf32>
    %15 = arith.addf %12, %14 : vector<1144x32xf32>
    %cst_10 = arith.constant 0.000000e+00 : f32
    %16 = vector.broadcast %cst_10 : f32 to vector<1144x32xf32>
    %17 = arith.maximumf %15, %16 : vector<1144x32xf32>
    %c0_11 = arith.constant 0 : index
    %c0_12 = arith.constant 0 : index
    %18 = vector.load %arg6[%c0_11, %c0_12] : memref<1144x32xf32, #tpu.memory_space<vmem>>, vector<1144x32xf32>
    tpu.vector_store %arg6[%c0_11, %c0_12], %17 {strides = array<i32>} : memref<1144x32xf32, #tpu.memory_space<vmem>>, vector<1144x32xf32>,
    return
  }
  func.func @transform_0(%arg0: i32) -> (i32, i32) {
    %c0_i32 = arith.constant 0 : i32
    %c0_i32_0 = arith.constant 0 : i32
    return %arg0, %c0_i32 : i32, i32
  }
  func.func @transform_1(%arg0: i32) -> (i32, i32) {
    %c0_i32 = arith.constant 0 : i32
    %c0_i32_0 = arith.constant 0 : i32
    %c0_i32_1 = arith.constant 0 : i32
    return %c0_i32, %c0_i32_0 : i32, i32
  }
  func.func @transform_2(%arg0: i32) -> (i32, i32) {
    %c0_i32 = arith.constant 0 : i32
    %c0_i32_0 = arith.constant 0 : i32
    %c0_i32_1 = arith.constant 0 : i32
    return %c0_i32, %c0_i32_0 : i32, i32
  }
  func.func @transform_3(%arg0: i32) -> (i32, i32) {
    %c0_i32 = arith.constant 0 : i32
    %c0_i32_0 = arith.constant 0 : i32
    %c0_i32_1 = arith.constant 0 : i32
    return %c0_i32, %c0_i32_0 : i32, i32
  }
  func.func @transform_4(%arg0: i32) -> (i32, i32) {
    %c0_i32 = arith.constant 0 : i32
    %c0_i32_0 = arith.constant 0 : i32
    %c0_i32_1 = arith.constant 0 : i32
    return %c0_i32, %c0_i32_0 : i32, i32
  }
  func.func @transform_5(%arg0: i32) -> (i32, i32) {
    %c0_i32 = arith.constant 0 : i32
    %c0_i32_0 = arith.constant 0 : i32
    return %arg0, %c0_i32 : i32, i32
  }
}

module attributes {stable_mosaic.version = 11 : i64} {
  func.func @_conv_gemm_kernel(%arg0: i32, %arg1: memref<256x288xbf16, #tpu.memory_space<vmem>>, %arg2: memref<288x32xbf16, #tpu.memory_space<vmem>>, %arg3: memref<1x32xf32, #tpu.memory_space<vmem>>, %arg4: memref<256x32xf32, #tpu.memory_space<vmem>>) attributes {dimension_semantics = [#tpu.dimension_semantics<parallel>], iteration_bounds = array<i64: 1>, scalar_prefetch = 0 : i64, scratch_operands = 0 : i64, tpu.core_type = #tpu.core_type<tc>, window_params = [{transform_indices = @transform_0, window_bounds = array<i64: 256, 288>}, {pipeline_mode = #tpu.pipeline_mode<synchronous>, transform_indices = @transform_1, window_bounds = array<i64: 288, 32>}, {pipeline_mode = #tpu.pipeline_mode<synchronous>, transform_indices = @transform_2, window_bounds = array<i64: 1, 32>}, {transform_indices = @transform_3, window_bounds = array<i64: 256, 32>}]} {
    %c0 = arith.constant 0 : index
    %c0_0 = arith.constant 0 : index
    %0 = vector.load %arg1[%c0, %c0_0] : memref<256x288xbf16, #tpu.memory_space<vmem>>, vector<256x288xbf16>
    %c0_1 = arith.constant 0 : index
    %c0_2 = arith.constant 0 : index
    %1 = vector.load %arg2[%c0_1, %c0_2] : memref<288x32xbf16, #tpu.memory_space<vmem>>, vector<288x32xbf16>
    %cst = arith.constant dense<0.000000e+00> : vector<256x32xf32>
    %2 = tpu.matmul %0, %1, %cst {dimension_numbers = #tpu.dot_dimension_numbers<[1], [0], [0], [1], [0, 0, 1, 1], [], []>} : vector<256x288xbf16>, vector<288x32xbf16>, vector<256x32xf32> -> vector<256x32xf32>
    %c0_3 = arith.constant 0 : index
    %c0_4 = arith.constant 0 : index
    %3 = vector.load %arg3[%c0_3, %c0_4] : memref<1x32xf32, #tpu.memory_space<vmem>>, vector<1x32xf32>
    %4 = vector.broadcast %3 : vector<1x32xf32> to vector<256x32xf32>
    %5 = arith.addf %2, %4 : vector<256x32xf32>
    %c0_5 = arith.constant 0 : index
    %c0_6 = arith.constant 0 : index
    %6 = vector.load %arg4[%c0_5, %c0_6] : memref<256x32xf32, #tpu.memory_space<vmem>>, vector<256x32xf32>
    tpu.vector_store %arg4[%c0_5, %c0_6], %5 {strides = array<i32>} : memref<256x32xf32, #tpu.memory_space<vmem>>, vector<256x32xf32>,
    return
  }
  func.func @transform_0(%arg0: i32) -> (i32, i32) {
    %c0_i32 = arith.constant 0 : i32
    %c0_i32_0 = arith.constant 0 : i32
    return %arg0, %c0_i32 : i32, i32
  }
  func.func @transform_1(%arg0: i32) -> (i32, i32) {
    %c0_i32 = arith.constant 0 : i32
    %c0_i32_0 = arith.constant 0 : i32
    %c0_i32_1 = arith.constant 0 : i32
    return %c0_i32, %c0_i32_0 : i32, i32
  }
  func.func @transform_2(%arg0: i32) -> (i32, i32) {
    %c0_i32 = arith.constant 0 : i32
    %c0_i32_0 = arith.constant 0 : i32
    %c0_i32_1 = arith.constant 0 : i32
    return %c0_i32, %c0_i32_0 : i32, i32
  }
  func.func @transform_3(%arg0: i32) -> (i32, i32) {
    %c0_i32 = arith.constant 0 : i32
    %c0_i32_0 = arith.constant 0 : i32
    return %arg0, %c0_i32 : i32, i32
  }
}

module attributes {stable_mosaic.version = 11 : i64} {
  func.func @_bn_act_conv_gemm_kernel(%arg0: i32, %arg1: memref<16x800xbf16, #tpu.memory_space<vmem>>, %arg2: memref<1x800xf32, #tpu.memory_space<vmem>>, %arg3: memref<1x800xf32, #tpu.memory_space<vmem>>, %arg4: memref<800x32xbf16, #tpu.memory_space<vmem>>, %arg5: memref<1x32xf32, #tpu.memory_space<vmem>>, %arg6: memref<16x32xf32, #tpu.memory_space<vmem>>) attributes {dimension_semantics = [#tpu.dimension_semantics<parallel>], iteration_bounds = array<i64: 1>, scalar_prefetch = 0 : i64, scratch_operands = 0 : i64, tpu.core_type = #tpu.core_type<tc>, window_params = [{transform_indices = @transform_0, window_bounds = array<i64: 16, 800>}, {pipeline_mode = #tpu.pipeline_mode<synchronous>, transform_indices = @transform_1, window_bounds = array<i64: 1, 800>}, {pipeline_mode = #tpu.pipeline_mode<synchronous>, transform_indices = @transform_2, window_bounds = array<i64: 1, 800>}, {pipeline_mode = #tpu.pipeline_mode<synchronous>, transform_indices = @transform_3, window_bounds = array<i64: 800, 32>}, {pipeline_mode = #tpu.pipeline_mode<synchronous>, transform_indices = @transform_4, window_bounds = array<i64: 1, 32>}, {transform_indices = @transform_5, window_bounds = array<i64: 16, 32>}]} {
    %c0 = arith.constant 0 : index
    %c0_0 = arith.constant 0 : index
    %0 = vector.load %arg1[%c0, %c0_0] : memref<16x800xbf16, #tpu.memory_space<vmem>>, vector<16x800xbf16>
    %c0_1 = arith.constant 0 : index
    %c0_2 = arith.constant 0 : index
    %1 = vector.load %arg2[%c0_1, %c0_2] : memref<1x800xf32, #tpu.memory_space<vmem>>, vector<1x800xf32>
    %2 = arith.extf %0 : vector<16x800xbf16> to vector<16x800xf32>
    %3 = vector.broadcast %1 : vector<1x800xf32> to vector<16x800xf32>
    %4 = arith.mulf %2, %3 : vector<16x800xf32>
    %c0_3 = arith.constant 0 : index
    %c0_4 = arith.constant 0 : index
    %5 = vector.load %arg3[%c0_3, %c0_4] : memref<1x800xf32, #tpu.memory_space<vmem>>, vector<1x800xf32>
    %6 = vector.broadcast %5 : vector<1x800xf32> to vector<16x800xf32>
    %7 = arith.addf %4, %6 : vector<16x800xf32>
    %cst = arith.constant 0.000000e+00 : f32
    %8 = vector.broadcast %cst : f32 to vector<16x800xf32>
    %9 = arith.maximumf %7, %8 : vector<16x800xf32>
    %10 = arith.truncf %9 : vector<16x800xf32> to vector<16x800xbf16>
    %c0_5 = arith.constant 0 : index
    %c0_6 = arith.constant 0 : index
    %11 = vector.load %arg4[%c0_5, %c0_6] : memref<800x32xbf16, #tpu.memory_space<vmem>>, vector<800x32xbf16>
    %cst_7 = arith.constant dense<0.000000e+00> : vector<16x32xf32>
    %12 = tpu.matmul %10, %11, %cst_7 {dimension_numbers = #tpu.dot_dimension_numbers<[1], [0], [0], [1], [0, 0, 1, 1], [], []>} : vector<16x800xbf16>, vector<800x32xbf16>, vector<16x32xf32> -> vector<16x32xf32>
    %c0_8 = arith.constant 0 : index
    %c0_9 = arith.constant 0 : index
    %13 = vector.load %arg5[%c0_8, %c0_9] : memref<1x32xf32, #tpu.memory_space<vmem>>, vector<1x32xf32>
    %14 = vector.broadcast %13 : vector<1x32xf32> to vector<16x32xf32>
    %15 = arith.addf %12, %14 : vector<16x32xf32>
    %cst_10 = arith.constant 0.000000e+00 : f32
    %16 = vector.broadcast %cst_10 : f32 to vector<16x32xf32>
    %17 = arith.maximumf %15, %16 : vector<16x32xf32>
    %c0_11 = arith.constant 0 : index
    %c0_12 = arith.constant 0 : index
    %18 = vector.load %arg6[%c0_11, %c0_12] : memref<16x32xf32, #tpu.memory_space<vmem>>, vector<16x32xf32>
    tpu.vector_store %arg6[%c0_11, %c0_12], %17 {strides = array<i32>} : memref<16x32xf32, #tpu.memory_space<vmem>>, vector<16x32xf32>,
    return
  }
  func.func @transform_0(%arg0: i32) -> (i32, i32) {
    %c0_i32 = arith.constant 0 : i32
    %c0_i32_0 = arith.constant 0 : i32
    return %arg0, %c0_i32 : i32, i32
  }
  func.func @transform_1(%arg0: i32) -> (i32, i32) {
    %c0_i32 = arith.constant 0 : i32
    %c0_i32_0 = arith.constant 0 : i32
    %c0_i32_1 = arith.constant 0 : i32
    return %c0_i32, %c0_i32_0 : i32, i32
  }
  func.func @transform_2(%arg0: i32) -> (i32, i32) {
    %c0_i32 = arith.constant 0 : i32
    %c0_i32_0 = arith.constant 0 : i32
    %c0_i32_1 = arith.constant 0 : i32
    return %c0_i32, %c0_i32_0 : i32, i32
  }
  func.func @transform_3(%arg0: i32) -> (i32, i32) {
    %c0_i32 = arith.constant 0 : i32
    %c0_i32_0 = arith.constant 0 : i32
    %c0_i32_1 = arith.constant 0 : i32
    return %c0_i32, %c0_i32_0 : i32, i32
  }
  func.func @transform_4(%arg0: i32) -> (i32, i32) {
    %c0_i32 = arith.constant 0 : i32
    %c0_i32_0 = arith.constant 0 : i32
    %c0_i32_1 = arith.constant 0 : i32
    return %c0_i32, %c0_i32_0 : i32, i32
  }
  func.func @transform_5(%arg0: i32) -> (i32, i32) {
    %c0_i32 = arith.constant 0 : i32
    %c0_i32_0 = arith.constant 0 : i32
    return %arg0, %c0_i32 : i32, i32
  }
}

module attributes {stable_mosaic.version = 11 : i64} {
  func.func @_head_kernel(%arg0: i32, %arg1: memref<8x256xbf16, #tpu.memory_space<vmem>>, %arg2: memref<256x32xbf16, #tpu.memory_space<vmem>>, %arg3: memref<1x32xf32, #tpu.memory_space<vmem>>, %arg4: memref<1x32xf32, #tpu.memory_space<vmem>>, %arg5: memref<8x1xf32, #tpu.memory_space<vmem>>) attributes {dimension_semantics = [#tpu.dimension_semantics<arbitrary>], iteration_bounds = array<i64: 1>, scalar_prefetch = 0 : i64, scratch_operands = 0 : i64, tpu.core_type = #tpu.core_type<tc>, window_params = [{pipeline_mode = #tpu.pipeline_mode<synchronous>, transform_indices = @transform_0, window_bounds = array<i64: 8, 256>}, {pipeline_mode = #tpu.pipeline_mode<synchronous>, transform_indices = @transform_1, window_bounds = array<i64: 256, 32>}, {pipeline_mode = #tpu.pipeline_mode<synchronous>, transform_indices = @transform_2, window_bounds = array<i64: 1, 32>}, {pipeline_mode = #tpu.pipeline_mode<synchronous>, transform_indices = @transform_3, window_bounds = array<i64: 1, 32>}, {pipeline_mode = #tpu.pipeline_mode<synchronous>, transform_indices = @transform_4, window_bounds = array<i64: 8, 1>}]} {
    %c0 = arith.constant 0 : index
    %c0_0 = arith.constant 0 : index
    %0 = vector.load %arg1[%c0, %c0_0] : memref<8x256xbf16, #tpu.memory_space<vmem>>, vector<8x256xbf16>
    %c0_1 = arith.constant 0 : index
    %c0_2 = arith.constant 0 : index
    %1 = vector.load %arg2[%c0_1, %c0_2] : memref<256x32xbf16, #tpu.memory_space<vmem>>, vector<256x32xbf16>
    %cst = arith.constant dense<0.000000e+00> : vector<8x32xf32>
    %2 = tpu.matmul %0, %1, %cst {dimension_numbers = #tpu.dot_dimension_numbers<[1], [0], [0], [1], [0, 0, 1, 1], [], []>} : vector<8x256xbf16>, vector<256x32xbf16>, vector<8x32xf32> -> vector<8x32xf32>
    %c0_3 = arith.constant 0 : index
    %c0_4 = arith.constant 0 : index
    %3 = vector.load %arg3[%c0_3, %c0_4] : memref<1x32xf32, #tpu.memory_space<vmem>>, vector<1x32xf32>
    %4 = vector.broadcast %3 : vector<1x32xf32> to vector<8x32xf32>
    %5 = arith.addf %2, %4 : vector<8x32xf32>
    %cst_5 = arith.constant 0.000000e+00 : f32
    %6 = vector.broadcast %cst_5 : f32 to vector<8x32xf32>
    %7 = arith.maximumf %5, %6 : vector<8x32xf32>
    %c0_6 = arith.constant 0 : index
    %c0_7 = arith.constant 0 : index
    %8 = vector.load %arg4[%c0_6, %c0_7] : memref<1x32xf32, #tpu.memory_space<vmem>>, vector<1x32xf32>
    %9 = vector.broadcast %8 : vector<1x32xf32> to vector<8x32xf32>
    %10 = arith.mulf %7, %9 : vector<8x32xf32>
    %cst_8 = arith.constant dense<0.000000e+00> : vector<8xf32>
    %11 = vector.multi_reduction <add>, %10, %cst_8 [1] : vector<8x32xf32> to vector<8xf32>
    %12 = vector.shape_cast %11 : vector<8xf32> to vector<8x1xf32>
    %c0_9 = arith.constant 0 : index
    %c0_10 = arith.constant 0 : index
    %13 = vector.load %arg5[%c0_9, %c0_10] : memref<8x1xf32, #tpu.memory_space<vmem>>, vector<8x1xf32>
    tpu.vector_store %arg5[%c0_9, %c0_10], %12 {strides = array<i32>} : memref<8x1xf32, #tpu.memory_space<vmem>>, vector<8x1xf32>,
    return
  }
  func.func @transform_0(%arg0: i32) -> (i32, i32) {
    %c0_i32 = arith.constant 0 : i32
    %c0_i32_0 = arith.constant 0 : i32
    %c0_i32_1 = arith.constant 0 : i32
    return %c0_i32, %c0_i32_0 : i32, i32
  }
  func.func @transform_1(%arg0: i32) -> (i32, i32) {
    %c0_i32 = arith.constant 0 : i32
    %c0_i32_0 = arith.constant 0 : i32
    %c0_i32_1 = arith.constant 0 : i32
    return %c0_i32, %c0_i32_0 : i32, i32
  }
  func.func @transform_2(%arg0: i32) -> (i32, i32) {
    %c0_i32 = arith.constant 0 : i32
    %c0_i32_0 = arith.constant 0 : i32
    %c0_i32_1 = arith.constant 0 : i32
    return %c0_i32, %c0_i32_0 : i32, i32
  }
  func.func @transform_3(%arg0: i32) -> (i32, i32) {
    %c0_i32 = arith.constant 0 : i32
    %c0_i32_0 = arith.constant 0 : i32
    %c0_i32_1 = arith.constant 0 : i32
    return %c0_i32, %c0_i32_0 : i32, i32
  }
  func.func @transform_4(%arg0: i32) -> (i32, i32) {
    %c0_i32 = arith.constant 0 : i32
    %c0_i32_0 = arith.constant 0 : i32
    %c0_i32_1 = arith.constant 0 : i32
    return %c0_i32, %c0_i32_0 : i32, i32
  }
}

</mosaic_0001>

<llo_original>
// kernel: assault_value_forward.6
$region0: #{assault_value_forward.6}
  #allocation0 [shape = 'u32[]', space=smem, size = 0x4, offset = 0x4, fixed_abs, tag = 'smem constant byte address 0x4 - core index']
  #allocation1 [shape = 'u32[72,128]{1,0:T(1,128)}', space=vmem, size = 0x9000, scoped, tag = 'internal scratch']
  %s0 = inlined_call_operand.vmem [shape: bf16[20480,32], index: 0, kind: input, shape index: {}]
  %s1 = inlined_call_operand.vmem [shape: bf16[32,8], index: 1, kind: input, shape index: {}]
  %s2 = inlined_call_operand.vmem [shape: f32[1,8], index: 2, kind: input, shape index: {}]
  %s3 = inlined_call_operand.vmem [shape: f32[20480,8], index: 3, kind: output, shape index: {}]
  %s4 = sld [smem:[#allocation0]]
  $region45: #{assault_value_forward.6} parent=0
    _
  %s6 = ssub.s32 1, %s4
  %s7 = scalar_select 0, %s6, %s4
  loop: start=0, step=1, limit=12
  $region2: #{assault_value_forward.6} parent=0 // loop_pre_header
    _
  $region3: #{assault_value_forward.6} parent=0 // loop_header
    %s9 = sphi 0, %s13
    %p10 = scmp.ge.s32.totalorder %s9, 12
    %s19 = sphi 0, %s21
    %s22 = sphi 0, %s19
    %s23 = sphi 0, %s22
    %s39 = sphi 0, %s23
    %s43 = sphi 0, %s43
    %s45 = sphi 0, %s43
    %s46 = sphi 0, %s45
    %s60 = sphi 0, %s46
    %s64 = sphi 0, %s64
    %s66 = sphi 0, %s64
    %s67 = sphi 0, %s66
    %s81 = sphi 0, %s67
    %s87 = sphi 0, %s89
    %s90 = sphi 0, %s87
    %s91 = sphi 0, %s90
    %s107 = sphi 0, %s91
  $region4: #{assault_value_forward.6} parent=0 // loop_header_branch
    %12 = sbr.rel (%p10) target = $region8
  $region5: #{assault_value_forward.6} parent=0 // loop_body
    %s14 = ssub.s32 %s9, 1
    %s15 = ssub.s32 %s9, 2
    %s16 = sadd.s32 %s9, 1
    %s17 = ssub.s32 %s9, %s16
    %p18 = scmp.eq.s32.totalorder %s17, 0
    %s20 = sadd.s32 %s19, 1
    %s21 = scalar_select %p18, %s19, %s20
    %p24 = pneg %p18
    %p25 = scmp.eq.s32.totalorder %s9, 9
    %p26 = por %p24, %p25
    %p27 = scmp.ne.s32.totalorder %s19, %s22
    %p28 = scmp.eq.s32.totalorder %s9, 0
    %p29 = por %p27, %p28
    %p30 = scmp.ne.s32.totalorder %s19, %s22
    %p31 = scmp.eq.s32.totalorder %s14, 9
    %p32 = por %p30, %p31
    %p33 = scmp.ne.s32.totalorder %s22, %s23
    %p34 = scmp.eq.s32.totalorder %s14, 0
    %p35 = por %p33, %p34
    %p36 = scmp.ne.s32.totalorder %s22, %s23
    %p37 = scmp.eq.s32.totalorder %s15, 9
    %p38 = por %p36, %p37
    %p40 = scmp.ne.s32.totalorder %s23, %s39
    %p41 = scmp.eq.s32.totalorder %s15, 0
    %p42 = por %p40, %p41
    %s44 = sadd.s32 %s43, 1
    %p47 = scmp.eq.s32.totalorder %s9, 9
    %p48 = scmp.ne.s32.totalorder %s43, %s45
    %p49 = scmp.eq.s32.totalorder %s9, 0
    %p50 = por %p48, %p49
    %p51 = scmp.ne.s32.totalorder %s43, %s45
    %p52 = scmp.eq.s32.totalorder %s14, 9
    %p53 = por %p51, %p52
    %p54 = scmp.ne.s32.totalorder %s45, %s46
    %p55 = scmp.eq.s32.totalorder %s14, 0
    %p56 = por %p54, %p55
    %p57 = scmp.ne.s32.totalorder %s45, %s46
    %p58 = scmp.eq.s32.totalorder %s15, 9
    %p59 = por %p57, %p58
    %p61 = scmp.ne.s32.totalorder %s46, %s60
    %p62 = scmp.eq.s32.totalorder %s15, 0
    %p63 = por %p61, %p62
    %s65 = sadd.s32 %s64, 1
    %p68 = scmp.eq.s32.totalorder %s9, 9
    %p69 = scmp.ne.s32.totalorder %s64, %s66
    %p70 = scmp.eq.s32.totalorder %s9, 0
    %p71 = por %p69, %p70
    %p72 = scmp.ne.s32.totalorder %s64, %s66
    %p73 = scmp.eq.s32.totalorder %s14, 9
    %p74 = por %p72, %p73
    %p75 = scmp.ne.s32.totalorder %s66, %s67
    %p76 = scmp.eq.s32.totalorder %s14, 0
    %p77 = por %p75, %p76
    %p78 = scmp.ne.s32.totalorder %s66, %s67
    %p79 = scmp.eq.s32.totalorder %s15, 9
    %p80 = por %p78, %p79
    %p82 = scmp.ne.s32.totalorder %s67, %s81
    %p83 = scmp.eq.s32.totalorder %s15, 0
    %p84 = por %p82, %p83
    %s85 = ssub.s32 %s9, %s16
    %p86 = scmp.eq.s32.totalorder %s85, 0
    %s88 = sadd.s32 %s87, 1
    %s89 = scalar_select %p86, %s87, %s88
    %p92 = pneg %p86
    %p93 = scmp.eq.s32.totalorder %s9, 9
    %p94 = por %p92, %p93
    %p95 = scmp.ne.s32.totalorder %s87, %s90
    %p96 = scmp.eq.s32.totalorder %s9, 0
    %p97 = por %p95, %p96
    %p98 = scmp.ne.s32.totalorder %s87, %s90
    %p99 = scmp.eq.s32.totalorder %s14, 9
    %p100 = por %p98, %p99
    %p101 = scmp.ne.s32.totalorder %s90, %s91
    %p102 = scmp.eq.s32.totalorder %s14, 0
    %p103 = por %p101, %p102
    %p104 = scmp.ne.s32.totalorder %s90, %s91
    %p105 = scmp.eq.s32.totalorder %s15, 9
    %p106 = por %p104, %p105
    %p108 = scmp.ne.s32.totalorder %s91, %s107
    %p109 = scmp.eq.s32.totalorder %s15, 0
    %p110 = por %p108, %p109
    %p111 = scmp.le.s32.totalorder 1, %s9
    %p112 = scmp.lt.s32.totalorder %s9, 11
    %p113 = pnand %p111, %p112
    %p114 = pneg %p113
    // Predicated region
    $region9: #{assault_value_forward.6} parent=5 // pred_check
      _
    $region10: #{assault_value_forward.6} parent=5 // pred_check_branch
      %116 = sbr.rel (%p113) target = $region12
    $region11: #{assault_value_forward.6} parent=5 // pred_region
      %s117 = ssub.s32 %s9, 1
      // Predicated region
      $region13: #{assault_value_forward.6} parent=11 // pred_check
        %p118 = pneg %p56
      $region14: #{assault_value_forward.6} parent=11 // pred_check_branch
        %120 = sbr.rel (%p118) target = $region16
      $region15: #{assault_value_forward.6} parent=11 // pred_region
        _
      $region16: #{assault_value_forward.6} parent=11 // pred_fallthru
        _
      // Predicated region
      $region17: #{assault_value_forward.6} parent=11 // pred_check
        %p121 = pneg %p77
      $region18: #{assault_value_forward.6} parent=11 // pred_check_branch
        %123 = sbr.rel (%p121) target = $region20
      $region19: #{assault_value_forward.6} parent=11 // pred_region
        _
      $region20: #{assault_value_forward.6} parent=11 // pred_fallthru
        _
    $region12: #{assault_value_forward.6} parent=5 // pred_fallthru
      _
    %p124 = scmp.lt.s32.totalorder %s9, 10
    // Predicated region
    $region21: #{assault_value_forward.6} parent=5 // pred_check
      %p125 = pneg %p124
    $region22: #{assault_value_forward.6} parent=5 // pred_check_branch
      %127 = sbr.rel (%p125) target = $region24
    $region23: #{assault_value_forward.6} parent=5 // pred_region
      // Predicated region
      $region25: #{assault_value_forward.6} parent=23 // pred_check
        %p128 = pneg %p29
      $region26: #{assault_value_forward.6} parent=23 // pred_check_branch
        %130 = sbr.rel (%p128) target = $region28
      $region27: #{assault_value_forward.6} parent=23 // pred_region
        %s131 = smul.u32 256, %s9
        %p132 = scmp.lt.s32.totalorder %s131, 2559
        %s133 = scalar_select %p132, %s131, 2559
        %s134 = smul.addr %s133, 4
        %s135 = scalar_lea.vmem %s0, %s134
        %s136 = smul.u32 256, %s9
      $region28: #{assault_value_forward.6} parent=23 // pred_fallthru
        _
    $region24: #{assault_value_forward.6} parent=5 // pred_fallthru
      _
    %p137 = scmp.le.s32.totalorder 1, %s9
    %p138 = scmp.lt.s32.totalorder %s9, 11
    %p139 = pnand %p137, %p138
    %p140 = pneg %p139
    // Predicated region
    $region29: #{assault_value_forward.6} parent=5 // pred_check
      _
    $region30: #{assault_value_forward.6} parent=5 // pred_check_branch
      %142 = sbr.rel (%p139) target = $region32
    $region31: #{assault_value_forward.6} parent=5 // pred_region
      %s143 = ssub.s32 %s9, 1
      %s144 = smul.u32 256, %s14
      %p145 = scmp.lt.s32.totalorder %s144, 2559
      %s146 = scalar_select %p145, %s144, 2559
      %s147 = smul.addr %s146, 4
      %s148 = scalar_lea.vmem %s0, %s147
      %p149 = pneg %p35
      %p150 = pneg %p32
      %p151 = pneg %p56
      %p152 = pneg %p53
      %p153 = pneg %p77
      %p154 = pneg %p74
      %p155 = pneg %p103
      %p156 = pneg %p100
      %s157 = smul.u32 256, %s14
      %p158 = scmp.lt.s32.totalorder %s157, 2559
      %s159 = scalar_select %p158, %s157, 2559
      %s160 = smul.addr %s159, 8
      %s161 = scalar_lea.vmem %s3, %s160
      %s162 = smul.u32 256, %s14
      %p163 = scmp.lt.s32.totalorder %s162, 2559
      %s164 = scalar_select %p163, %s162, 2559
      %s165 = smul.addr %s164, 4
      %s166 = scalar_lea.vmem %s0, %s165
      %s167 = smul.u32 256, %s14
      %s168 = smul.u32 256, %s14
      %p169 = scmp.lt.s32.totalorder %s168, 2559
      %s170 = scalar_select %p169, %s168, 2559
      %s171 = smul.addr %s170, 8
      %s172 = scalar_lea.vmem %s3, %s171
      %s173 = smul.u32 256, %s14
      %v175 = vld [vmem:[%s166] sm:$0xf]
      %v176 = vld [vmem:[%s166 + $0x4] sm:$0xf]
      %v177 = vld [vmem:[%s166 + $0x8] sm:$0xf]
      %v178 = vld [vmem:[%s166 + $0xc] sm:$0xf]
      %v179 = vld [vmem:[%s166 + $0x10] sm:$0xf]
      %v180 = vld [vmem:[%s166 + $0x14] sm:$0xf]
      %v181 = vld [vmem:[%s166 + $0x18] sm:$0xf]
      %v182 = vld [vmem:[%s166 + $0x1c] sm:$0xf]
      %v183 = vld [vmem:[%s166 + $0x20] sm:$0xf]
      %v184 = vld [vmem:[%s166 + $0x24] sm:$0xf]
      %v185 = vld [vmem:[%s166 + $0x28] sm:$0xf]
      %v186 = vld [vmem:[%s166 + $0x2c] sm:$0xf]
      %v187 = vld [vmem:[%s166 + $0x30] sm:$0xf]
      %v188 = vld [vmem:[%s166 + $0x34] sm:$0xf]
      %v189 = vld [vmem:[%s166 + $0x38] sm:$0xf]
      %v190 = vld [vmem:[%s166 + $0x3c] sm:$0xf]
      %v191 = vld [vmem:[%s166 + $0x40] sm:$0xf]
      %v192 = vld [vmem:[%s166 + $0x44] sm:$0xf]
      %v193 = vld [vmem:[%s166 + $0x48] sm:$0xf]
      %v194 = vld [vmem:[%s166 + $0x4c] sm:$0xf]
      %v195 = vld [vmem:[%s166 + $0x50] sm:$0xf]
      %v196 = vld [vmem:[%s166 + $0x54] sm:$0xf]
      %v197 = vld [vmem:[%s166 + $0x58] sm:$0xf]
      %v198 = vld [vmem:[%s166 + $0x5c] sm:$0xf]
      %v199 = vld [vmem:[%s166 + $0x60] sm:$0xf]
      %v200 = vld [vmem:[%s166 + $0x64] sm:$0xf]
      %v201 = vld [vmem:[%s166 + $0x68] sm:$0xf]
      %v202 = vld [vmem:[%s166 + $0x6c] sm:$0xf]
      %v203 = vld [vmem:[%s166 + $0x70] sm:$0xf]
      %v204 = vld [vmem:[%s166 + $0x74] sm:$0xf]
      %v205 = vld [vmem:[%s166 + $0x78] sm:$0xf]
      %v206 = vld [vmem:[%s166 + $0x7c] sm:$0xf]
      %v207 = vld [vmem:[%s166 + $0x80] sm:$0xf]
      %v208 = vld [vmem:[%s166 + $0x84] sm:$0xf]
      %v209 = vld [vmem:[%s166 + $0x88] sm:$0xf]
      %v210 = vld [vmem:[%s166 + $0x8c] sm:$0xf]
      %v211 = vld [vmem:[%s166 + $0x90] sm:$0xf]
      %v212 = vld [vmem:[%s166 + $0x94] sm:$0xf]
      %v213 = vld [vmem:[%s166 + $0x98] sm:$0xf]
      %v214 = vld [vmem:[%s166 + $0x9c] sm:$0xf]
      %v215 = vld [vmem:[%s166 + $0xa0] sm:$0xf]
      %v216 = vld [vmem:[%s166 + $0xa4] sm:$0xf]
      %v217 = vld [vmem:[%s166 + $0xa8] sm:$0xf]
      %v218 = vld [vmem:[%s166 + $0xac] sm:$0xf]
      %v219 = vld [vmem:[%s166 + $0xb0] sm:$0xf]
      %v220 = vld [vmem:[%s166 + $0xb4] sm:$0xf]
      %v221 = vld [vmem:[%s166 + $0xb8] sm:$0xf]
      %v222 = vld [vmem:[%s166 + $0xbc] sm:$0xf]
      %v223 = vld [vmem:[%s166 + $0xc0] sm:$0xf]
      %v224 = vld [vmem:[%s166 + $0xc4] sm:$0xf]
      %v225 = vld [vmem:[%s166 + $0xc8] sm:$0xf]
      %v226 = vld [vmem:[%s166 + $0xcc] sm:$0xf]
      %v227 = vld [vmem:[%s166 + $0xd0] sm:$0xf]
      %v228 = vld [vmem:[%s166 + $0xd4] sm:$0xf]
      %v229 = vld [vmem:[%s166 + $0xd8] sm:$0xf]
      %v230 = vld [vmem:[%s166 + $0xdc] sm:$0xf]
      %v231 = vld [vmem:[%s166 + $0xe0] sm:$0xf]
      %v232 = vld [vmem:[%s166 + $0xe4] sm:$0xf]
      %v233 = vld [vmem:[%s166 + $0xe8] sm:$0xf]
      %v234 = vld [vmem:[%s166 + $0xec] sm:$0xf]
      %v235 = vld [vmem:[%s166 + $0xf0] sm:$0xf]
      %v236 = vld [vmem:[%s166 + $0xf4] sm:$0xf]
      %v237 = vld [vmem:[%s166 + $0xf8] sm:$0xf]
      %v238 = vld [vmem:[%s166 + $0xfc] sm:$0xf]
      %v239 = vld [vmem:[%s166 + $0x100] sm:$0xf]
      %v240 = vld [vmem:[%s166 + $0x104] sm:$0xf]
      %v241 = vld [vmem:[%s166 + $0x108] sm:$0xf]
      %v242 = vld [vmem:[%s166 + $0x10c] sm:$0xf]
      %v243 = vld [vmem:[%s166 + $0x110] sm:$0xf]
      %v244 = vld [vmem:[%s166 + $0x114] sm:$0xf]
      %v245 = vld [vmem:[%s166 + $0x118] sm:$0xf]
      %v246 = vld [vmem:[%s166 + $0x11c] sm:$0xf]
      %v247 = vld [vmem:[%s166 + $0x120] sm:$0xf]
      %v248 = vld [vmem:[%s166 + $0x124] sm:$0xf]
      %v249 = vld [vmem:[%s166 + $0x128] sm:$0xf]
      %v250 = vld [vmem:[%s166 + $0x12c] sm:$0xf]
      %v251 = vld [vmem:[%s166 + $0x130] sm:$0xf]
      %v252 = vld [vmem:[%s166 + $0x134] sm:$0xf]
      %v253 = vld [vmem:[%s166 + $0x138] sm:$0xf]
      %v254 = vld [vmem:[%s166 + $0x13c] sm:$0xf]
      %v255 = vld [vmem:[%s166 + $0x140] sm:$0xf]
      %v256 = vld [vmem:[%s166 + $0x144] sm:$0xf]
      %v257 = vld [vmem:[%s166 + $0x148] sm:$0xf]
      %v258 = vld [vmem:[%s166 + $0x14c] sm:$0xf]
      %v259 = vld [vmem:[%s166 + $0x150] sm:$0xf]
      %v260 = vld [vmem:[%s166 + $0x154] sm:$0xf]
      %v261 = vld [vmem:[%s166 + $0x158] sm:$0xf]
      %v262 = vld [vmem:[%s166 + $0x15c] sm:$0xf]
      %v263 = vld [vmem:[%s166 + $0x160] sm:$0xf]
      %v264 = vld [vmem:[%s166 + $0x164] sm:$0xf]
      %v265 = vld [vmem:[%s166 + $0x168] sm:$0xf]
      %v266 = vld [vmem:[%s166 + $0x16c] sm:$0xf]
      %v267 = vld [vmem:[%s166 + $0x170] sm:$0xf]
      %v268 = vld [vmem:[%s166 + $0x174] sm:$0xf]
      %v269 = vld [vmem:[%s166 + $0x178] sm:$0xf]
      %v270 = vld [vmem:[%s166 + $0x17c] sm:$0xf]
      %v271 = vld [vmem:[%s166 + $0x180] sm:$0xf]
      %v272 = vld [vmem:[%s166 + $0x184] sm:$0xf]
      %v273 = vld [vmem:[%s166 + $0x188] sm:$0xf]
      %v274 = vld [vmem:[%s166 + $0x18c] sm:$0xf]
      %v275 = vld [vmem:[%s166 + $0x190] sm:$0xf]
      %v276 = vld [vmem:[%s166 + $0x194] sm:$0xf]
      %v277 = vld [vmem:[%s166 + $0x198] sm:$0xf]
      %v278 = vld [vmem:[%s166 + $0x19c] sm:$0xf]
      %v279 = vld [vmem:[%s166 + $0x1a0] sm:$0xf]
      %v280 = vld [vmem:[%s166 + $0x1a4] sm:$0xf]
      %v281 = vld [vmem:[%s166 + $0x1a8] sm:$0xf]
      %v282 = vld [vmem:[%s166 + $0x1ac] sm:$0xf]
      %v283 = vld [vmem:[%s166 + $0x1b0] sm:$0xf]
      %v284 = vld [vmem:[%s166 + $0x1b4] sm:$0xf]
      %v285 = vld [vmem:[%s166 + $0x1b8] sm:$0xf]
      %v286 = vld [vmem:[%s166 + $0x1bc] sm:$0xf]
      %v287 = vld [vmem:[%s166 + $0x1c0] sm:$0xf]
      %v288 = vld [vmem:[%s166 + $0x1c4] sm:$0xf]
      %v289 = vld [vmem:[%s166 + $0x1c8] sm:$0xf]
      %v290 = vld [vmem:[%s166 + $0x1cc] sm:$0xf]
      %v291 = vld [vmem:[%s166 + $0x1d0] sm:$0xf]
      %v292 = vld [vmem:[%s166 + $0x1d4] sm:$0xf]
      %v293 = vld [vmem:[%s166 + $0x1d8] sm:$0xf]
      %v294 = vld [vmem:[%s166 + $0x1dc] sm:$0xf]
      %v295 = vld [vmem:[%s166 + $0x1e0] sm:$0xf]
      %v296 = vld [vmem:[%s166 + $0x1e4] sm:$0xf]
      %v297 = vld [vmem:[%s166 + $0x1e8] sm:$0xf]
      %v298 = vld [vmem:[%s166 + $0x1ec] sm:$0xf]
      %v299 = vld [vmem:[%s166 + $0x1f0] sm:$0xf]
      %v300 = vld [vmem:[%s166 + $0x1f4] sm:$0xf]
      %v301 = vld [vmem:[%s166 + $0x1f8] sm:$0xf]
      %v302 = vld [vmem:[%s166 + $0x1fc] sm:$0xf]
      %v303 = vld [vmem:[%s166 + $0x200] sm:$0xf]
      %v304 = vld [vmem:[%s166 + $0x204] sm:$0xf]
      %v305 = vld [vmem:[%s166 + $0x208] sm:$0xf]
      %v306 = vld [vmem:[%s166 + $0x20c] sm:$0xf]
      %v307 = vld [vmem:[%s166 + $0x210] sm:$0xf]
      %v308 = vld [vmem:[%s166 + $0x214] sm:$0xf]
      %v309 = vld [vmem:[%s166 + $0x218] sm:$0xf]
      %v310 = vld [vmem:[%s166 + $0x21c] sm:$0xf]
      %v311 = vld [vmem:[%s166 + $0x220] sm:$0xf]
      %v312 = vld [vmem:[%s166 + $0x224] sm:$0xf]
      %v313 = vld [vmem:[%s166 + $0x228] sm:$0xf]
      %v314 = vld [vmem:[%s166 + $0x22c] sm:$0xf]
      %v315 = vld [vmem:[%s166 + $0x230] sm:$0xf]
      %v316 = vld [vmem:[%s166 + $0x234] sm:$0xf]
      %v317 = vld [vmem:[%s166 + $0x238] sm:$0xf]
      %v318 = vld [vmem:[%s166 + $0x23c] sm:$0xf]
      %v319 = vld [vmem:[%s166 + $0x240] sm:$0xf]
      %v320 = vld [vmem:[%s166 + $0x244] sm:$0xf]
      %v321 = vld [vmem:[%s166 + $0x248] sm:$0xf]
      %v322 = vld [vmem:[%s166 + $0x24c] sm:$0xf]
      %v323 = vld [vmem:[%s166 + $0x250] sm:$0xf]
      %v324 = vld [vmem:[%s166 + $0x254] sm:$0xf]
      %v325 = vld [vmem:[%s166 + $0x258] sm:$0xf]
      %v326 = vld [vmem:[%s166 + $0x25c] sm:$0xf]
      %v327 = vld [vmem:[%s166 + $0x260] sm:$0xf]
      %v328 = vld [vmem:[%s166 + $0x264] sm:$0xf]
      %v329 = vld [vmem:[%s166 + $0x268] sm:$0xf]
      %v330 = vld [vmem:[%s166 + $0x26c] sm:$0xf]
      %v331 = vld [vmem:[%s166 + $0x270] sm:$0xf]
      %v332 = vld [vmem:[%s166 + $0x274] sm:$0xf]
      %v333 = vld [vmem:[%s166 + $0x278] sm:$0xf]
      %v334 = vld [vmem:[%s166 + $0x27c] sm:$0xf]
      %v335 = vld [vmem:[%s166 + $0x280] sm:$0xf]
      %v336 = vld [vmem:[%s166 + $0x284] sm:$0xf]
      %v337 = vld [vmem:[%s166 + $0x288] sm:$0xf]
      %v338 = vld [vmem:[%s166 + $0x28c] sm:$0xf]
      %v339 = vld [vmem:[%s166 + $0x290] sm:$0xf]
      %v340 = vld [vmem:[%s166 + $0x294] sm:$0xf]
      %v341 = vld [vmem:[%s166 + $0x298] sm:$0xf]
      %v342 = vld [vmem:[%s166 + $0x29c] sm:$0xf]
      %v343 = vld [vmem:[%s166 + $0x2a0] sm:$0xf]
      %v344 = vld [vmem:[%s166 + $0x2a4] sm:$0xf]
      %v345 = vld [vmem:[%s166 + $0x2a8] sm:$0xf]
      %v346 = vld [vmem:[%s166 + $0x2ac] sm:$0xf]
      %v347 = vld [vmem:[%s166 + $0x2b0] sm:$0xf]
      %v348 = vld [vmem:[%s166 + $0x2b4] sm:$0xf]
      %v349 = vld [vmem:[%s166 + $0x2b8] sm:$0xf]
      %v350 = vld [vmem:[%s166 + $0x2bc] sm:$0xf]
      %v351 = vld [vmem:[%s166 + $0x2c0] sm:$0xf]
      %v352 = vld [vmem:[%s166 + $0x2c4] sm:$0xf]
      %v353 = vld [vmem:[%s166 + $0x2c8] sm:$0xf]
      %v354 = vld [vmem:[%s166 + $0x2cc] sm:$0xf]
      %v355 = vld [vmem:[%s166 + $0x2d0] sm:$0xf]
      %v356 = vld [vmem:[%s166 + $0x2d4] sm:$0xf]
      %v357 = vld [vmem:[%s166 + $0x2d8] sm:$0xf]
      %v358 = vld [vmem:[%s166 + $0x2dc] sm:$0xf]
      %v359 = vld [vmem:[%s166 + $0x2e0] sm:$0xf]
      %v360 = vld [vmem:[%s166 + $0x2e4] sm:$0xf]
      %v361 = vld [vmem:[%s166 + $0x2e8] sm:$0xf]
      %v362 = vld [vmem:[%s166 + $0x2ec] sm:$0xf]
      %v363 = vld [vmem:[%s166 + $0x2f0] sm:$0xf]
      %v364 = vld [vmem:[%s166 + $0x2f4] sm:$0xf]
      %v365 = vld [vmem:[%s166 + $0x2f8] sm:$0xf]
      %v366 = vld [vmem:[%s166 + $0x2fc] sm:$0xf]
      %v367 = vld [vmem:[%s166 + $0x300] sm:$0xf]
      %v368 = vld [vmem:[%s166 + $0x304] sm:$0xf]
      %v369 = vld [vmem:[%s166 + $0x308] sm:$0xf]
      %v370 = vld [vmem:[%s166 + $0x30c] sm:$0xf]
      %v371 = vld [vmem:[%s166 + $0x310] sm:$0xf]
      %v372 = vld [vmem:[%s166 + $0x314] sm:$0xf]
      %v373 = vld [vmem:[%s166 + $0x318] sm:$0xf]
      %v374 = vld [vmem:[%s166 + $0x31c] sm:$0xf]
      %v375 = vld [vmem:[%s166 + $0x320] sm:$0xf]
      %v376 = vld [vmem:[%s166 + $0x324] sm:$0xf]
      %v377 = vld [vmem:[%s166 + $0x328] sm:$0xf]
      %v378 = vld [vmem:[%s166 + $0x32c] sm:$0xf]
      %v379 = vld [vmem:[%s166 + $0x330] sm:$0xf]
      %v380 = vld [vmem:[%s166 + $0x334] sm:$0xf]
      %v381 = vld [vmem:[%s166 + $0x338] sm:$0xf]
      %v382 = vld [vmem:[%s166 + $0x33c] sm:$0xf]
      %v383 = vld [vmem:[%s166 + $0x340] sm:$0xf]
      %v384 = vld [vmem:[%s166 + $0x344] sm:$0xf]
      %v385 = vld [vmem:[%s166 + $0x348] sm:$0xf]
      %v386 = vld [vmem:[%s166 + $0x34c] sm:$0xf]
      %v387 = vld [vmem:[%s166 + $0x350] sm:$0xf]
      %v388 = vld [vmem:[%s166 + $0x354] sm:$0xf]
      %v389 = vld [vmem:[%s166 + $0x358] sm:$0xf]
      %v390 = vld [vmem:[%s166 + $0x35c] sm:$0xf]
      %v391 = vld [vmem:[%s166 + $0x360] sm:$0xf]
      %v392 = vld [vmem:[%s166 + $0x364] sm:$0xf]
      %v393 = vld [vmem:[%s166 + $0x368] sm:$0xf]
      %v394 = vld [vmem:[%s166 + $0x36c] sm:$0xf]
      %v395 = vld [vmem:[%s166 + $0x370] sm:$0xf]
      %v396 = vld [vmem:[%s166 + $0x374] sm:$0xf]
      %v397 = vld [vmem:[%s166 + $0x378] sm:$0xf]
      %v398 = vld [vmem:[%s166 + $0x37c] sm:$0xf]
      %v399 = vld [vmem:[%s166 + $0x380] sm:$0xf]
      %v400 = vld [vmem:[%s166 + $0x384] sm:$0xf]
      %v401 = vld [vmem:[%s166 + $0x388] sm:$0xf]
      %v402 = vld [vmem:[%s166 + $0x38c] sm:$0xf]
      %v403 = vld [vmem:[%s166 + $0x390] sm:$0xf]
      %v404 = vld [vmem:[%s166 + $0x394] sm:$0xf]
      %v405 = vld [vmem:[%s166 + $0x398] sm:$0xf]
      %v406 = vld [vmem:[%s166 + $0x39c] sm:$0xf]
      %v407 = vld [vmem:[%s166 + $0x3a0] sm:$0xf]
      %v408 = vld [vmem:[%s166 + $0x3a4] sm:$0xf]
      %v409 = vld [vmem:[%s166 + $0x3a8] sm:$0xf]
      %v410 = vld [vmem:[%s166 + $0x3ac] sm:$0xf]
      %v411 = vld [vmem:[%s166 + $0x3b0] sm:$0xf]
      %v412 = vld [vmem:[%s166 + $0x3b4] sm:$0xf]
      %v413 = vld [vmem:[%s166 + $0x3b8] sm:$0xf]
      %v414 = vld [vmem:[%s166 + $0x3bc] sm:$0xf]
      %v415 = vld [vmem:[%s166 + $0x3c0] sm:$0xf]
      %v416 = vld [vmem:[%s166 + $0x3c4] sm:$0xf]
      %v417 = vld [vmem:[%s166 + $0x3c8] sm:$0xf]
      %v418 = vld [vmem:[%s166 + $0x3cc] sm:$0xf]
      %v419 = vld [vmem:[%s166 + $0x3d0] sm:$0xf]
      %v420 = vld [vmem:[%s166 + $0x3d4] sm:$0xf]
      %v421 = vld [vmem:[%s166 + $0x3d8] sm:$0xf]
      %v422 = vld [vmem:[%s166 + $0x3dc] sm:$0xf]
      %v423 = vld [vmem:[%s166 + $0x3e0] sm:$0xf]
      %v424 = vld [vmem:[%s166 + $0x3e4] sm:$0xf]
      %v425 = vld [vmem:[%s166 + $0x3e8] sm:$0xf]
      %v426 = vld [vmem:[%s166 + $0x3ec] sm:$0xf]
      %v427 = vld [vmem:[%s166 + $0x3f0] sm:$0xf]
      %v428 = vld [vmem:[%s166 + $0x3f4] sm:$0xf]
      %v429 = vld [vmem:[%s166 + $0x3f8] sm:$0xf]
      %v430 = vld [vmem:[%s166 + $0x3fc] sm:$0xf]
      %v431 = vld [vmem:[%s1] sm:$0xf]
      %v432 = vld [vmem:[%s1 + $0x4] sm:$0xf]
      %v433 = vld [vmem:[%s1 + $0x8] sm:$0xf]
      %v434 = vld [vmem:[%s1 + $0xc] sm:$0xf]
      %v435 = vld [vmem:[%s2] sm:$0x1]
      %v437 = vperm.slane %v435, 0
      %v695 = vunpack.c.l.b16 %v175
      %v696 = vunpack.c.l.b16 %v176
      %v697 = vunpack.c.l.b16 %v177
      %v698 = vunpack.c.l.b16 %v178
      %v699 = vunpack.c.l.b16 %v179
      %v700 = vunpack.c.l.b16 %v180
      %v701 = vunpack.c.l.b16 %v181
      %v702 = vunpack.c.l.b16 %v182
      %v703 = vunpack.c.l.b16 %v183
      %v704 = vunpack.c.l.b16 %v184
      %v705 = vunpack.c.l.b16 %v185
      %v706 = vunpack.c.l.b16 %v186
      %v707 = vunpack.c.l.b16 %v187
      %v708 = vunpack.c.l.b16 %v188
      %v709 = vunpack.c.l.b16 %v189
      %v710 = vunpack.c.l.b16 %v190
      %v711 = vunpack.c.l.b16 %v191
      %v712 = vunpack.c.l.b16 %v192
      %v713 = vunpack.c.l.b16 %v193
      %v714 = vunpack.c.l.b16 %v194
      %v715 = vunpack.c.l.b16 %v195
      %v716 = vunpack.c.l.b16 %v196
      %v717 = vunpack.c.l.b16 %v197
      %v718 = vunpack.c.l.b16 %v198
      %v719 = vunpack.c.l.b16 %v199
      %v720 = vunpack.c.l.b16 %v200
      %v721 = vunpack.c.l.b16 %v201
      %v722 = vunpack.c.l.b16 %v202
      %v723 = vunpack.c.l.b16 %v203
      %v724 = vunpack.c.l.b16 %v204
      %v725 = vunpack.c.l.b16 %v205
      %v726 = vunpack.c.l.b16 %v206
      %v727 = vunpack.c.l.b16 %v207
      %v728 = vunpack.c.l.b16 %v208
      %v729 = vunpack.c.l.b16 %v209
      %v730 = vunpack.c.l.b16 %v210
      %v731 = vunpack.c.l.b16 %v211
      %v732 = vunpack.c.l.b16 %v212
      %v733 = vunpack.c.l.b16 %v213
      %v734 = vunpack.c.l.b16 %v214
      %v735 = vunpack.c.l.b16 %v215
      %v736 = vunpack.c.l.b16 %v216
      %v737 = vunpack.c.l.b16 %v217
      %v738 = vunpack.c.l.b16 %v218
      %v739 = vunpack.c.l.b16 %v219
      %v740 = vunpack.c.l.b16 %v220
      %v741 = vunpack.c.l.b16 %v221
      %v742 = vunpack.c.l.b16 %v222
      %v743 = vunpack.c.l.b16 %v223
      %v744 = vunpack.c.l.b16 %v224
      %v745 = vunpack.c.l.b16 %v225
      %v746 = vunpack.c.l.b16 %v226
      %v747 = vunpack.c.l.b16 %v227
      %v748 = vunpack.c.l.b16 %v228
      %v749 = vunpack.c.l.b16 %v229
      %v750 = vunpack.c.l.b16 %v230
      %v751 = vunpack.c.l.b16 %v231
      %v752 = vunpack.c.l.b16 %v232
      %v753 = vunpack.c.l.b16 %v233
      %v754 = vunpack.c.l.b16 %v234
      %v755 = vunpack.c.l.b16 %v235
      %v756 = vunpack.c.l.b16 %v236
      %v757 = vunpack.c.l.b16 %v237
      %v758 = vunpack.c.l.b16 %v238
      %v759 = vunpack.c.l.b16 %v239
      %v760 = vunpack.c.l.b16 %v240
      %v761 = vunpack.c.l.b16 %v241
      %v762 = vunpack.c.l.b16 %v242
      %v763 = vunpack.c.l.b16 %v243
      %v764 = vunpack.c.l.b16 %v244
      %v765 = vunpack.c.l.b16 %v245
      %v766 = vunpack.c.l.b16 %v246
      %v767 = vunpack.c.l.b16 %v247
      %v768 = vunpack.c.l.b16 %v248
      %v769 = vunpack.c.l.b16 %v249
      %v770 = vunpack.c.l.b16 %v250
      %v771 = vunpack.c.l.b16 %v251
      %v772 = vunpack.c.l.b16 %v252
      %v773 = vunpack.c.l.b16 %v253
      %v774 = vunpack.c.l.b16 %v254
      %v775 = vunpack.c.l.b16 %v255
      %v776 = vunpack.c.l.b16 %v256
      %v777 = vunpack.c.l.b16 %v257
      %v778 = vunpack.c.l.b16 %v258
      %v779 = vunpack.c.l.b16 %v259
      %v780 = vunpack.c.l.b16 %v260
      %v781 = vunpack.c.l.b16 %v261
      %v782 = vunpack.c.l.b16 %v262
      %v783 = vunpack.c.l.b16 %v263
      %v784 = vunpack.c.l.b16 %v264
      %v785 = vunpack.c.l.b16 %v265
      %v786 = vunpack.c.l.b16 %v266
      %v787 = vunpack.c.l.b16 %v267
      %v788 = vunpack.c.l.b16 %v268
      %v789 = vunpack.c.l.b16 %v269
      %v790 = vunpack.c.l.b16 %v270
      %v791 = vunpack.c.l.b16 %v271
      %v792 = vunpack.c.l.b16 %v272
      %v793 = vunpack.c.l.b16 %v273
      %v794 = vunpack.c.l.b16 %v274
      %v795 = vunpack.c.l.b16 %v275
      %v796 = vunpack.c.l.b16 %v276
      %v797 = vunpack.c.l.b16 %v277
      %v798 = vunpack.c.l.b16 %v278
      %v799 = vunpack.c.l.b16 %v279
      %v800 = vunpack.c.l.b16 %v280
      %v801 = vunpack.c.l.b16 %v281
      %v802 = vunpack.c.l.b16 %v282
      %v803 = vunpack.c.l.b16 %v283
      %v804 = vunpack.c.l.b16 %v284
      %v805 = vunpack.c.l.b16 %v285
      %v806 = vunpack.c.l.b16 %v286
      %v807 = vunpack.c.l.b16 %v287
      %v808 = vunpack.c.l.b16 %v288
      %v809 = vunpack.c.l.b16 %v289
      %v810 = vunpack.c.l.b16 %v290
      %v811 = vunpack.c.l.b16 %v291
      %v812 = vunpack.c.l.b16 %v292
      %v813 = vunpack.c.l.b16 %v293
      %v814 = vunpack.c.l.b16 %v294
      %v815 = vunpack.c.l.b16 %v295
      %v816 = vunpack.c.l.b16 %v296
      %v817 = vunpack.c.l.b16 %v297
      %v818 = vunpack.c.l.b16 %v298
      %v819 = vunpack.c.l.b16 %v299
      %v820 = vunpack.c.l.b16 %v300
      %v821 = vunpack.c.l.b16 %v301
      %v822 = vunpack.c.l.b16 %v302
      %v823 = vunpack.c.l.b16 %v303
      %v824 = vunpack.c.l.b16 %v304
      %v825 = vunpack.c.l.b16 %v305
      %v826 = vunpack.c.l.b16 %v306
      %v827 = vunpack.c.l.b16 %v307
      %v828 = vunpack.c.l.b16 %v308
      %v829 = vunpack.c.l.b16 %v309
      %v830 = vunpack.c.l.b16 %v310
      %v831 = vunpack.c.l.b16 %v311
      %v832 = vunpack.c.l.b16 %v312
      %v833 = vunpack.c.l.b16 %v313
      %v834 = vunpack.c.l.b16 %v314
      %v835 = vunpack.c.l.b16 %v315
      %v836 = vunpack.c.l.b16 %v316
      %v837 = vunpack.c.l.b16 %v317
      %v838 = vunpack.c.l.b16 %v318
      %v839 = vunpack.c.l.b16 %v319
      %v840 = vunpack.c.l.b16 %v320
      %v841 = vunpack.c.l.b16 %v321
      %v842 = vunpack.c.l.b16 %v322
      %v843 = vunpack.c.l.b16 %v323
      %v844 = vunpack.c.l.b16 %v324
      %v845 = vunpack.c.l.b16 %v325
      %v846 = vunpack.c.l.b16 %v326
      %v847 = vunpack.c.l.b16 %v327
      %v848 = vunpack.c.l.b16 %v328
      %v849 = vunpack.c.l.b16 %v329
      %v850 = vunpack.c.l.b16 %v330
      %v851 = vunpack.c.l.b16 %v331
      %v852 = vunpack.c.l.b16 %v332
      %v853 = vunpack.c.l.b16 %v333
      %v854 = vunpack.c.l.b16 %v334
      %v855 = vunpack.c.l.b16 %v335
      %v856 = vunpack.c.l.b16 %v336
      %v857 = vunpack.c.l.b16 %v337
      %v858 = vunpack.c.l.b16 %v338
      %v859 = vunpack.c.l.b16 %v339
      %v860 = vunpack.c.l.b16 %v340
      %v861 = vunpack.c.l.b16 %v341
      %v862 = vunpack.c.l.b16 %v342
      %v863 = vunpack.c.l.b16 %v343
      %v864 = vunpack.c.l.b16 %v344
      %v865 = vunpack.c.l.b16 %v345
      %v866 = vunpack.c.l.b16 %v346
      %v867 = vunpack.c.l.b16 %v347
      %v868 = vunpack.c.l.b16 %v348
      %v869 = vunpack.c.l.b16 %v349
      %v870 = vunpack.c.l.b16 %v350
      %v871 = vunpack.c.l.b16 %v351
      %v872 = vunpack.c.l.b16 %v352
      %v873 = vunpack.c.l.b16 %v353
      %v874 = vunpack.c.l.b16 %v354
      %v875 = vunpack.c.l.b16 %v355
      %v876 = vunpack.c.l.b16 %v356
      %v877 = vunpack.c.l.b16 %v357
      %v878 = vunpack.c.l.b16 %v358
      %v879 = vunpack.c.l.b16 %v359
      %v880 = vunpack.c.l.b16 %v360
      %v881 = vunpack.c.l.b16 %v361
      %v882 = vunpack.c.l.b16 %v362
      %v883 = vunpack.c.l.b16 %v363
      %v884 = vunpack.c.l.b16 %v364
      %v885 = vunpack.c.l.b16 %v365
      %v886 = vunpack.c.l.b16 %v366
      %v887 = vunpack.c.l.b16 %v367
      %v888 = vunpack.c.l.b16 %v368
      %v889 = vunpack.c.l.b16 %v369
      %v890 = vunpack.c.l.b16 %v370
      %v891 = vunpack.c.l.b16 %v371
      %v892 = vunpack.c.l.b16 %v372
      %v893 = vunpack.c.l.b16 %v373
      %v894 = vunpack.c.l.b16 %v374
      %v895 = vunpack.c.l.b16 %v375
      %v896 = vunpack.c.l.b16 %v376
      %v897 = vunpack.c.l.b16 %v377
      %v898 = vunpack.c.l.b16 %v378
      %v899 = vunpack.c.l.b16 %v379
      %v900 = vunpack.c.l.b16 %v380
      %v901 = vunpack.c.l.b16 %v381
      %v902 = vunpack.c.l.b16 %v382
      %v903 = vunpack.c.l.b16 %v383
      %v904 = vunpack.c.l.b16 %v384
      %v905 = vunpack.c.l.b16 %v385
      %v906 = vunpack.c.l.b16 %v386
      %v907 = vunpack.c.l.b16 %v387
      %v908 = vunpack.c.l.b16 %v388
      %v909 = vunpack.c.l.b16 %v389
      %v910 = vunpack.c.l.b16 %v390
      %v911 = vunpack.c.l.b16 %v391
      %v912 = vunpack.c.l.b16 %v392
      %v913 = vunpack.c.l.b16 %v393
      %v914 = vunpack.c.l.b16 %v394
      %v915 = vunpack.c.l.b16 %v395
      %v916 = vunpack.c.l.b16 %v396
      %v917 = vunpack.c.l.b16 %v397
      %v918 = vunpack.c.l.b16 %v398
      %v919 = vunpack.c.l.b16 %v399
      %v920 = vunpack.c.l.b16 %v400
      %v921 = vunpack.c.l.b16 %v401
      %v922 = vunpack.c.l.b16 %v402
      %v923 = vunpack.c.l.b16 %v403
      %v924 = vunpack.c.l.b16 %v404
      %v925 = vunpack.c.l.b16 %v405
      %v926 = vunpack.c.l.b16 %v406
      %v927 = vunpack.c.l.b16 %v407
      %v928 = vunpack.c.l.b16 %v408
      %v929 = vunpack.c.l.b16 %v409
      %v930 = vunpack.c.l.b16 %v410
      %v931 = vunpack.c.l.b16 %v411
      %v932 = vunpack.c.l.b16 %v412
      %v933 = vunpack.c.l.b16 %v413
      %v934 = vunpack.c.l.b16 %v414
      %v935 = vunpack.c.l.b16 %v415
      %v936 = vunpack.c.l.b16 %v416
      %v937 = vunpack.c.l.b16 %v417
      %v938 = vunpack.c.l.b16 %v418
      %v939 = vunpack.c.l.b16 %v419
      %v940 = vunpack.c.l.b16 %v420
      %v941 = vunpack.c.l.b16 %v421
      %v942 = vunpack.c.l.b16 %v422
      %v943 = vunpack.c.l.b16 %v423
      %v944 = vunpack.c.l.b16 %v424
      %v945 = vunpack.c.l.b16 %v425
      %v946 = vunpack.c.l.b16 %v426
      %v947 = vunpack.c.l.b16 %v427
      %v948 = vunpack.c.l.b16 %v428
      %v949 = vunpack.c.l.b16 %v429
      %v950 = vunpack.c.l.b16 %v430
      %v951 = vpack.c.b16 %v696, %v695
      %v952 = vpack.c.b16 %v698, %v697
      %v953 = vpack.c.b16 %v700, %v699
      %v954 = vpack.c.b16 %v702, %v701
      %v955 = vpack.c.b16 %v704, %v703
      %v956 = vpack.c.b16 %v706, %v705
      %v957 = vpack.c.b16 %v708, %v707
      %v958 = vpack.c.b16 %v710, %v709
      %v959 = vpack.c.b16 %v712, %v711
      %v960 = vpack.c.b16 %v714, %v713
      %v961 = vpack.c.b16 %v716, %v715
      %v962 = vpack.c.b16 %v718, %v717
      %v963 = vpack.c.b16 %v720, %v719
      %v964 = vpack.c.b16 %v722, %v721
      %v965 = vpack.c.b16 %v724, %v723
      %v966 = vpack.c.b16 %v726, %v725
      %v967 = vpack.c.b16 %v728, %v727
      %v968 = vpack.c.b16 %v730, %v729
      %v969 = vpack.c.b16 %v732, %v731
      %v970 = vpack.c.b16 %v734, %v733
      %v971 = vpack.c.b16 %v736, %v735
      %v972 = vpack.c.b16 %v738, %v737
      %v973 = vpack.c.b16 %v740, %v739
      %v974 = vpack.c.b16 %v742, %v741
      %v975 = vpack.c.b16 %v744, %v743
      %v976 = vpack.c.b16 %v746, %v745
      %v977 = vpack.c.b16 %v748, %v747
      %v978 = vpack.c.b16 %v750, %v749
      %v979 = vpack.c.b16 %v752, %v751
      %v980 = vpack.c.b16 %v754, %v753
      %v981 = vpack.c.b16 %v756, %v755
      %v982 = vpack.c.b16 %v758, %v757
      %v983 = vpack.c.b16 %v760, %v759
      %v984 = vpack.c.b16 %v762, %v761
      %v985 = vpack.c.b16 %v764, %v763
      %v986 = vpack.c.b16 %v766, %v765
      %v987 = vpack.c.b16 %v768, %v767
      %v988 = vpack.c.b16 %v770, %v769
      %v989 = vpack.c.b16 %v772, %v771
      %v990 = vpack.c.b16 %v774, %v773
      %v991 = vpack.c.b16 %v776, %v775
      %v992 = vpack.c.b16 %v778, %v777
      %v993 = vpack.c.b16 %v780, %v779
      %v994 = vpack.c.b16 %v782, %v781
      %v995 = vpack.c.b16 %v784, %v783
      %v996 = vpack.c.b16 %v786, %v785
      %v997 = vpack.c.b16 %v788, %v787
      %v998 = vpack.c.b16 %v790, %v789
      %v999 = vpack.c.b16 %v792, %v791
      %v1000 = vpack.c.b16 %v794, %v793
      %v1001 = vpack.c.b16 %v796, %v795
      %v1002 = vpack.c.b16 %v798, %v797
      %v1003 = vpack.c.b16 %v800, %v799
      %v1004 = vpack.c.b16 %v802, %v801
      %v1005 = vpack.c.b16 %v804, %v803
      %v1006 = vpack.c.b16 %v806, %v805
      %v1007 = vpack.c.b16 %v808, %v807
      %v1008 = vpack.c.b16 %v810, %v809
      %v1009 = vpack.c.b16 %v812, %v811
      %v1010 = vpack.c.b16 %v814, %v813
      %v1011 = vpack.c.b16 %v816, %v815
      %v1012 = vpack.c.b16 %v818, %v817
      %v1013 = vpack.c.b16 %v820, %v819
      %v1014 = vpack.c.b16 %v822, %v821
      %v1015 = vpack.c.b16 %v824, %v823
      %v1016 = vpack.c.b16 %v826, %v825
      %v1017 = vpack.c.b16 %v828, %v827
      %v1018 = vpack.c.b16 %v830, %v829
      %v1019 = vpack.c.b16 %v832, %v831
      %v1020 = vpack.c.b16 %v834, %v833
      %v1021 = vpack.c.b16 %v836, %v835
      %v1022 = vpack.c.b16 %v838, %v837
      %v1023 = vpack.c.b16 %v840, %v839
      %v1024 = vpack.c.b16 %v842, %v841
      %v1025 = vpack.c.b16 %v844, %v843
      %v1026 = vpack.c.b16 %v846, %v845
      %v1027 = vpack.c.b16 %v848, %v847
      %v1028 = vpack.c.b16 %v850, %v849
      %v1029 = vpack.c.b16 %v852, %v851
      %v1030 = vpack.c.b16 %v854, %v853
      %v1031 = vpack.c.b16 %v856, %v855
      %v1032 = vpack.c.b16 %v858, %v857
      %v1033 = vpack.c.b16 %v860, %v859
      %v1034 = vpack.c.b16 %v862, %v861
      %v1035 = vpack.c.b16 %v864, %v863
      %v1036 = vpack.c.b16 %v866, %v865
      %v1037 = vpack.c.b16 %v868, %v867
      %v1038 = vpack.c.b16 %v870, %v869
      %v1039 = vpack.c.b16 %v872, %v871
      %v1040 = vpack.c.b16 %v874, %v873
      %v1041 = vpack.c.b16 %v876, %v875
      %v1042 = vpack.c.b16 %v878, %v877
      %v1043 = vpack.c.b16 %v880, %v879
      %v1044 = vpack.c.b16 %v882, %v881
      %v1045 = vpack.c.b16 %v884, %v883
      %v1046 = vpack.c.b16 %v886, %v885
      %v1047 = vpack.c.b16 %v888, %v887
      %v1048 = vpack.c.b16 %v890, %v889
      %v1049 = vpack.c.b16 %v892, %v891
      %v1050 = vpack.c.b16 %v894, %v893
      %v1051 = vpack.c.b16 %v896, %v895
      %v1052 = vpack.c.b16 %v898, %v897
      %v1053 = vpack.c.b16 %v900, %v899
      %v1054 = vpack.c.b16 %v902, %v901
      %v1055 = vpack.c.b16 %v904, %v903
      %v1056 = vpack.c.b16 %v906, %v905
      %v1057 = vpack.c.b16 %v908, %v907
      %v1058 = vpack.c.b16 %v910, %v909
      %v1059 = vpack.c.b16 %v912, %v911
      %v1060 = vpack.c.b16 %v914, %v913
      %v1061 = vpack.c.b16 %v916, %v915
      %v1062 = vpack.c.b16 %v918, %v917
      %v1063 = vpack.c.b16 %v920, %v919
      %v1064 = vpack.c.b16 %v922, %v921
      %v1065 = vpack.c.b16 %v924, %v923
      %v1066 = vpack.c.b16 %v926, %v925
      %v1067 = vpack.c.b16 %v928, %v927
      %v1068 = vpack.c.b16 %v930, %v929
      %v1069 = vpack.c.b16 %v932, %v931
      %v1070 = vpack.c.b16 %v934, %v933
      %v1071 = vpack.c.b16 %v936, %v935
      %v1072 = vpack.c.b16 %v938, %v937
      %v1073 = vpack.c.b16 %v940, %v939
      %v1074 = vpack.c.b16 %v942, %v941
      %v1075 = vpack.c.b16 %v944, %v943
      %v1076 = vpack.c.b16 %v946, %v945
      %v1077 = vpack.c.b16 %v948, %v947
      %v1078 = vpack.c.b16 %v950, %v949
      %v1083 = vunpack.c.l.b16 %v431
      %v1084 = vunpack.c.l.b16 %v432
      %v1085 = vunpack.c.l.b16 %v433
      %v1086 = vunpack.c.l.b16 %v434
      %v1087 = vpack.c.b16 %v1084, %v1083
      %v1088 = vpack.c.b16 %v1086, %v1085
      %vm1091 = vcmask 261120
      %v1093 = vsel %vm1091, %v951, 0
      %v1096 = vsel %vm1091, %v952, 0
      %v1099 = vsel %vm1091, %v953, 0
      %v1102 = vsel %vm1091, %v954, 0
      %v1105 = vsel %vm1091, %v955, 0
      %v1108 = vsel %vm1091, %v956, 0
      %v1111 = vsel %vm1091, %v957, 0
      %v1114 = vsel %vm1091, %v958, 0
      %v1117 = vsel %vm1091, %v959, 0
      %v1120 = vsel %vm1091, %v960, 0
      %v1123 = vsel %vm1091, %v961, 0
      %v1126 = vsel %vm1091, %v962, 0
      %v1129 = vsel %vm1091, %v963, 0
      %v1132 = vsel %vm1091, %v964, 0
      %v1135 = vsel %vm1091, %v965, 0
      %v1138 = vsel %vm1091, %v966, 0
      %v1141 = vsel %vm1091, %v967, 0
      %v1144 = vsel %vm1091, %v968, 0
      %v1147 = vsel %vm1091, %v969, 0
      %v1150 = vsel %vm1091, %v970, 0
      %v1153 = vsel %vm1091, %v971, 0
      %v1156 = vsel %vm1091, %v972, 0
      %v1159 = vsel %vm1091, %v973, 0
      %v1162 = vsel %vm1091, %v974, 0
      %v1165 = vsel %vm1091, %v975, 0
      %v1168 = vsel %vm1091, %v976, 0
      %v1171 = vsel %vm1091, %v977, 0
      %v1174 = vsel %vm1091, %v978, 0
      %v1177 = vsel %vm1091, %v979, 0
      %v1180 = vsel %vm1091, %v980, 0
      %v1183 = vsel %vm1091, %v981, 0
      %v1186 = vsel %vm1091, %v982, 0
      %v1189 = vsel %vm1091, %v983, 0
      %v1192 = vsel %vm1091, %v984, 0
      %v1195 = vsel %vm1091, %v985, 0
      %v1198 = vsel %vm1091, %v986, 0
      %v1201 = vsel %vm1091, %v987, 0
      %v1204 = vsel %vm1091, %v988, 0
      %v1207 = vsel %vm1091, %v989, 0
      %v1210 = vsel %vm1091, %v990, 0
      %v1213 = vsel %vm1091, %v991, 0
      %v1216 = vsel %vm1091, %v992, 0
      %v1219 = vsel %vm1091, %v993, 0
      %v1222 = vsel %vm1091, %v994, 0
      %v1225 = vsel %vm1091, %v995, 0
      %v1228 = vsel %vm1091, %v996, 0
      %v1231 = vsel %vm1091, %v997, 0
      %v1234 = vsel %vm1091, %v998, 0
      %v1237 = vsel %vm1091, %v999, 0
      %v1240 = vsel %vm1091, %v1000, 0
      %v1243 = vsel %vm1091, %v1001, 0
      %v1246 = vsel %vm1091, %v1002, 0
      %v1249 = vsel %vm1091, %v1003, 0
      %v1252 = vsel %vm1091, %v1004, 0
      %v1255 = vsel %vm1091, %v1005, 0
      %v1258 = vsel %vm1091, %v1006, 0
      %v1261 = vsel %vm1091, %v1007, 0
      %v1264 = vsel %vm1091, %v1008, 0
      %v1267 = vsel %vm1091, %v1009, 0
      %v1270 = vsel %vm1091, %v1010, 0
      %v1273 = vsel %vm1091, %v1011, 0
      %v1276 = vsel %vm1091, %v1012, 0
      %v1279 = vsel %vm1091, %v1013, 0
      %v1282 = vsel %vm1091, %v1014, 0
      %v1285 = vsel %vm1091, %v1015, 0
      %v1288 = vsel %vm1091, %v1016, 0
      %v1291 = vsel %vm1091, %v1017, 0
      %v1294 = vsel %vm1091, %v1018, 0
      %v1297 = vsel %vm1091, %v1019, 0
      %v1300 = vsel %vm1091, %v1020, 0
      %v1303 = vsel %vm1091, %v1021, 0
      %v1306 = vsel %vm1091, %v1022, 0
      %v1309 = vsel %vm1091, %v1023, 0
      %v1312 = vsel %vm1091, %v1024, 0
      %v1315 = vsel %vm1091, %v1025, 0
      %v1318 = vsel %vm1091, %v1026, 0
      %v1321 = vsel %vm1091, %v1027, 0
      %v1324 = vsel %vm1091, %v1028, 0
      %v1327 = vsel %vm1091, %v1029, 0
      %v1330 = vsel %vm1091, %v1030, 0
      %v1333 = vsel %vm1091, %v1031, 0
      %v1336 = vsel %vm1091, %v1032, 0
      %v1339 = vsel %vm1091, %v1033, 0
      %v1342 = vsel %vm1091, %v1034, 0
      %v1345 = vsel %vm1091, %v1035, 0
      %v1348 = vsel %vm1091, %v1036, 0
      %v1351 = vsel %vm1091, %v1037, 0
      %v1354 = vsel %vm1091, %v1038, 0
      %v1357 = vsel %vm1091, %v1039, 0
      %v1360 = vsel %vm1091, %v1040, 0
      %v1363 = vsel %vm1091, %v1041, 0
      %v1366 = vsel %vm1091, %v1042, 0
      %v1369 = vsel %vm1091, %v1043, 0
      %v1372 = vsel %vm1091, %v1044, 0
      %v1375 = vsel %vm1091, %v1045, 0
      %v1378 = vsel %vm1091, %v1046, 0
      %v1381 = vsel %vm1091, %v1047, 0
      %v1384 = vsel %vm1091, %v1048, 0
      %v1387 = vsel %vm1091, %v1049, 0
      %v1390 = vsel %vm1091, %v1050, 0
      %v1393 = vsel %vm1091, %v1051, 0
      %v1396 = vsel %vm1091, %v1052, 0
      %v1399 = vsel %vm1091, %v1053, 0
      %v1402 = vsel %vm1091, %v1054, 0
      %v1405 = vsel %vm1091, %v1055, 0
      %v1408 = vsel %vm1091, %v1056, 0
      %v1411 = vsel %vm1091, %v1057, 0
      %v1414 = vsel %vm1091, %v1058, 0
      %v1417 = vsel %vm1091, %v1059, 0
      %v1420 = vsel %vm1091, %v1060, 0
      %v1423 = vsel %vm1091, %v1061, 0
      %v1426 = vsel %vm1091, %v1062, 0
      %v1429 = vsel %vm1091, %v1063, 0
      %v1432 = vsel %vm1091, %v1064, 0
      %v1435 = vsel %vm1091, %v1065, 0
      %v1438 = vsel %vm1091, %v1066, 0
      %v1441 = vsel %vm1091, %v1067, 0
      %v1444 = vsel %vm1091, %v1068, 0
      %v1447 = vsel %vm1091, %v1069, 0
      %v1450 = vsel %vm1091, %v1070, 0
      %v1453 = vsel %vm1091, %v1071, 0
      %v1456 = vsel %vm1091, %v1072, 0
      %v1459 = vsel %vm1091, %v1073, 0
      %v1462 = vsel %vm1091, %v1074, 0
      %v1465 = vsel %vm1091, %v1075, 0
      %v1468 = vsel %vm1091, %v1076, 0
      %v1471 = vsel %vm1091, %v1077, 0
      %v1474 = vsel %vm1091, %v1078, 0
      %1476 = vmatpush.bf16.msra.mxu0 0
      %1477 = vmatpush.bf16.msra.mxu0 0
      %1478 = vmatpush.bf16.msra.mxu0 0
      %1479 = vmatpush.bf16.msra.mxu0 0
      %1480 = vmatpush.bf16.msra.mxu0 0
      %1481 = vmatpush.bf16.msra.mxu0 0
      %1482 = vmatpush.bf16.msra.mxu0 %v1088
      %1483 = vmatpush.bf16.msra.mxu0 %v1087
      %1484 = vmatmul.bf16.gmra.mxu0 %v1093
      %v1485 = vpop.f32.mrf.mxu0
      %v1486 = vadd.f32 %v437, %v1485
      %v1487 = vpop.f32.mrf.mxu0
      %v1488 = vadd.f32 %v437, %v1487
      %1489 = vmatmul.bf16.gmra.mxu0 %v1096
      %v1490 = vpop.f32.mrf.mxu0
      %v1491 = vadd.f32 %v437, %v1490
      %v1492 = vpop.f32.mrf.mxu0
      %v1493 = vadd.f32 %v437, %v1492
      %1494 = vmatmul.bf16.gmra.mxu0 %v1099
      %v1495 = vpop.f32.mrf.mxu0
      %v1496 = vadd.f32 %v437, %v1495
      %v1497 = vpop.f32.mrf.mxu0
      %v1498 = vadd.f32 %v437, %v1497
      %1499 = vmatmul.bf16.gmra.mxu0 %v1102
      %v1500 = vpop.f32.mrf.mxu0
      %v1501 = vadd.f32 %v437, %v1500
      %v1502 = vpop.f32.mrf.mxu0
      %v1503 = vadd.f32 %v437, %v1502
      %1504 = vmatmul.bf16.gmra.mxu0 %v1105
      %v1505 = vpop.f32.mrf.mxu0
      %v1506 = vadd.f32 %v437, %v1505
      %v1507 = vpop.f32.mrf.mxu0
      %v1508 = vadd.f32 %v437, %v1507
      %1509 = vmatmul.bf16.gmra.mxu0 %v1108
      %v1510 = vpop.f32.mrf.mxu0
      %v1511 = vadd.f32 %v437, %v1510
      %v1512 = vpop.f32.mrf.mxu0
      %v1513 = vadd.f32 %v437, %v1512
      %1514 = vmatmul.bf16.gmra.mxu0 %v1111
      %v1515 = vpop.f32.mrf.mxu0
      %v1516 = vadd.f32 %v437, %v1515
      %v1517 = vpop.f32.mrf.mxu0
      %v1518 = vadd.f32 %v437, %v1517
      %1519 = vmatmul.bf16.gmra.mxu0 %v1114
      %v1520 = vpop.f32.mrf.mxu0
      %v1521 = vadd.f32 %v437, %v1520
      %v1522 = vpop.f32.mrf.mxu0
      %v1523 = vadd.f32 %v437, %v1522
      %1524 = vmatmul.bf16.gmra.mxu0 %v1117
      %v1525 = vpop.f32.mrf.mxu0
      %v1526 = vadd.f32 %v437, %v1525
      %v1527 = vpop.f32.mrf.mxu0
      %v1528 = vadd.f32 %v437, %v1527
      %1529 = vmatmul.bf16.gmra.mxu0 %v1120
      %v1530 = vpop.f32.mrf.mxu0
      %v1531 = vadd.f32 %v437, %v1530
      %v1532 = vpop.f32.mrf.mxu0
      %v1533 = vadd.f32 %v437, %v1532
      %1534 = vmatmul.bf16.gmra.mxu0 %v1123
      %v1535 = vpop.f32.mrf.mxu0
      %v1536 = vadd.f32 %v437, %v1535
      %v1537 = vpop.f32.mrf.mxu0
      %v1538 = vadd.f32 %v437, %v1537
      %1539 = vmatmul.bf16.gmra.mxu0 %v1126
      %v1540 = vpop.f32.mrf.mxu0
      %v1541 = vadd.f32 %v437, %v1540
      %v1542 = vpop.f32.mrf.mxu0
      %v1543 = vadd.f32 %v437, %v1542
      %1544 = vmatmul.bf16.gmra.mxu0 %v1129
      %v1545 = vpop.f32.mrf.mxu0
      %v1546 = vadd.f32 %v437, %v1545
      %v1547 = vpop.f32.mrf.mxu0
      %v1548 = vadd.f32 %v437, %v1547
      %1549 = vmatmul.bf16.gmra.mxu0 %v1132
      %v1550 = vpop.f32.mrf.mxu0
      %v1551 = vadd.f32 %v437, %v1550
      %v1552 = vpop.f32.mrf.mxu0
      %v1553 = vadd.f32 %v437, %v1552
      %1554 = vmatmul.bf16.gmra.mxu0 %v1135
      %v1555 = vpop.f32.mrf.mxu0
      %v1556 = vadd.f32 %v437, %v1555
      %v1557 = vpop.f32.mrf.mxu0
      %v1558 = vadd.f32 %v437, %v1557
      %1559 = vmatmul.bf16.gmra.mxu0 %v1138
      %v1560 = vpop.f32.mrf.mxu0
      %v1561 = vadd.f32 %v437, %v1560
      %v1562 = vpop.f32.mrf.mxu0
      %v1563 = vadd.f32 %v437, %v1562
      %1564 = vmatmul.bf16.gmra.mxu0 %v1141
      %v1565 = vpop.f32.mrf.mxu0
      %v1566 = vadd.f32 %v437, %v1565
      %v1567 = vpop.f32.mrf.mxu0
      %v1568 = vadd.f32 %v437, %v1567
      %1569 = vmatmul.bf16.gmra.mxu0 %v1144
      %v1570 = vpop.f32.mrf.mxu0
      %v1571 = vadd.f32 %v437, %v1570
      %v1572 = vpop.f32.mrf.mxu0
      %v1573 = vadd.f32 %v437, %v1572
      %1574 = vmatmul.bf16.gmra.mxu0 %v1147
      %v1575 = vpop.f32.mrf.mxu0
      %v1576 = vadd.f32 %v437, %v1575
      %v1577 = vpop.f32.mrf.mxu0
      %v1578 = vadd.f32 %v437, %v1577
      %1579 = vmatmul.bf16.gmra.mxu0 %v1150
      %v1580 = vpop.f32.mrf.mxu0
      %v1581 = vadd.f32 %v437, %v1580
      %v1582 = vpop.f32.mrf.mxu0
      %v1583 = vadd.f32 %v437, %v1582
      %1584 = vmatmul.bf16.gmra.mxu0 %v1153
      %v1585 = vpop.f32.mrf.mxu0
      %v1586 = vadd.f32 %v437, %v1585
      %v1587 = vpop.f32.mrf.mxu0
      %v1588 = vadd.f32 %v437, %v1587
      %1589 = vmatmul.bf16.gmra.mxu0 %v1156
      %v1590 = vpop.f32.mrf.mxu0
      %v1591 = vadd.f32 %v437, %v1590
      %v1592 = vpop.f32.mrf.mxu0
      %v1593 = vadd.f32 %v437, %v1592
      %1594 = vmatmul.bf16.gmra.mxu0 %v1159
      %v1595 = vpop.f32.mrf.mxu0
      %v1596 = vadd.f32 %v437, %v1595
      %v1597 = vpop.f32.mrf.mxu0
      %v1598 = vadd.f32 %v437, %v1597
      %1599 = vmatmul.bf16.gmra.mxu0 %v1162
      %v1600 = vpop.f32.mrf.mxu0
      %v1601 = vadd.f32 %v437, %v1600
      %v1602 = vpop.f32.mrf.mxu0
      %v1603 = vadd.f32 %v437, %v1602
      %1604 = vmatmul.bf16.gmra.mxu0 %v1165
      %v1605 = vpop.f32.mrf.mxu0
      %v1606 = vadd.f32 %v437, %v1605
      %v1607 = vpop.f32.mrf.mxu0
      %v1608 = vadd.f32 %v437, %v1607
      %1609 = vmatmul.bf16.gmra.mxu0 %v1168
      %v1610 = vpop.f32.mrf.mxu0
      %v1611 = vadd.f32 %v437, %v1610
      %v1612 = vpop.f32.mrf.mxu0
      %v1613 = vadd.f32 %v437, %v1612
      %1614 = vmatmul.bf16.gmra.mxu0 %v1171
      %v1615 = vpop.f32.mrf.mxu0
      %v1616 = vadd.f32 %v437, %v1615
      %v1617 = vpop.f32.mrf.mxu0
      %v1618 = vadd.f32 %v437, %v1617
      %1619 = vmatmul.bf16.gmra.mxu0 %v1174
      %v1620 = vpop.f32.mrf.mxu0
      %v1621 = vadd.f32 %v437, %v1620
      %v1622 = vpop.f32.mrf.mxu0
      %v1623 = vadd.f32 %v437, %v1622
      %1624 = vmatmul.bf16.gmra.mxu0 %v1177
      %v1625 = vpop.f32.mrf.mxu0
      %v1626 = vadd.f32 %v437, %v1625
      %v1627 = vpop.f32.mrf.mxu0
      %v1628 = vadd.f32 %v437, %v1627
      %1629 = vmatmul.bf16.gmra.mxu0 %v1180
      %v1630 = vpop.f32.mrf.mxu0
      %v1631 = vadd.f32 %v437, %v1630
      %v1632 = vpop.f32.mrf.mxu0
      %v1633 = vadd.f32 %v437, %v1632
      %1634 = vmatmul.bf16.gmra.mxu0 %v1183
      %v1635 = vpop.f32.mrf.mxu0
      %v1636 = vadd.f32 %v437, %v1635
      %v1637 = vpop.f32.mrf.mxu0
      %v1638 = vadd.f32 %v437, %v1637
      %1639 = vmatmul.bf16.gmra.mxu0 %v1186
      %v1640 = vpop.f32.mrf.mxu0
      %v1641 = vadd.f32 %v437, %v1640
      %v1642 = vpop.f32.mrf.mxu0
      %v1643 = vadd.f32 %v437, %v1642
      %1644 = vmatmul.bf16.gmra.mxu0 %v1189
      %v1645 = vpop.f32.mrf.mxu0
      %v1646 = vadd.f32 %v437, %v1645
      %v1647 = vpop.f32.mrf.mxu0
      %v1648 = vadd.f32 %v437, %v1647
      %1649 = vmatmul.bf16.gmra.mxu0 %v1192
      %v1650 = vpop.f32.mrf.mxu0
      %v1651 = vadd.f32 %v437, %v1650
      %v1652 = vpop.f32.mrf.mxu0
      %v1653 = vadd.f32 %v437, %v1652
      %1654 = vmatmul.bf16.gmra.mxu0 %v1195
      %v1655 = vpop.f32.mrf.mxu0
      %v1656 = vadd.f32 %v437, %v1655
      %v1657 = vpop.f32.mrf.mxu0
      %v1658 = vadd.f32 %v437, %v1657
      %1659 = vmatmul.bf16.gmra.mxu0 %v1198
      %v1660 = vpop.f32.mrf.mxu0
      %v1661 = vadd.f32 %v437, %v1660
      %v1662 = vpop.f32.mrf.mxu0
      %v1663 = vadd.f32 %v437, %v1662
      %1664 = vmatmul.bf16.gmra.mxu0 %v1201
      %v1665 = vpop.f32.mrf.mxu0
      %v1666 = vadd.f32 %v437, %v1665
      %v1667 = vpop.f32.mrf.mxu0
      %v1668 = vadd.f32 %v437, %v1667
      %1669 = vmatmul.bf16.gmra.mxu0 %v1204
      %v1670 = vpop.f32.mrf.mxu0
      %v1671 = vadd.f32 %v437, %v1670
      %v1672 = vpop.f32.mrf.mxu0
      %v1673 = vadd.f32 %v437, %v1672
      %1674 = vmatmul.bf16.gmra.mxu0 %v1207
      %v1675 = vpop.f32.mrf.mxu0
      %v1676 = vadd.f32 %v437, %v1675
      %v1677 = vpop.f32.mrf.mxu0
      %v1678 = vadd.f32 %v437, %v1677
      %1679 = vmatmul.bf16.gmra.mxu0 %v1210
      %v1680 = vpop.f32.mrf.mxu0
      %v1681 = vadd.f32 %v437, %v1680
      %v1682 = vpop.f32.mrf.mxu0
      %v1683 = vadd.f32 %v437, %v1682
      %1684 = vmatmul.bf16.gmra.mxu0 %v1213
      %v1685 = vpop.f32.mrf.mxu0
      %v1686 = vadd.f32 %v437, %v1685
      %v1687 = vpop.f32.mrf.mxu0
      %v1688 = vadd.f32 %v437, %v1687
      %1689 = vmatmul.bf16.gmra.mxu0 %v1216
      %v1690 = vpop.f32.mrf.mxu0
      %v1691 = vadd.f32 %v437, %v1690
      %v1692 = vpop.f32.mrf.mxu0
      %v1693 = vadd.f32 %v437, %v1692
      %1694 = vmatmul.bf16.gmra.mxu0 %v1219
      %v1695 = vpop.f32.mrf.mxu0
      %v1696 = vadd.f32 %v437, %v1695
      %v1697 = vpop.f32.mrf.mxu0
      %v1698 = vadd.f32 %v437, %v1697
      %1699 = vmatmul.bf16.gmra.mxu0 %v1222
      %v1700 = vpop.f32.mrf.mxu0
      %v1701 = vadd.f32 %v437, %v1700
      %v1702 = vpop.f32.mrf.mxu0
      %v1703 = vadd.f32 %v437, %v1702
      %1704 = vmatmul.bf16.gmra.mxu0 %v1225
      %v1705 = vpop.f32.mrf.mxu0
      %v1706 = vadd.f32 %v437, %v1705
      %v1707 = vpop.f32.mrf.mxu0
      %v1708 = vadd.f32 %v437, %v1707
      %1709 = vmatmul.bf16.gmra.mxu0 %v1228
      %v1710 = vpop.f32.mrf.mxu0
      %v1711 = vadd.f32 %v437, %v1710
      %v1712 = vpop.f32.mrf.mxu0
      %v1713 = vadd.f32 %v437, %v1712
      %1714 = vmatmul.bf16.gmra.mxu0 %v1231
      %v1715 = vpop.f32.mrf.mxu0
      %v1716 = vadd.f32 %v437, %v1715
      %v1717 = vpop.f32.mrf.mxu0
      %v1718 = vadd.f32 %v437, %v1717
      %1719 = vmatmul.bf16.gmra.mxu0 %v1234
      %v1720 = vpop.f32.mrf.mxu0
      %v1721 = vadd.f32 %v437, %v1720
      %v1722 = vpop.f32.mrf.mxu0
      %v1723 = vadd.f32 %v437, %v1722
      %1724 = vmatmul.bf16.gmra.mxu0 %v1237
      %v1725 = vpop.f32.mrf.mxu0
      %v1726 = vadd.f32 %v437, %v1725
      %v1727 = vpop.f32.mrf.mxu0
      %v1728 = vadd.f32 %v437, %v1727
      %1729 = vmatmul.bf16.gmra.mxu0 %v1240
      %v1730 = vpop.f32.mrf.mxu0
      %v1731 = vadd.f32 %v437, %v1730
      %v1732 = vpop.f32.mrf.mxu0
      %v1733 = vadd.f32 %v437, %v1732
      %1734 = vmatmul.bf16.gmra.mxu0 %v1243
      %v1735 = vpop.f32.mrf.mxu0
      %v1736 = vadd.f32 %v437, %v1735
      %v1737 = vpop.f32.mrf.mxu0
      %v1738 = vadd.f32 %v437, %v1737
      %1739 = vmatmul.bf16.gmra.mxu0 %v1246
      %v1740 = vpop.f32.mrf.mxu0
      %v1741 = vadd.f32 %v437, %v1740
      %v1742 = vpop.f32.mrf.mxu0
      %v1743 = vadd.f32 %v437, %v1742
      %1744 = vmatmul.bf16.gmra.mxu0 %v1249
      %v1745 = vpop.f32.mrf.mxu0
      %v1746 = vadd.f32 %v437, %v1745
      %v1747 = vpop.f32.mrf.mxu0
      %v1748 = vadd.f32 %v437, %v1747
      %1749 = vmatmul.bf16.gmra.mxu0 %v1252
      %v1750 = vpop.f32.mrf.mxu0
      %v1751 = vadd.f32 %v437, %v1750
      %v1752 = vpop.f32.mrf.mxu0
      %v1753 = vadd.f32 %v437, %v1752
      %1754 = vmatmul.bf16.gmra.mxu0 %v1255
      %v1755 = vpop.f32.mrf.mxu0
      %v1756 = vadd.f32 %v437, %v1755
      %v1757 = vpop.f32.mrf.mxu0
      %v1758 = vadd.f32 %v437, %v1757
      %1759 = vmatmul.bf16.gmra.mxu0 %v1258
      %v1760 = vpop.f32.mrf.mxu0
      %v1761 = vadd.f32 %v437, %v1760
      %v1762 = vpop.f32.mrf.mxu0
      %v1763 = vadd.f32 %v437, %v1762
      %1764 = vmatmul.bf16.gmra.mxu0 %v1261
      %v1765 = vpop.f32.mrf.mxu0
      %v1766 = vadd.f32 %v437, %v1765
      %v1767 = vpop.f32.mrf.mxu0
      %v1768 = vadd.f32 %v437, %v1767
      %1769 = vmatmul.bf16.gmra.mxu0 %v1264
      %v1770 = vpop.f32.mrf.mxu0
      %v1771 = vadd.f32 %v437, %v1770
      %v1772 = vpop.f32.mrf.mxu0
      %v1773 = vadd.f32 %v437, %v1772
      %1774 = vmatmul.bf16.gmra.mxu0 %v1267
      %v1775 = vpop.f32.mrf.mxu0
      %v1776 = vadd.f32 %v437, %v1775
      %v1777 = vpop.f32.mrf.mxu0
      %v1778 = vadd.f32 %v437, %v1777
      %1779 = vmatmul.bf16.gmra.mxu0 %v1270
      %v1780 = vpop.f32.mrf.mxu0
      %v1781 = vadd.f32 %v437, %v1780
      %v1782 = vpop.f32.mrf.mxu0
      %v1783 = vadd.f32 %v437, %v1782
      %1784 = vmatmul.bf16.gmra.mxu0 %v1273
      %v1785 = vpop.f32.mrf.mxu0
      %v1786 = vadd.f32 %v437, %v1785
      %v1787 = vpop.f32.mrf.mxu0
      %v1788 = vadd.f32 %v437, %v1787
      %1789 = vmatmul.bf16.gmra.mxu0 %v1276
      %v1790 = vpop.f32.mrf.mxu0
      %v1791 = vadd.f32 %v437, %v1790
      %v1792 = vpop.f32.mrf.mxu0
      %v1793 = vadd.f32 %v437, %v1792
      %1794 = vmatmul.bf16.gmra.mxu0 %v1279
      %v1795 = vpop.f32.mrf.mxu0
      %v1796 = vadd.f32 %v437, %v1795
      %v1797 = vpop.f32.mrf.mxu0
      %v1798 = vadd.f32 %v437, %v1797
      %1799 = vmatmul.bf16.gmra.mxu0 %v1282
      %v1800 = vpop.f32.mrf.mxu0
      %v1801 = vadd.f32 %v437, %v1800
      %v1802 = vpop.f32.mrf.mxu0
      %v1803 = vadd.f32 %v437, %v1802
      %1804 = vmatmul.bf16.gmra.mxu0 %v1285
      %v1805 = vpop.f32.mrf.mxu0
      %v1806 = vadd.f32 %v437, %v1805
      %v1807 = vpop.f32.mrf.mxu0
      %v1808 = vadd.f32 %v437, %v1807
      %1809 = vmatmul.bf16.gmra.mxu0 %v1288
      %v1810 = vpop.f32.mrf.mxu0
      %v1811 = vadd.f32 %v437, %v1810
      %v1812 = vpop.f32.mrf.mxu0
      %v1813 = vadd.f32 %v437, %v1812
      %1814 = vmatmul.bf16.gmra.mxu0 %v1291
      %v1815 = vpop.f32.mrf.mxu0
      %v1816 = vadd.f32 %v437, %v1815
      %v1817 = vpop.f32.mrf.mxu0
      %v1818 = vadd.f32 %v437, %v1817
      %1819 = vmatmul.bf16.gmra.mxu0 %v1294
      %v1820 = vpop.f32.mrf.mxu0
      %v1821 = vadd.f32 %v437, %v1820
      %v1822 = vpop.f32.mrf.mxu0
      %v1823 = vadd.f32 %v437, %v1822
      %1824 = vmatmul.bf16.gmra.mxu0 %v1297
      %v1825 = vpop.f32.mrf.mxu0
      %v1826 = vadd.f32 %v437, %v1825
      %v1827 = vpop.f32.mrf.mxu0
      %v1828 = vadd.f32 %v437, %v1827
      %1829 = vmatmul.bf16.gmra.mxu0 %v1300
      %v1830 = vpop.f32.mrf.mxu0
      %v1831 = vadd.f32 %v437, %v1830
      %v1832 = vpop.f32.mrf.mxu0
      %v1833 = vadd.f32 %v437, %v1832
      %1834 = vmatmul.bf16.gmra.mxu0 %v1303
      %v1835 = vpop.f32.mrf.mxu0
      %v1836 = vadd.f32 %v437, %v1835
      %v1837 = vpop.f32.mrf.mxu0
      %v1838 = vadd.f32 %v437, %v1837
      %1839 = vmatmul.bf16.gmra.mxu0 %v1306
      %v1840 = vpop.f32.mrf.mxu0
      %v1841 = vadd.f32 %v437, %v1840
      %v1842 = vpop.f32.mrf.mxu0
      %v1843 = vadd.f32 %v437, %v1842
      %1844 = vmatmul.bf16.gmra.mxu0 %v1309
      %v1845 = vpop.f32.mrf.mxu0
      %v1846 = vadd.f32 %v437, %v1845
      %v1847 = vpop.f32.mrf.mxu0
      %v1848 = vadd.f32 %v437, %v1847
      %1849 = vmatmul.bf16.gmra.mxu0 %v1312
      %v1850 = vpop.f32.mrf.mxu0
      %v1851 = vadd.f32 %v437, %v1850
      %v1852 = vpop.f32.mrf.mxu0
      %v1853 = vadd.f32 %v437, %v1852
      %1854 = vmatmul.bf16.gmra.mxu0 %v1315
      %v1855 = vpop.f32.mrf.mxu0
      %v1856 = vadd.f32 %v437, %v1855
      %v1857 = vpop.f32.mrf.mxu0
      %v1858 = vadd.f32 %v437, %v1857
      %1859 = vmatmul.bf16.gmra.mxu0 %v1318
      %v1860 = vpop.f32.mrf.mxu0
      %v1861 = vadd.f32 %v437, %v1860
      %v1862 = vpop.f32.mrf.mxu0
      %v1863 = vadd.f32 %v437, %v1862
      %1864 = vmatmul.bf16.gmra.mxu0 %v1321
      %v1865 = vpop.f32.mrf.mxu0
      %v1866 = vadd.f32 %v437, %v1865
      %v1867 = vpop.f32.mrf.mxu0
      %v1868 = vadd.f32 %v437, %v1867
      %1869 = vmatmul.bf16.gmra.mxu0 %v1324
      %v1870 = vpop.f32.mrf.mxu0
      %v1871 = vadd.f32 %v437, %v1870
      %v1872 = vpop.f32.mrf.mxu0
      %v1873 = vadd.f32 %v437, %v1872
      %1874 = vmatmul.bf16.gmra.mxu0 %v1327
      %v1875 = vpop.f32.mrf.mxu0
      %v1876 = vadd.f32 %v437, %v1875
      %v1877 = vpop.f32.mrf.mxu0
      %v1878 = vadd.f32 %v437, %v1877
      %1879 = vmatmul.bf16.gmra.mxu0 %v1330
      %v1880 = vpop.f32.mrf.mxu0
      %v1881 = vadd.f32 %v437, %v1880
      %v1882 = vpop.f32.mrf.mxu0
      %v1883 = vadd.f32 %v437, %v1882
      %1884 = vmatmul.bf16.gmra.mxu0 %v1333
      %v1885 = vpop.f32.mrf.mxu0
      %v1886 = vadd.f32 %v437, %v1885
      %v1887 = vpop.f32.mrf.mxu0
      %v1888 = vadd.f32 %v437, %v1887
      %1889 = vmatmul.bf16.gmra.mxu0 %v1336
      %v1890 = vpop.f32.mrf.mxu0
      %v1891 = vadd.f32 %v437, %v1890
      %v1892 = vpop.f32.mrf.mxu0
      %v1893 = vadd.f32 %v437, %v1892
      %1894 = vmatmul.bf16.gmra.mxu0 %v1339
      %v1895 = vpop.f32.mrf.mxu0
      %v1896 = vadd.f32 %v437, %v1895
      %v1897 = vpop.f32.mrf.mxu0
      %v1898 = vadd.f32 %v437, %v1897
      %1899 = vmatmul.bf16.gmra.mxu0 %v1342
      %v1900 = vpop.f32.mrf.mxu0
      %v1901 = vadd.f32 %v437, %v1900
      %v1902 = vpop.f32.mrf.mxu0
      %v1903 = vadd.f32 %v437, %v1902
      %1904 = vmatmul.bf16.gmra.mxu0 %v1345
      %v1905 = vpop.f32.mrf.mxu0
      %v1906 = vadd.f32 %v437, %v1905
      %v1907 = vpop.f32.mrf.mxu0
      %v1908 = vadd.f32 %v437, %v1907
      %1909 = vmatmul.bf16.gmra.mxu0 %v1348
      %v1910 = vpop.f32.mrf.mxu0
      %v1911 = vadd.f32 %v437, %v1910
      %v1912 = vpop.f32.mrf.mxu0
      %v1913 = vadd.f32 %v437, %v1912
      %1914 = vmatmul.bf16.gmra.mxu0 %v1351
      %v1915 = vpop.f32.mrf.mxu0
      %v1916 = vadd.f32 %v437, %v1915
      %v1917 = vpop.f32.mrf.mxu0
      %v1918 = vadd.f32 %v437, %v1917
      %1919 = vmatmul.bf16.gmra.mxu0 %v1354
      %v1920 = vpop.f32.mrf.mxu0
      %v1921 = vadd.f32 %v437, %v1920
      %v1922 = vpop.f32.mrf.mxu0
      %v1923 = vadd.f32 %v437, %v1922
      %1924 = vmatmul.bf16.gmra.mxu0 %v1357
      %v1925 = vpop.f32.mrf.mxu0
      %v1926 = vadd.f32 %v437, %v1925
      %v1927 = vpop.f32.mrf.mxu0
      %v1928 = vadd.f32 %v437, %v1927
      %1929 = vmatmul.bf16.gmra.mxu0 %v1360
      %v1930 = vpop.f32.mrf.mxu0
      %v1931 = vadd.f32 %v437, %v1930
      %v1932 = vpop.f32.mrf.mxu0
      %v1933 = vadd.f32 %v437, %v1932
      %1934 = vmatmul.bf16.gmra.mxu0 %v1363
      %v1935 = vpop.f32.mrf.mxu0
      %v1936 = vadd.f32 %v437, %v1935
      %v1937 = vpop.f32.mrf.mxu0
      %v1938 = vadd.f32 %v437, %v1937
      %1939 = vmatmul.bf16.gmra.mxu0 %v1366
      %v1940 = vpop.f32.mrf.mxu0
      %v1941 = vadd.f32 %v437, %v1940
      %v1942 = vpop.f32.mrf.mxu0
      %v1943 = vadd.f32 %v437, %v1942
      %1944 = vmatmul.bf16.gmra.mxu0 %v1369
      %v1945 = vpop.f32.mrf.mxu0
      %v1946 = vadd.f32 %v437, %v1945
      %v1947 = vpop.f32.mrf.mxu0
      %v1948 = vadd.f32 %v437, %v1947
      %1949 = vmatmul.bf16.gmra.mxu0 %v1372
      %v1950 = vpop.f32.mrf.mxu0
      %v1951 = vadd.f32 %v437, %v1950
      %v1952 = vpop.f32.mrf.mxu0
      %v1953 = vadd.f32 %v437, %v1952
      %1954 = vmatmul.bf16.gmra.mxu0 %v1375
      %v1955 = vpop.f32.mrf.mxu0
      %v1956 = vadd.f32 %v437, %v1955
      %v1957 = vpop.f32.mrf.mxu0
      %v1958 = vadd.f32 %v437, %v1957
      %1959 = vmatmul.bf16.gmra.mxu0 %v1378
      %v1960 = vpop.f32.mrf.mxu0
      %v1961 = vadd.f32 %v437, %v1960
      %v1962 = vpop.f32.mrf.mxu0
      %v1963 = vadd.f32 %v437, %v1962
      %1964 = vmatmul.bf16.gmra.mxu0 %v1381
      %v1965 = vpop.f32.mrf.mxu0
      %v1966 = vadd.f32 %v437, %v1965
      %v1967 = vpop.f32.mrf.mxu0
      %v1968 = vadd.f32 %v437, %v1967
      %1969 = vmatmul.bf16.gmra.mxu0 %v1384
      %v1970 = vpop.f32.mrf.mxu0
      %v1971 = vadd.f32 %v437, %v1970
      %v1972 = vpop.f32.mrf.mxu0
      %v1973 = vadd.f32 %v437, %v1972
      %1974 = vmatmul.bf16.gmra.mxu0 %v1387
      %v1975 = vpop.f32.mrf.mxu0
      %v1976 = vadd.f32 %v437, %v1975
      %v1977 = vpop.f32.mrf.mxu0
      %v1978 = vadd.f32 %v437, %v1977
      %1979 = vmatmul.bf16.gmra.mxu0 %v1390
      %v1980 = vpop.f32.mrf.mxu0
      %v1981 = vadd.f32 %v437, %v1980
      %v1982 = vpop.f32.mrf.mxu0
      %v1983 = vadd.f32 %v437, %v1982
      %1984 = vmatmul.bf16.gmra.mxu0 %v1393
      %v1985 = vpop.f32.mrf.mxu0
      %v1986 = vadd.f32 %v437, %v1985
      %v1987 = vpop.f32.mrf.mxu0
      %v1988 = vadd.f32 %v437, %v1987
      %1989 = vmatmul.bf16.gmra.mxu0 %v1396
      %v1990 = vpop.f32.mrf.mxu0
      %v1991 = vadd.f32 %v437, %v1990
      %v1992 = vpop.f32.mrf.mxu0
      %v1993 = vadd.f32 %v437, %v1992
      %1994 = vmatmul.bf16.gmra.mxu0 %v1399
      %v1995 = vpop.f32.mrf.mxu0
      %v1996 = vadd.f32 %v437, %v1995
      %v1997 = vpop.f32.mrf.mxu0
      %v1998 = vadd.f32 %v437, %v1997
      %1999 = vmatmul.bf16.gmra.mxu0 %v1402
      %v2000 = vpop.f32.mrf.mxu0
      %v2001 = vadd.f32 %v437, %v2000
      %v2002 = vpop.f32.mrf.mxu0
      %v2003 = vadd.f32 %v437, %v2002
      %2004 = vmatmul.bf16.gmra.mxu0 %v1405
      %v2005 = vpop.f32.mrf.mxu0
      %v2006 = vadd.f32 %v437, %v2005
      %v2007 = vpop.f32.mrf.mxu0
      %v2008 = vadd.f32 %v437, %v2007
      %2009 = vmatmul.bf16.gmra.mxu0 %v1408
      %v2010 = vpop.f32.mrf.mxu0
      %v2011 = vadd.f32 %v437, %v2010
      %v2012 = vpop.f32.mrf.mxu0
      %v2013 = vadd.f32 %v437, %v2012
      %2014 = vmatmul.bf16.gmra.mxu0 %v1411
      %v2015 = vpop.f32.mrf.mxu0
      %v2016 = vadd.f32 %v437, %v2015
      %v2017 = vpop.f32.mrf.mxu0
      %v2018 = vadd.f32 %v437, %v2017
      %2019 = vmatmul.bf16.gmra.mxu0 %v1414
      %v2020 = vpop.f32.mrf.mxu0
      %v2021 = vadd.f32 %v437, %v2020
      %v2022 = vpop.f32.mrf.mxu0
      %v2023 = vadd.f32 %v437, %v2022
      %2024 = vmatmul.bf16.gmra.mxu0 %v1417
      %v2025 = vpop.f32.mrf.mxu0
      %v2026 = vadd.f32 %v437, %v2025
      %v2027 = vpop.f32.mrf.mxu0
      %v2028 = vadd.f32 %v437, %v2027
      %2029 = vmatmul.bf16.gmra.mxu0 %v1420
      %v2030 = vpop.f32.mrf.mxu0
      %v2031 = vadd.f32 %v437, %v2030
      %v2032 = vpop.f32.mrf.mxu0
      %v2033 = vadd.f32 %v437, %v2032
      %2034 = vmatmul.bf16.gmra.mxu0 %v1423
      %v2035 = vpop.f32.mrf.mxu0
      %v2036 = vadd.f32 %v437, %v2035
      %v2037 = vpop.f32.mrf.mxu0
      %v2038 = vadd.f32 %v437, %v2037
      %2039 = vmatmul.bf16.gmra.mxu0 %v1426
      %v2040 = vpop.f32.mrf.mxu0
      %v2041 = vadd.f32 %v437, %v2040
      %v2042 = vpop.f32.mrf.mxu0
      %v2043 = vadd.f32 %v437, %v2042
      %2044 = vmatmul.bf16.gmra.mxu0 %v1429
      %v2045 = vpop.f32.mrf.mxu0
      %v2046 = vadd.f32 %v437, %v2045
      %v2047 = vpop.f32.mrf.mxu0
      %v2048 = vadd.f32 %v437, %v2047
      %2049 = vmatmul.bf16.gmra.mxu0 %v1432
      %v2050 = vpop.f32.mrf.mxu0
      %v2051 = vadd.f32 %v437, %v2050
      %v2052 = vpop.f32.mrf.mxu0
      %v2053 = vadd.f32 %v437, %v2052
      %2054 = vmatmul.bf16.gmra.mxu0 %v1435
      %v2055 = vpop.f32.mrf.mxu0
      %v2056 = vadd.f32 %v437, %v2055
      %v2057 = vpop.f32.mrf.mxu0
      %v2058 = vadd.f32 %v437, %v2057
      %2059 = vmatmul.bf16.gmra.mxu0 %v1438
      %v2060 = vpop.f32.mrf.mxu0
      %v2061 = vadd.f32 %v437, %v2060
      %v2062 = vpop.f32.mrf.mxu0
      %v2063 = vadd.f32 %v437, %v2062
      %2064 = vmatmul.bf16.gmra.mxu0 %v1441
      %v2065 = vpop.f32.mrf.mxu0
      %v2066 = vadd.f32 %v437, %v2065
      %v2067 = vpop.f32.mrf.mxu0
      %v2068 = vadd.f32 %v437, %v2067
      %2069 = vmatmul.bf16.gmra.mxu0 %v1444
      %v2070 = vpop.f32.mrf.mxu0
      %v2071 = vadd.f32 %v437, %v2070
      %v2072 = vpop.f32.mrf.mxu0
      %v2073 = vadd.f32 %v437, %v2072
      %2074 = vmatmul.bf16.gmra.mxu0 %v1447
      %v2075 = vpop.f32.mrf.mxu0
      %v2076 = vadd.f32 %v437, %v2075
      %v2077 = vpop.f32.mrf.mxu0
      %v2078 = vadd.f32 %v437, %v2077
      %2079 = vmatmul.bf16.gmra.mxu0 %v1450
      %v2080 = vpop.f32.mrf.mxu0
      %v2081 = vadd.f32 %v437, %v2080
      %v2082 = vpop.f32.mrf.mxu0
      %v2083 = vadd.f32 %v437, %v2082
      %2084 = vmatmul.bf16.gmra.mxu0 %v1453
      %v2085 = vpop.f32.mrf.mxu0
      %v2086 = vadd.f32 %v437, %v2085
      %v2087 = vpop.f32.mrf.mxu0
      %v2088 = vadd.f32 %v437, %v2087
      %2089 = vmatmul.bf16.gmra.mxu0 %v1456
      %v2090 = vpop.f32.mrf.mxu0
      %v2091 = vadd.f32 %v437, %v2090
      %v2092 = vpop.f32.mrf.mxu0
      %v2093 = vadd.f32 %v437, %v2092
      %2094 = vmatmul.bf16.gmra.mxu0 %v1459
      %v2095 = vpop.f32.mrf.mxu0
      %v2096 = vadd.f32 %v437, %v2095
      %v2097 = vpop.f32.mrf.mxu0
      %v2098 = vadd.f32 %v437, %v2097
      %2099 = vmatmul.bf16.gmra.mxu0 %v1462
      %v2100 = vpop.f32.mrf.mxu0
      %v2101 = vadd.f32 %v437, %v2100
      %v2102 = vpop.f32.mrf.mxu0
      %v2103 = vadd.f32 %v437, %v2102
      %2104 = vmatmul.bf16.gmra.mxu0 %v1465
      %v2105 = vpop.f32.mrf.mxu0
      %v2106 = vadd.f32 %v437, %v2105
      %v2107 = vpop.f32.mrf.mxu0
      %v2108 = vadd.f32 %v437, %v2107
      %2109 = vmatmul.bf16.gmra.mxu0 %v1468
      %v2110 = vpop.f32.mrf.mxu0
      %v2111 = vadd.f32 %v437, %v2110
      %v2112 = vpop.f32.mrf.mxu0
      %v2113 = vadd.f32 %v437, %v2112
      %2114 = vmatmul.bf16.gmra.mxu0 %v1471
      %v2115 = vpop.f32.mrf.mxu0
      %v2116 = vadd.f32 %v437, %v2115
      %v2117 = vpop.f32.mrf.mxu0
      %v2118 = vadd.f32 %v437, %v2117
      %2119 = vmatmul.bf16.gmra.mxu0 %v1474
      %v2120 = vpop.f32.mrf.mxu0
      %v2121 = vadd.f32 %v437, %v2120
      %v2122 = vpop.f32.mrf.mxu0
      %v2123 = vadd.f32 %v437, %v2122
      %2124 = vdwg.mxu0
      %v2125 = vmax.f32 %v1486, 0.0
      %v2126 = vmax.f32 %v1488, 0.0
      %v2127 = vmax.f32 %v1491, 0.0
      %v2128 = vmax.f32 %v1493, 0.0
      %v2129 = vmax.f32 %v1496, 0.0
      %v2130 = vmax.f32 %v1498, 0.0
      %v2131 = vmax.f32 %v1501, 0.0
      %v2132 = vmax.f32 %v1503, 0.0
      %v2133 = vmax.f32 %v1506, 0.0
      %v2134 = vmax.f32 %v1508, 0.0
      %v2135 = vmax.f32 %v1511, 0.0
      %v2136 = vmax.f32 %v1513, 0.0
      %v2137 = vmax.f32 %v1516, 0.0
      %v2138 = vmax.f32 %v1518, 0.0
      %v2139 = vmax.f32 %v1521, 0.0
      %v2140 = vmax.f32 %v1523, 0.0
      %v2141 = vmax.f32 %v1526, 0.0
      %v2142 = vmax.f32 %v1528, 0.0
      %v2143 = vmax.f32 %v1531, 0.0
      %v2144 = vmax.f32 %v1533, 0.0
      %v2145 = vmax.f32 %v1536, 0.0
      %v2146 = vmax.f32 %v1538, 0.0
      %v2147 = vmax.f32 %v1541, 0.0
      %v2148 = vmax.f32 %v1543, 0.0
      %v2149 = vmax.f32 %v1546, 0.0
      %v2150 = vmax.f32 %v1548, 0.0
      %v2151 = vmax.f32 %v1551, 0.0
      %v2152 = vmax.f32 %v1553, 0.0
      %v2153 = vmax.f32 %v1556, 0.0
      %v2154 = vmax.f32 %v1558, 0.0
      %v2155 = vmax.f32 %v1561, 0.0
      %v2156 = vmax.f32 %v1563, 0.0
      %v2157 = vmax.f32 %v1566, 0.0
      %v2158 = vmax.f32 %v1568, 0.0
      %v2159 = vmax.f32 %v1571, 0.0
      %v2160 = vmax.f32 %v1573, 0.0
      %v2161 = vmax.f32 %v1576, 0.0
      %v2162 = vmax.f32 %v1578, 0.0
      %v2163 = vmax.f32 %v1581, 0.0
      %v2164 = vmax.f32 %v1583, 0.0
      %v2165 = vmax.f32 %v1586, 0.0
      %v2166 = vmax.f32 %v1588, 0.0
      %v2167 = vmax.f32 %v1591, 0.0
      %v2168 = vmax.f32 %v1593, 0.0
      %v2169 = vmax.f32 %v1596, 0.0
      %v2170 = vmax.f32 %v1598, 0.0
      %v2171 = vmax.f32 %v1601, 0.0
      %v2172 = vmax.f32 %v1603, 0.0
      %v2173 = vmax.f32 %v1606, 0.0
      %v2174 = vmax.f32 %v1608, 0.0
      %v2175 = vmax.f32 %v1611, 0.0
      %v2176 = vmax.f32 %v1613, 0.0
      %v2177 = vmax.f32 %v1616, 0.0
      %v2178 = vmax.f32 %v1618, 0.0
      %v2179 = vmax.f32 %v1621, 0.0
      %v2180 = vmax.f32 %v1623, 0.0
      %v2181 = vmax.f32 %v1626, 0.0
      %v2182 = vmax.f32 %v1628, 0.0
      %v2183 = vmax.f32 %v1631, 0.0
      %v2184 = vmax.f32 %v1633, 0.0
      %v2185 = vmax.f32 %v1636, 0.0
      %v2186 = vmax.f32 %v1638, 0.0
      %v2187 = vmax.f32 %v1641, 0.0
      %v2188 = vmax.f32 %v1643, 0.0
      %v2189 = vmax.f32 %v1646, 0.0
      %v2190 = vmax.f32 %v1648, 0.0
      %v2191 = vmax.f32 %v1651, 0.0
      %v2192 = vmax.f32 %v1653, 0.0
      %v2193 = vmax.f32 %v1656, 0.0
      %v2194 = vmax.f32 %v1658, 0.0
      %v2195 = vmax.f32 %v1661, 0.0
      %v2196 = vmax.f32 %v1663, 0.0
      %v2197 = vmax.f32 %v1666, 0.0
      %v2198 = vmax.f32 %v1668, 0.0
      %v2199 = vmax.f32 %v1671, 0.0
      %v2200 = vmax.f32 %v1673, 0.0
      %v2201 = vmax.f32 %v1676, 0.0
      %v2202 = vmax.f32 %v1678, 0.0
      %v2203 = vmax.f32 %v1681, 0.0
      %v2204 = vmax.f32 %v1683, 0.0
      %v2205 = vmax.f32 %v1686, 0.0
      %v2206 = vmax.f32 %v1688, 0.0
      %v2207 = vmax.f32 %v1691, 0.0
      %v2208 = vmax.f32 %v1693, 0.0
      %v2209 = vmax.f32 %v1696, 0.0
      %v2210 = vmax.f32 %v1698, 0.0
      %v2211 = vmax.f32 %v1701, 0.0
      %v2212 = vmax.f32 %v1703, 0.0
      %v2213 = vmax.f32 %v1706, 0.0
      %v2214 = vmax.f32 %v1708, 0.0
      %v2215 = vmax.f32 %v1711, 0.0
      %v2216 = vmax.f32 %v1713, 0.0
      %v2217 = vmax.f32 %v1716, 0.0
      %v2218 = vmax.f32 %v1718, 0.0
      %v2219 = vmax.f32 %v1721, 0.0
      %v2220 = vmax.f32 %v1723, 0.0
      %v2221 = vmax.f32 %v1726, 0.0
      %v2222 = vmax.f32 %v1728, 0.0
      %v2223 = vmax.f32 %v1731, 0.0
      %v2224 = vmax.f32 %v1733, 0.0
      %v2225 = vmax.f32 %v1736, 0.0
      %v2226 = vmax.f32 %v1738, 0.0
      %v2227 = vmax.f32 %v1741, 0.0
      %v2228 = vmax.f32 %v1743, 0.0
      %v2229 = vmax.f32 %v1746, 0.0
      %v2230 = vmax.f32 %v1748, 0.0
      %v2231 = vmax.f32 %v1751, 0.0
      %v2232 = vmax.f32 %v1753, 0.0
      %v2233 = vmax.f32 %v1756, 0.0
      %v2234 = vmax.f32 %v1758, 0.0
      %v2235 = vmax.f32 %v1761, 0.0
      %v2236 = vmax.f32 %v1763, 0.0
      %v2237 = vmax.f32 %v1766, 0.0
      %v2238 = vmax.f32 %v1768, 0.0
      %v2239 = vmax.f32 %v1771, 0.0
      %v2240 = vmax.f32 %v1773, 0.0
      %v2241 = vmax.f32 %v1776, 0.0
      %v2242 = vmax.f32 %v1778, 0.0
      %v2243 = vmax.f32 %v1781, 0.0
      %v2244 = vmax.f32 %v1783, 0.0
      %v2245 = vmax.f32 %v1786, 0.0
      %v2246 = vmax.f32 %v1788, 0.0
      %v2247 = vmax.f32 %v1791, 0.0
      %v2248 = vmax.f32 %v1793, 0.0
      %v2249 = vmax.f32 %v1796, 0.0
      %v2250 = vmax.f32 %v1798, 0.0
      %v2251 = vmax.f32 %v1801, 0.0
      %v2252 = vmax.f32 %v1803, 0.0
      %v2253 = vmax.f32 %v1806, 0.0
      %v2254 = vmax.f32 %v1808, 0.0
      %v2255 = vmax.f32 %v1811, 0.0
      %v2256 = vmax.f32 %v1813, 0.0
      %v2257 = vmax.f32 %v1816, 0.0
      %v2258 = vmax.f32 %v1818, 0.0
      %v2259 = vmax.f32 %v1821, 0.0
      %v2260 = vmax.f32 %v1823, 0.0
      %v2261 = vmax.f32 %v1826, 0.0
      %v2262 = vmax.f32 %v1828, 0.0
      %v2263 = vmax.f32 %v1831, 0.0
      %v2264 = vmax.f32 %v1833, 0.0
      %v2265 = vmax.f32 %v1836, 0.0
      %v2266 = vmax.f32 %v1838, 0.0
      %v2267 = vmax.f32 %v1841, 0.0
      %v2268 = vmax.f32 %v1843, 0.0
      %v2269 = vmax.f32 %v1846, 0.0
      %v2270 = vmax.f32 %v1848, 0.0
      %v2271 = vmax.f32 %v1851, 0.0
      %v2272 = vmax.f32 %v1853, 0.0
      %v2273 = vmax.f32 %v1856, 0.0
      %v2274 = vmax.f32 %v1858, 0.0
      %v2275 = vmax.f32 %v1861, 0.0
      %v2276 = vmax.f32 %v1863, 0.0
      %v2277 = vmax.f32 %v1866, 0.0
      %v2278 = vmax.f32 %v1868, 0.0
      %v2279 = vmax.f32 %v1871, 0.0
      %v2280 = vmax.f32 %v1873, 0.0
      %v2281 = vmax.f32 %v1876, 0.0
      %v2282 = vmax.f32 %v1878, 0.0
      %v2283 = vmax.f32 %v1881, 0.0
      %v2284 = vmax.f32 %v1883, 0.0
      %v2285 = vmax.f32 %v1886, 0.0
      %v2286 = vmax.f32 %v1888, 0.0
      %v2287 = vmax.f32 %v1891, 0.0
      %v2288 = vmax.f32 %v1893, 0.0
      %v2289 = vmax.f32 %v1896, 0.0
      %v2290 = vmax.f32 %v1898, 0.0
      %v2291 = vmax.f32 %v1901, 0.0
      %v2292 = vmax.f32 %v1903, 0.0
      %v2293 = vmax.f32 %v1906, 0.0
      %v2294 = vmax.f32 %v1908, 0.0
      %v2295 = vmax.f32 %v1911, 0.0
      %v2296 = vmax.f32 %v1913, 0.0
      %v2297 = vmax.f32 %v1916, 0.0
      %v2298 = vmax.f32 %v1918, 0.0
      %v2299 = vmax.f32 %v1921, 0.0
      %v2300 = vmax.f32 %v1923, 0.0
      %v2301 = vmax.f32 %v1926, 0.0
      %v2302 = vmax.f32 %v1928, 0.0
      %v2303 = vmax.f32 %v1931, 0.0
      %v2304 = vmax.f32 %v1933, 0.0
      %v2305 = vmax.f32 %v1936, 0.0
      %v2306 = vmax.f32 %v1938, 0.0
      %v2307 = vmax.f32 %v1941, 0.0
      %v2308 = vmax.f32 %v1943, 0.0
      %v2309 = vmax.f32 %v1946, 0.0
      %v2310 = vmax.f32 %v1948, 0.0
      %v2311 = vmax.f32 %v1951, 0.0
      %v2312 = vmax.f32 %v1953, 0.0
      %v2313 = vmax.f32 %v1956, 0.0
      %v2314 = vmax.f32 %v1958, 0.0
      %v2315 = vmax.f32 %v1961, 0.0
      %v2316 = vmax.f32 %v1963, 0.0
      %v2317 = vmax.f32 %v1966, 0.0
      %v2318 = vmax.f32 %v1968, 0.0
      %v2319 = vmax.f32 %v1971, 0.0
      %v2320 = vmax.f32 %v1973, 0.0
      %v2321 = vmax.f32 %v1976, 0.0
      %v2322 = vmax.f32 %v1978, 0.0
      %v2323 = vmax.f32 %v1981, 0.0
      %v2324 = vmax.f32 %v1983, 0.0
      %v2325 = vmax.f32 %v1986, 0.0
      %v2326 = vmax.f32 %v1988, 0.0
      %v2327 = vmax.f32 %v1991, 0.0
      %v2328 = vmax.f32 %v1993, 0.0
      %v2329 = vmax.f32 %v1996, 0.0
      %v2330 = vmax.f32 %v1998, 0.0
      %v2331 = vmax.f32 %v2001, 0.0
      %v2332 = vmax.f32 %v2003, 0.0
      %v2333 = vmax.f32 %v2006, 0.0
      %v2334 = vmax.f32 %v2008, 0.0
      %v2335 = vmax.f32 %v2011, 0.0
      %v2336 = vmax.f32 %v2013, 0.0
      %v2337 = vmax.f32 %v2016, 0.0
      %v2338 = vmax.f32 %v2018, 0.0
      %v2339 = vmax.f32 %v2021, 0.0
      %v2340 = vmax.f32 %v2023, 0.0
      %v2341 = vmax.f32 %v2026, 0.0
      %v2342 = vmax.f32 %v2028, 0.0
      %v2343 = vmax.f32 %v2031, 0.0
      %v2344 = vmax.f32 %v2033, 0.0
      %v2345 = vmax.f32 %v2036, 0.0
      %v2346 = vmax.f32 %v2038, 0.0
      %v2347 = vmax.f32 %v2041, 0.0
      %v2348 = vmax.f32 %v2043, 0.0
      %v2349 = vmax.f32 %v2046, 0.0
      %v2350 = vmax.f32 %v2048, 0.0
      %v2351 = vmax.f32 %v2051, 0.0
      %v2352 = vmax.f32 %v2053, 0.0
      %v2353 = vmax.f32 %v2056, 0.0
      %v2354 = vmax.f32 %v2058, 0.0
      %v2355 = vmax.f32 %v2061, 0.0
      %v2356 = vmax.f32 %v2063, 0.0
      %v2357 = vmax.f32 %v2066, 0.0
      %v2358 = vmax.f32 %v2068, 0.0
      %v2359 = vmax.f32 %v2071, 0.0
      %v2360 = vmax.f32 %v2073, 0.0
      %v2361 = vmax.f32 %v2076, 0.0
      %v2362 = vmax.f32 %v2078, 0.0
      %v2363 = vmax.f32 %v2081, 0.0
      %v2364 = vmax.f32 %v2083, 0.0
      %v2365 = vmax.f32 %v2086, 0.0
      %v2366 = vmax.f32 %v2088, 0.0
      %v2367 = vmax.f32 %v2091, 0.0
      %v2368 = vmax.f32 %v2093, 0.0
      %v2369 = vmax.f32 %v2096, 0.0
      %v2370 = vmax.f32 %v2098, 0.0
      %v2371 = vmax.f32 %v2101, 0.0
      %v2372 = vmax.f32 %v2103, 0.0
      %v2373 = vmax.f32 %v2106, 0.0
      %v2374 = vmax.f32 %v2108, 0.0
      %v2375 = vmax.f32 %v2111, 0.0
      %v2376 = vmax.f32 %v2113, 0.0
      %v2377 = vmax.f32 %v2116, 0.0
      %v2378 = vmax.f32 %v2118, 0.0
      %v2379 = vmax.f32 %v2121, 0.0
      %v2380 = vmax.f32 %v2123, 0.0
      %vm2381 = vcmask 64512
      %2382 = vst.msk [vmem:[%s172] sm:$0xff] %vm2381, %v2125
      %2383 = vst.msk [vmem:[%s172 + $0x8] sm:$0xff] %vm2381, %v2126
      %2384 = vst.msk [vmem:[%s172 + $0x10] sm:$0xff] %vm2381, %v2127
      %2385 = vst.msk [vmem:[%s172 + $0x18] sm:$0xff] %vm2381, %v2128
      %2386 = vst.msk [vmem:[%s172 + $0x20] sm:$0xff] %vm2381, %v2129
      %2387 = vst.msk [vmem:[%s172 + $0x28] sm:$0xff] %vm2381, %v2130
      %2388 = vst.msk [vmem:[%s172 + $0x30] sm:$0xff] %vm2381, %v2131
      %2389 = vst.msk [vmem:[%s172 + $0x38] sm:$0xff] %vm2381, %v2132
      %2390 = vst.msk [vmem:[%s172 + $0x40] sm:$0xff] %vm2381, %v2133
      %2391 = vst.msk [vmem:[%s172 + $0x48] sm:$0xff] %vm2381, %v2134
      %2392 = vst.msk [vmem:[%s172 + $0x50] sm:$0xff] %vm2381, %v2135
      %2393 = vst.msk [vmem:[%s172 + $0x58] sm:$0xff] %vm2381, %v2136
      %2394 = vst.msk [vmem:[%s172 + $0x60] sm:$0xff] %vm2381, %v2137
      %2395 = vst.msk [vmem:[%s172 + $0x68] sm:$0xff] %vm2381, %v2138
      %2396 = vst.msk [vmem:[%s172 + $0x70] sm:$0xff] %vm2381, %v2139
      %2397 = vst.msk [vmem:[%s172 + $0x78] sm:$0xff] %vm2381, %v2140
      %2398 = vst.msk [vmem:[%s172 + $0x80] sm:$0xff] %vm2381, %v2141
      %2399 = vst.msk [vmem:[%s172 + $0x88] sm:$0xff] %vm2381, %v2142
      %2400 = vst.msk [vmem:[%s172 + $0x90] sm:$0xff] %vm2381, %v2143
      %2401 = vst.msk [vmem:[%s172 + $0x98] sm:$0xff] %vm2381, %v2144
      %2402 = vst.msk [vmem:[%s172 + $0xa0] sm:$0xff] %vm2381, %v2145
      %2403 = vst.msk [vmem:[%s172 + $0xa8] sm:$0xff] %vm2381, %v2146
      %2404 = vst.msk [vmem:[%s172 + $0xb0] sm:$0xff] %vm2381, %v2147
      %2405 = vst.msk [vmem:[%s172 + $0xb8] sm:$0xff] %vm2381, %v2148
      %2406 = vst.msk [vmem:[%s172 + $0xc0] sm:$0xff] %vm2381, %v2149
      %2407 = vst.msk [vmem:[%s172 + $0xc8] sm:$0xff] %vm2381, %v2150
      %2408 = vst.msk [vmem:[%s172 + $0xd0] sm:$0xff] %vm2381, %v2151
      %2409 = vst.msk [vmem:[%s172 + $0xd8] sm:$0xff] %vm2381, %v2152
      %2410 = vst.msk [vmem:[%s172 + $0xe0] sm:$0xff] %vm2381, %v2153
      %2411 = vst.msk [vmem:[%s172 + $0xe8] sm:$0xff] %vm2381, %v2154
      %2412 = vst.msk [vmem:[%s172 + $0xf0] sm:$0xff] %vm2381, %v2155
      %2413 = vst.msk [vmem:[%s172 + $0xf8] sm:$0xff] %vm2381, %v2156
      %2414 = vst.msk [vmem:[%s172 + $0x100] sm:$0xff] %vm2381, %v2157
      %2415 = vst.msk [vmem:[%s172 + $0x108] sm:$0xff] %vm2381, %v2158
      %2416 = vst.msk [vmem:[%s172 + $0x110] sm:$0xff] %vm2381, %v2159
      %2417 = vst.msk [vmem:[%s172 + $0x118] sm:$0xff] %vm2381, %v2160
      %2418 = vst.msk [vmem:[%s172 + $0x120] sm:$0xff] %vm2381, %v2161
      %2419 = vst.msk [vmem:[%s172 + $0x128] sm:$0xff] %vm2381, %v2162
      %2420 = vst.msk [vmem:[%s172 + $0x130] sm:$0xff] %vm2381, %v2163
      %2421 = vst.msk [vmem:[%s172 + $0x138] sm:$0xff] %vm2381, %v2164
      %2422 = vst.msk [vmem:[%s172 + $0x140] sm:$0xff] %vm2381, %v2165
      %2423 = vst.msk [vmem:[%s172 + $0x148] sm:$0xff] %vm2381, %v2166
      %2424 = vst.msk [vmem:[%s172 + $0x150] sm:$0xff] %vm2381, %v2167
      %2425 = vst.msk [vmem:[%s172 + $0x158] sm:$0xff] %vm2381, %v2168
      %2426 = vst.msk [vmem:[%s172 + $0x160] sm:$0xff] %vm2381, %v2169
      %2427 = vst.msk [vmem:[%s172 + $0x168] sm:$0xff] %vm2381, %v2170
      %2428 = vst.msk [vmem:[%s172 + $0x170] sm:$0xff] %vm2381, %v2171
      %2429 = vst.msk [vmem:[%s172 + $0x178] sm:$0xff] %vm2381, %v2172
      %2430 = vst.msk [vmem:[%s172 + $0x180] sm:$0xff] %vm2381, %v2173
      %2431 = vst.msk [vmem:[%s172 + $0x188] sm:$0xff] %vm2381, %v2174
      %2432 = vst.msk [vmem:[%s172 + $0x190] sm:$0xff] %vm2381, %v2175
      %2433 = vst.msk [vmem:[%s172 + $0x198] sm:$0xff] %vm2381, %v2176
      %2434 = vst.msk [vmem:[%s172 + $0x1a0] sm:$0xff] %vm2381, %v2177
      %2435 = vst.msk [vmem:[%s172 + $0x1a8] sm:$0xff] %vm2381, %v2178
      %2436 = vst.msk [vmem:[%s172 + $0x1b0] sm:$0xff] %vm2381, %v2179
      %2437 = vst.msk [vmem:[%s172 + $0x1b8] sm:$0xff] %vm2381, %v2180
      %2438 = vst.msk [vmem:[%s172 + $0x1c0] sm:$0xff] %vm2381, %v2181
      %2439 = vst.msk [vmem:[%s172 + $0x1c8] sm:$0xff] %vm2381, %v2182
      %2440 = vst.msk [vmem:[%s172 + $0x1d0] sm:$0xff] %vm2381, %v2183
      %2441 = vst.msk [vmem:[%s172 + $0x1d8] sm:$0xff] %vm2381, %v2184
      %2442 = vst.msk [vmem:[%s172 + $0x1e0] sm:$0xff] %vm2381, %v2185
      %2443 = vst.msk [vmem:[%s172 + $0x1e8] sm:$0xff] %vm2381, %v2186
      %2444 = vst.msk [vmem:[%s172 + $0x1f0] sm:$0xff] %vm2381, %v2187
      %2445 = vst.msk [vmem:[%s172 + $0x1f8] sm:$0xff] %vm2381, %v2188
      %2446 = vst.msk [vmem:[%s172 + $0x200] sm:$0xff] %vm2381, %v2189
      %2447 = vst.msk [vmem:[%s172 + $0x208] sm:$0xff] %vm2381, %v2190
      %2448 = vst.msk [vmem:[%s172 + $0x210] sm:$0xff] %vm2381, %v2191
      %2449 = vst.msk [vmem:[%s172 + $0x218] sm:$0xff] %vm2381, %v2192
      %2450 = vst.msk [vmem:[%s172 + $0x220] sm:$0xff] %vm2381, %v2193
      %2451 = vst.msk [vmem:[%s172 + $0x228] sm:$0xff] %vm2381, %v2194
      %2452 = vst.msk [vmem:[%s172 + $0x230] sm:$0xff] %vm2381, %v2195
      %2453 = vst.msk [vmem:[%s172 + $0x238] sm:$0xff] %vm2381, %v2196
      %2454 = vst.msk [vmem:[%s172 + $0x240] sm:$0xff] %vm2381, %v2197
      %2455 = vst.msk [vmem:[%s172 + $0x248] sm:$0xff] %vm2381, %v2198
      %2456 = vst.msk [vmem:[%s172 + $0x250] sm:$0xff] %vm2381, %v2199
      %2457 = vst.msk [vmem:[%s172 + $0x258] sm:$0xff] %vm2381, %v2200
      %2458 = vst.msk [vmem:[%s172 + $0x260] sm:$0xff] %vm2381, %v2201
      %2459 = vst.msk [vmem:[%s172 + $0x268] sm:$0xff] %vm2381, %v2202
      %2460 = vst.msk [vmem:[%s172 + $0x270] sm:$0xff] %vm2381, %v2203
      %2461 = vst.msk [vmem:[%s172 + $0x278] sm:$0xff] %vm2381, %v2204
      %2462 = vst.msk [vmem:[%s172 + $0x280] sm:$0xff] %vm2381, %v2205
      %2463 = vst.msk [vmem:[%s172 + $0x288] sm:$0xff] %vm2381, %v2206
      %2464 = vst.msk [vmem:[%s172 + $0x290] sm:$0xff] %vm2381, %v2207
      %2465 = vst.msk [vmem:[%s172 + $0x298] sm:$0xff] %vm2381, %v2208
      %2466 = vst.msk [vmem:[%s172 + $0x2a0] sm:$0xff] %vm2381, %v2209
      %2467 = vst.msk [vmem:[%s172 + $0x2a8] sm:$0xff] %vm2381, %v2210
      %2468 = vst.msk [vmem:[%s172 + $0x2b0] sm:$0xff] %vm2381, %v2211
      %2469 = vst.msk [vmem:[%s172 + $0x2b8] sm:$0xff] %vm2381, %v2212
      %2470 = vst.msk [vmem:[%s172 + $0x2c0] sm:$0xff] %vm2381, %v2213
      %2471 = vst.msk [vmem:[%s172 + $0x2c8] sm:$0xff] %vm2381, %v2214
      %2472 = vst.msk [vmem:[%s172 + $0x2d0] sm:$0xff] %vm2381, %v2215
      %2473 = vst.msk [vmem:[%s172 + $0x2d8] sm:$0xff] %vm2381, %v2216
      %2474 = vst.msk [vmem:[%s172 + $0x2e0] sm:$0xff] %vm2381, %v2217
      %2475 = vst.msk [vmem:[%s172 + $0x2e8] sm:$0xff] %vm2381, %v2218
      %2476 = vst.msk [vmem:[%s172 + $0x2f0] sm:$0xff] %vm2381, %v2219
      %2477 = vst.msk [vmem:[%s172 + $0x2f8] sm:$0xff] %vm2381, %v2220
      %2478 = vst.msk [vmem:[%s172 + $0x300] sm:$0xff] %vm2381, %v2221
      %2479 = vst.msk [vmem:[%s172 + $0x308] sm:$0xff] %vm2381, %v2222
      %2480 = vst.msk [vmem:[%s172 + $0x310] sm:$0xff] %vm2381, %v2223
      %2481 = vst.msk [vmem:[%s172 + $0x318] sm:$0xff] %vm2381, %v2224
      %2482 = vst.msk [vmem:[%s172 + $0x320] sm:$0xff] %vm2381, %v2225
      %2483 = vst.msk [vmem:[%s172 + $0x328] sm:$0xff] %vm2381, %v2226
      %2484 = vst.msk [vmem:[%s172 + $0x330] sm:$0xff] %vm2381, %v2227
      %2485 = vst.msk [vmem:[%s172 + $0x338] sm:$0xff] %vm2381, %v2228
      %2486 = vst.msk [vmem:[%s172 + $0x340] sm:$0xff] %vm2381, %v2229
      %2487 = vst.msk [vmem:[%s172 + $0x348] sm:$0xff] %vm2381, %v2230
      %2488 = vst.msk [vmem:[%s172 + $0x350] sm:$0xff] %vm2381, %v2231
      %2489 = vst.msk [vmem:[%s172 + $0x358] sm:$0xff] %vm2381, %v2232
      %2490 = vst.msk [vmem:[%s172 + $0x360] sm:$0xff] %vm2381, %v2233
      %2491 = vst.msk [vmem:[%s172 + $0x368] sm:$0xff] %vm2381, %v2234
      %2492 = vst.msk [vmem:[%s172 + $0x370] sm:$0xff] %vm2381, %v2235
      %2493 = vst.msk [vmem:[%s172 + $0x378] sm:$0xff] %vm2381, %v2236
      %2494 = vst.msk [vmem:[%s172 + $0x380] sm:$0xff] %vm2381, %v2237
      %2495 = vst.msk [vmem:[%s172 + $0x388] sm:$0xff] %vm2381, %v2238
      %2496 = vst.msk [vmem:[%s172 + $0x390] sm:$0xff] %vm2381, %v2239
      %2497 = vst.msk [vmem:[%s172 + $0x398] sm:$0xff] %vm2381, %v2240
      %2498 = vst.msk [vmem:[%s172 + $0x3a0] sm:$0xff] %vm2381, %v2241
      %2499 = vst.msk [vmem:[%s172 + $0x3a8] sm:$0xff] %vm2381, %v2242
      %2500 = vst.msk [vmem:[%s172 + $0x3b0] sm:$0xff] %vm2381, %v2243
      %2501 = vst.msk [vmem:[%s172 + $0x3b8] sm:$0xff] %vm2381, %v2244
      %2502 = vst.msk [vmem:[%s172 + $0x3c0] sm:$0xff] %vm2381, %v2245
      %2503 = vst.msk [vmem:[%s172 + $0x3c8] sm:$0xff] %vm2381, %v2246
      %2504 = vst.msk [vmem:[%s172 + $0x3d0] sm:$0xff] %vm2381, %v2247
      %2505 = vst.msk [vmem:[%s172 + $0x3d8] sm:$0xff] %vm2381, %v2248
      %2506 = vst.msk [vmem:[%s172 + $0x3e0] sm:$0xff] %vm2381, %v2249
      %2507 = vst.msk [vmem:[%s172 + $0x3e8] sm:$0xff] %vm2381, %v2250
      %2508 = vst.msk [vmem:[%s172 + $0x3f0] sm:$0xff] %vm2381, %v2251
      %2509 = vst.msk [vmem:[%s172 + $0x3f8] sm:$0xff] %vm2381, %v2252
      %2510 = vst.msk [vmem:[%s172 + $0x400] sm:$0xff] %vm2381, %v2253
      %2511 = vst.msk [vmem:[%s172 + $0x408] sm:$0xff] %vm2381, %v2254
      %2512 = vst.msk [vmem:[%s172 + $0x410] sm:$0xff] %vm2381, %v2255
      %2513 = vst.msk [vmem:[%s172 + $0x418] sm:$0xff] %vm2381, %v2256
      %2514 = vst.msk [vmem:[%s172 + $0x420] sm:$0xff] %vm2381, %v2257
      %2515 = vst.msk [vmem:[%s172 + $0x428] sm:$0xff] %vm2381, %v2258
      %2516 = vst.msk [vmem:[%s172 + $0x430] sm:$0xff] %vm2381, %v2259
      %2517 = vst.msk [vmem:[%s172 + $0x438] sm:$0xff] %vm2381, %v2260
      %2518 = vst.msk [vmem:[%s172 + $0x440] sm:$0xff] %vm2381, %v2261
      %2519 = vst.msk [vmem:[%s172 + $0x448] sm:$0xff] %vm2381, %v2262
      %2520 = vst.msk [vmem:[%s172 + $0x450] sm:$0xff] %vm2381, %v2263
      %2521 = vst.msk [vmem:[%s172 + $0x458] sm:$0xff] %vm2381, %v2264
      %2522 = vst.msk [vmem:[%s172 + $0x460] sm:$0xff] %vm2381, %v2265
      %2523 = vst.msk [vmem:[%s172 + $0x468] sm:$0xff] %vm2381, %v2266
      %2524 = vst.msk [vmem:[%s172 + $0x470] sm:$0xff] %vm2381, %v2267
      %2525 = vst.msk [vmem:[%s172 + $0x478] sm:$0xff] %vm2381, %v2268
      %2526 = vst.msk [vmem:[%s172 + $0x480] sm:$0xff] %vm2381, %v2269
      %2527 = vst.msk [vmem:[%s172 + $0x488] sm:$0xff] %vm2381, %v2270
      %2528 = vst.msk [vmem:[%s172 + $0x490] sm:$0xff] %vm2381, %v2271
      %2529 = vst.msk [vmem:[%s172 + $0x498] sm:$0xff] %vm2381, %v2272
      %2530 = vst.msk [vmem:[%s172 + $0x4a0] sm:$0xff] %vm2381, %v2273
      %2531 = vst.msk [vmem:[%s172 + $0x4a8] sm:$0xff] %vm2381, %v2274
      %2532 = vst.msk [vmem:[%s172 + $0x4b0] sm:$0xff] %vm2381, %v2275
      %2533 = vst.msk [vmem:[%s172 + $0x4b8] sm:$0xff] %vm2381, %v2276
      %2534 = vst.msk [vmem:[%s172 + $0x4c0] sm:$0xff] %vm2381, %v2277
      %2535 = vst.msk [vmem:[%s172 + $0x4c8] sm:$0xff] %vm2381, %v2278
      %2536 = vst.msk [vmem:[%s172 + $0x4d0] sm:$0xff] %vm2381, %v2279
      %2537 = vst.msk [vmem:[%s172 + $0x4d8] sm:$0xff] %vm2381, %v2280
      %2538 = vst.msk [vmem:[%s172 + $0x4e0] sm:$0xff] %vm2381, %v2281
      %2539 = vst.msk [vmem:[%s172 + $0x4e8] sm:$0xff] %vm2381, %v2282
      %2540 = vst.msk [vmem:[%s172 + $0x4f0] sm:$0xff] %vm2381, %v2283
      %2541 = vst.msk [vmem:[%s172 + $0x4f8] sm:$0xff] %vm2381, %v2284
      %2542 = vst.msk [vmem:[%s172 + $0x500] sm:$0xff] %vm2381, %v2285
      %2543 = vst.msk [vmem:[%s172 + $0x508] sm:$0xff] %vm2381, %v2286
      %2544 = vst.msk [vmem:[%s172 + $0x510] sm:$0xff] %vm2381, %v2287
      %2545 = vst.msk [vmem:[%s172 + $0x518] sm:$0xff] %vm2381, %v2288
      %2546 = vst.msk [vmem:[%s172 + $0x520] sm:$0xff] %vm2381, %v2289
      %2547 = vst.msk [vmem:[%s172 + $0x528] sm:$0xff] %vm2381, %v2290
      %2548 = vst.msk [vmem:[%s172 + $0x530] sm:$0xff] %vm2381, %v2291
      %2549 = vst.msk [vmem:[%s172 + $0x538] sm:$0xff] %vm2381, %v2292
      %2550 = vst.msk [vmem:[%s172 + $0x540] sm:$0xff] %vm2381, %v2293
      %2551 = vst.msk [vmem:[%s172 + $0x548] sm:$0xff] %vm2381, %v2294
      %2552 = vst.msk [vmem:[%s172 + $0x550] sm:$0xff] %vm2381, %v2295
      %2553 = vst.msk [vmem:[%s172 + $0x558] sm:$0xff] %vm2381, %v2296
      %2554 = vst.msk [vmem:[%s172 + $0x560] sm:$0xff] %vm2381, %v2297
      %2555 = vst.msk [vmem:[%s172 + $0x568] sm:$0xff] %vm2381, %v2298
      %2556 = vst.msk [vmem:[%s172 + $0x570] sm:$0xff] %vm2381, %v2299
      %2557 = vst.msk [vmem:[%s172 + $0x578] sm:$0xff] %vm2381, %v2300
      %2558 = vst.msk [vmem:[%s172 + $0x580] sm:$0xff] %vm2381, %v2301
      %2559 = vst.msk [vmem:[%s172 + $0x588] sm:$0xff] %vm2381, %v2302
      %2560 = vst.msk [vmem:[%s172 + $0x590] sm:$0xff] %vm2381, %v2303
      %2561 = vst.msk [vmem:[%s172 + $0x598] sm:$0xff] %vm2381, %v2304
      %2562 = vst.msk [vmem:[%s172 + $0x5a0] sm:$0xff] %vm2381, %v2305
      %2563 = vst.msk [vmem:[%s172 + $0x5a8] sm:$0xff] %vm2381, %v2306
      %2564 = vst.msk [vmem:[%s172 + $0x5b0] sm:$0xff] %vm2381, %v2307
      %2565 = vst.msk [vmem:[%s172 + $0x5b8] sm:$0xff] %vm2381, %v2308
      %2566 = vst.msk [vmem:[%s172 + $0x5c0] sm:$0xff] %vm2381, %v2309
      %2567 = vst.msk [vmem:[%s172 + $0x5c8] sm:$0xff] %vm2381, %v2310
      %2568 = vst.msk [vmem:[%s172 + $0x5d0] sm:$0xff] %vm2381, %v2311
      %2569 = vst.msk [vmem:[%s172 + $0x5d8] sm:$0xff] %vm2381, %v2312
      %2570 = vst.msk [vmem:[%s172 + $0x5e0] sm:$0xff] %vm2381, %v2313
      %2571 = vst.msk [vmem:[%s172 + $0x5e8] sm:$0xff] %vm2381, %v2314
      %2572 = vst.msk [vmem:[%s172 + $0x5f0] sm:$0xff] %vm2381, %v2315
      %2573 = vst.msk [vmem:[%s172 + $0x5f8] sm:$0xff] %vm2381, %v2316
      %2574 = vst.msk [vmem:[%s172 + $0x600] sm:$0xff] %vm2381, %v2317
      %2575 = vst.msk [vmem:[%s172 + $0x608] sm:$0xff] %vm2381, %v2318
      %2576 = vst.msk [vmem:[%s172 + $0x610] sm:$0xff] %vm2381, %v2319
      %2577 = vst.msk [vmem:[%s172 + $0x618] sm:$0xff] %vm2381, %v2320
      %2578 = vst.msk [vmem:[%s172 + $0x620] sm:$0xff] %vm2381, %v2321
      %2579 = vst.msk [vmem:[%s172 + $0x628] sm:$0xff] %vm2381, %v2322
      %2580 = vst.msk [vmem:[%s172 + $0x630] sm:$0xff] %vm2381, %v2323
      %2581 = vst.msk [vmem:[%s172 + $0x638] sm:$0xff] %vm2381, %v2324
      %2582 = vst.msk [vmem:[%s172 + $0x640] sm:$0xff] %vm2381, %v2325
      %2583 = vst.msk [vmem:[%s172 + $0x648] sm:$0xff] %vm2381, %v2326
      %2584 = vst.msk [vmem:[%s172 + $0x650] sm:$0xff] %vm2381, %v2327
      %2585 = vst.msk [vmem:[%s172 + $0x658] sm:$0xff] %vm2381, %v2328
      %2586 = vst.msk [vmem:[%s172 + $0x660] sm:$0xff] %vm2381, %v2329
      %2587 = vst.msk [vmem:[%s172 + $0x668] sm:$0xff] %vm2381, %v2330
      %2588 = vst.msk [vmem:[%s172 + $0x670] sm:$0xff] %vm2381, %v2331
      %2589 = vst.msk [vmem:[%s172 + $0x678] sm:$0xff] %vm2381, %v2332
      %2590 = vst.msk [vmem:[%s172 + $0x680] sm:$0xff] %vm2381, %v2333
      %2591 = vst.msk [vmem:[%s172 + $0x688] sm:$0xff] %vm2381, %v2334
      %2592 = vst.msk [vmem:[%s172 + $0x690] sm:$0xff] %vm2381, %v2335
      %2593 = vst.msk [vmem:[%s172 + $0x698] sm:$0xff] %vm2381, %v2336
      %2594 = vst.msk [vmem:[%s172 + $0x6a0] sm:$0xff] %vm2381, %v2337
      %2595 = vst.msk [vmem:[%s172 + $0x6a8] sm:$0xff] %vm2381, %v2338
      %2596 = vst.msk [vmem:[%s172 + $0x6b0] sm:$0xff] %vm2381, %v2339
      %2597 = vst.msk [vmem:[%s172 + $0x6b8] sm:$0xff] %vm2381, %v2340
      %2598 = vst.msk [vmem:[%s172 + $0x6c0] sm:$0xff] %vm2381, %v2341
      %2599 = vst.msk [vmem:[%s172 + $0x6c8] sm:$0xff] %vm2381, %v2342
      %2600 = vst.msk [vmem:[%s172 + $0x6d0] sm:$0xff] %vm2381, %v2343
      %2601 = vst.msk [vmem:[%s172 + $0x6d8] sm:$0xff] %vm2381, %v2344
      %2602 = vst.msk [vmem:[%s172 + $0x6e0] sm:$0xff] %vm2381, %v2345
      %2603 = vst.msk [vmem:[%s172 + $0x6e8] sm:$0xff] %vm2381, %v2346
      %2604 = vst.msk [vmem:[%s172 + $0x6f0] sm:$0xff] %vm2381, %v2347
      %2605 = vst.msk [vmem:[%s172 + $0x6f8] sm:$0xff] %vm2381, %v2348
      %2606 = vst.msk [vmem:[%s172 + $0x700] sm:$0xff] %vm2381, %v2349
      %2607 = vst.msk [vmem:[%s172 + $0x708] sm:$0xff] %vm2381, %v2350
      %2608 = vst.msk [vmem:[%s172 + $0x710] sm:$0xff] %vm2381, %v2351
      %2609 = vst.msk [vmem:[%s172 + $0x718] sm:$0xff] %vm2381, %v2352
      %2610 = vst.msk [vmem:[%s172 + $0x720] sm:$0xff] %vm2381, %v2353
      %2611 = vst.msk [vmem:[%s172 + $0x728] sm:$0xff] %vm2381, %v2354
      %2612 = vst.msk [vmem:[%s172 + $0x730] sm:$0xff] %vm2381, %v2355
      %2613 = vst.msk [vmem:[%s172 + $0x738] sm:$0xff] %vm2381, %v2356
      %2614 = vst.msk [vmem:[%s172 + $0x740] sm:$0xff] %vm2381, %v2357
      %2615 = vst.msk [vmem:[%s172 + $0x748] sm:$0xff] %vm2381, %v2358
      %2616 = vst.msk [vmem:[%s172 + $0x750] sm:$0xff] %vm2381, %v2359
      %2617 = vst.msk [vmem:[%s172 + $0x758] sm:$0xff] %vm2381, %v2360
      %2618 = vst.msk [vmem:[%s172 + $0x760] sm:$0xff] %vm2381, %v2361
      %2619 = vst.msk [vmem:[%s172 + $0x768] sm:$0xff] %vm2381, %v2362
      %2620 = vst.msk [vmem:[%s172 + $0x770] sm:$0xff] %vm2381, %v2363
      %2621 = vst.msk [vmem:[%s172 + $0x778] sm:$0xff] %vm2381, %v2364
      %2622 = vst.msk [vmem:[%s172 + $0x780] sm:$0xff] %vm2381, %v2365
      %2623 = vst.msk [vmem:[%s172 + $0x788] sm:$0xff] %vm2381, %v2366
      %2624 = vst.msk [vmem:[%s172 + $0x790] sm:$0xff] %vm2381, %v2367
      %2625 = vst.msk [vmem:[%s172 + $0x798] sm:$0xff] %vm2381, %v2368
      %2626 = vst.msk [vmem:[%s172 + $0x7a0] sm:$0xff] %vm2381, %v2369
      %2627 = vst.msk [vmem:[%s172 + $0x7a8] sm:$0xff] %vm2381, %v2370
      %2628 = vst.msk [vmem:[%s172 + $0x7b0] sm:$0xff] %vm2381, %v2371
      %2629 = vst.msk [vmem:[%s172 + $0x7b8] sm:$0xff] %vm2381, %v2372
      %2630 = vst.msk [vmem:[%s172 + $0x7c0] sm:$0xff] %vm2381, %v2373
      %2631 = vst.msk [vmem:[%s172 + $0x7c8] sm:$0xff] %vm2381, %v2374
      %2632 = vst.msk [vmem:[%s172 + $0x7d0] sm:$0xff] %vm2381, %v2375
      %2633 = vst.msk [vmem:[%s172 + $0x7d8] sm:$0xff] %vm2381, %v2376
      %2634 = vst.msk [vmem:[%s172 + $0x7e0] sm:$0xff] %vm2381, %v2377
      %2635 = vst.msk [vmem:[%s172 + $0x7e8] sm:$0xff] %vm2381, %v2378
      %2636 = vst.msk [vmem:[%s172 + $0x7f0] sm:$0xff] %vm2381, %v2379
      %2637 = vst.msk [vmem:[%s172 + $0x7f8] sm:$0xff] %vm2381, %v2380
      %s2638 = smul.u32 256, %s14
      %p2639 = scmp.lt.s32.totalorder %s2638, 2559
      %s2640 = scalar_select %p2639, %s2638, 2559
      %s2641 = smul.addr %s2640, 8
      %s2642 = scalar_lea.vmem %s3, %s2641
      // Predicated region
      $region33: #{assault_value_forward.6} parent=31 // pred_check
        %p2643 = pneg %p100
      $region34: #{assault_value_forward.6} parent=31 // pred_check_branch
        %2645 = sbr.rel (%p2643) target = $region36
      $region35: #{assault_value_forward.6} parent=31 // pred_region
        %s2646 = smul.u32 256, %s14
      $region36: #{assault_value_forward.6} parent=31 // pred_fallthru
        _
    $region32: #{assault_value_forward.6} parent=5 // pred_fallthru
      _
    %p2647 = scmp.le.s32.totalorder 2, %s9
    // Predicated region
    $region37: #{assault_value_forward.6} parent=5 // pred_check
      %p2648 = pneg %p2647
    $region38: #{assault_value_forward.6} parent=5 // pred_check_branch
      %2650 = sbr.rel (%p2648) target = $region40
    $region39: #{assault_value_forward.6} parent=5 // pred_region
      %s2651 = ssub.s32 %s9, 2
      // Predicated region
      $region41: #{assault_value_forward.6} parent=39 // pred_check
        %p2652 = pneg %p106
      $region42: #{assault_value_forward.6} parent=39 // pred_check_branch
        %2654 = sbr.rel (%p2652) target = $region44
      $region43: #{assault_value_forward.6} parent=39 // pred_region
        %s2655 = smul.u32 256, %s15
        %p2656 = scmp.lt.s32.totalorder %s2655, 2559
        %s2657 = scalar_select %p2656, %s2655, 2559
        %s2658 = smul.addr %s2657, 8
        %s2659 = scalar_lea.vmem %s3, %s2658
      $region44: #{assault_value_forward.6} parent=39 // pred_fallthru
        _
    $region40: #{assault_value_forward.6} parent=5 // pred_fallthru
      _
  $region6: #{assault_value_forward.6} parent=0 // loop_footer
    %s13 = sadd.s32 1, %s9
  $region7: #{assault_value_forward.6} parent=0 // loop_footer_branch
    %8 = sbr.rel target = $region3
  $region8: #{assault_value_forward.6} parent=0 // loop_exit
    _

// kernel: assault_value_forward.7
$region0: #{assault_value_forward.7}
  #allocation0 [shape = 'u32[]', space=smem, size = 0x4, offset = 0x4, fixed_abs, tag = 'smem constant byte address 0x4 - core index']
  #allocation1 [shape = 'u32[72,128]{1,0:T(1,128)}', space=vmem, size = 0x9000, scoped, tag = 'internal scratch']
  %s0 = inlined_call_operand.vmem [shape: bf16[6144,72], index: 0, kind: input, shape index: {}]
  %s1 = inlined_call_operand.vmem [shape: bf16[72,16], index: 1, kind: input, shape index: {}]
  %s2 = inlined_call_operand.vmem [shape: f32[1,16], index: 2, kind: input, shape index: {}]
  %s3 = inlined_call_operand.vmem [shape: f32[6144,16], index: 3, kind: output, shape index: {}]
  %s4 = sld [smem:[#allocation0]]
  $region45: #{assault_value_forward.7} parent=0
    _
  %s6 = ssub.s32 1, %s4
  %s7 = scalar_select 0, %s6, %s4
  loop: start=0, step=1, limit=5
  $region2: #{assault_value_forward.7} parent=0 // loop_pre_header
    _
  $region3: #{assault_value_forward.7} parent=0 // loop_header
    %s9 = sphi 0, %s13
    %p10 = scmp.ge.s32.totalorder %s9, 5
    %s19 = sphi 0, %s21
    %s22 = sphi 0, %s19
    %s23 = sphi 0, %s22
    %s39 = sphi 0, %s23
    %s43 = sphi 0, %s43
    %s45 = sphi 0, %s43
    %s46 = sphi 0, %s45
    %s60 = sphi 0, %s46
    %s64 = sphi 0, %s64
    %s66 = sphi 0, %s64
    %s67 = sphi 0, %s66
    %s81 = sphi 0, %s67
    %s87 = sphi 0, %s89
    %s90 = sphi 0, %s87
    %s91 = sphi 0, %s90
    %s107 = sphi 0, %s91
  $region4: #{assault_value_forward.7} parent=0 // loop_header_branch
    %12 = sbr.rel (%p10) target = $region8
  $region5: #{assault_value_forward.7} parent=0 // loop_body
    %s14 = ssub.s32 %s9, 1
    %s15 = ssub.s32 %s9, 2
    %s16 = sadd.s32 %s9, 1
    %s17 = ssub.s32 %s9, %s16
    %p18 = scmp.eq.s32.totalorder %s17, 0
    %s20 = sadd.s32 %s19, 1
    %s21 = scalar_select %p18, %s19, %s20
    %p24 = pneg %p18
    %p25 = scmp.eq.s32.totalorder %s9, 2
    %p26 = por %p24, %p25
    %p27 = scmp.ne.s32.totalorder %s19, %s22
    %p28 = scmp.eq.s32.totalorder %s9, 0
    %p29 = por %p27, %p28
    %p30 = scmp.ne.s32.totalorder %s19, %s22
    %p31 = scmp.eq.s32.totalorder %s14, 2
    %p32 = por %p30, %p31
    %p33 = scmp.ne.s32.totalorder %s22, %s23
    %p34 = scmp.eq.s32.totalorder %s14, 0
    %p35 = por %p33, %p34
    %p36 = scmp.ne.s32.totalorder %s22, %s23
    %p37 = scmp.eq.s32.totalorder %s15, 2
    %p38 = por %p36, %p37
    %p40 = scmp.ne.s32.totalorder %s23, %s39
    %p41 = scmp.eq.s32.totalorder %s15, 0
    %p42 = por %p40, %p41
    %s44 = sadd.s32 %s43, 1
    %p47 = scmp.eq.s32.totalorder %s9, 2
    %p48 = scmp.ne.s32.totalorder %s43, %s45
    %p49 = scmp.eq.s32.totalorder %s9, 0
    %p50 = por %p48, %p49
    %p51 = scmp.ne.s32.totalorder %s43, %s45
    %p52 = scmp.eq.s32.totalorder %s14, 2
    %p53 = por %p51, %p52
    %p54 = scmp.ne.s32.totalorder %s45, %s46
    %p55 = scmp.eq.s32.totalorder %s14, 0
    %p56 = por %p54, %p55
    %p57 = scmp.ne.s32.totalorder %s45, %s46
    %p58 = scmp.eq.s32.totalorder %s15, 2
    %p59 = por %p57, %p58
    %p61 = scmp.ne.s32.totalorder %s46, %s60
    %p62 = scmp.eq.s32.totalorder %s15, 0
    %p63 = por %p61, %p62
    %s65 = sadd.s32 %s64, 1
    %p68 = scmp.eq.s32.totalorder %s9, 2
    %p69 = scmp.ne.s32.totalorder %s64, %s66
    %p70 = scmp.eq.s32.totalorder %s9, 0
    %p71 = por %p69, %p70
    %p72 = scmp.ne.s32.totalorder %s64, %s66
    %p73 = scmp.eq.s32.totalorder %s14, 2
    %p74 = por %p72, %p73
    %p75 = scmp.ne.s32.totalorder %s66, %s67
    %p76 = scmp.eq.s32.totalorder %s14, 0
    %p77 = por %p75, %p76
    %p78 = scmp.ne.s32.totalorder %s66, %s67
    %p79 = scmp.eq.s32.totalorder %s15, 2
    %p80 = por %p78, %p79
    %p82 = scmp.ne.s32.totalorder %s67, %s81
    %p83 = scmp.eq.s32.totalorder %s15, 0
    %p84 = por %p82, %p83
    %s85 = ssub.s32 %s9, %s16
    %p86 = scmp.eq.s32.totalorder %s85, 0
    %s88 = sadd.s32 %s87, 1
    %s89 = scalar_select %p86, %s87, %s88
    %p92 = pneg %p86
    %p93 = scmp.eq.s32.totalorder %s9, 2
    %p94 = por %p92, %p93
    %p95 = scmp.ne.s32.totalorder %s87, %s90
    %p96 = scmp.eq.s32.totalorder %s9, 0
    %p97 = por %p95, %p96
    %p98 = scmp.ne.s32.totalorder %s87, %s90
    %p99 = scmp.eq.s32.totalorder %s14, 2
    %p100 = por %p98, %p99
    %p101 = scmp.ne.s32.totalorder %s90, %s91
    %p102 = scmp.eq.s32.totalorder %s14, 0
    %p103 = por %p101, %p102
    %p104 = scmp.ne.s32.totalorder %s90, %s91
    %p105 = scmp.eq.s32.totalorder %s15, 2
    %p106 = por %p104, %p105
    %p108 = scmp.ne.s32.totalorder %s91, %s107
    %p109 = scmp.eq.s32.totalorder %s15, 0
    %p110 = por %p108, %p109
    %p111 = scmp.le.s32.totalorder 1, %s9
    %p112 = scmp.lt.s32.totalorder %s9, 4
    %p113 = pnand %p111, %p112
    %p114 = pneg %p113
    // Predicated region
    $region9: #{assault_value_forward.7} parent=5 // pred_check
      _
    $region10: #{assault_value_forward.7} parent=5 // pred_check_branch
      %116 = sbr.rel (%p113) target = $region12
    $region11: #{assault_value_forward.7} parent=5 // pred_region
      %s117 = ssub.s32 %s9, 1
      // Predicated region
      $region13: #{assault_value_forward.7} parent=11 // pred_check
        %p118 = pneg %p56
      $region14: #{assault_value_forward.7} parent=11 // pred_check_branch
        %120 = sbr.rel (%p118) target = $region16
      $region15: #{assault_value_forward.7} parent=11 // pred_region
        _
      $region16: #{assault_value_forward.7} parent=11 // pred_fallthru
        _
      // Predicated region
      $region17: #{assault_value_forward.7} parent=11 // pred_check
        %p121 = pneg %p77
      $region18: #{assault_value_forward.7} parent=11 // pred_check_branch
        %123 = sbr.rel (%p121) target = $region20
      $region19: #{assault_value_forward.7} parent=11 // pred_region
        _
      $region20: #{assault_value_forward.7} parent=11 // pred_fallthru
        _
    $region12: #{assault_value_forward.7} parent=5 // pred_fallthru
      _
    %p124 = scmp.lt.s32.totalorder %s9, 3
    // Predicated region
    $region21: #{assault_value_forward.7} parent=5 // pred_check
      %p125 = pneg %p124
    $region22: #{assault_value_forward.7} parent=5 // pred_check_branch
      %127 = sbr.rel (%p125) target = $region24
    $region23: #{assault_value_forward.7} parent=5 // pred_region
      // Predicated region
      $region25: #{assault_value_forward.7} parent=23 // pred_check
        %p128 = pneg %p29
      $region26: #{assault_value_forward.7} parent=23 // pred_check_branch
        %130 = sbr.rel (%p128) target = $region28
      $region27: #{assault_value_forward.7} parent=23 // pred_region
        %s131 = smul.u32 256, %s9
        %p132 = scmp.lt.s32.totalorder %s131, 767
        %s133 = scalar_select %p132, %s131, 767
        %s134 = smul.addr %s133, 4
        %s135 = scalar_lea.vmem %s0, %s134
        %s136 = smul.u32 256, %s9
      $region28: #{assault_value_forward.7} parent=23 // pred_fallthru
        _
    $region24: #{assault_value_forward.7} parent=5 // pred_fallthru
      _
    %p137 = scmp.le.s32.totalorder 1, %s9
    %p138 = scmp.lt.s32.totalorder %s9, 4
    %p139 = pnand %p137, %p138
    %p140 = pneg %p139
    // Predicated region
    $region29: #{assault_value_forward.7} parent=5 // pred_check
      _
    $region30: #{assault_value_forward.7} parent=5 // pred_check_branch
      %142 = sbr.rel (%p139) target = $region32
    $region31: #{assault_value_forward.7} parent=5 // pred_region
      %s143 = ssub.s32 %s9, 1
      %s144 = smul.u32 256, %s14
      %p145 = scmp.lt.s32.totalorder %s144, 767
      %s146 = scalar_select %p145, %s144, 767
      %s147 = smul.addr %s146, 4
      %s148 = scalar_lea.vmem %s0, %s147
      %p149 = pneg %p35
      %p150 = pneg %p32
      %p151 = pneg %p56
      %p152 = pneg %p53
      %p153 = pneg %p77
      %p154 = pneg %p74
      %p155 = pneg %p103
      %p156 = pneg %p100
      %s157 = smul.u32 256, %s14
      %p158 = scmp.lt.s32.totalorder %s157, 767
      %s159 = scalar_select %p158, %s157, 767
      %s160 = smul.addr %s159, 8
      %s161 = scalar_lea.vmem %s3, %s160
      %s162 = smul.u32 256, %s14
      %p163 = scmp.lt.s32.totalorder %s162, 767
      %s164 = scalar_select %p163, %s162, 767
      %s165 = smul.addr %s164, 4
      %s166 = scalar_lea.vmem %s0, %s165
      %s167 = smul.u32 256, %s14
      %s168 = smul.u32 256, %s14
      %p169 = scmp.lt.s32.totalorder %s168, 767
      %s170 = scalar_select %p169, %s168, 767
      %s171 = smul.addr %s170, 8
      %s172 = scalar_lea.vmem %s3, %s171
      %s173 = smul.u32 256, %s14
      %v175 = vld [vmem:[%s166] sm:$0xf]
      %v176 = vld [vmem:[%s166 + $0x4] sm:$0xf]
      %v177 = vld [vmem:[%s166 + $0x8] sm:$0xf]
      %v178 = vld [vmem:[%s166 + $0xc] sm:$0xf]
      %v179 = vld [vmem:[%s166 + $0x10] sm:$0xf]
      %v180 = vld [vmem:[%s166 + $0x14] sm:$0xf]
      %v181 = vld [vmem:[%s166 + $0x18] sm:$0xf]
      %v182 = vld [vmem:[%s166 + $0x1c] sm:$0xf]
      %v183 = vld [vmem:[%s166 + $0x20] sm:$0xf]
      %v184 = vld [vmem:[%s166 + $0x24] sm:$0xf]
      %v185 = vld [vmem:[%s166 + $0x28] sm:$0xf]
      %v186 = vld [vmem:[%s166 + $0x2c] sm:$0xf]
      %v187 = vld [vmem:[%s166 + $0x30] sm:$0xf]
      %v188 = vld [vmem:[%s166 + $0x34] sm:$0xf]
      %v189 = vld [vmem:[%s166 + $0x38] sm:$0xf]
      %v190 = vld [vmem:[%s166 + $0x3c] sm:$0xf]
      %v191 = vld [vmem:[%s166 + $0x40] sm:$0xf]
      %v192 = vld [vmem:[%s166 + $0x44] sm:$0xf]
      %v193 = vld [vmem:[%s166 + $0x48] sm:$0xf]
      %v194 = vld [vmem:[%s166 + $0x4c] sm:$0xf]
      %v195 = vld [vmem:[%s166 + $0x50] sm:$0xf]
      %v196 = vld [vmem:[%s166 + $0x54] sm:$0xf]
      %v197 = vld [vmem:[%s166 + $0x58] sm:$0xf]
      %v198 = vld [vmem:[%s166 + $0x5c] sm:$0xf]
      %v199 = vld [vmem:[%s166 + $0x60] sm:$0xf]
      %v200 = vld [vmem:[%s166 + $0x64] sm:$0xf]
      %v201 = vld [vmem:[%s166 + $0x68] sm:$0xf]
      %v202 = vld [vmem:[%s166 + $0x6c] sm:$0xf]
      %v203 = vld [vmem:[%s166 + $0x70] sm:$0xf]
      %v204 = vld [vmem:[%s166 + $0x74] sm:$0xf]
      %v205 = vld [vmem:[%s166 + $0x78] sm:$0xf]
      %v206 = vld [vmem:[%s166 + $0x7c] sm:$0xf]
      %v207 = vld [vmem:[%s166 + $0x80] sm:$0xf]
      %v208 = vld [vmem:[%s166 + $0x84] sm:$0xf]
      %v209 = vld [vmem:[%s166 + $0x88] sm:$0xf]
      %v210 = vld [vmem:[%s166 + $0x8c] sm:$0xf]
      %v211 = vld [vmem:[%s166 + $0x90] sm:$0xf]
      %v212 = vld [vmem:[%s166 + $0x94] sm:$0xf]
      %v213 = vld [vmem:[%s166 + $0x98] sm:$0xf]
      %v214 = vld [vmem:[%s166 + $0x9c] sm:$0xf]
      %v215 = vld [vmem:[%s166 + $0xa0] sm:$0xf]
      %v216 = vld [vmem:[%s166 + $0xa4] sm:$0xf]
      %v217 = vld [vmem:[%s166 + $0xa8] sm:$0xf]
      %v218 = vld [vmem:[%s166 + $0xac] sm:$0xf]
      %v219 = vld [vmem:[%s166 + $0xb0] sm:$0xf]
      %v220 = vld [vmem:[%s166 + $0xb4] sm:$0xf]
      %v221 = vld [vmem:[%s166 + $0xb8] sm:$0xf]
      %v222 = vld [vmem:[%s166 + $0xbc] sm:$0xf]
      %v223 = vld [vmem:[%s166 + $0xc0] sm:$0xf]
      %v224 = vld [vmem:[%s166 + $0xc4] sm:$0xf]
      %v225 = vld [vmem:[%s166 + $0xc8] sm:$0xf]
      %v226 = vld [vmem:[%s166 + $0xcc] sm:$0xf]
      %v227 = vld [vmem:[%s166 + $0xd0] sm:$0xf]
      %v228 = vld [vmem:[%s166 + $0xd4] sm:$0xf]
      %v229 = vld [vmem:[%s166 + $0xd8] sm:$0xf]
      %v230 = vld [vmem:[%s166 + $0xdc] sm:$0xf]
      %v231 = vld [vmem:[%s166 + $0xe0] sm:$0xf]
      %v232 = vld [vmem:[%s166 + $0xe4] sm:$0xf]
      %v233 = vld [vmem:[%s166 + $0xe8] sm:$0xf]
      %v234 = vld [vmem:[%s166 + $0xec] sm:$0xf]
      %v235 = vld [vmem:[%s166 + $0xf0] sm:$0xf]
      %v236 = vld [vmem:[%s166 + $0xf4] sm:$0xf]
      %v237 = vld [vmem:[%s166 + $0xf8] sm:$0xf]
      %v238 = vld [vmem:[%s166 + $0xfc] sm:$0xf]
      %v239 = vld [vmem:[%s166 + $0x100] sm:$0xf]
      %v240 = vld [vmem:[%s166 + $0x104] sm:$0xf]
      %v241 = vld [vmem:[%s166 + $0x108] sm:$0xf]
      %v242 = vld [vmem:[%s166 + $0x10c] sm:$0xf]
      %v243 = vld [vmem:[%s166 + $0x110] sm:$0xf]
      %v244 = vld [vmem:[%s166 + $0x114] sm:$0xf]
      %v245 = vld [vmem:[%s166 + $0x118] sm:$0xf]
      %v246 = vld [vmem:[%s166 + $0x11c] sm:$0xf]
      %v247 = vld [vmem:[%s166 + $0x120] sm:$0xf]
      %v248 = vld [vmem:[%s166 + $0x124] sm:$0xf]
      %v249 = vld [vmem:[%s166 + $0x128] sm:$0xf]
      %v250 = vld [vmem:[%s166 + $0x12c] sm:$0xf]
      %v251 = vld [vmem:[%s166 + $0x130] sm:$0xf]
      %v252 = vld [vmem:[%s166 + $0x134] sm:$0xf]
      %v253 = vld [vmem:[%s166 + $0x138] sm:$0xf]
      %v254 = vld [vmem:[%s166 + $0x13c] sm:$0xf]
      %v255 = vld [vmem:[%s166 + $0x140] sm:$0xf]
      %v256 = vld [vmem:[%s166 + $0x144] sm:$0xf]
      %v257 = vld [vmem:[%s166 + $0x148] sm:$0xf]
      %v258 = vld [vmem:[%s166 + $0x14c] sm:$0xf]
      %v259 = vld [vmem:[%s166 + $0x150] sm:$0xf]
      %v260 = vld [vmem:[%s166 + $0x154] sm:$0xf]
      %v261 = vld [vmem:[%s166 + $0x158] sm:$0xf]
      %v262 = vld [vmem:[%s166 + $0x15c] sm:$0xf]
      %v263 = vld [vmem:[%s166 + $0x160] sm:$0xf]
      %v264 = vld [vmem:[%s166 + $0x164] sm:$0xf]
      %v265 = vld [vmem:[%s166 + $0x168] sm:$0xf]
      %v266 = vld [vmem:[%s166 + $0x16c] sm:$0xf]
      %v267 = vld [vmem:[%s166 + $0x170] sm:$0xf]
      %v268 = vld [vmem:[%s166 + $0x174] sm:$0xf]
      %v269 = vld [vmem:[%s166 + $0x178] sm:$0xf]
      %v270 = vld [vmem:[%s166 + $0x17c] sm:$0xf]
      %v271 = vld [vmem:[%s166 + $0x180] sm:$0xf]
      %v272 = vld [vmem:[%s166 + $0x184] sm:$0xf]
      %v273 = vld [vmem:[%s166 + $0x188] sm:$0xf]
      %v274 = vld [vmem:[%s166 + $0x18c] sm:$0xf]
      %v275 = vld [vmem:[%s166 + $0x190] sm:$0xf]
      %v276 = vld [vmem:[%s166 + $0x194] sm:$0xf]
      %v277 = vld [vmem:[%s166 + $0x198] sm:$0xf]
      %v278 = vld [vmem:[%s166 + $0x19c] sm:$0xf]
      %v279 = vld [vmem:[%s166 + $0x1a0] sm:$0xf]
      %v280 = vld [vmem:[%s166 + $0x1a4] sm:$0xf]
      %v281 = vld [vmem:[%s166 + $0x1a8] sm:$0xf]
      %v282 = vld [vmem:[%s166 + $0x1ac] sm:$0xf]
      %v283 = vld [vmem:[%s166 + $0x1b0] sm:$0xf]
      %v284 = vld [vmem:[%s166 + $0x1b4] sm:$0xf]
      %v285 = vld [vmem:[%s166 + $0x1b8] sm:$0xf]
      %v286 = vld [vmem:[%s166 + $0x1bc] sm:$0xf]
      %v287 = vld [vmem:[%s166 + $0x1c0] sm:$0xf]
      %v288 = vld [vmem:[%s166 + $0x1c4] sm:$0xf]
      %v289 = vld [vmem:[%s166 + $0x1c8] sm:$0xf]
      %v290 = vld [vmem:[%s166 + $0x1cc] sm:$0xf]
      %v291 = vld [vmem:[%s166 + $0x1d0] sm:$0xf]
      %v292 = vld [vmem:[%s166 + $0x1d4] sm:$0xf]
      %v293 = vld [vmem:[%s166 + $0x1d8] sm:$0xf]
      %v294 = vld [vmem:[%s166 + $0x1dc] sm:$0xf]
      %v295 = vld [vmem:[%s166 + $0x1e0] sm:$0xf]
      %v296 = vld [vmem:[%s166 + $0x1e4] sm:$0xf]
      %v297 = vld [vmem:[%s166 + $0x1e8] sm:$0xf]
      %v298 = vld [vmem:[%s166 + $0x1ec] sm:$0xf]
      %v299 = vld [vmem:[%s166 + $0x1f0] sm:$0xf]
      %v300 = vld [vmem:[%s166 + $0x1f4] sm:$0xf]
      %v301 = vld [vmem:[%s166 + $0x1f8] sm:$0xf]
      %v302 = vld [vmem:[%s166 + $0x1fc] sm:$0xf]
      %v303 = vld [vmem:[%s166 + $0x200] sm:$0xf]
      %v304 = vld [vmem:[%s166 + $0x204] sm:$0xf]
      %v305 = vld [vmem:[%s166 + $0x208] sm:$0xf]
      %v306 = vld [vmem:[%s166 + $0x20c] sm:$0xf]
      %v307 = vld [vmem:[%s166 + $0x210] sm:$0xf]
      %v308 = vld [vmem:[%s166 + $0x214] sm:$0xf]
      %v309 = vld [vmem:[%s166 + $0x218] sm:$0xf]
      %v310 = vld [vmem:[%s166 + $0x21c] sm:$0xf]
      %v311 = vld [vmem:[%s166 + $0x220] sm:$0xf]
      %v312 = vld [vmem:[%s166 + $0x224] sm:$0xf]
      %v313 = vld [vmem:[%s166 + $0x228] sm:$0xf]
      %v314 = vld [vmem:[%s166 + $0x22c] sm:$0xf]
      %v315 = vld [vmem:[%s166 + $0x230] sm:$0xf]
      %v316 = vld [vmem:[%s166 + $0x234] sm:$0xf]
      %v317 = vld [vmem:[%s166 + $0x238] sm:$0xf]
      %v318 = vld [vmem:[%s166 + $0x23c] sm:$0xf]
      %v319 = vld [vmem:[%s166 + $0x240] sm:$0xf]
      %v320 = vld [vmem:[%s166 + $0x244] sm:$0xf]
      %v321 = vld [vmem:[%s166 + $0x248] sm:$0xf]
      %v322 = vld [vmem:[%s166 + $0x24c] sm:$0xf]
      %v323 = vld [vmem:[%s166 + $0x250] sm:$0xf]
      %v324 = vld [vmem:[%s166 + $0x254] sm:$0xf]
      %v325 = vld [vmem:[%s166 + $0x258] sm:$0xf]
      %v326 = vld [vmem:[%s166 + $0x25c] sm:$0xf]
      %v327 = vld [vmem:[%s166 + $0x260] sm:$0xf]
      %v328 = vld [vmem:[%s166 + $0x264] sm:$0xf]
      %v329 = vld [vmem:[%s166 + $0x268] sm:$0xf]
      %v330 = vld [vmem:[%s166 + $0x26c] sm:$0xf]
      %v331 = vld [vmem:[%s166 + $0x270] sm:$0xf]
      %v332 = vld [vmem:[%s166 + $0x274] sm:$0xf]
      %v333 = vld [vmem:[%s166 + $0x278] sm:$0xf]
      %v334 = vld [vmem:[%s166 + $0x27c] sm:$0xf]
      %v335 = vld [vmem:[%s166 + $0x280] sm:$0xf]
      %v336 = vld [vmem:[%s166 + $0x284] sm:$0xf]
      %v337 = vld [vmem:[%s166 + $0x288] sm:$0xf]
      %v338 = vld [vmem:[%s166 + $0x28c] sm:$0xf]
      %v339 = vld [vmem:[%s166 + $0x290] sm:$0xf]
      %v340 = vld [vmem:[%s166 + $0x294] sm:$0xf]
      %v341 = vld [vmem:[%s166 + $0x298] sm:$0xf]
      %v342 = vld [vmem:[%s166 + $0x29c] sm:$0xf]
      %v343 = vld [vmem:[%s166 + $0x2a0] sm:$0xf]
      %v344 = vld [vmem:[%s166 + $0x2a4] sm:$0xf]
      %v345 = vld [vmem:[%s166 + $0x2a8] sm:$0xf]
      %v346 = vld [vmem:[%s166 + $0x2ac] sm:$0xf]
      %v347 = vld [vmem:[%s166 + $0x2b0] sm:$0xf]
      %v348 = vld [vmem:[%s166 + $0x2b4] sm:$0xf]
      %v349 = vld [vmem:[%s166 + $0x2b8] sm:$0xf]
      %v350 = vld [vmem:[%s166 + $0x2bc] sm:$0xf]
      %v351 = vld [vmem:[%s166 + $0x2c0] sm:$0xf]
      %v352 = vld [vmem:[%s166 + $0x2c4] sm:$0xf]
      %v353 = vld [vmem:[%s166 + $0x2c8] sm:$0xf]
      %v354 = vld [vmem:[%s166 + $0x2cc] sm:$0xf]
      %v355 = vld [vmem:[%s166 + $0x2d0] sm:$0xf]
      %v356 = vld [vmem:[%s166 + $0x2d4] sm:$0xf]
      %v357 = vld [vmem:[%s166 + $0x2d8] sm:$0xf]
      %v358 = vld [vmem:[%s166 + $0x2dc] sm:$0xf]
      %v359 = vld [vmem:[%s166 + $0x2e0] sm:$0xf]
      %v360 = vld [vmem:[%s166 + $0x2e4] sm:$0xf]
      %v361 = vld [vmem:[%s166 + $0x2e8] sm:$0xf]
      %v362 = vld [vmem:[%s166 + $0x2ec] sm:$0xf]
      %v363 = vld [vmem:[%s166 + $0x2f0] sm:$0xf]
      %v364 = vld [vmem:[%s166 + $0x2f4] sm:$0xf]
      %v365 = vld [vmem:[%s166 + $0x2f8] sm:$0xf]
      %v366 = vld [vmem:[%s166 + $0x2fc] sm:$0xf]
      %v367 = vld [vmem:[%s166 + $0x300] sm:$0xf]
      %v368 = vld [vmem:[%s166 + $0x304] sm:$0xf]
      %v369 = vld [vmem:[%s166 + $0x308] sm:$0xf]
      %v370 = vld [vmem:[%s166 + $0x30c] sm:$0xf]
      %v371 = vld [vmem:[%s166 + $0x310] sm:$0xf]
      %v372 = vld [vmem:[%s166 + $0x314] sm:$0xf]
      %v373 = vld [vmem:[%s166 + $0x318] sm:$0xf]
      %v374 = vld [vmem:[%s166 + $0x31c] sm:$0xf]
      %v375 = vld [vmem:[%s166 + $0x320] sm:$0xf]
      %v376 = vld [vmem:[%s166 + $0x324] sm:$0xf]
      %v377 = vld [vmem:[%s166 + $0x328] sm:$0xf]
      %v378 = vld [vmem:[%s166 + $0x32c] sm:$0xf]
      %v379 = vld [vmem:[%s166 + $0x330] sm:$0xf]
      %v380 = vld [vmem:[%s166 + $0x334] sm:$0xf]
      %v381 = vld [vmem:[%s166 + $0x338] sm:$0xf]
      %v382 = vld [vmem:[%s166 + $0x33c] sm:$0xf]
      %v383 = vld [vmem:[%s166 + $0x340] sm:$0xf]
      %v384 = vld [vmem:[%s166 + $0x344] sm:$0xf]
      %v385 = vld [vmem:[%s166 + $0x348] sm:$0xf]
      %v386 = vld [vmem:[%s166 + $0x34c] sm:$0xf]
      %v387 = vld [vmem:[%s166 + $0x350] sm:$0xf]
      %v388 = vld [vmem:[%s166 + $0x354] sm:$0xf]
      %v389 = vld [vmem:[%s166 + $0x358] sm:$0xf]
      %v390 = vld [vmem:[%s166 + $0x35c] sm:$0xf]
      %v391 = vld [vmem:[%s166 + $0x360] sm:$0xf]
      %v392 = vld [vmem:[%s166 + $0x364] sm:$0xf]
      %v393 = vld [vmem:[%s166 + $0x368] sm:$0xf]
      %v394 = vld [vmem:[%s166 + $0x36c] sm:$0xf]
      %v395 = vld [vmem:[%s166 + $0x370] sm:$0xf]
      %v396 = vld [vmem:[%s166 + $0x374] sm:$0xf]
      %v397 = vld [vmem:[%s166 + $0x378] sm:$0xf]
      %v398 = vld [vmem:[%s166 + $0x37c] sm:$0xf]
      %v399 = vld [vmem:[%s166 + $0x380] sm:$0xf]
      %v400 = vld [vmem:[%s166 + $0x384] sm:$0xf]
      %v401 = vld [vmem:[%s166 + $0x388] sm:$0xf]
      %v402 = vld [vmem:[%s166 + $0x38c] sm:$0xf]
      %v403 = vld [vmem:[%s166 + $0x390] sm:$0xf]
      %v404 = vld [vmem:[%s166 + $0x394] sm:$0xf]
      %v405 = vld [vmem:[%s166 + $0x398] sm:$0xf]
      %v406 = vld [vmem:[%s166 + $0x39c] sm:$0xf]
      %v407 = vld [vmem:[%s166 + $0x3a0] sm:$0xf]
      %v408 = vld [vmem:[%s166 + $0x3a4] sm:$0xf]
      %v409 = vld [vmem:[%s166 + $0x3a8] sm:$0xf]
      %v410 = vld [vmem:[%s166 + $0x3ac] sm:$0xf]
      %v411 = vld [vmem:[%s166 + $0x3b0] sm:$0xf]
      %v412 = vld [vmem:[%s166 + $0x3b4] sm:$0xf]
      %v413 = vld [vmem:[%s166 + $0x3b8] sm:$0xf]
      %v414 = vld [vmem:[%s166 + $0x3bc] sm:$0xf]
      %v415 = vld [vmem:[%s166 + $0x3c0] sm:$0xf]
      %v416 = vld [vmem:[%s166 + $0x3c4] sm:$0xf]
      %v417 = vld [vmem:[%s166 + $0x3c8] sm:$0xf]
      %v418 = vld [vmem:[%s166 + $0x3cc] sm:$0xf]
      %v419 = vld [vmem:[%s166 + $0x3d0] sm:$0xf]
      %v420 = vld [vmem:[%s166 + $0x3d4] sm:$0xf]
      %v421 = vld [vmem:[%s166 + $0x3d8] sm:$0xf]
      %v422 = vld [vmem:[%s166 + $0x3dc] sm:$0xf]
      %v423 = vld [vmem:[%s166 + $0x3e0] sm:$0xf]
      %v424 = vld [vmem:[%s166 + $0x3e4] sm:$0xf]
      %v425 = vld [vmem:[%s166 + $0x3e8] sm:$0xf]
      %v426 = vld [vmem:[%s166 + $0x3ec] sm:$0xf]
      %v427 = vld [vmem:[%s166 + $0x3f0] sm:$0xf]
      %v428 = vld [vmem:[%s166 + $0x3f4] sm:$0xf]
      %v429 = vld [vmem:[%s166 + $0x3f8] sm:$0xf]
      %v430 = vld [vmem:[%s166 + $0x3fc] sm:$0xf]
      %v431 = vld [vmem:[%s1] sm:$0xf]
      %v432 = vld [vmem:[%s1 + $0x4] sm:$0xf]
      %v433 = vld [vmem:[%s1 + $0x8] sm:$0xf]
      %v434 = vld [vmem:[%s1 + $0xc] sm:$0xf]
      %v435 = vld [vmem:[%s1 + $0x10] sm:$0xf]
      %v436 = vld [vmem:[%s1 + $0x14] sm:$0xf]
      %v437 = vld [vmem:[%s1 + $0x18] sm:$0xf]
      %v438 = vld [vmem:[%s1 + $0x1c] sm:$0xf]
      %v439 = vld [vmem:[%s1 + $0x20] sm:$0xf]
      %v440 = vld [vmem:[%s2] sm:$0x1]
      %v442 = vperm.slane %v440, 0
      %v700 = vunpack.c.l.b16 %v175
      %v701 = vunpack.c.l.b16 %v176
      %v702 = vunpack.c.l.b16 %v177
      %v703 = vunpack.c.l.b16 %v178
      %v704 = vunpack.c.l.b16 %v179
      %v705 = vunpack.c.l.b16 %v180
      %v706 = vunpack.c.l.b16 %v181
      %v707 = vunpack.c.l.b16 %v182
      %v708 = vunpack.c.l.b16 %v183
      %v709 = vunpack.c.l.b16 %v184
      %v710 = vunpack.c.l.b16 %v185
      %v711 = vunpack.c.l.b16 %v186
      %v712 = vunpack.c.l.b16 %v187
      %v713 = vunpack.c.l.b16 %v188
      %v714 = vunpack.c.l.b16 %v189
      %v715 = vunpack.c.l.b16 %v190
      %v716 = vunpack.c.l.b16 %v191
      %v717 = vunpack.c.l.b16 %v192
      %v718 = vunpack.c.l.b16 %v193
      %v719 = vunpack.c.l.b16 %v194
      %v720 = vunpack.c.l.b16 %v195
      %v721 = vunpack.c.l.b16 %v196
      %v722 = vunpack.c.l.b16 %v197
      %v723 = vunpack.c.l.b16 %v198
      %v724 = vunpack.c.l.b16 %v199
      %v725 = vunpack.c.l.b16 %v200
      %v726 = vunpack.c.l.b16 %v201
      %v727 = vunpack.c.l.b16 %v202
      %v728 = vunpack.c.l.b16 %v203
      %v729 = vunpack.c.l.b16 %v204
      %v730 = vunpack.c.l.b16 %v205
      %v731 = vunpack.c.l.b16 %v206
      %v732 = vunpack.c.l.b16 %v207
      %v733 = vunpack.c.l.b16 %v208
      %v734 = vunpack.c.l.b16 %v209
      %v735 = vunpack.c.l.b16 %v210
      %v736 = vunpack.c.l.b16 %v211
      %v737 = vunpack.c.l.b16 %v212
      %v738 = vunpack.c.l.b16 %v213
      %v739 = vunpack.c.l.b16 %v214
      %v740 = vunpack.c.l.b16 %v215
      %v741 = vunpack.c.l.b16 %v216
      %v742 = vunpack.c.l.b16 %v217
      %v743 = vunpack.c.l.b16 %v218
      %v744 = vunpack.c.l.b16 %v219
      %v745 = vunpack.c.l.b16 %v220
      %v746 = vunpack.c.l.b16 %v221
      %v747 = vunpack.c.l.b16 %v222
      %v748 = vunpack.c.l.b16 %v223
      %v749 = vunpack.c.l.b16 %v224
      %v750 = vunpack.c.l.b16 %v225
      %v751 = vunpack.c.l.b16 %v226
      %v752 = vunpack.c.l.b16 %v227
      %v753 = vunpack.c.l.b16 %v228
      %v754 = vunpack.c.l.b16 %v229
      %v755 = vunpack.c.l.b16 %v230
      %v756 = vunpack.c.l.b16 %v231
      %v757 = vunpack.c.l.b16 %v232
      %v758 = vunpack.c.l.b16 %v233
      %v759 = vunpack.c.l.b16 %v234
      %v760 = vunpack.c.l.b16 %v235
      %v761 = vunpack.c.l.b16 %v236
      %v762 = vunpack.c.l.b16 %v237
      %v763 = vunpack.c.l.b16 %v238
      %v764 = vunpack.c.l.b16 %v239
      %v765 = vunpack.c.l.b16 %v240
      %v766 = vunpack.c.l.b16 %v241
      %v767 = vunpack.c.l.b16 %v242
      %v768 = vunpack.c.l.b16 %v243
      %v769 = vunpack.c.l.b16 %v244
      %v770 = vunpack.c.l.b16 %v245
      %v771 = vunpack.c.l.b16 %v246
      %v772 = vunpack.c.l.b16 %v247
      %v773 = vunpack.c.l.b16 %v248
      %v774 = vunpack.c.l.b16 %v249
      %v775 = vunpack.c.l.b16 %v250
      %v776 = vunpack.c.l.b16 %v251
      %v777 = vunpack.c.l.b16 %v252
      %v778 = vunpack.c.l.b16 %v253
      %v779 = vunpack.c.l.b16 %v254
      %v780 = vunpack.c.l.b16 %v255
      %v781 = vunpack.c.l.b16 %v256
      %v782 = vunpack.c.l.b16 %v257
      %v783 = vunpack.c.l.b16 %v258
      %v784 = vunpack.c.l.b16 %v259
      %v785 = vunpack.c.l.b16 %v260
      %v786 = vunpack.c.l.b16 %v261
      %v787 = vunpack.c.l.b16 %v262
      %v788 = vunpack.c.l.b16 %v263
      %v789 = vunpack.c.l.b16 %v264
      %v790 = vunpack.c.l.b16 %v265
      %v791 = vunpack.c.l.b16 %v266
      %v792 = vunpack.c.l.b16 %v267
      %v793 = vunpack.c.l.b16 %v268
      %v794 = vunpack.c.l.b16 %v269
      %v795 = vunpack.c.l.b16 %v270
      %v796 = vunpack.c.l.b16 %v271
      %v797 = vunpack.c.l.b16 %v272
      %v798 = vunpack.c.l.b16 %v273
      %v799 = vunpack.c.l.b16 %v274
      %v800 = vunpack.c.l.b16 %v275
      %v801 = vunpack.c.l.b16 %v276
      %v802 = vunpack.c.l.b16 %v277
      %v803 = vunpack.c.l.b16 %v278
      %v804 = vunpack.c.l.b16 %v279
      %v805 = vunpack.c.l.b16 %v280
      %v806 = vunpack.c.l.b16 %v281
      %v807 = vunpack.c.l.b16 %v282
      %v808 = vunpack.c.l.b16 %v283
      %v809 = vunpack.c.l.b16 %v284
      %v810 = vunpack.c.l.b16 %v285
      %v811 = vunpack.c.l.b16 %v286
      %v812 = vunpack.c.l.b16 %v287
      %v813 = vunpack.c.l.b16 %v288
      %v814 = vunpack.c.l.b16 %v289
      %v815 = vunpack.c.l.b16 %v290
      %v816 = vunpack.c.l.b16 %v291
      %v817 = vunpack.c.l.b16 %v292
      %v818 = vunpack.c.l.b16 %v293
      %v819 = vunpack.c.l.b16 %v294
      %v820 = vunpack.c.l.b16 %v295
      %v821 = vunpack.c.l.b16 %v296
      %v822 = vunpack.c.l.b16 %v297
      %v823 = vunpack.c.l.b16 %v298
      %v824 = vunpack.c.l.b16 %v299
      %v825 = vunpack.c.l.b16 %v300
      %v826 = vunpack.c.l.b16 %v301
      %v827 = vunpack.c.l.b16 %v302
      %v828 = vunpack.c.l.b16 %v303
      %v829 = vunpack.c.l.b16 %v304
      %v830 = vunpack.c.l.b16 %v305
      %v831 = vunpack.c.l.b16 %v306
      %v832 = vunpack.c.l.b16 %v307
      %v833 = vunpack.c.l.b16 %v308
      %v834 = vunpack.c.l.b16 %v309
      %v835 = vunpack.c.l.b16 %v310
      %v836 = vunpack.c.l.b16 %v311
      %v837 = vunpack.c.l.b16 %v312
      %v838 = vunpack.c.l.b16 %v313
      %v839 = vunpack.c.l.b16 %v314
      %v840 = vunpack.c.l.b16 %v315
      %v841 = vunpack.c.l.b16 %v316
      %v842 = vunpack.c.l.b16 %v317
      %v843 = vunpack.c.l.b16 %v318
      %v844 = vunpack.c.l.b16 %v319
      %v845 = vunpack.c.l.b16 %v320
      %v846 = vunpack.c.l.b16 %v321
      %v847 = vunpack.c.l.b16 %v322
      %v848 = vunpack.c.l.b16 %v323
      %v849 = vunpack.c.l.b16 %v324
      %v850 = vunpack.c.l.b16 %v325
      %v851 = vunpack.c.l.b16 %v326
      %v852 = vunpack.c.l.b16 %v327
      %v853 = vunpack.c.l.b16 %v328
      %v854 = vunpack.c.l.b16 %v329
      %v855 = vunpack.c.l.b16 %v330
      %v856 = vunpack.c.l.b16 %v331
      %v857 = vunpack.c.l.b16 %v332
      %v858 = vunpack.c.l.b16 %v333
      %v859 = vunpack.c.l.b16 %v334
      %v860 = vunpack.c.l.b16 %v335
      %v861 = vunpack.c.l.b16 %v336
      %v862 = vunpack.c.l.b16 %v337
      %v863 = vunpack.c.l.b16 %v338
      %v864 = vunpack.c.l.b16 %v339
      %v865 = vunpack.c.l.b16 %v340
      %v866 = vunpack.c.l.b16 %v341
      %v867 = vunpack.c.l.b16 %v342
      %v868 = vunpack.c.l.b16 %v343
      %v869 = vunpack.c.l.b16 %v344
      %v870 = vunpack.c.l.b16 %v345
      %v871 = vunpack.c.l.b16 %v346
      %v872 = vunpack.c.l.b16 %v347
      %v873 = vunpack.c.l.b16 %v348
      %v874 = vunpack.c.l.b16 %v349
      %v875 = vunpack.c.l.b16 %v350
      %v876 = vunpack.c.l.b16 %v351
      %v877 = vunpack.c.l.b16 %v352
      %v878 = vunpack.c.l.b16 %v353
      %v879 = vunpack.c.l.b16 %v354
      %v880 = vunpack.c.l.b16 %v355
      %v881 = vunpack.c.l.b16 %v356
      %v882 = vunpack.c.l.b16 %v357
      %v883 = vunpack.c.l.b16 %v358
      %v884 = vunpack.c.l.b16 %v359
      %v885 = vunpack.c.l.b16 %v360
      %v886 = vunpack.c.l.b16 %v361
      %v887 = vunpack.c.l.b16 %v362
      %v888 = vunpack.c.l.b16 %v363
      %v889 = vunpack.c.l.b16 %v364
      %v890 = vunpack.c.l.b16 %v365
      %v891 = vunpack.c.l.b16 %v366
      %v892 = vunpack.c.l.b16 %v367
      %v893 = vunpack.c.l.b16 %v368
      %v894 = vunpack.c.l.b16 %v369
      %v895 = vunpack.c.l.b16 %v370
      %v896 = vunpack.c.l.b16 %v371
      %v897 = vunpack.c.l.b16 %v372
      %v898 = vunpack.c.l.b16 %v373
      %v899 = vunpack.c.l.b16 %v374
      %v900 = vunpack.c.l.b16 %v375
      %v901 = vunpack.c.l.b16 %v376
      %v902 = vunpack.c.l.b16 %v377
      %v903 = vunpack.c.l.b16 %v378
      %v904 = vunpack.c.l.b16 %v379
      %v905 = vunpack.c.l.b16 %v380
      %v906 = vunpack.c.l.b16 %v381
      %v907 = vunpack.c.l.b16 %v382
      %v908 = vunpack.c.l.b16 %v383
      %v909 = vunpack.c.l.b16 %v384
      %v910 = vunpack.c.l.b16 %v385
      %v911 = vunpack.c.l.b16 %v386
      %v912 = vunpack.c.l.b16 %v387
      %v913 = vunpack.c.l.b16 %v388
      %v914 = vunpack.c.l.b16 %v389
      %v915 = vunpack.c.l.b16 %v390
      %v916 = vunpack.c.l.b16 %v391
      %v917 = vunpack.c.l.b16 %v392
      %v918 = vunpack.c.l.b16 %v393
      %v919 = vunpack.c.l.b16 %v394
      %v920 = vunpack.c.l.b16 %v395
      %v921 = vunpack.c.l.b16 %v396
      %v922 = vunpack.c.l.b16 %v397
      %v923 = vunpack.c.l.b16 %v398
      %v924 = vunpack.c.l.b16 %v399
      %v925 = vunpack.c.l.b16 %v400
      %v926 = vunpack.c.l.b16 %v401
      %v927 = vunpack.c.l.b16 %v402
      %v928 = vunpack.c.l.b16 %v403
      %v929 = vunpack.c.l.b16 %v404
      %v930 = vunpack.c.l.b16 %v405
      %v931 = vunpack.c.l.b16 %v406
      %v932 = vunpack.c.l.b16 %v407
      %v933 = vunpack.c.l.b16 %v408
      %v934 = vunpack.c.l.b16 %v409
      %v935 = vunpack.c.l.b16 %v410
      %v936 = vunpack.c.l.b16 %v411
      %v937 = vunpack.c.l.b16 %v412
      %v938 = vunpack.c.l.b16 %v413
      %v939 = vunpack.c.l.b16 %v414
      %v940 = vunpack.c.l.b16 %v415
      %v941 = vunpack.c.l.b16 %v416
      %v942 = vunpack.c.l.b16 %v417
      %v943 = vunpack.c.l.b16 %v418
      %v944 = vunpack.c.l.b16 %v419
      %v945 = vunpack.c.l.b16 %v420
      %v946 = vunpack.c.l.b16 %v421
      %v947 = vunpack.c.l.b16 %v422
      %v948 = vunpack.c.l.b16 %v423
      %v949 = vunpack.c.l.b16 %v424
      %v950 = vunpack.c.l.b16 %v425
      %v951 = vunpack.c.l.b16 %v426
      %v952 = vunpack.c.l.b16 %v427
      %v953 = vunpack.c.l.b16 %v428
      %v954 = vunpack.c.l.b16 %v429
      %v955 = vunpack.c.l.b16 %v430
      %v956 = vpack.c.b16 %v701, %v700
      %v957 = vpack.c.b16 %v703, %v702
      %v958 = vpack.c.b16 %v705, %v704
      %v959 = vpack.c.b16 %v707, %v706
      %v960 = vpack.c.b16 %v709, %v708
      %v961 = vpack.c.b16 %v711, %v710
      %v962 = vpack.c.b16 %v713, %v712
      %v963 = vpack.c.b16 %v715, %v714
      %v964 = vpack.c.b16 %v717, %v716
      %v965 = vpack.c.b16 %v719, %v718
      %v966 = vpack.c.b16 %v721, %v720
      %v967 = vpack.c.b16 %v723, %v722
      %v968 = vpack.c.b16 %v725, %v724
      %v969 = vpack.c.b16 %v727, %v726
      %v970 = vpack.c.b16 %v729, %v728
      %v971 = vpack.c.b16 %v731, %v730
      %v972 = vpack.c.b16 %v733, %v732
      %v973 = vpack.c.b16 %v735, %v734
      %v974 = vpack.c.b16 %v737, %v736
      %v975 = vpack.c.b16 %v739, %v738
      %v976 = vpack.c.b16 %v741, %v740
      %v977 = vpack.c.b16 %v743, %v742
      %v978 = vpack.c.b16 %v745, %v744
      %v979 = vpack.c.b16 %v747, %v746
      %v980 = vpack.c.b16 %v749, %v748
      %v981 = vpack.c.b16 %v751, %v750
      %v982 = vpack.c.b16 %v753, %v752
      %v983 = vpack.c.b16 %v755, %v754
      %v984 = vpack.c.b16 %v757, %v756
      %v985 = vpack.c.b16 %v759, %v758
      %v986 = vpack.c.b16 %v761, %v760
      %v987 = vpack.c.b16 %v763, %v762
      %v988 = vpack.c.b16 %v765, %v764
      %v989 = vpack.c.b16 %v767, %v766
      %v990 = vpack.c.b16 %v769, %v768
      %v991 = vpack.c.b16 %v771, %v770
      %v992 = vpack.c.b16 %v773, %v772
      %v993 = vpack.c.b16 %v775, %v774
      %v994 = vpack.c.b16 %v777, %v776
      %v995 = vpack.c.b16 %v779, %v778
      %v996 = vpack.c.b16 %v781, %v780
      %v997 = vpack.c.b16 %v783, %v782
      %v998 = vpack.c.b16 %v785, %v784
      %v999 = vpack.c.b16 %v787, %v786
      %v1000 = vpack.c.b16 %v789, %v788
      %v1001 = vpack.c.b16 %v791, %v790
      %v1002 = vpack.c.b16 %v793, %v792
      %v1003 = vpack.c.b16 %v795, %v794
      %v1004 = vpack.c.b16 %v797, %v796
      %v1005 = vpack.c.b16 %v799, %v798
      %v1006 = vpack.c.b16 %v801, %v800
      %v1007 = vpack.c.b16 %v803, %v802
      %v1008 = vpack.c.b16 %v805, %v804
      %v1009 = vpack.c.b16 %v807, %v806
      %v1010 = vpack.c.b16 %v809, %v808
      %v1011 = vpack.c.b16 %v811, %v810
      %v1012 = vpack.c.b16 %v813, %v812
      %v1013 = vpack.c.b16 %v815, %v814
      %v1014 = vpack.c.b16 %v817, %v816
      %v1015 = vpack.c.b16 %v819, %v818
      %v1016 = vpack.c.b16 %v821, %v820
      %v1017 = vpack.c.b16 %v823, %v822
      %v1018 = vpack.c.b16 %v825, %v824
      %v1019 = vpack.c.b16 %v827, %v826
      %v1020 = vpack.c.b16 %v829, %v828
      %v1021 = vpack.c.b16 %v831, %v830
      %v1022 = vpack.c.b16 %v833, %v832
      %v1023 = vpack.c.b16 %v835, %v834
      %v1024 = vpack.c.b16 %v837, %v836
      %v1025 = vpack.c.b16 %v839, %v838
      %v1026 = vpack.c.b16 %v841, %v840
      %v1027 = vpack.c.b16 %v843, %v842
      %v1028 = vpack.c.b16 %v845, %v844
      %v1029 = vpack.c.b16 %v847, %v846
      %v1030 = vpack.c.b16 %v849, %v848
      %v1031 = vpack.c.b16 %v851, %v850
      %v1032 = vpack.c.b16 %v853, %v852
      %v1033 = vpack.c.b16 %v855, %v854
      %v1034 = vpack.c.b16 %v857, %v856
      %v1035 = vpack.c.b16 %v859, %v858
      %v1036 = vpack.c.b16 %v861, %v860
      %v1037 = vpack.c.b16 %v863, %v862
      %v1038 = vpack.c.b16 %v865, %v864
      %v1039 = vpack.c.b16 %v867, %v866
      %v1040 = vpack.c.b16 %v869, %v868
      %v1041 = vpack.c.b16 %v871, %v870
      %v1042 = vpack.c.b16 %v873, %v872
      %v1043 = vpack.c.b16 %v875, %v874
      %v1044 = vpack.c.b16 %v877, %v876
      %v1045 = vpack.c.b16 %v879, %v878
      %v1046 = vpack.c.b16 %v881, %v880
      %v1047 = vpack.c.b16 %v883, %v882
      %v1048 = vpack.c.b16 %v885, %v884
      %v1049 = vpack.c.b16 %v887, %v886
      %v1050 = vpack.c.b16 %v889, %v888
      %v1051 = vpack.c.b16 %v891, %v890
      %v1052 = vpack.c.b16 %v893, %v892
      %v1053 = vpack.c.b16 %v895, %v894
      %v1054 = vpack.c.b16 %v897, %v896
      %v1055 = vpack.c.b16 %v899, %v898
      %v1056 = vpack.c.b16 %v901, %v900
      %v1057 = vpack.c.b16 %v903, %v902
      %v1058 = vpack.c.b16 %v905, %v904
      %v1059 = vpack.c.b16 %v907, %v906
      %v1060 = vpack.c.b16 %v909, %v908
      %v1061 = vpack.c.b16 %v911, %v910
      %v1062 = vpack.c.b16 %v913, %v912
      %v1063 = vpack.c.b16 %v915, %v914
      %v1064 = vpack.c.b16 %v917, %v916
      %v1065 = vpack.c.b16 %v919, %v918
      %v1066 = vpack.c.b16 %v921, %v920
      %v1067 = vpack.c.b16 %v923, %v922
      %v1068 = vpack.c.b16 %v925, %v924
      %v1069 = vpack.c.b16 %v927, %v926
      %v1070 = vpack.c.b16 %v929, %v928
      %v1071 = vpack.c.b16 %v931, %v930
      %v1072 = vpack.c.b16 %v933, %v932
      %v1073 = vpack.c.b16 %v935, %v934
      %v1074 = vpack.c.b16 %v937, %v936
      %v1075 = vpack.c.b16 %v939, %v938
      %v1076 = vpack.c.b16 %v941, %v940
      %v1077 = vpack.c.b16 %v943, %v942
      %v1078 = vpack.c.b16 %v945, %v944
      %v1079 = vpack.c.b16 %v947, %v946
      %v1080 = vpack.c.b16 %v949, %v948
      %v1081 = vpack.c.b16 %v951, %v950
      %v1082 = vpack.c.b16 %v953, %v952
      %v1083 = vpack.c.b16 %v955, %v954
      %v1093 = vunpack.c.l.b16 %v431
      %v1094 = vunpack.c.l.b16 %v432
      %v1095 = vunpack.c.l.b16 %v433
      %v1096 = vunpack.c.l.b16 %v434
      %v1097 = vunpack.c.l.b16 %v435
      %v1098 = vunpack.c.l.b16 %v436
      %v1099 = vunpack.c.l.b16 %v437
      %v1100 = vunpack.c.l.b16 %v438
      %v1101 = vunpack.c.l.b16 %v439
      %v1102 = vpack.c.b16 %v1094, %v1093
      %v1103 = vpack.c.b16 %v1096, %v1095
      %v1104 = vpack.c.b16 %v1098, %v1097
      %v1105 = vpack.c.b16 %v1100, %v1099
      %v1106 = vpack.c.b16 %v1101, %v1101
      %vm1111 = vcmask 588800
      %v1113 = vsel %vm1111, %v956, 0
      %v1116 = vsel %vm1111, %v957, 0
      %v1119 = vsel %vm1111, %v958, 0
      %v1122 = vsel %vm1111, %v959, 0
      %v1125 = vsel %vm1111, %v960, 0
      %v1128 = vsel %vm1111, %v961, 0
      %v1131 = vsel %vm1111, %v962, 0
      %v1134 = vsel %vm1111, %v963, 0
      %v1137 = vsel %vm1111, %v964, 0
      %v1140 = vsel %vm1111, %v965, 0
      %v1143 = vsel %vm1111, %v966, 0
      %v1146 = vsel %vm1111, %v967, 0
      %v1149 = vsel %vm1111, %v968, 0
      %v1152 = vsel %vm1111, %v969, 0
      %v1155 = vsel %vm1111, %v970, 0
      %v1158 = vsel %vm1111, %v971, 0
      %v1161 = vsel %vm1111, %v972, 0
      %v1164 = vsel %vm1111, %v973, 0
      %v1167 = vsel %vm1111, %v974, 0
      %v1170 = vsel %vm1111, %v975, 0
      %v1173 = vsel %vm1111, %v976, 0
      %v1176 = vsel %vm1111, %v977, 0
      %v1179 = vsel %vm1111, %v978, 0
      %v1182 = vsel %vm1111, %v979, 0
      %v1185 = vsel %vm1111, %v980, 0
      %v1188 = vsel %vm1111, %v981, 0
      %v1191 = vsel %vm1111, %v982, 0
      %v1194 = vsel %vm1111, %v983, 0
      %v1197 = vsel %vm1111, %v984, 0
      %v1200 = vsel %vm1111, %v985, 0
      %v1203 = vsel %vm1111, %v986, 0
      %v1206 = vsel %vm1111, %v987, 0
      %v1209 = vsel %vm1111, %v988, 0
      %v1212 = vsel %vm1111, %v989, 0
      %v1215 = vsel %vm1111, %v990, 0
      %v1218 = vsel %vm1111, %v991, 0
      %v1221 = vsel %vm1111, %v992, 0
      %v1224 = vsel %vm1111, %v993, 0
      %v1227 = vsel %vm1111, %v994, 0
      %v1230 = vsel %vm1111, %v995, 0
      %v1233 = vsel %vm1111, %v996, 0
      %v1236 = vsel %vm1111, %v997, 0
      %v1239 = vsel %vm1111, %v998, 0
      %v1242 = vsel %vm1111, %v999, 0
      %v1245 = vsel %vm1111, %v1000, 0
      %v1248 = vsel %vm1111, %v1001, 0
      %v1251 = vsel %vm1111, %v1002, 0
      %v1254 = vsel %vm1111, %v1003, 0
      %v1257 = vsel %vm1111, %v1004, 0
      %v1260 = vsel %vm1111, %v1005, 0
      %v1263 = vsel %vm1111, %v1006, 0
      %v1266 = vsel %vm1111, %v1007, 0
      %v1269 = vsel %vm1111, %v1008, 0
      %v1272 = vsel %vm1111, %v1009, 0
      %v1275 = vsel %vm1111, %v1010, 0
      %v1278 = vsel %vm1111, %v1011, 0
      %v1281 = vsel %vm1111, %v1012, 0
      %v1284 = vsel %vm1111, %v1013, 0
      %v1287 = vsel %vm1111, %v1014, 0
      %v1290 = vsel %vm1111, %v1015, 0
      %v1293 = vsel %vm1111, %v1016, 0
      %v1296 = vsel %vm1111, %v1017, 0
      %v1299 = vsel %vm1111, %v1018, 0
      %v1302 = vsel %vm1111, %v1019, 0
      %v1305 = vsel %vm1111, %v1020, 0
      %v1308 = vsel %vm1111, %v1021, 0
      %v1311 = vsel %vm1111, %v1022, 0
      %v1314 = vsel %vm1111, %v1023, 0
      %v1317 = vsel %vm1111, %v1024, 0
      %v1320 = vsel %vm1111, %v1025, 0
      %v1323 = vsel %vm1111, %v1026, 0
      %v1326 = vsel %vm1111, %v1027, 0
      %v1329 = vsel %vm1111, %v1028, 0
      %v1332 = vsel %vm1111, %v1029, 0
      %v1335 = vsel %vm1111, %v1030, 0
      %v1338 = vsel %vm1111, %v1031, 0
      %v1341 = vsel %vm1111, %v1032, 0
      %v1344 = vsel %vm1111, %v1033, 0
      %v1347 = vsel %vm1111, %v1034, 0
      %v1350 = vsel %vm1111, %v1035, 0
      %v1353 = vsel %vm1111, %v1036, 0
      %v1356 = vsel %vm1111, %v1037, 0
      %v1359 = vsel %vm1111, %v1038, 0
      %v1362 = vsel %vm1111, %v1039, 0
      %v1365 = vsel %vm1111, %v1040, 0
      %v1368 = vsel %vm1111, %v1041, 0
      %v1371 = vsel %vm1111, %v1042, 0
      %v1374 = vsel %vm1111, %v1043, 0
      %v1377 = vsel %vm1111, %v1044, 0
      %v1380 = vsel %vm1111, %v1045, 0
      %v1383 = vsel %vm1111, %v1046, 0
      %v1386 = vsel %vm1111, %v1047, 0
      %v1389 = vsel %vm1111, %v1048, 0
      %v1392 = vsel %vm1111, %v1049, 0
      %v1395 = vsel %vm1111, %v1050, 0
      %v1398 = vsel %vm1111, %v1051, 0
      %v1401 = vsel %vm1111, %v1052, 0
      %v1404 = vsel %vm1111, %v1053, 0
      %v1407 = vsel %vm1111, %v1054, 0
      %v1410 = vsel %vm1111, %v1055, 0
      %v1413 = vsel %vm1111, %v1056, 0
      %v1416 = vsel %vm1111, %v1057, 0
      %v1419 = vsel %vm1111, %v1058, 0
      %v1422 = vsel %vm1111, %v1059, 0
      %v1425 = vsel %vm1111, %v1060, 0
      %v1428 = vsel %vm1111, %v1061, 0
      %v1431 = vsel %vm1111, %v1062, 0
      %v1434 = vsel %vm1111, %v1063, 0
      %v1437 = vsel %vm1111, %v1064, 0
      %v1440 = vsel %vm1111, %v1065, 0
      %v1443 = vsel %vm1111, %v1066, 0
      %v1446 = vsel %vm1111, %v1067, 0
      %v1449 = vsel %vm1111, %v1068, 0
      %v1452 = vsel %vm1111, %v1069, 0
      %v1455 = vsel %vm1111, %v1070, 0
      %v1458 = vsel %vm1111, %v1071, 0
      %v1461 = vsel %vm1111, %v1072, 0
      %v1464 = vsel %vm1111, %v1073, 0
      %v1467 = vsel %vm1111, %v1074, 0
      %v1470 = vsel %vm1111, %v1075, 0
      %v1473 = vsel %vm1111, %v1076, 0
      %v1476 = vsel %vm1111, %v1077, 0
      %v1479 = vsel %vm1111, %v1078, 0
      %v1482 = vsel %vm1111, %v1079, 0
      %v1485 = vsel %vm1111, %v1080, 0
      %v1488 = vsel %vm1111, %v1081, 0
      %v1491 = vsel %vm1111, %v1082, 0
      %v1494 = vsel %vm1111, %v1083, 0
      %vm1496 = vcmask 1043456
      %v1498 = vsel %vm1496, %v1106, 0
      %1500 = vmatpush.bf16.msra.mxu0 0
      %1501 = vmatpush.bf16.msra.mxu0 0
      %1502 = vmatpush.bf16.msra.mxu0 0
      %1503 = vmatpush.bf16.msra.mxu0 %v1498
      %1504 = vmatpush.bf16.msra.mxu0 %v1105
      %1505 = vmatpush.bf16.msra.mxu0 %v1104
      %1506 = vmatpush.bf16.msra.mxu0 %v1103
      %1507 = vmatpush.bf16.msra.mxu0 %v1102
      %1508 = vmatmul.bf16.gmra.mxu0 %v1113
      %v1509 = vpop.f32.mrf.mxu0
      %v1510 = vadd.f32 %v442, %v1509
      %v1511 = vpop.f32.mrf.mxu0
      %v1512 = vadd.f32 %v442, %v1511
      %1513 = vmatmul.bf16.gmra.mxu0 %v1116
      %v1514 = vpop.f32.mrf.mxu0
      %v1515 = vadd.f32 %v442, %v1514
      %v1516 = vpop.f32.mrf.mxu0
      %v1517 = vadd.f32 %v442, %v1516
      %1518 = vmatmul.bf16.gmra.mxu0 %v1119
      %v1519 = vpop.f32.mrf.mxu0
      %v1520 = vadd.f32 %v442, %v1519
      %v1521 = vpop.f32.mrf.mxu0
      %v1522 = vadd.f32 %v442, %v1521
      %1523 = vmatmul.bf16.gmra.mxu0 %v1122
      %v1524 = vpop.f32.mrf.mxu0
      %v1525 = vadd.f32 %v442, %v1524
      %v1526 = vpop.f32.mrf.mxu0
      %v1527 = vadd.f32 %v442, %v1526
      %1528 = vmatmul.bf16.gmra.mxu0 %v1125
      %v1529 = vpop.f32.mrf.mxu0
      %v1530 = vadd.f32 %v442, %v1529
      %v1531 = vpop.f32.mrf.mxu0
      %v1532 = vadd.f32 %v442, %v1531
      %1533 = vmatmul.bf16.gmra.mxu0 %v1128
      %v1534 = vpop.f32.mrf.mxu0
      %v1535 = vadd.f32 %v442, %v1534
      %v1536 = vpop.f32.mrf.mxu0
      %v1537 = vadd.f32 %v442, %v1536
      %1538 = vmatmul.bf16.gmra.mxu0 %v1131
      %v1539 = vpop.f32.mrf.mxu0
      %v1540 = vadd.f32 %v442, %v1539
      %v1541 = vpop.f32.mrf.mxu0
      %v1542 = vadd.f32 %v442, %v1541
      %1543 = vmatmul.bf16.gmra.mxu0 %v1134
      %v1544 = vpop.f32.mrf.mxu0
      %v1545 = vadd.f32 %v442, %v1544
      %v1546 = vpop.f32.mrf.mxu0
      %v1547 = vadd.f32 %v442, %v1546
      %1548 = vmatmul.bf16.gmra.mxu0 %v1137
      %v1549 = vpop.f32.mrf.mxu0
      %v1550 = vadd.f32 %v442, %v1549
      %v1551 = vpop.f32.mrf.mxu0
      %v1552 = vadd.f32 %v442, %v1551
      %1553 = vmatmul.bf16.gmra.mxu0 %v1140
      %v1554 = vpop.f32.mrf.mxu0
      %v1555 = vadd.f32 %v442, %v1554
      %v1556 = vpop.f32.mrf.mxu0
      %v1557 = vadd.f32 %v442, %v1556
      %1558 = vmatmul.bf16.gmra.mxu0 %v1143
      %v1559 = vpop.f32.mrf.mxu0
      %v1560 = vadd.f32 %v442, %v1559
      %v1561 = vpop.f32.mrf.mxu0
      %v1562 = vadd.f32 %v442, %v1561
      %1563 = vmatmul.bf16.gmra.mxu0 %v1146
      %v1564 = vpop.f32.mrf.mxu0
      %v1565 = vadd.f32 %v442, %v1564
      %v1566 = vpop.f32.mrf.mxu0
      %v1567 = vadd.f32 %v442, %v1566
      %1568 = vmatmul.bf16.gmra.mxu0 %v1149
      %v1569 = vpop.f32.mrf.mxu0
      %v1570 = vadd.f32 %v442, %v1569
      %v1571 = vpop.f32.mrf.mxu0
      %v1572 = vadd.f32 %v442, %v1571
      %1573 = vmatmul.bf16.gmra.mxu0 %v1152
      %v1574 = vpop.f32.mrf.mxu0
      %v1575 = vadd.f32 %v442, %v1574
      %v1576 = vpop.f32.mrf.mxu0
      %v1577 = vadd.f32 %v442, %v1576
      %1578 = vmatmul.bf16.gmra.mxu0 %v1155
      %v1579 = vpop.f32.mrf.mxu0
      %v1580 = vadd.f32 %v442, %v1579
      %v1581 = vpop.f32.mrf.mxu0
      %v1582 = vadd.f32 %v442, %v1581
      %1583 = vmatmul.bf16.gmra.mxu0 %v1158
      %v1584 = vpop.f32.mrf.mxu0
      %v1585 = vadd.f32 %v442, %v1584
      %v1586 = vpop.f32.mrf.mxu0
      %v1587 = vadd.f32 %v442, %v1586
      %1588 = vmatmul.bf16.gmra.mxu0 %v1161
      %v1589 = vpop.f32.mrf.mxu0
      %v1590 = vadd.f32 %v442, %v1589
      %v1591 = vpop.f32.mrf.mxu0
      %v1592 = vadd.f32 %v442, %v1591
      %1593 = vmatmul.bf16.gmra.mxu0 %v1164
      %v1594 = vpop.f32.mrf.mxu0
      %v1595 = vadd.f32 %v442, %v1594
      %v1596 = vpop.f32.mrf.mxu0
      %v1597 = vadd.f32 %v442, %v1596
      %1598 = vmatmul.bf16.gmra.mxu0 %v1167
      %v1599 = vpop.f32.mrf.mxu0
      %v1600 = vadd.f32 %v442, %v1599
      %v1601 = vpop.f32.mrf.mxu0
      %v1602 = vadd.f32 %v442, %v1601
      %1603 = vmatmul.bf16.gmra.mxu0 %v1170
      %v1604 = vpop.f32.mrf.mxu0
      %v1605 = vadd.f32 %v442, %v1604
      %v1606 = vpop.f32.mrf.mxu0
      %v1607 = vadd.f32 %v442, %v1606
      %1608 = vmatmul.bf16.gmra.mxu0 %v1173
      %v1609 = vpop.f32.mrf.mxu0
      %v1610 = vadd.f32 %v442, %v1609
      %v1611 = vpop.f32.mrf.mxu0
      %v1612 = vadd.f32 %v442, %v1611
      %1613 = vmatmul.bf16.gmra.mxu0 %v1176
      %v1614 = vpop.f32.mrf.mxu0
      %v1615 = vadd.f32 %v442, %v1614
      %v1616 = vpop.f32.mrf.mxu0
      %v1617 = vadd.f32 %v442, %v1616
      %1618 = vmatmul.bf16.gmra.mxu0 %v1179
      %v1619 = vpop.f32.mrf.mxu0
      %v1620 = vadd.f32 %v442, %v1619
      %v1621 = vpop.f32.mrf.mxu0
      %v1622 = vadd.f32 %v442, %v1621
      %1623 = vmatmul.bf16.gmra.mxu0 %v1182
      %v1624 = vpop.f32.mrf.mxu0
      %v1625 = vadd.f32 %v442, %v1624
      %v1626 = vpop.f32.mrf.mxu0
      %v1627 = vadd.f32 %v442, %v1626
      %1628 = vmatmul.bf16.gmra.mxu0 %v1185
      %v1629 = vpop.f32.mrf.mxu0
      %v1630 = vadd.f32 %v442, %v1629
      %v1631 = vpop.f32.mrf.mxu0
      %v1632 = vadd.f32 %v442, %v1631
      %1633 = vmatmul.bf16.gmra.mxu0 %v1188
      %v1634 = vpop.f32.mrf.mxu0
      %v1635 = vadd.f32 %v442, %v1634
      %v1636 = vpop.f32.mrf.mxu0
      %v1637 = vadd.f32 %v442, %v1636
      %1638 = vmatmul.bf16.gmra.mxu0 %v1191
      %v1639 = vpop.f32.mrf.mxu0
      %v1640 = vadd.f32 %v442, %v1639
      %v1641 = vpop.f32.mrf.mxu0
      %v1642 = vadd.f32 %v442, %v1641
      %1643 = vmatmul.bf16.gmra.mxu0 %v1194
      %v1644 = vpop.f32.mrf.mxu0
      %v1645 = vadd.f32 %v442, %v1644
      %v1646 = vpop.f32.mrf.mxu0
      %v1647 = vadd.f32 %v442, %v1646
      %1648 = vmatmul.bf16.gmra.mxu0 %v1197
      %v1649 = vpop.f32.mrf.mxu0
      %v1650 = vadd.f32 %v442, %v1649
      %v1651 = vpop.f32.mrf.mxu0
      %v1652 = vadd.f32 %v442, %v1651
      %1653 = vmatmul.bf16.gmra.mxu0 %v1200
      %v1654 = vpop.f32.mrf.mxu0
      %v1655 = vadd.f32 %v442, %v1654
      %v1656 = vpop.f32.mrf.mxu0
      %v1657 = vadd.f32 %v442, %v1656
      %1658 = vmatmul.bf16.gmra.mxu0 %v1203
      %v1659 = vpop.f32.mrf.mxu0
      %v1660 = vadd.f32 %v442, %v1659
      %v1661 = vpop.f32.mrf.mxu0
      %v1662 = vadd.f32 %v442, %v1661
      %1663 = vmatmul.bf16.gmra.mxu0 %v1206
      %v1664 = vpop.f32.mrf.mxu0
      %v1665 = vadd.f32 %v442, %v1664
      %v1666 = vpop.f32.mrf.mxu0
      %v1667 = vadd.f32 %v442, %v1666
      %1668 = vmatmul.bf16.gmra.mxu0 %v1209
      %v1669 = vpop.f32.mrf.mxu0
      %v1670 = vadd.f32 %v442, %v1669
      %v1671 = vpop.f32.mrf.mxu0
      %v1672 = vadd.f32 %v442, %v1671
      %1673 = vmatmul.bf16.gmra.mxu0 %v1212
      %v1674 = vpop.f32.mrf.mxu0
      %v1675 = vadd.f32 %v442, %v1674
      %v1676 = vpop.f32.mrf.mxu0
      %v1677 = vadd.f32 %v442, %v1676
      %1678 = vmatmul.bf16.gmra.mxu0 %v1215
      %v1679 = vpop.f32.mrf.mxu0
      %v1680 = vadd.f32 %v442, %v1679
      %v1681 = vpop.f32.mrf.mxu0
      %v1682 = vadd.f32 %v442, %v1681
      %1683 = vmatmul.bf16.gmra.mxu0 %v1218
      %v1684 = vpop.f32.mrf.mxu0
      %v1685 = vadd.f32 %v442, %v1684
      %v1686 = vpop.f32.mrf.mxu0
      %v1687 = vadd.f32 %v442, %v1686
      %1688 = vmatmul.bf16.gmra.mxu0 %v1221
      %v1689 = vpop.f32.mrf.mxu0
      %v1690 = vadd.f32 %v442, %v1689
      %v1691 = vpop.f32.mrf.mxu0
      %v1692 = vadd.f32 %v442, %v1691
      %1693 = vmatmul.bf16.gmra.mxu0 %v1224
      %v1694 = vpop.f32.mrf.mxu0
      %v1695 = vadd.f32 %v442, %v1694
      %v1696 = vpop.f32.mrf.mxu0
      %v1697 = vadd.f32 %v442, %v1696
      %1698 = vmatmul.bf16.gmra.mxu0 %v1227
      %v1699 = vpop.f32.mrf.mxu0
      %v1700 = vadd.f32 %v442, %v1699
      %v1701 = vpop.f32.mrf.mxu0
      %v1702 = vadd.f32 %v442, %v1701
      %1703 = vmatmul.bf16.gmra.mxu0 %v1230
      %v1704 = vpop.f32.mrf.mxu0
      %v1705 = vadd.f32 %v442, %v1704
      %v1706 = vpop.f32.mrf.mxu0
      %v1707 = vadd.f32 %v442, %v1706
      %1708 = vmatmul.bf16.gmra.mxu0 %v1233
      %v1709 = vpop.f32.mrf.mxu0
      %v1710 = vadd.f32 %v442, %v1709
      %v1711 = vpop.f32.mrf.mxu0
      %v1712 = vadd.f32 %v442, %v1711
      %1713 = vmatmul.bf16.gmra.mxu0 %v1236
      %v1714 = vpop.f32.mrf.mxu0
      %v1715 = vadd.f32 %v442, %v1714
      %v1716 = vpop.f32.mrf.mxu0
      %v1717 = vadd.f32 %v442, %v1716
      %1718 = vmatmul.bf16.gmra.mxu0 %v1239
      %v1719 = vpop.f32.mrf.mxu0
      %v1720 = vadd.f32 %v442, %v1719
      %v1721 = vpop.f32.mrf.mxu0
      %v1722 = vadd.f32 %v442, %v1721
      %1723 = vmatmul.bf16.gmra.mxu0 %v1242
      %v1724 = vpop.f32.mrf.mxu0
      %v1725 = vadd.f32 %v442, %v1724
      %v1726 = vpop.f32.mrf.mxu0
      %v1727 = vadd.f32 %v442, %v1726
      %1728 = vmatmul.bf16.gmra.mxu0 %v1245
      %v1729 = vpop.f32.mrf.mxu0
      %v1730 = vadd.f32 %v442, %v1729
      %v1731 = vpop.f32.mrf.mxu0
      %v1732 = vadd.f32 %v442, %v1731
      %1733 = vmatmul.bf16.gmra.mxu0 %v1248
      %v1734 = vpop.f32.mrf.mxu0
      %v1735 = vadd.f32 %v442, %v1734
      %v1736 = vpop.f32.mrf.mxu0
      %v1737 = vadd.f32 %v442, %v1736
      %1738 = vmatmul.bf16.gmra.mxu0 %v1251
      %v1739 = vpop.f32.mrf.mxu0
      %v1740 = vadd.f32 %v442, %v1739
      %v1741 = vpop.f32.mrf.mxu0
      %v1742 = vadd.f32 %v442, %v1741
      %1743 = vmatmul.bf16.gmra.mxu0 %v1254
      %v1744 = vpop.f32.mrf.mxu0
      %v1745 = vadd.f32 %v442, %v1744
      %v1746 = vpop.f32.mrf.mxu0
      %v1747 = vadd.f32 %v442, %v1746
      %1748 = vmatmul.bf16.gmra.mxu0 %v1257
      %v1749 = vpop.f32.mrf.mxu0
      %v1750 = vadd.f32 %v442, %v1749
      %v1751 = vpop.f32.mrf.mxu0
      %v1752 = vadd.f32 %v442, %v1751
      %1753 = vmatmul.bf16.gmra.mxu0 %v1260
      %v1754 = vpop.f32.mrf.mxu0
      %v1755 = vadd.f32 %v442, %v1754
      %v1756 = vpop.f32.mrf.mxu0
      %v1757 = vadd.f32 %v442, %v1756
      %1758 = vmatmul.bf16.gmra.mxu0 %v1263
      %v1759 = vpop.f32.mrf.mxu0
      %v1760 = vadd.f32 %v442, %v1759
      %v1761 = vpop.f32.mrf.mxu0
      %v1762 = vadd.f32 %v442, %v1761
      %1763 = vmatmul.bf16.gmra.mxu0 %v1266
      %v1764 = vpop.f32.mrf.mxu0
      %v1765 = vadd.f32 %v442, %v1764
      %v1766 = vpop.f32.mrf.mxu0
      %v1767 = vadd.f32 %v442, %v1766
      %1768 = vmatmul.bf16.gmra.mxu0 %v1269
      %v1769 = vpop.f32.mrf.mxu0
      %v1770 = vadd.f32 %v442, %v1769
      %v1771 = vpop.f32.mrf.mxu0
      %v1772 = vadd.f32 %v442, %v1771
      %1773 = vmatmul.bf16.gmra.mxu0 %v1272
      %v1774 = vpop.f32.mrf.mxu0
      %v1775 = vadd.f32 %v442, %v1774
      %v1776 = vpop.f32.mrf.mxu0
      %v1777 = vadd.f32 %v442, %v1776
      %1778 = vmatmul.bf16.gmra.mxu0 %v1275
      %v1779 = vpop.f32.mrf.mxu0
      %v1780 = vadd.f32 %v442, %v1779
      %v1781 = vpop.f32.mrf.mxu0
      %v1782 = vadd.f32 %v442, %v1781
      %1783 = vmatmul.bf16.gmra.mxu0 %v1278
      %v1784 = vpop.f32.mrf.mxu0
      %v1785 = vadd.f32 %v442, %v1784
      %v1786 = vpop.f32.mrf.mxu0
      %v1787 = vadd.f32 %v442, %v1786
      %1788 = vmatmul.bf16.gmra.mxu0 %v1281
      %v1789 = vpop.f32.mrf.mxu0
      %v1790 = vadd.f32 %v442, %v1789
      %v1791 = vpop.f32.mrf.mxu0
      %v1792 = vadd.f32 %v442, %v1791
      %1793 = vmatmul.bf16.gmra.mxu0 %v1284
      %v1794 = vpop.f32.mrf.mxu0
      %v1795 = vadd.f32 %v442, %v1794
      %v1796 = vpop.f32.mrf.mxu0
      %v1797 = vadd.f32 %v442, %v1796
      %1798 = vmatmul.bf16.gmra.mxu0 %v1287
      %v1799 = vpop.f32.mrf.mxu0
      %v1800 = vadd.f32 %v442, %v1799
      %v1801 = vpop.f32.mrf.mxu0
      %v1802 = vadd.f32 %v442, %v1801
      %1803 = vmatmul.bf16.gmra.mxu0 %v1290
      %v1804 = vpop.f32.mrf.mxu0
      %v1805 = vadd.f32 %v442, %v1804
      %v1806 = vpop.f32.mrf.mxu0
      %v1807 = vadd.f32 %v442, %v1806
      %1808 = vmatmul.bf16.gmra.mxu0 %v1293
      %v1809 = vpop.f32.mrf.mxu0
      %v1810 = vadd.f32 %v442, %v1809
      %v1811 = vpop.f32.mrf.mxu0
      %v1812 = vadd.f32 %v442, %v1811
      %1813 = vmatmul.bf16.gmra.mxu0 %v1296
      %v1814 = vpop.f32.mrf.mxu0
      %v1815 = vadd.f32 %v442, %v1814
      %v1816 = vpop.f32.mrf.mxu0
      %v1817 = vadd.f32 %v442, %v1816
      %1818 = vmatmul.bf16.gmra.mxu0 %v1299
      %v1819 = vpop.f32.mrf.mxu0
      %v1820 = vadd.f32 %v442, %v1819
      %v1821 = vpop.f32.mrf.mxu0
      %v1822 = vadd.f32 %v442, %v1821
      %1823 = vmatmul.bf16.gmra.mxu0 %v1302
      %v1824 = vpop.f32.mrf.mxu0
      %v1825 = vadd.f32 %v442, %v1824
      %v1826 = vpop.f32.mrf.mxu0
      %v1827 = vadd.f32 %v442, %v1826
      %1828 = vmatmul.bf16.gmra.mxu0 %v1305
      %v1829 = vpop.f32.mrf.mxu0
      %v1830 = vadd.f32 %v442, %v1829
      %v1831 = vpop.f32.mrf.mxu0
      %v1832 = vadd.f32 %v442, %v1831
      %1833 = vmatmul.bf16.gmra.mxu0 %v1308
      %v1834 = vpop.f32.mrf.mxu0
      %v1835 = vadd.f32 %v442, %v1834
      %v1836 = vpop.f32.mrf.mxu0
      %v1837 = vadd.f32 %v442, %v1836
      %1838 = vmatmul.bf16.gmra.mxu0 %v1311
      %v1839 = vpop.f32.mrf.mxu0
      %v1840 = vadd.f32 %v442, %v1839
      %v1841 = vpop.f32.mrf.mxu0
      %v1842 = vadd.f32 %v442, %v1841
      %1843 = vmatmul.bf16.gmra.mxu0 %v1314
      %v1844 = vpop.f32.mrf.mxu0
      %v1845 = vadd.f32 %v442, %v1844
      %v1846 = vpop.f32.mrf.mxu0
      %v1847 = vadd.f32 %v442, %v1846
      %1848 = vmatmul.bf16.gmra.mxu0 %v1317
      %v1849 = vpop.f32.mrf.mxu0
      %v1850 = vadd.f32 %v442, %v1849
      %v1851 = vpop.f32.mrf.mxu0
      %v1852 = vadd.f32 %v442, %v1851
      %1853 = vmatmul.bf16.gmra.mxu0 %v1320
      %v1854 = vpop.f32.mrf.mxu0
      %v1855 = vadd.f32 %v442, %v1854
      %v1856 = vpop.f32.mrf.mxu0
      %v1857 = vadd.f32 %v442, %v1856
      %1858 = vmatmul.bf16.gmra.mxu0 %v1323
      %v1859 = vpop.f32.mrf.mxu0
      %v1860 = vadd.f32 %v442, %v1859
      %v1861 = vpop.f32.mrf.mxu0
      %v1862 = vadd.f32 %v442, %v1861
      %1863 = vmatmul.bf16.gmra.mxu0 %v1326
      %v1864 = vpop.f32.mrf.mxu0
      %v1865 = vadd.f32 %v442, %v1864
      %v1866 = vpop.f32.mrf.mxu0
      %v1867 = vadd.f32 %v442, %v1866
      %1868 = vmatmul.bf16.gmra.mxu0 %v1329
      %v1869 = vpop.f32.mrf.mxu0
      %v1870 = vadd.f32 %v442, %v1869
      %v1871 = vpop.f32.mrf.mxu0
      %v1872 = vadd.f32 %v442, %v1871
      %1873 = vmatmul.bf16.gmra.mxu0 %v1332
      %v1874 = vpop.f32.mrf.mxu0
      %v1875 = vadd.f32 %v442, %v1874
      %v1876 = vpop.f32.mrf.mxu0
      %v1877 = vadd.f32 %v442, %v1876
      %1878 = vmatmul.bf16.gmra.mxu0 %v1335
      %v1879 = vpop.f32.mrf.mxu0
      %v1880 = vadd.f32 %v442, %v1879
      %v1881 = vpop.f32.mrf.mxu0
      %v1882 = vadd.f32 %v442, %v1881
      %1883 = vmatmul.bf16.gmra.mxu0 %v1338
      %v1884 = vpop.f32.mrf.mxu0
      %v1885 = vadd.f32 %v442, %v1884
      %v1886 = vpop.f32.mrf.mxu0
      %v1887 = vadd.f32 %v442, %v1886
      %1888 = vmatmul.bf16.gmra.mxu0 %v1341
      %v1889 = vpop.f32.mrf.mxu0
      %v1890 = vadd.f32 %v442, %v1889
      %v1891 = vpop.f32.mrf.mxu0
      %v1892 = vadd.f32 %v442, %v1891
      %1893 = vmatmul.bf16.gmra.mxu0 %v1344
      %v1894 = vpop.f32.mrf.mxu0
      %v1895 = vadd.f32 %v442, %v1894
      %v1896 = vpop.f32.mrf.mxu0
      %v1897 = vadd.f32 %v442, %v1896
      %1898 = vmatmul.bf16.gmra.mxu0 %v1347
      %v1899 = vpop.f32.mrf.mxu0
      %v1900 = vadd.f32 %v442, %v1899
      %v1901 = vpop.f32.mrf.mxu0
      %v1902 = vadd.f32 %v442, %v1901
      %1903 = vmatmul.bf16.gmra.mxu0 %v1350
      %v1904 = vpop.f32.mrf.mxu0
      %v1905 = vadd.f32 %v442, %v1904
      %v1906 = vpop.f32.mrf.mxu0
      %v1907 = vadd.f32 %v442, %v1906
      %1908 = vmatmul.bf16.gmra.mxu0 %v1353
      %v1909 = vpop.f32.mrf.mxu0
      %v1910 = vadd.f32 %v442, %v1909
      %v1911 = vpop.f32.mrf.mxu0
      %v1912 = vadd.f32 %v442, %v1911
      %1913 = vmatmul.bf16.gmra.mxu0 %v1356
      %v1914 = vpop.f32.mrf.mxu0
      %v1915 = vadd.f32 %v442, %v1914
      %v1916 = vpop.f32.mrf.mxu0
      %v1917 = vadd.f32 %v442, %v1916
      %1918 = vmatmul.bf16.gmra.mxu0 %v1359
      %v1919 = vpop.f32.mrf.mxu0
      %v1920 = vadd.f32 %v442, %v1919
      %v1921 = vpop.f32.mrf.mxu0
      %v1922 = vadd.f32 %v442, %v1921
      %1923 = vmatmul.bf16.gmra.mxu0 %v1362
      %v1924 = vpop.f32.mrf.mxu0
      %v1925 = vadd.f32 %v442, %v1924
      %v1926 = vpop.f32.mrf.mxu0
      %v1927 = vadd.f32 %v442, %v1926
      %1928 = vmatmul.bf16.gmra.mxu0 %v1365
      %v1929 = vpop.f32.mrf.mxu0
      %v1930 = vadd.f32 %v442, %v1929
      %v1931 = vpop.f32.mrf.mxu0
      %v1932 = vadd.f32 %v442, %v1931
      %1933 = vmatmul.bf16.gmra.mxu0 %v1368
      %v1934 = vpop.f32.mrf.mxu0
      %v1935 = vadd.f32 %v442, %v1934
      %v1936 = vpop.f32.mrf.mxu0
      %v1937 = vadd.f32 %v442, %v1936
      %1938 = vmatmul.bf16.gmra.mxu0 %v1371
      %v1939 = vpop.f32.mrf.mxu0
      %v1940 = vadd.f32 %v442, %v1939
      %v1941 = vpop.f32.mrf.mxu0
      %v1942 = vadd.f32 %v442, %v1941
      %1943 = vmatmul.bf16.gmra.mxu0 %v1374
      %v1944 = vpop.f32.mrf.mxu0
      %v1945 = vadd.f32 %v442, %v1944
      %v1946 = vpop.f32.mrf.mxu0
      %v1947 = vadd.f32 %v442, %v1946
      %1948 = vmatmul.bf16.gmra.mxu0 %v1377
      %v1949 = vpop.f32.mrf.mxu0
      %v1950 = vadd.f32 %v442, %v1949
      %v1951 = vpop.f32.mrf.mxu0
      %v1952 = vadd.f32 %v442, %v1951
      %1953 = vmatmul.bf16.gmra.mxu0 %v1380
      %v1954 = vpop.f32.mrf.mxu0
      %v1955 = vadd.f32 %v442, %v1954
      %v1956 = vpop.f32.mrf.mxu0
      %v1957 = vadd.f32 %v442, %v1956
      %1958 = vmatmul.bf16.gmra.mxu0 %v1383
      %v1959 = vpop.f32.mrf.mxu0
      %v1960 = vadd.f32 %v442, %v1959
      %v1961 = vpop.f32.mrf.mxu0
      %v1962 = vadd.f32 %v442, %v1961
      %1963 = vmatmul.bf16.gmra.mxu0 %v1386
      %v1964 = vpop.f32.mrf.mxu0
      %v1965 = vadd.f32 %v442, %v1964
      %v1966 = vpop.f32.mrf.mxu0
      %v1967 = vadd.f32 %v442, %v1966
      %1968 = vmatmul.bf16.gmra.mxu0 %v1389
      %v1969 = vpop.f32.mrf.mxu0
      %v1970 = vadd.f32 %v442, %v1969
      %v1971 = vpop.f32.mrf.mxu0
      %v1972 = vadd.f32 %v442, %v1971
      %1973 = vmatmul.bf16.gmra.mxu0 %v1392
      %v1974 = vpop.f32.mrf.mxu0
      %v1975 = vadd.f32 %v442, %v1974
      %v1976 = vpop.f32.mrf.mxu0
      %v1977 = vadd.f32 %v442, %v1976
      %1978 = vmatmul.bf16.gmra.mxu0 %v1395
      %v1979 = vpop.f32.mrf.mxu0
      %v1980 = vadd.f32 %v442, %v1979
      %v1981 = vpop.f32.mrf.mxu0
      %v1982 = vadd.f32 %v442, %v1981
      %1983 = vmatmul.bf16.gmra.mxu0 %v1398
      %v1984 = vpop.f32.mrf.mxu0
      %v1985 = vadd.f32 %v442, %v1984
      %v1986 = vpop.f32.mrf.mxu0
      %v1987 = vadd.f32 %v442, %v1986
      %1988 = vmatmul.bf16.gmra.mxu0 %v1401
      %v1989 = vpop.f32.mrf.mxu0
      %v1990 = vadd.f32 %v442, %v1989
      %v1991 = vpop.f32.mrf.mxu0
      %v1992 = vadd.f32 %v442, %v1991
      %1993 = vmatmul.bf16.gmra.mxu0 %v1404
      %v1994 = vpop.f32.mrf.mxu0
      %v1995 = vadd.f32 %v442, %v1994
      %v1996 = vpop.f32.mrf.mxu0
      %v1997 = vadd.f32 %v442, %v1996
      %1998 = vmatmul.bf16.gmra.mxu0 %v1407
      %v1999 = vpop.f32.mrf.mxu0
      %v2000 = vadd.f32 %v442, %v1999
      %v2001 = vpop.f32.mrf.mxu0
      %v2002 = vadd.f32 %v442, %v2001
      %2003 = vmatmul.bf16.gmra.mxu0 %v1410
      %v2004 = vpop.f32.mrf.mxu0
      %v2005 = vadd.f32 %v442, %v2004
      %v2006 = vpop.f32.mrf.mxu0
      %v2007 = vadd.f32 %v442, %v2006
      %2008 = vmatmul.bf16.gmra.mxu0 %v1413
      %v2009 = vpop.f32.mrf.mxu0
      %v2010 = vadd.f32 %v442, %v2009
      %v2011 = vpop.f32.mrf.mxu0
      %v2012 = vadd.f32 %v442, %v2011
      %2013 = vmatmul.bf16.gmra.mxu0 %v1416
      %v2014 = vpop.f32.mrf.mxu0
      %v2015 = vadd.f32 %v442, %v2014
      %v2016 = vpop.f32.mrf.mxu0
      %v2017 = vadd.f32 %v442, %v2016
      %2018 = vmatmul.bf16.gmra.mxu0 %v1419
      %v2019 = vpop.f32.mrf.mxu0
      %v2020 = vadd.f32 %v442, %v2019
      %v2021 = vpop.f32.mrf.mxu0
      %v2022 = vadd.f32 %v442, %v2021
      %2023 = vmatmul.bf16.gmra.mxu0 %v1422
      %v2024 = vpop.f32.mrf.mxu0
      %v2025 = vadd.f32 %v442, %v2024
      %v2026 = vpop.f32.mrf.mxu0
      %v2027 = vadd.f32 %v442, %v2026
      %2028 = vmatmul.bf16.gmra.mxu0 %v1425
      %v2029 = vpop.f32.mrf.mxu0
      %v2030 = vadd.f32 %v442, %v2029
      %v2031 = vpop.f32.mrf.mxu0
      %v2032 = vadd.f32 %v442, %v2031
      %2033 = vmatmul.bf16.gmra.mxu0 %v1428
      %v2034 = vpop.f32.mrf.mxu0
      %v2035 = vadd.f32 %v442, %v2034
      %v2036 = vpop.f32.mrf.mxu0
      %v2037 = vadd.f32 %v442, %v2036
      %2038 = vmatmul.bf16.gmra.mxu0 %v1431
      %v2039 = vpop.f32.mrf.mxu0
      %v2040 = vadd.f32 %v442, %v2039
      %v2041 = vpop.f32.mrf.mxu0
      %v2042 = vadd.f32 %v442, %v2041
      %2043 = vmatmul.bf16.gmra.mxu0 %v1434
      %v2044 = vpop.f32.mrf.mxu0
      %v2045 = vadd.f32 %v442, %v2044
      %v2046 = vpop.f32.mrf.mxu0
      %v2047 = vadd.f32 %v442, %v2046
      %2048 = vmatmul.bf16.gmra.mxu0 %v1437
      %v2049 = vpop.f32.mrf.mxu0
      %v2050 = vadd.f32 %v442, %v2049
      %v2051 = vpop.f32.mrf.mxu0
      %v2052 = vadd.f32 %v442, %v2051
      %2053 = vmatmul.bf16.gmra.mxu0 %v1440
      %v2054 = vpop.f32.mrf.mxu0
      %v2055 = vadd.f32 %v442, %v2054
      %v2056 = vpop.f32.mrf.mxu0
      %v2057 = vadd.f32 %v442, %v2056
      %2058 = vmatmul.bf16.gmra.mxu0 %v1443
      %v2059 = vpop.f32.mrf.mxu0
      %v2060 = vadd.f32 %v442, %v2059
      %v2061 = vpop.f32.mrf.mxu0
      %v2062 = vadd.f32 %v442, %v2061
      %2063 = vmatmul.bf16.gmra.mxu0 %v1446
      %v2064 = vpop.f32.mrf.mxu0
      %v2065 = vadd.f32 %v442, %v2064
      %v2066 = vpop.f32.mrf.mxu0
      %v2067 = vadd.f32 %v442, %v2066
      %2068 = vmatmul.bf16.gmra.mxu0 %v1449
      %v2069 = vpop.f32.mrf.mxu0
      %v2070 = vadd.f32 %v442, %v2069
      %v2071 = vpop.f32.mrf.mxu0
      %v2072 = vadd.f32 %v442, %v2071
      %2073 = vmatmul.bf16.gmra.mxu0 %v1452
      %v2074 = vpop.f32.mrf.mxu0
      %v2075 = vadd.f32 %v442, %v2074
      %v2076 = vpop.f32.mrf.mxu0
      %v2077 = vadd.f32 %v442, %v2076
      %2078 = vmatmul.bf16.gmra.mxu0 %v1455
      %v2079 = vpop.f32.mrf.mxu0
      %v2080 = vadd.f32 %v442, %v2079
      %v2081 = vpop.f32.mrf.mxu0
      %v2082 = vadd.f32 %v442, %v2081
      %2083 = vmatmul.bf16.gmra.mxu0 %v1458
      %v2084 = vpop.f32.mrf.mxu0
      %v2085 = vadd.f32 %v442, %v2084
      %v2086 = vpop.f32.mrf.mxu0
      %v2087 = vadd.f32 %v442, %v2086
      %2088 = vmatmul.bf16.gmra.mxu0 %v1461
      %v2089 = vpop.f32.mrf.mxu0
      %v2090 = vadd.f32 %v442, %v2089
      %v2091 = vpop.f32.mrf.mxu0
      %v2092 = vadd.f32 %v442, %v2091
      %2093 = vmatmul.bf16.gmra.mxu0 %v1464
      %v2094 = vpop.f32.mrf.mxu0
      %v2095 = vadd.f32 %v442, %v2094
      %v2096 = vpop.f32.mrf.mxu0
      %v2097 = vadd.f32 %v442, %v2096
      %2098 = vmatmul.bf16.gmra.mxu0 %v1467
      %v2099 = vpop.f32.mrf.mxu0
      %v2100 = vadd.f32 %v442, %v2099
      %v2101 = vpop.f32.mrf.mxu0
      %v2102 = vadd.f32 %v442, %v2101
      %2103 = vmatmul.bf16.gmra.mxu0 %v1470
      %v2104 = vpop.f32.mrf.mxu0
      %v2105 = vadd.f32 %v442, %v2104
      %v2106 = vpop.f32.mrf.mxu0
      %v2107 = vadd.f32 %v442, %v2106
      %2108 = vmatmul.bf16.gmra.mxu0 %v1473
      %v2109 = vpop.f32.mrf.mxu0
      %v2110 = vadd.f32 %v442, %v2109
      %v2111 = vpop.f32.mrf.mxu0
      %v2112 = vadd.f32 %v442, %v2111
      %2113 = vmatmul.bf16.gmra.mxu0 %v1476
      %v2114 = vpop.f32.mrf.mxu0
      %v2115 = vadd.f32 %v442, %v2114
      %v2116 = vpop.f32.mrf.mxu0
      %v2117 = vadd.f32 %v442, %v2116
      %2118 = vmatmul.bf16.gmra.mxu0 %v1479
      %v2119 = vpop.f32.mrf.mxu0
      %v2120 = vadd.f32 %v442, %v2119
      %v2121 = vpop.f32.mrf.mxu0
      %v2122 = vadd.f32 %v442, %v2121
      %2123 = vmatmul.bf16.gmra.mxu0 %v1482
      %v2124 = vpop.f32.mrf.mxu0
      %v2125 = vadd.f32 %v442, %v2124
      %v2126 = vpop.f32.mrf.mxu0
      %v2127 = vadd.f32 %v442, %v2126
      %2128 = vmatmul.bf16.gmra.mxu0 %v1485
      %v2129 = vpop.f32.mrf.mxu0
      %v2130 = vadd.f32 %v442, %v2129
      %v2131 = vpop.f32.mrf.mxu0
      %v2132 = vadd.f32 %v442, %v2131
      %2133 = vmatmul.bf16.gmra.mxu0 %v1488
      %v2134 = vpop.f32.mrf.mxu0
      %v2135 = vadd.f32 %v442, %v2134
      %v2136 = vpop.f32.mrf.mxu0
      %v2137 = vadd.f32 %v442, %v2136
      %2138 = vmatmul.bf16.gmra.mxu0 %v1491
      %v2139 = vpop.f32.mrf.mxu0
      %v2140 = vadd.f32 %v442, %v2139
      %v2141 = vpop.f32.mrf.mxu0
      %v2142 = vadd.f32 %v442, %v2141
      %2143 = vmatmul.bf16.gmra.mxu0 %v1494
      %v2144 = vpop.f32.mrf.mxu0
      %v2145 = vadd.f32 %v442, %v2144
      %v2146 = vpop.f32.mrf.mxu0
      %v2147 = vadd.f32 %v442, %v2146
      %2148 = vdwg.mxu0
      %vm2149 = vcmask 130048
      %2150 = vst.msk [vmem:[%s172] sm:$0xff] %vm2149, %v1510
      %2151 = vst.msk [vmem:[%s172 + $0x8] sm:$0xff] %vm2149, %v1512
      %2152 = vst.msk [vmem:[%s172 + $0x10] sm:$0xff] %vm2149, %v1515
      %2153 = vst.msk [vmem:[%s172 + $0x18] sm:$0xff] %vm2149, %v1517
      %2154 = vst.msk [vmem:[%s172 + $0x20] sm:$0xff] %vm2149, %v1520
      %2155 = vst.msk [vmem:[%s172 + $0x28] sm:$0xff] %vm2149, %v1522
      %2156 = vst.msk [vmem:[%s172 + $0x30] sm:$0xff] %vm2149, %v1525
      %2157 = vst.msk [vmem:[%s172 + $0x38] sm:$0xff] %vm2149, %v1527
      %2158 = vst.msk [vmem:[%s172 + $0x40] sm:$0xff] %vm2149, %v1530
      %2159 = vst.msk [vmem:[%s172 + $0x48] sm:$0xff] %vm2149, %v1532
      %2160 = vst.msk [vmem:[%s172 + $0x50] sm:$0xff] %vm2149, %v1535
      %2161 = vst.msk [vmem:[%s172 + $0x58] sm:$0xff] %vm2149, %v1537
      %2162 = vst.msk [vmem:[%s172 + $0x60] sm:$0xff] %vm2149, %v1540
      %2163 = vst.msk [vmem:[%s172 + $0x68] sm:$0xff] %vm2149, %v1542
      %2164 = vst.msk [vmem:[%s172 + $0x70] sm:$0xff] %vm2149, %v1545
      %2165 = vst.msk [vmem:[%s172 + $0x78] sm:$0xff] %vm2149, %v1547
      %2166 = vst.msk [vmem:[%s172 + $0x80] sm:$0xff] %vm2149, %v1550
      %2167 = vst.msk [vmem:[%s172 + $0x88] sm:$0xff] %vm2149, %v1552
      %2168 = vst.msk [vmem:[%s172 + $0x90] sm:$0xff] %vm2149, %v1555
      %2169 = vst.msk [vmem:[%s172 + $0x98] sm:$0xff] %vm2149, %v1557
      %2170 = vst.msk [vmem:[%s172 + $0xa0] sm:$0xff] %vm2149, %v1560
      %2171 = vst.msk [vmem:[%s172 + $0xa8] sm:$0xff] %vm2149, %v1562
      %2172 = vst.msk [vmem:[%s172 + $0xb0] sm:$0xff] %vm2149, %v1565
      %2173 = vst.msk [vmem:[%s172 + $0xb8] sm:$0xff] %vm2149, %v1567
      %2174 = vst.msk [vmem:[%s172 + $0xc0] sm:$0xff] %vm2149, %v1570
      %2175 = vst.msk [vmem:[%s172 + $0xc8] sm:$0xff] %vm2149, %v1572
      %2176 = vst.msk [vmem:[%s172 + $0xd0] sm:$0xff] %vm2149, %v1575
      %2177 = vst.msk [vmem:[%s172 + $0xd8] sm:$0xff] %vm2149, %v1577
      %2178 = vst.msk [vmem:[%s172 + $0xe0] sm:$0xff] %vm2149, %v1580
      %2179 = vst.msk [vmem:[%s172 + $0xe8] sm:$0xff] %vm2149, %v1582
      %2180 = vst.msk [vmem:[%s172 + $0xf0] sm:$0xff] %vm2149, %v1585
      %2181 = vst.msk [vmem:[%s172 + $0xf8] sm:$0xff] %vm2149, %v1587
      %2182 = vst.msk [vmem:[%s172 + $0x100] sm:$0xff] %vm2149, %v1590
      %2183 = vst.msk [vmem:[%s172 + $0x108] sm:$0xff] %vm2149, %v1592
      %2184 = vst.msk [vmem:[%s172 + $0x110] sm:$0xff] %vm2149, %v1595
      %2185 = vst.msk [vmem:[%s172 + $0x118] sm:$0xff] %vm2149, %v1597
      %2186 = vst.msk [vmem:[%s172 + $0x120] sm:$0xff] %vm2149, %v1600
      %2187 = vst.msk [vmem:[%s172 + $0x128] sm:$0xff] %vm2149, %v1602
      %2188 = vst.msk [vmem:[%s172 + $0x130] sm:$0xff] %vm2149, %v1605
      %2189 = vst.msk [vmem:[%s172 + $0x138] sm:$0xff] %vm2149, %v1607
      %2190 = vst.msk [vmem:[%s172 + $0x140] sm:$0xff] %vm2149, %v1610
      %2191 = vst.msk [vmem:[%s172 + $0x148] sm:$0xff] %vm2149, %v1612
      %2192 = vst.msk [vmem:[%s172 + $0x150] sm:$0xff] %vm2149, %v1615
      %2193 = vst.msk [vmem:[%s172 + $0x158] sm:$0xff] %vm2149, %v1617
      %2194 = vst.msk [vmem:[%s172 + $0x160] sm:$0xff] %vm2149, %v1620
      %2195 = vst.msk [vmem:[%s172 + $0x168] sm:$0xff] %vm2149, %v1622
      %2196 = vst.msk [vmem:[%s172 + $0x170] sm:$0xff] %vm2149, %v1625
      %2197 = vst.msk [vmem:[%s172 + $0x178] sm:$0xff] %vm2149, %v1627
      %2198 = vst.msk [vmem:[%s172 + $0x180] sm:$0xff] %vm2149, %v1630
      %2199 = vst.msk [vmem:[%s172 + $0x188] sm:$0xff] %vm2149, %v1632
      %2200 = vst.msk [vmem:[%s172 + $0x190] sm:$0xff] %vm2149, %v1635
      %2201 = vst.msk [vmem:[%s172 + $0x198] sm:$0xff] %vm2149, %v1637
      %2202 = vst.msk [vmem:[%s172 + $0x1a0] sm:$0xff] %vm2149, %v1640
      %2203 = vst.msk [vmem:[%s172 + $0x1a8] sm:$0xff] %vm2149, %v1642
      %2204 = vst.msk [vmem:[%s172 + $0x1b0] sm:$0xff] %vm2149, %v1645
      %2205 = vst.msk [vmem:[%s172 + $0x1b8] sm:$0xff] %vm2149, %v1647
      %2206 = vst.msk [vmem:[%s172 + $0x1c0] sm:$0xff] %vm2149, %v1650
      %2207 = vst.msk [vmem:[%s172 + $0x1c8] sm:$0xff] %vm2149, %v1652
      %2208 = vst.msk [vmem:[%s172 + $0x1d0] sm:$0xff] %vm2149, %v1655
      %2209 = vst.msk [vmem:[%s172 + $0x1d8] sm:$0xff] %vm2149, %v1657
      %2210 = vst.msk [vmem:[%s172 + $0x1e0] sm:$0xff] %vm2149, %v1660
      %2211 = vst.msk [vmem:[%s172 + $0x1e8] sm:$0xff] %vm2149, %v1662
      %2212 = vst.msk [vmem:[%s172 + $0x1f0] sm:$0xff] %vm2149, %v1665
      %2213 = vst.msk [vmem:[%s172 + $0x1f8] sm:$0xff] %vm2149, %v1667
      %2214 = vst.msk [vmem:[%s172 + $0x200] sm:$0xff] %vm2149, %v1670
      %2215 = vst.msk [vmem:[%s172 + $0x208] sm:$0xff] %vm2149, %v1672
      %2216 = vst.msk [vmem:[%s172 + $0x210] sm:$0xff] %vm2149, %v1675
      %2217 = vst.msk [vmem:[%s172 + $0x218] sm:$0xff] %vm2149, %v1677
      %2218 = vst.msk [vmem:[%s172 + $0x220] sm:$0xff] %vm2149, %v1680
      %2219 = vst.msk [vmem:[%s172 + $0x228] sm:$0xff] %vm2149, %v1682
      %2220 = vst.msk [vmem:[%s172 + $0x230] sm:$0xff] %vm2149, %v1685
      %2221 = vst.msk [vmem:[%s172 + $0x238] sm:$0xff] %vm2149, %v1687
      %2222 = vst.msk [vmem:[%s172 + $0x240] sm:$0xff] %vm2149, %v1690
      %2223 = vst.msk [vmem:[%s172 + $0x248] sm:$0xff] %vm2149, %v1692
      %2224 = vst.msk [vmem:[%s172 + $0x250] sm:$0xff] %vm2149, %v1695
      %2225 = vst.msk [vmem:[%s172 + $0x258] sm:$0xff] %vm2149, %v1697
      %2226 = vst.msk [vmem:[%s172 + $0x260] sm:$0xff] %vm2149, %v1700
      %2227 = vst.msk [vmem:[%s172 + $0x268] sm:$0xff] %vm2149, %v1702
      %2228 = vst.msk [vmem:[%s172 + $0x270] sm:$0xff] %vm2149, %v1705
      %2229 = vst.msk [vmem:[%s172 + $0x278] sm:$0xff] %vm2149, %v1707
      %2230 = vst.msk [vmem:[%s172 + $0x280] sm:$0xff] %vm2149, %v1710
      %2231 = vst.msk [vmem:[%s172 + $0x288] sm:$0xff] %vm2149, %v1712
      %2232 = vst.msk [vmem:[%s172 + $0x290] sm:$0xff] %vm2149, %v1715
      %2233 = vst.msk [vmem:[%s172 + $0x298] sm:$0xff] %vm2149, %v1717
      %2234 = vst.msk [vmem:[%s172 + $0x2a0] sm:$0xff] %vm2149, %v1720
      %2235 = vst.msk [vmem:[%s172 + $0x2a8] sm:$0xff] %vm2149, %v1722
      %2236 = vst.msk [vmem:[%s172 + $0x2b0] sm:$0xff] %vm2149, %v1725
      %2237 = vst.msk [vmem:[%s172 + $0x2b8] sm:$0xff] %vm2149, %v1727
      %2238 = vst.msk [vmem:[%s172 + $0x2c0] sm:$0xff] %vm2149, %v1730
      %2239 = vst.msk [vmem:[%s172 + $0x2c8] sm:$0xff] %vm2149, %v1732
      %2240 = vst.msk [vmem:[%s172 + $0x2d0] sm:$0xff] %vm2149, %v1735
      %2241 = vst.msk [vmem:[%s172 + $0x2d8] sm:$0xff] %vm2149, %v1737
      %2242 = vst.msk [vmem:[%s172 + $0x2e0] sm:$0xff] %vm2149, %v1740
      %2243 = vst.msk [vmem:[%s172 + $0x2e8] sm:$0xff] %vm2149, %v1742
      %2244 = vst.msk [vmem:[%s172 + $0x2f0] sm:$0xff] %vm2149, %v1745
      %2245 = vst.msk [vmem:[%s172 + $0x2f8] sm:$0xff] %vm2149, %v1747
      %2246 = vst.msk [vmem:[%s172 + $0x300] sm:$0xff] %vm2149, %v1750
      %2247 = vst.msk [vmem:[%s172 + $0x308] sm:$0xff] %vm2149, %v1752
      %2248 = vst.msk [vmem:[%s172 + $0x310] sm:$0xff] %vm2149, %v1755
      %2249 = vst.msk [vmem:[%s172 + $0x318] sm:$0xff] %vm2149, %v1757
      %2250 = vst.msk [vmem:[%s172 + $0x320] sm:$0xff] %vm2149, %v1760
      %2251 = vst.msk [vmem:[%s172 + $0x328] sm:$0xff] %vm2149, %v1762
      %2252 = vst.msk [vmem:[%s172 + $0x330] sm:$0xff] %vm2149, %v1765
      %2253 = vst.msk [vmem:[%s172 + $0x338] sm:$0xff] %vm2149, %v1767
      %2254 = vst.msk [vmem:[%s172 + $0x340] sm:$0xff] %vm2149, %v1770
      %2255 = vst.msk [vmem:[%s172 + $0x348] sm:$0xff] %vm2149, %v1772
      %2256 = vst.msk [vmem:[%s172 + $0x350] sm:$0xff] %vm2149, %v1775
      %2257 = vst.msk [vmem:[%s172 + $0x358] sm:$0xff] %vm2149, %v1777
      %2258 = vst.msk [vmem:[%s172 + $0x360] sm:$0xff] %vm2149, %v1780
      %2259 = vst.msk [vmem:[%s172 + $0x368] sm:$0xff] %vm2149, %v1782
      %2260 = vst.msk [vmem:[%s172 + $0x370] sm:$0xff] %vm2149, %v1785
      %2261 = vst.msk [vmem:[%s172 + $0x378] sm:$0xff] %vm2149, %v1787
      %2262 = vst.msk [vmem:[%s172 + $0x380] sm:$0xff] %vm2149, %v1790
      %2263 = vst.msk [vmem:[%s172 + $0x388] sm:$0xff] %vm2149, %v1792
      %2264 = vst.msk [vmem:[%s172 + $0x390] sm:$0xff] %vm2149, %v1795
      %2265 = vst.msk [vmem:[%s172 + $0x398] sm:$0xff] %vm2149, %v1797
      %2266 = vst.msk [vmem:[%s172 + $0x3a0] sm:$0xff] %vm2149, %v1800
      %2267 = vst.msk [vmem:[%s172 + $0x3a8] sm:$0xff] %vm2149, %v1802
      %2268 = vst.msk [vmem:[%s172 + $0x3b0] sm:$0xff] %vm2149, %v1805
      %2269 = vst.msk [vmem:[%s172 + $0x3b8] sm:$0xff] %vm2149, %v1807
      %2270 = vst.msk [vmem:[%s172 + $0x3c0] sm:$0xff] %vm2149, %v1810
      %2271 = vst.msk [vmem:[%s172 + $0x3c8] sm:$0xff] %vm2149, %v1812
      %2272 = vst.msk [vmem:[%s172 + $0x3d0] sm:$0xff] %vm2149, %v1815
      %2273 = vst.msk [vmem:[%s172 + $0x3d8] sm:$0xff] %vm2149, %v1817
      %2274 = vst.msk [vmem:[%s172 + $0x3e0] sm:$0xff] %vm2149, %v1820
      %2275 = vst.msk [vmem:[%s172 + $0x3e8] sm:$0xff] %vm2149, %v1822
      %2276 = vst.msk [vmem:[%s172 + $0x3f0] sm:$0xff] %vm2149, %v1825
      %2277 = vst.msk [vmem:[%s172 + $0x3f8] sm:$0xff] %vm2149, %v1827
      %2278 = vst.msk [vmem:[%s172 + $0x400] sm:$0xff] %vm2149, %v1830
      %2279 = vst.msk [vmem:[%s172 + $0x408] sm:$0xff] %vm2149, %v1832
      %2280 = vst.msk [vmem:[%s172 + $0x410] sm:$0xff] %vm2149, %v1835
      %2281 = vst.msk [vmem:[%s172 + $0x418] sm:$0xff] %vm2149, %v1837
      %2282 = vst.msk [vmem:[%s172 + $0x420] sm:$0xff] %vm2149, %v1840
      %2283 = vst.msk [vmem:[%s172 + $0x428] sm:$0xff] %vm2149, %v1842
      %2284 = vst.msk [vmem:[%s172 + $0x430] sm:$0xff] %vm2149, %v1845
      %2285 = vst.msk [vmem:[%s172 + $0x438] sm:$0xff] %vm2149, %v1847
      %2286 = vst.msk [vmem:[%s172 + $0x440] sm:$0xff] %vm2149, %v1850
      %2287 = vst.msk [vmem:[%s172 + $0x448] sm:$0xff] %vm2149, %v1852
      %2288 = vst.msk [vmem:[%s172 + $0x450] sm:$0xff] %vm2149, %v1855
      %2289 = vst.msk [vmem:[%s172 + $0x458] sm:$0xff] %vm2149, %v1857
      %2290 = vst.msk [vmem:[%s172 + $0x460] sm:$0xff] %vm2149, %v1860
      %2291 = vst.msk [vmem:[%s172 + $0x468] sm:$0xff] %vm2149, %v1862
      %2292 = vst.msk [vmem:[%s172 + $0x470] sm:$0xff] %vm2149, %v1865
      %2293 = vst.msk [vmem:[%s172 + $0x478] sm:$0xff] %vm2149, %v1867
      %2294 = vst.msk [vmem:[%s172 + $0x480] sm:$0xff] %vm2149, %v1870
      %2295 = vst.msk [vmem:[%s172 + $0x488] sm:$0xff] %vm2149, %v1872
      %2296 = vst.msk [vmem:[%s172 + $0x490] sm:$0xff] %vm2149, %v1875
      %2297 = vst.msk [vmem:[%s172 + $0x498] sm:$0xff] %vm2149, %v1877
      %2298 = vst.msk [vmem:[%s172 + $0x4a0] sm:$0xff] %vm2149, %v1880
      %2299 = vst.msk [vmem:[%s172 + $0x4a8] sm:$0xff] %vm2149, %v1882
      %2300 = vst.msk [vmem:[%s172 + $0x4b0] sm:$0xff] %vm2149, %v1885
      %2301 = vst.msk [vmem:[%s172 + $0x4b8] sm:$0xff] %vm2149, %v1887
      %2302 = vst.msk [vmem:[%s172 + $0x4c0] sm:$0xff] %vm2149, %v1890
      %2303 = vst.msk [vmem:[%s172 + $0x4c8] sm:$0xff] %vm2149, %v1892
      %2304 = vst.msk [vmem:[%s172 + $0x4d0] sm:$0xff] %vm2149, %v1895
      %2305 = vst.msk [vmem:[%s172 + $0x4d8] sm:$0xff] %vm2149, %v1897
      %2306 = vst.msk [vmem:[%s172 + $0x4e0] sm:$0xff] %vm2149, %v1900
      %2307 = vst.msk [vmem:[%s172 + $0x4e8] sm:$0xff] %vm2149, %v1902
      %2308 = vst.msk [vmem:[%s172 + $0x4f0] sm:$0xff] %vm2149, %v1905
      %2309 = vst.msk [vmem:[%s172 + $0x4f8] sm:$0xff] %vm2149, %v1907
      %2310 = vst.msk [vmem:[%s172 + $0x500] sm:$0xff] %vm2149, %v1910
      %2311 = vst.msk [vmem:[%s172 + $0x508] sm:$0xff] %vm2149, %v1912
      %2312 = vst.msk [vmem:[%s172 + $0x510] sm:$0xff] %vm2149, %v1915
      %2313 = vst.msk [vmem:[%s172 + $0x518] sm:$0xff] %vm2149, %v1917
      %2314 = vst.msk [vmem:[%s172 + $0x520] sm:$0xff] %vm2149, %v1920
      %2315 = vst.msk [vmem:[%s172 + $0x528] sm:$0xff] %vm2149, %v1922
      %2316 = vst.msk [vmem:[%s172 + $0x530] sm:$0xff] %vm2149, %v1925
      %2317 = vst.msk [vmem:[%s172 + $0x538] sm:$0xff] %vm2149, %v1927
      %2318 = vst.msk [vmem:[%s172 + $0x540] sm:$0xff] %vm2149, %v1930
      %2319 = vst.msk [vmem:[%s172 + $0x548] sm:$0xff] %vm2149, %v1932
      %2320 = vst.msk [vmem:[%s172 + $0x550] sm:$0xff] %vm2149, %v1935
      %2321 = vst.msk [vmem:[%s172 + $0x558] sm:$0xff] %vm2149, %v1937
      %2322 = vst.msk [vmem:[%s172 + $0x560] sm:$0xff] %vm2149, %v1940
      %2323 = vst.msk [vmem:[%s172 + $0x568] sm:$0xff] %vm2149, %v1942
      %2324 = vst.msk [vmem:[%s172 + $0x570] sm:$0xff] %vm2149, %v1945
      %2325 = vst.msk [vmem:[%s172 + $0x578] sm:$0xff] %vm2149, %v1947
      %2326 = vst.msk [vmem:[%s172 + $0x580] sm:$0xff] %vm2149, %v1950
      %2327 = vst.msk [vmem:[%s172 + $0x588] sm:$0xff] %vm2149, %v1952
      %2328 = vst.msk [vmem:[%s172 + $0x590] sm:$0xff] %vm2149, %v1955
      %2329 = vst.msk [vmem:[%s172 + $0x598] sm:$0xff] %vm2149, %v1957
      %2330 = vst.msk [vmem:[%s172 + $0x5a0] sm:$0xff] %vm2149, %v1960
      %2331 = vst.msk [vmem:[%s172 + $0x5a8] sm:$0xff] %vm2149, %v1962
      %2332 = vst.msk [vmem:[%s172 + $0x5b0] sm:$0xff] %vm2149, %v1965
      %2333 = vst.msk [vmem:[%s172 + $0x5b8] sm:$0xff] %vm2149, %v1967
      %2334 = vst.msk [vmem:[%s172 + $0x5c0] sm:$0xff] %vm2149, %v1970
      %2335 = vst.msk [vmem:[%s172 + $0x5c8] sm:$0xff] %vm2149, %v1972
      %2336 = vst.msk [vmem:[%s172 + $0x5d0] sm:$0xff] %vm2149, %v1975
      %2337 = vst.msk [vmem:[%s172 + $0x5d8] sm:$0xff] %vm2149, %v1977
      %2338 = vst.msk [vmem:[%s172 + $0x5e0] sm:$0xff] %vm2149, %v1980
      %2339 = vst.msk [vmem:[%s172 + $0x5e8] sm:$0xff] %vm2149, %v1982
      %2340 = vst.msk [vmem:[%s172 + $0x5f0] sm:$0xff] %vm2149, %v1985
      %2341 = vst.msk [vmem:[%s172 + $0x5f8] sm:$0xff] %vm2149, %v1987
      %2342 = vst.msk [vmem:[%s172 + $0x600] sm:$0xff] %vm2149, %v1990
      %2343 = vst.msk [vmem:[%s172 + $0x608] sm:$0xff] %vm2149, %v1992
      %2344 = vst.msk [vmem:[%s172 + $0x610] sm:$0xff] %vm2149, %v1995
      %2345 = vst.msk [vmem:[%s172 + $0x618] sm:$0xff] %vm2149, %v1997
      %2346 = vst.msk [vmem:[%s172 + $0x620] sm:$0xff] %vm2149, %v2000
      %2347 = vst.msk [vmem:[%s172 + $0x628] sm:$0xff] %vm2149, %v2002
      %2348 = vst.msk [vmem:[%s172 + $0x630] sm:$0xff] %vm2149, %v2005
      %2349 = vst.msk [vmem:[%s172 + $0x638] sm:$0xff] %vm2149, %v2007
      %2350 = vst.msk [vmem:[%s172 + $0x640] sm:$0xff] %vm2149, %v2010
      %2351 = vst.msk [vmem:[%s172 + $0x648] sm:$0xff] %vm2149, %v2012
      %2352 = vst.msk [vmem:[%s172 + $0x650] sm:$0xff] %vm2149, %v2015
      %2353 = vst.msk [vmem:[%s172 + $0x658] sm:$0xff] %vm2149, %v2017
      %2354 = vst.msk [vmem:[%s172 + $0x660] sm:$0xff] %vm2149, %v2020
      %2355 = vst.msk [vmem:[%s172 + $0x668] sm:$0xff] %vm2149, %v2022
      %2356 = vst.msk [vmem:[%s172 + $0x670] sm:$0xff] %vm2149, %v2025
      %2357 = vst.msk [vmem:[%s172 + $0x678] sm:$0xff] %vm2149, %v2027
      %2358 = vst.msk [vmem:[%s172 + $0x680] sm:$0xff] %vm2149, %v2030
      %2359 = vst.msk [vmem:[%s172 + $0x688] sm:$0xff] %vm2149, %v2032
      %2360 = vst.msk [vmem:[%s172 + $0x690] sm:$0xff] %vm2149, %v2035
      %2361 = vst.msk [vmem:[%s172 + $0x698] sm:$0xff] %vm2149, %v2037
      %2362 = vst.msk [vmem:[%s172 + $0x6a0] sm:$0xff] %vm2149, %v2040
      %2363 = vst.msk [vmem:[%s172 + $0x6a8] sm:$0xff] %vm2149, %v2042
      %2364 = vst.msk [vmem:[%s172 + $0x6b0] sm:$0xff] %vm2149, %v2045
      %2365 = vst.msk [vmem:[%s172 + $0x6b8] sm:$0xff] %vm2149, %v2047
      %2366 = vst.msk [vmem:[%s172 + $0x6c0] sm:$0xff] %vm2149, %v2050
      %2367 = vst.msk [vmem:[%s172 + $0x6c8] sm:$0xff] %vm2149, %v2052
      %2368 = vst.msk [vmem:[%s172 + $0x6d0] sm:$0xff] %vm2149, %v2055
      %2369 = vst.msk [vmem:[%s172 + $0x6d8] sm:$0xff] %vm2149, %v2057
      %2370 = vst.msk [vmem:[%s172 + $0x6e0] sm:$0xff] %vm2149, %v2060
      %2371 = vst.msk [vmem:[%s172 + $0x6e8] sm:$0xff] %vm2149, %v2062
      %2372 = vst.msk [vmem:[%s172 + $0x6f0] sm:$0xff] %vm2149, %v2065
      %2373 = vst.msk [vmem:[%s172 + $0x6f8] sm:$0xff] %vm2149, %v2067
      %2374 = vst.msk [vmem:[%s172 + $0x700] sm:$0xff] %vm2149, %v2070
      %2375 = vst.msk [vmem:[%s172 + $0x708] sm:$0xff] %vm2149, %v2072
      %2376 = vst.msk [vmem:[%s172 + $0x710] sm:$0xff] %vm2149, %v2075
      %2377 = vst.msk [vmem:[%s172 + $0x718] sm:$0xff] %vm2149, %v2077
      %2378 = vst.msk [vmem:[%s172 + $0x720] sm:$0xff] %vm2149, %v2080
      %2379 = vst.msk [vmem:[%s172 + $0x728] sm:$0xff] %vm2149, %v2082
      %2380 = vst.msk [vmem:[%s172 + $0x730] sm:$0xff] %vm2149, %v2085
      %2381 = vst.msk [vmem:[%s172 + $0x738] sm:$0xff] %vm2149, %v2087
      %2382 = vst.msk [vmem:[%s172 + $0x740] sm:$0xff] %vm2149, %v2090
      %2383 = vst.msk [vmem:[%s172 + $0x748] sm:$0xff] %vm2149, %v2092
      %2384 = vst.msk [vmem:[%s172 + $0x750] sm:$0xff] %vm2149, %v2095
      %2385 = vst.msk [vmem:[%s172 + $0x758] sm:$0xff] %vm2149, %v2097
      %2386 = vst.msk [vmem:[%s172 + $0x760] sm:$0xff] %vm2149, %v2100
      %2387 = vst.msk [vmem:[%s172 + $0x768] sm:$0xff] %vm2149, %v2102
      %2388 = vst.msk [vmem:[%s172 + $0x770] sm:$0xff] %vm2149, %v2105
      %2389 = vst.msk [vmem:[%s172 + $0x778] sm:$0xff] %vm2149, %v2107
      %2390 = vst.msk [vmem:[%s172 + $0x780] sm:$0xff] %vm2149, %v2110
      %2391 = vst.msk [vmem:[%s172 + $0x788] sm:$0xff] %vm2149, %v2112
      %2392 = vst.msk [vmem:[%s172 + $0x790] sm:$0xff] %vm2149, %v2115
      %2393 = vst.msk [vmem:[%s172 + $0x798] sm:$0xff] %vm2149, %v2117
      %2394 = vst.msk [vmem:[%s172 + $0x7a0] sm:$0xff] %vm2149, %v2120
      %2395 = vst.msk [vmem:[%s172 + $0x7a8] sm:$0xff] %vm2149, %v2122
      %2396 = vst.msk [vmem:[%s172 + $0x7b0] sm:$0xff] %vm2149, %v2125
      %2397 = vst.msk [vmem:[%s172 + $0x7b8] sm:$0xff] %vm2149, %v2127
      %2398 = vst.msk [vmem:[%s172 + $0x7c0] sm:$0xff] %vm2149, %v2130
      %2399 = vst.msk [vmem:[%s172 + $0x7c8] sm:$0xff] %vm2149, %v2132
      %2400 = vst.msk [vmem:[%s172 + $0x7d0] sm:$0xff] %vm2149, %v2135
      %2401 = vst.msk [vmem:[%s172 + $0x7d8] sm:$0xff] %vm2149, %v2137
      %2402 = vst.msk [vmem:[%s172 + $0x7e0] sm:$0xff] %vm2149, %v2140
      %2403 = vst.msk [vmem:[%s172 + $0x7e8] sm:$0xff] %vm2149, %v2142
      %2404 = vst.msk [vmem:[%s172 + $0x7f0] sm:$0xff] %vm2149, %v2145
      %2405 = vst.msk [vmem:[%s172 + $0x7f8] sm:$0xff] %vm2149, %v2147
      %s2406 = smul.u32 256, %s14
      %p2407 = scmp.lt.s32.totalorder %s2406, 767
      %s2408 = scalar_select %p2407, %s2406, 767
      %s2409 = smul.addr %s2408, 8
      %s2410 = scalar_lea.vmem %s3, %s2409
      // Predicated region
      $region33: #{assault_value_forward.7} parent=31 // pred_check
        %p2411 = pneg %p100
      $region34: #{assault_value_forward.7} parent=31 // pred_check_branch
        %2413 = sbr.rel (%p2411) target = $region36
      $region35: #{assault_value_forward.7} parent=31 // pred_region
        %s2414 = smul.u32 256, %s14
      $region36: #{assault_value_forward.7} parent=31 // pred_fallthru
        _
    $region32: #{assault_value_forward.7} parent=5 // pred_fallthru
      _
    %p2415 = scmp.le.s32.totalorder 2, %s9
    // Predicated region
    $region37: #{assault_value_forward.7} parent=5 // pred_check
      %p2416 = pneg %p2415
    $region38: #{assault_value_forward.7} parent=5 // pred_check_branch
      %2418 = sbr.rel (%p2416) target = $region40
    $region39: #{assault_value_forward.7} parent=5 // pred_region
      %s2419 = ssub.s32 %s9, 2
      // Predicated region
      $region41: #{assault_value_forward.7} parent=39 // pred_check
        %p2420 = pneg %p106
      $region42: #{assault_value_forward.7} parent=39 // pred_check_branch
        %2422 = sbr.rel (%p2420) target = $region44
      $region43: #{assault_value_forward.7} parent=39 // pred_region
        %s2423 = smul.u32 256, %s15
        %p2424 = scmp.lt.s32.totalorder %s2423, 767
        %s2425 = scalar_select %p2424, %s2423, 767
        %s2426 = smul.addr %s2425, 8
        %s2427 = scalar_lea.vmem %s3, %s2426
      $region44: #{assault_value_forward.7} parent=39 // pred_fallthru
        _
    $region40: #{assault_value_forward.7} parent=5 // pred_fallthru
      _
  $region6: #{assault_value_forward.7} parent=0 // loop_footer
    %s13 = sadd.s32 1, %s9
  $region7: #{assault_value_forward.7} parent=0 // loop_footer_branch
    %8 = sbr.rel target = $region3
  $region8: #{assault_value_forward.7} parent=0 // loop_exit
    _

// kernel: tile.23
$region0: #{tile.23}
  #allocation0 [shape = 's32[1]{0}', space=sflag, size = 0x4, scoped, tag = 'scoped memory for tile.23']
  %s0 = inlined_call_operand.vmem [shape: f32[16], index: 0, kind: input, shape index: {}]
  %s1 = inlined_call_operand.vmem [shape: f32[9,16], index: 1, kind: output, shape index: {}]
  // Predicated region
  $region2: #{tile.23} parent=0 // pred_check
    _
  $region3: #{tile.23} parent=0 // pred_check_branch
    %3 = sbr.rel (0) target = $region5
  $region4: #{tile.23} parent=0 // pred_region
    _
  $region5: #{tile.23} parent=0 // pred_fallthru
    _
  %v4 = vld [vmem:[%s0] ss:$0 sm:$0xff]
  %5 = vst [vmem:[%s1] sm:$0xff] %v4
  %s6 = scalar_lea.vmem %s1, 8
  %7 = vst [vmem:[%s6] sm:$0xff] %v4

// kernel: assault_value_forward.8
$region0: #{assault_value_forward.8}
  #allocation0 [shape = 'u32[]', space=smem, size = 0x4, offset = 0x4, fixed_abs, tag = 'smem constant byte address 0x4 - core index']
  #allocation1 [shape = 'u32[72,128]{1,0:T(1,128)}', space=vmem, size = 0x9000, scoped, tag = 'internal scratch']
  %s0 = inlined_call_operand.vmem [shape: bf16[1144,144], index: 0, kind: input, shape index: {}]
  %s1 = inlined_call_operand.vmem [shape: f32[1,144], index: 1, kind: input, shape index: {}]
  %s2 = inlined_call_operand.vmem [shape: f32[1,144], index: 2, kind: input, shape index: {}]
  %s3 = inlined_call_operand.vmem [shape: bf16[144,32], index: 3, kind: input, shape index: {}]
  %s4 = inlined_call_operand.vmem [shape: f32[1,32], index: 4, kind: input, shape index: {}]
  %s5 = inlined_call_operand.vmem [shape: f32[1144,32], index: 5, kind: output, shape index: {}]
  %s6 = sld [smem:[#allocation0]]
  $region30: #{assault_value_forward.8} parent=0
    _
  %s8 = ssub.s32 1, %s6
  %s9 = scalar_select 0, %s8, %s6
  // Predicated region
  $region2: #{assault_value_forward.8} parent=0 // pred_check
    _
  $region3: #{assault_value_forward.8} parent=0 // pred_check_branch
    %11 = sbr.rel (0) target = $region5
  $region4: #{assault_value_forward.8} parent=0 // pred_region
    _
  $region5: #{assault_value_forward.8} parent=0 // pred_fallthru
    _
  // Predicated region
  $region6: #{assault_value_forward.8} parent=0 // pred_check
    _
  $region7: #{assault_value_forward.8} parent=0 // pred_check_branch
    %13 = sbr.rel (0) target = $region9
  $region8: #{assault_value_forward.8} parent=0 // pred_region
    _
  $region9: #{assault_value_forward.8} parent=0 // pred_fallthru
    _
  // Predicated region
  $region10: #{assault_value_forward.8} parent=0 // pred_check
    _
  $region11: #{assault_value_forward.8} parent=0 // pred_check_branch
    %15 = sbr.rel (0) target = $region13
  $region12: #{assault_value_forward.8} parent=0 // pred_region
    _
  $region13: #{assault_value_forward.8} parent=0 // pred_fallthru
    _
  // Predicated region
  $region14: #{assault_value_forward.8} parent=0 // pred_check
    _
  $region15: #{assault_value_forward.8} parent=0 // pred_check_branch
    %17 = sbr.rel (0) target = $region17
  $region16: #{assault_value_forward.8} parent=0 // pred_region
    _
  $region17: #{assault_value_forward.8} parent=0 // pred_fallthru
    _
  // Predicated region
  $region18: #{assault_value_forward.8} parent=0 // pred_check
    _
  $region19: #{assault_value_forward.8} parent=0 // pred_check_branch
    %19 = sbr.rel (0) target = $region21
  $region20: #{assault_value_forward.8} parent=0 // pred_region
    _
  $region21: #{assault_value_forward.8} parent=0 // pred_fallthru
    _
  %v21 = vld [vmem:[%s0] sm:$0xff]
  %v22 = vld [vmem:[%s0 + $0x8] sm:$0xff]
  %v23 = vld [vmem:[%s0 + $0x10] sm:$0xff]
  %v24 = vld [vmem:[%s0 + $0x18] sm:$0xff]
  %v25 = vld [vmem:[%s0 + $0x20] sm:$0xff]
  %v26 = vld [vmem:[%s0 + $0x28] sm:$0xff]
  %v27 = vld [vmem:[%s0 + $0x30] sm:$0xff]
  %v28 = vld [vmem:[%s0 + $0x38] sm:$0xff]
  %v29 = vld [vmem:[%s0 + $0x40] sm:$0xff]
  %v30 = vld [vmem:[%s0 + $0x48] sm:$0xff]
  %v31 = vld [vmem:[%s0 + $0x50] sm:$0xff]
  %v32 = vld [vmem:[%s0 + $0x58] sm:$0xff]
  %v33 = vld [vmem:[%s0 + $0x60] sm:$0xff]
  %v34 = vld [vmem:[%s0 + $0x68] sm:$0xff]
  %v35 = vld [vmem:[%s0 + $0x70] sm:$0xff]
  %v36 = vld [vmem:[%s0 + $0x78] sm:$0xff]
  %v37 = vld [vmem:[%s0 + $0x80] sm:$0xff]
  %v38 = vld [vmem:[%s0 + $0x88] sm:$0xff]
  %v39 = vld [vmem:[%s0 + $0x90] sm:$0xff]
  %v40 = vld [vmem:[%s0 + $0x98] sm:$0xff]
  %v41 = vld [vmem:[%s0 + $0xa0] sm:$0xff]
  %v42 = vld [vmem:[%s0 + $0xa8] sm:$0xff]
  %v43 = vld [vmem:[%s0 + $0xb0] sm:$0xff]
  %v44 = vld [vmem:[%s0 + $0xb8] sm:$0xff]
  %v45 = vld [vmem:[%s0 + $0xc0] sm:$0xff]
  %v46 = vld [vmem:[%s0 + $0xc8] sm:$0xff]
  %v47 = vld [vmem:[%s0 + $0xd0] sm:$0xff]
  %v48 = vld [vmem:[%s0 + $0xd8] sm:$0xff]
  %v49 = vld [vmem:[%s0 + $0xe0] sm:$0xff]
  %v50 = vld [vmem:[%s0 + $0xe8] sm:$0xff]
  %v51 = vld [vmem:[%s0 + $0xf0] sm:$0xff]
  %v52 = vld [vmem:[%s0 + $0xf8] sm:$0xff]
  %v53 = vld [vmem:[%s0 + $0x100] sm:$0xff]
  %v54 = vld [vmem:[%s0 + $0x108] sm:$0xff]
  %v55 = vld [vmem:[%s0 + $0x110] sm:$0xff]
  %v56 = vld [vmem:[%s0 + $0x118] sm:$0xff]
  %v57 = vld [vmem:[%s0 + $0x120] sm:$0xff]
  %v58 = vld [vmem:[%s0 + $0x128] sm:$0xff]
  %v59 = vld [vmem:[%s0 + $0x130] sm:$0xff]
  %v60 = vld [vmem:[%s0 + $0x138] sm:$0xff]
  %v61 = vld [vmem:[%s0 + $0x140] sm:$0xff]
  %v62 = vld [vmem:[%s0 + $0x148] sm:$0xff]
  %v63 = vld [vmem:[%s0 + $0x150] sm:$0xff]
  %v64 = vld [vmem:[%s0 + $0x158] sm:$0xff]
  %v65 = vld [vmem:[%s0 + $0x160] sm:$0xff]
  %v66 = vld [vmem:[%s0 + $0x168] sm:$0xff]
  %v67 = vld [vmem:[%s0 + $0x170] sm:$0xff]
  %v68 = vld [vmem:[%s0 + $0x178] sm:$0xff]
  %v69 = vld [vmem:[%s0 + $0x180] sm:$0xff]
  %v70 = vld [vmem:[%s0 + $0x188] sm:$0xff]
  %v71 = vld [vmem:[%s0 + $0x190] sm:$0xff]
  %v72 = vld [vmem:[%s0 + $0x198] sm:$0xff]
  %v73 = vld [vmem:[%s0 + $0x1a0] sm:$0xff]
  %v74 = vld [vmem:[%s0 + $0x1a8] sm:$0xff]
  %v75 = vld [vmem:[%s0 + $0x1b0] sm:$0xff]
  %v76 = vld [vmem:[%s0 + $0x1b8] sm:$0xff]
  %v77 = vld [vmem:[%s0 + $0x1c0] sm:$0xff]
  %v78 = vld [vmem:[%s0 + $0x1c8] sm:$0xff]
  %v79 = vld [vmem:[%s0 + $0x1d0] sm:$0xff]
  %v80 = vld [vmem:[%s0 + $0x1d8] sm:$0xff]
  %v81 = vld [vmem:[%s0 + $0x1e0] sm:$0xff]
  %v82 = vld [vmem:[%s0 + $0x1e8] sm:$0xff]
  %v83 = vld [vmem:[%s0 + $0x1f0] sm:$0xff]
  %v84 = vld [vmem:[%s0 + $0x1f8] sm:$0xff]
  %v85 = vld [vmem:[%s0 + $0x200] sm:$0xff]
  %v86 = vld [vmem:[%s0 + $0x208] sm:$0xff]
  %v87 = vld [vmem:[%s0 + $0x210] sm:$0xff]
  %v88 = vld [vmem:[%s0 + $0x218] sm:$0xff]
  %v89 = vld [vmem:[%s0 + $0x220] sm:$0xff]
  %v90 = vld [vmem:[%s0 + $0x228] sm:$0xff]
  %v91 = vld [vmem:[%s0 + $0x230] sm:$0xff]
  %v92 = vld [vmem:[%s0 + $0x238] sm:$0xff]
  %v93 = vld [vmem:[%s0 + $0x240] sm:$0xff]
  %v94 = vld [vmem:[%s0 + $0x248] sm:$0xff]
  %v95 = vld [vmem:[%s0 + $0x250] sm:$0xff]
  %v96 = vld [vmem:[%s0 + $0x258] sm:$0xff]
  %v97 = vld [vmem:[%s0 + $0x260] sm:$0xff]
  %v98 = vld [vmem:[%s0 + $0x268] sm:$0xff]
  %v99 = vld [vmem:[%s0 + $0x270] sm:$0xff]
  %v100 = vld [vmem:[%s0 + $0x278] sm:$0xff]
  %v101 = vld [vmem:[%s0 + $0x280] sm:$0xff]
  %v102 = vld [vmem:[%s0 + $0x288] sm:$0xff]
  %v103 = vld [vmem:[%s0 + $0x290] sm:$0xff]
  %v104 = vld [vmem:[%s0 + $0x298] sm:$0xff]
  %v105 = vld [vmem:[%s0 + $0x2a0] sm:$0xff]
  %v106 = vld [vmem:[%s0 + $0x2a8] sm:$0xff]
  %v107 = vld [vmem:[%s0 + $0x2b0] sm:$0xff]
  %v108 = vld [vmem:[%s0 + $0x2b8] sm:$0xff]
  %v109 = vld [vmem:[%s0 + $0x2c0] sm:$0xff]
  %v110 = vld [vmem:[%s0 + $0x2c8] sm:$0xff]
  %v111 = vld [vmem:[%s0 + $0x2d0] sm:$0xff]
  %v112 = vld [vmem:[%s0 + $0x2d8] sm:$0xff]
  %v113 = vld [vmem:[%s0 + $0x2e0] sm:$0xff]
  %v114 = vld [vmem:[%s0 + $0x2e8] sm:$0xff]
  %v115 = vld [vmem:[%s0 + $0x2f0] sm:$0xff]
  %v116 = vld [vmem:[%s0 + $0x2f8] sm:$0xff]
  %v117 = vld [vmem:[%s0 + $0x300] sm:$0xff]
  %v118 = vld [vmem:[%s0 + $0x308] sm:$0xff]
  %v119 = vld [vmem:[%s0 + $0x310] sm:$0xff]
  %v120 = vld [vmem:[%s0 + $0x318] sm:$0xff]
  %v121 = vld [vmem:[%s0 + $0x320] sm:$0xff]
  %v122 = vld [vmem:[%s0 + $0x328] sm:$0xff]
  %v123 = vld [vmem:[%s0 + $0x330] sm:$0xff]
  %v124 = vld [vmem:[%s0 + $0x338] sm:$0xff]
  %v125 = vld [vmem:[%s0 + $0x340] sm:$0xff]
  %v126 = vld [vmem:[%s0 + $0x348] sm:$0xff]
  %v127 = vld [vmem:[%s0 + $0x350] sm:$0xff]
  %v128 = vld [vmem:[%s0 + $0x358] sm:$0xff]
  %v129 = vld [vmem:[%s0 + $0x360] sm:$0xff]
  %v130 = vld [vmem:[%s0 + $0x368] sm:$0xff]
  %v131 = vld [vmem:[%s0 + $0x370] sm:$0xff]
  %v132 = vld [vmem:[%s0 + $0x378] sm:$0xff]
  %v133 = vld [vmem:[%s0 + $0x380] sm:$0xff]
  %v134 = vld [vmem:[%s0 + $0x388] sm:$0xff]
  %v135 = vld [vmem:[%s0 + $0x390] sm:$0xff]
  %v136 = vld [vmem:[%s0 + $0x398] sm:$0xff]
  %v137 = vld [vmem:[%s0 + $0x3a0] sm:$0xff]
  %v138 = vld [vmem:[%s0 + $0x3a8] sm:$0xff]
  %v139 = vld [vmem:[%s0 + $0x3b0] sm:$0xff]
  %v140 = vld [vmem:[%s0 + $0x3b8] sm:$0xff]
  %v141 = vld [vmem:[%s0 + $0x3c0] sm:$0xff]
  %v142 = vld [vmem:[%s0 + $0x3c8] sm:$0xff]
  %v143 = vld [vmem:[%s0 + $0x3d0] sm:$0xff]
  %v144 = vld [vmem:[%s0 + $0x3d8] sm:$0xff]
  %v145 = vld [vmem:[%s0 + $0x3e0] sm:$0xff]
  %v146 = vld [vmem:[%s0 + $0x3e8] sm:$0xff]
  %v147 = vld [vmem:[%s0 + $0x3f0] sm:$0xff]
  %v148 = vld [vmem:[%s0 + $0x3f8] sm:$0xff]
  %v149 = vld [vmem:[%s0 + $0x400] sm:$0xff]
  %v150 = vld [vmem:[%s0 + $0x408] sm:$0xff]
  %v151 = vld [vmem:[%s0 + $0x410] sm:$0xff]
  %v152 = vld [vmem:[%s0 + $0x418] sm:$0xff]
  %v153 = vld [vmem:[%s0 + $0x420] sm:$0xff]
  %v154 = vld [vmem:[%s0 + $0x428] sm:$0xff]
  %v155 = vld [vmem:[%s0 + $0x430] sm:$0xff]
  %v156 = vld [vmem:[%s0 + $0x438] sm:$0xff]
  %v157 = vld [vmem:[%s0 + $0x440] sm:$0xff]
  %v158 = vld [vmem:[%s0 + $0x448] sm:$0xff]
  %v159 = vld [vmem:[%s0 + $0x450] sm:$0xff]
  %v160 = vld [vmem:[%s0 + $0x458] sm:$0xff]
  %v161 = vld [vmem:[%s0 + $0x460] sm:$0xff]
  %v162 = vld [vmem:[%s0 + $0x468] sm:$0xff]
  %v163 = vld [vmem:[%s0 + $0x470] sm:$0xff]
  %v164 = vld [vmem:[%s1] sm:$0x3]
  %v165 = vunpack.c.l.bf16 %v21
  %v166 = vunpack.c.h.bf16 %v21
  %v167 = vunpack.c.l.bf16 %v22
  %v168 = vunpack.c.h.bf16 %v22
  %v169 = vunpack.c.l.bf16 %v23
  %v170 = vunpack.c.h.bf16 %v23
  %v171 = vunpack.c.l.bf16 %v24
  %v172 = vunpack.c.h.bf16 %v24
  %v173 = vunpack.c.l.bf16 %v25
  %v174 = vunpack.c.h.bf16 %v25
  %v175 = vunpack.c.l.bf16 %v26
  %v176 = vunpack.c.h.bf16 %v26
  %v177 = vunpack.c.l.bf16 %v27
  %v178 = vunpack.c.h.bf16 %v27
  %v179 = vunpack.c.l.bf16 %v28
  %v180 = vunpack.c.h.bf16 %v28
  %v181 = vunpack.c.l.bf16 %v29
  %v182 = vunpack.c.h.bf16 %v29
  %v183 = vunpack.c.l.bf16 %v30
  %v184 = vunpack.c.h.bf16 %v30
  %v185 = vunpack.c.l.bf16 %v31
  %v186 = vunpack.c.h.bf16 %v31
  %v187 = vunpack.c.l.bf16 %v32
  %v188 = vunpack.c.h.bf16 %v32
  %v189 = vunpack.c.l.bf16 %v33
  %v190 = vunpack.c.h.bf16 %v33
  %v191 = vunpack.c.l.bf16 %v34
  %v192 = vunpack.c.h.bf16 %v34
  %v193 = vunpack.c.l.bf16 %v35
  %v194 = vunpack.c.h.bf16 %v35
  %v195 = vunpack.c.l.bf16 %v36
  %v196 = vunpack.c.h.bf16 %v36
  %v197 = vunpack.c.l.bf16 %v37
  %v198 = vunpack.c.h.bf16 %v37
  %v199 = vunpack.c.l.bf16 %v38
  %v200 = vunpack.c.h.bf16 %v38
  %v201 = vunpack.c.l.bf16 %v39
  %v202 = vunpack.c.h.bf16 %v39
  %v203 = vunpack.c.l.bf16 %v40
  %v204 = vunpack.c.h.bf16 %v40
  %v205 = vunpack.c.l.bf16 %v41
  %v206 = vunpack.c.h.bf16 %v41
  %v207 = vunpack.c.l.bf16 %v42
  %v208 = vunpack.c.h.bf16 %v42
  %v209 = vunpack.c.l.bf16 %v43
  %v210 = vunpack.c.h.bf16 %v43
  %v211 = vunpack.c.l.bf16 %v44
  %v212 = vunpack.c.h.bf16 %v44
  %v213 = vunpack.c.l.bf16 %v45
  %v214 = vunpack.c.h.bf16 %v45
  %v215 = vunpack.c.l.bf16 %v46
  %v216 = vunpack.c.h.bf16 %v46
  %v217 = vunpack.c.l.bf16 %v47
  %v218 = vunpack.c.h.bf16 %v47
  %v219 = vunpack.c.l.bf16 %v48
  %v220 = vunpack.c.h.bf16 %v48
  %v221 = vunpack.c.l.bf16 %v49
  %v222 = vunpack.c.h.bf16 %v49
  %v223 = vunpack.c.l.bf16 %v50
  %v224 = vunpack.c.h.bf16 %v50
  %v225 = vunpack.c.l.bf16 %v51
  %v226 = vunpack.c.h.bf16 %v51
  %v227 = vunpack.c.l.bf16 %v52
  %v228 = vunpack.c.h.bf16 %v52
  %v229 = vunpack.c.l.bf16 %v53
  %v230 = vunpack.c.h.bf16 %v53
  %v231 = vunpack.c.l.bf16 %v54
  %v232 = vunpack.c.h.bf16 %v54
  %v233 = vunpack.c.l.bf16 %v55
  %v234 = vunpack.c.h.bf16 %v55
  %v235 = vunpack.c.l.bf16 %v56
  %v236 = vunpack.c.h.bf16 %v56
  %v237 = vunpack.c.l.bf16 %v57
  %v238 = vunpack.c.h.bf16 %v57
  %v239 = vunpack.c.l.bf16 %v58
  %v240 = vunpack.c.h.bf16 %v58
  %v241 = vunpack.c.l.bf16 %v59
  %v242 = vunpack.c.h.bf16 %v59
  %v243 = vunpack.c.l.bf16 %v60
  %v244 = vunpack.c.h.bf16 %v60
  %v245 = vunpack.c.l.bf16 %v61
  %v246 = vunpack.c.h.bf16 %v61
  %v247 = vunpack.c.l.bf16 %v62
  %v248 = vunpack.c.h.bf16 %v62
  %v249 = vunpack.c.l.bf16 %v63
  %v250 = vunpack.c.h.bf16 %v63
  %v251 = vunpack.c.l.bf16 %v64
  %v252 = vunpack.c.h.bf16 %v64
  %v253 = vunpack.c.l.bf16 %v65
  %v254 = vunpack.c.h.bf16 %v65
  %v255 = vunpack.c.l.bf16 %v66
  %v256 = vunpack.c.h.bf16 %v66
  %v257 = vunpack.c.l.bf16 %v67
  %v258 = vunpack.c.h.bf16 %v67
  %v259 = vunpack.c.l.bf16 %v68
  %v260 = vunpack.c.h.bf16 %v68
  %v261 = vunpack.c.l.bf16 %v69
  %v262 = vunpack.c.h.bf16 %v69
  %v263 = vunpack.c.l.bf16 %v70
  %v264 = vunpack.c.h.bf16 %v70
  %v265 = vunpack.c.l.bf16 %v71
  %v266 = vunpack.c.h.bf16 %v71
  %v267 = vunpack.c.l.bf16 %v72
  %v268 = vunpack.c.h.bf16 %v72
  %v269 = vunpack.c.l.bf16 %v73
  %v270 = vunpack.c.h.bf16 %v73
  %v271 = vunpack.c.l.bf16 %v74
  %v272 = vunpack.c.h.bf16 %v74
  %v273 = vunpack.c.l.bf16 %v75
  %v274 = vunpack.c.h.bf16 %v75
  %v275 = vunpack.c.l.bf16 %v76
  %v276 = vunpack.c.h.bf16 %v76
  %v277 = vunpack.c.l.bf16 %v77
  %v278 = vunpack.c.h.bf16 %v77
  %v279 = vunpack.c.l.bf16 %v78
  %v280 = vunpack.c.h.bf16 %v78
  %v281 = vunpack.c.l.bf16 %v79
  %v282 = vunpack.c.h.bf16 %v79
  %v283 = vunpack.c.l.bf16 %v80
  %v284 = vunpack.c.h.bf16 %v80
  %v285 = vunpack.c.l.bf16 %v81
  %v286 = vunpack.c.h.bf16 %v81
  %v287 = vunpack.c.l.bf16 %v82
  %v288 = vunpack.c.h.bf16 %v82
  %v289 = vunpack.c.l.bf16 %v83
  %v290 = vunpack.c.h.bf16 %v83
  %v291 = vunpack.c.l.bf16 %v84
  %v292 = vunpack.c.h.bf16 %v84
  %v293 = vunpack.c.l.bf16 %v85
  %v294 = vunpack.c.h.bf16 %v85
  %v295 = vunpack.c.l.bf16 %v86
  %v296 = vunpack.c.h.bf16 %v86
  %v297 = vunpack.c.l.bf16 %v87
  %v298 = vunpack.c.h.bf16 %v87
  %v299 = vunpack.c.l.bf16 %v88
  %v300 = vunpack.c.h.bf16 %v88
  %v301 = vunpack.c.l.bf16 %v89
  %v302 = vunpack.c.h.bf16 %v89
  %v303 = vunpack.c.l.bf16 %v90
  %v304 = vunpack.c.h.bf16 %v90
  %v305 = vunpack.c.l.bf16 %v91
  %v306 = vunpack.c.h.bf16 %v91
  %v307 = vunpack.c.l.bf16 %v92
  %v308 = vunpack.c.h.bf16 %v92
  %v309 = vunpack.c.l.bf16 %v93
  %v310 = vunpack.c.h.bf16 %v93
  %v311 = vunpack.c.l.bf16 %v94
  %v312 = vunpack.c.h.bf16 %v94
  %v313 = vunpack.c.l.bf16 %v95
  %v314 = vunpack.c.h.bf16 %v95
  %v315 = vunpack.c.l.bf16 %v96
  %v316 = vunpack.c.h.bf16 %v96
  %v317 = vunpack.c.l.bf16 %v97
  %v318 = vunpack.c.h.bf16 %v97
  %v319 = vunpack.c.l.bf16 %v98
  %v320 = vunpack.c.h.bf16 %v98
  %v321 = vunpack.c.l.bf16 %v99
  %v322 = vunpack.c.h.bf16 %v99
  %v323 = vunpack.c.l.bf16 %v100
  %v324 = vunpack.c.h.bf16 %v100
  %v325 = vunpack.c.l.bf16 %v101
  %v326 = vunpack.c.h.bf16 %v101
  %v327 = vunpack.c.l.bf16 %v102
  %v328 = vunpack.c.h.bf16 %v102
  %v329 = vunpack.c.l.bf16 %v103
  %v330 = vunpack.c.h.bf16 %v103
  %v331 = vunpack.c.l.bf16 %v104
  %v332 = vunpack.c.h.bf16 %v104
  %v333 = vunpack.c.l.bf16 %v105
  %v334 = vunpack.c.h.bf16 %v105
  %v335 = vunpack.c.l.bf16 %v106
  %v336 = vunpack.c.h.bf16 %v106
  %v337 = vunpack.c.l.bf16 %v107
  %v338 = vunpack.c.h.bf16 %v107
  %v339 = vunpack.c.l.bf16 %v108
  %v340 = vunpack.c.h.bf16 %v108
  %v341 = vunpack.c.l.bf16 %v109
  %v342 = vunpack.c.h.bf16 %v109
  %v343 = vunpack.c.l.bf16 %v110
  %v344 = vunpack.c.h.bf16 %v110
  %v345 = vunpack.c.l.bf16 %v111
  %v346 = vunpack.c.h.bf16 %v111
  %v347 = vunpack.c.l.bf16 %v112
  %v348 = vunpack.c.h.bf16 %v112
  %v349 = vunpack.c.l.bf16 %v113
  %v350 = vunpack.c.h.bf16 %v113
  %v351 = vunpack.c.l.bf16 %v114
  %v352 = vunpack.c.h.bf16 %v114
  %v353 = vunpack.c.l.bf16 %v115
  %v354 = vunpack.c.h.bf16 %v115
  %v355 = vunpack.c.l.bf16 %v116
  %v356 = vunpack.c.h.bf16 %v116
  %v357 = vunpack.c.l.bf16 %v117
  %v358 = vunpack.c.h.bf16 %v117
  %v359 = vunpack.c.l.bf16 %v118
  %v360 = vunpack.c.h.bf16 %v118
  %v361 = vunpack.c.l.bf16 %v119
  %v362 = vunpack.c.h.bf16 %v119
  %v363 = vunpack.c.l.bf16 %v120
  %v364 = vunpack.c.h.bf16 %v120
  %v365 = vunpack.c.l.bf16 %v121
  %v366 = vunpack.c.h.bf16 %v121
  %v367 = vunpack.c.l.bf16 %v122
  %v368 = vunpack.c.h.bf16 %v122
  %v369 = vunpack.c.l.bf16 %v123
  %v370 = vunpack.c.h.bf16 %v123
  %v371 = vunpack.c.l.bf16 %v124
  %v372 = vunpack.c.h.bf16 %v124
  %v373 = vunpack.c.l.bf16 %v125
  %v374 = vunpack.c.h.bf16 %v125
  %v375 = vunpack.c.l.bf16 %v126
  %v376 = vunpack.c.h.bf16 %v126
  %v377 = vunpack.c.l.bf16 %v127
  %v378 = vunpack.c.h.bf16 %v127
  %v379 = vunpack.c.l.bf16 %v128
  %v380 = vunpack.c.h.bf16 %v128
  %v381 = vunpack.c.l.bf16 %v129
  %v382 = vunpack.c.h.bf16 %v129
  %v383 = vunpack.c.l.bf16 %v130
  %v384 = vunpack.c.h.bf16 %v130
  %v385 = vunpack.c.l.bf16 %v131
  %v386 = vunpack.c.h.bf16 %v131
  %v387 = vunpack.c.l.bf16 %v132
  %v388 = vunpack.c.h.bf16 %v132
  %v389 = vunpack.c.l.bf16 %v133
  %v390 = vunpack.c.h.bf16 %v133
  %v391 = vunpack.c.l.bf16 %v134
  %v392 = vunpack.c.h.bf16 %v134
  %v393 = vunpack.c.l.bf16 %v135
  %v394 = vunpack.c.h.bf16 %v135
  %v395 = vunpack.c.l.bf16 %v136
  %v396 = vunpack.c.h.bf16 %v136
  %v397 = vunpack.c.l.bf16 %v137
  %v398 = vunpack.c.h.bf16 %v137
  %v399 = vunpack.c.l.bf16 %v138
  %v400 = vunpack.c.h.bf16 %v138
  %v401 = vunpack.c.l.bf16 %v139
  %v402 = vunpack.c.h.bf16 %v139
  %v403 = vunpack.c.l.bf16 %v140
  %v404 = vunpack.c.h.bf16 %v140
  %v405 = vunpack.c.l.bf16 %v141
  %v406 = vunpack.c.h.bf16 %v141
  %v407 = vunpack.c.l.bf16 %v142
  %v408 = vunpack.c.h.bf16 %v142
  %v409 = vunpack.c.l.bf16 %v143
  %v410 = vunpack.c.h.bf16 %v143
  %v411 = vunpack.c.l.bf16 %v144
  %v412 = vunpack.c.h.bf16 %v144
  %v413 = vunpack.c.l.bf16 %v145
  %v414 = vunpack.c.h.bf16 %v145
  %v415 = vunpack.c.l.bf16 %v146
  %v416 = vunpack.c.h.bf16 %v146
  %v417 = vunpack.c.l.bf16 %v147
  %v418 = vunpack.c.h.bf16 %v147
  %v419 = vunpack.c.l.bf16 %v148
  %v420 = vunpack.c.h.bf16 %v148
  %v421 = vunpack.c.l.bf16 %v149
  %v422 = vunpack.c.h.bf16 %v149
  %v423 = vunpack.c.l.bf16 %v150
  %v424 = vunpack.c.h.bf16 %v150
  %v425 = vunpack.c.l.bf16 %v151
  %v426 = vunpack.c.h.bf16 %v151
  %v427 = vunpack.c.l.bf16 %v152
  %v428 = vunpack.c.h.bf16 %v152
  %v429 = vunpack.c.l.bf16 %v153
  %v430 = vunpack.c.h.bf16 %v153
  %v431 = vunpack.c.l.bf16 %v154
  %v432 = vunpack.c.h.bf16 %v154
  %v433 = vunpack.c.l.bf16 %v155
  %v434 = vunpack.c.h.bf16 %v155
  %v435 = vunpack.c.l.bf16 %v156
  %v436 = vunpack.c.h.bf16 %v156
  %v437 = vunpack.c.l.bf16 %v157
  %v438 = vunpack.c.h.bf16 %v157
  %v439 = vunpack.c.l.bf16 %v158
  %v440 = vunpack.c.h.bf16 %v158
  %v441 = vunpack.c.l.bf16 %v159
  %v442 = vunpack.c.h.bf16 %v159
  %v443 = vunpack.c.l.bf16 %v160
  %v444 = vunpack.c.h.bf16 %v160
  %v445 = vunpack.c.l.bf16 %v161
  %v446 = vunpack.c.h.bf16 %v161
  %v447 = vunpack.c.l.bf16 %v162
  %v448 = vunpack.c.h.bf16 %v162
  %v449 = vunpack.c.l.bf16 %v163
  %v450 = vunpack.c.h.bf16 %v163
  %v452 = vperm.slane %v164, 0
  %v453 = vperm.slane %v164, 1
  %v456 = vmul.f32 %v165, %v452
  %v457 = vmul.f32 %v166, %v453
  %v458 = vmul.f32 %v167, %v452
  %v459 = vmul.f32 %v168, %v453
  %v460 = vmul.f32 %v169, %v452
  %v461 = vmul.f32 %v170, %v453
  %v462 = vmul.f32 %v171, %v452
  %v463 = vmul.f32 %v172, %v453
  %v464 = vmul.f32 %v173, %v452
  %v465 = vmul.f32 %v174, %v453
  %v466 = vmul.f32 %v175, %v452
  %v467 = vmul.f32 %v176, %v453
  %v468 = vmul.f32 %v177, %v452
  %v469 = vmul.f32 %v178, %v453
  %v470 = vmul.f32 %v179, %v452
  %v471 = vmul.f32 %v180, %v453
  %v472 = vmul.f32 %v181, %v452
  %v473 = vmul.f32 %v182, %v453
  %v474 = vmul.f32 %v183, %v452
  %v475 = vmul.f32 %v184, %v453
  %v476 = vmul.f32 %v185, %v452
  %v477 = vmul.f32 %v186, %v453
  %v478 = vmul.f32 %v187, %v452
  %v479 = vmul.f32 %v188, %v453
  %v480 = vmul.f32 %v189, %v452
  %v481 = vmul.f32 %v190, %v453
  %v482 = vmul.f32 %v191, %v452
  %v483 = vmul.f32 %v192, %v453
  %v484 = vmul.f32 %v193, %v452
  %v485 = vmul.f32 %v194, %v453
  %v486 = vmul.f32 %v195, %v452
  %v487 = vmul.f32 %v196, %v453
  %v488 = vmul.f32 %v197, %v452
  %v489 = vmul.f32 %v198, %v453
  %v490 = vmul.f32 %v199, %v452
  %v491 = vmul.f32 %v200, %v453
  %v492 = vmul.f32 %v201, %v452
  %v493 = vmul.f32 %v202, %v453
  %v494 = vmul.f32 %v203, %v452
  %v495 = vmul.f32 %v204, %v453
  %v496 = vmul.f32 %v205, %v452
  %v497 = vmul.f32 %v206, %v453
  %v498 = vmul.f32 %v207, %v452
  %v499 = vmul.f32 %v208, %v453
  %v500 = vmul.f32 %v209, %v452
  %v501 = vmul.f32 %v210, %v453
  %v502 = vmul.f32 %v211, %v452
  %v503 = vmul.f32 %v212, %v453
  %v504 = vmul.f32 %v213, %v452
  %v505 = vmul.f32 %v214, %v453
  %v506 = vmul.f32 %v215, %v452
  %v507 = vmul.f32 %v216, %v453
  %v508 = vmul.f32 %v217, %v452
  %v509 = vmul.f32 %v218, %v453
  %v510 = vmul.f32 %v219, %v452
  %v511 = vmul.f32 %v220, %v453
  %v512 = vmul.f32 %v221, %v452
  %v513 = vmul.f32 %v222, %v453
  %v514 = vmul.f32 %v223, %v452
  %v515 = vmul.f32 %v224, %v453
  %v516 = vmul.f32 %v225, %v452
  %v517 = vmul.f32 %v226, %v453
  %v518 = vmul.f32 %v227, %v452
  %v519 = vmul.f32 %v228, %v453
  %v520 = vmul.f32 %v229, %v452
  %v521 = vmul.f32 %v230, %v453
  %v522 = vmul.f32 %v231, %v452
  %v523 = vmul.f32 %v232, %v453
  %v524 = vmul.f32 %v233, %v452
  %v525 = vmul.f32 %v234, %v453
  %v526 = vmul.f32 %v235, %v452
  %v527 = vmul.f32 %v236, %v453
  %v528 = vmul.f32 %v237, %v452
  %v529 = vmul.f32 %v238, %v453
  %v530 = vmul.f32 %v239, %v452
  %v531 = vmul.f32 %v240, %v453
  %v532 = vmul.f32 %v241, %v452
  %v533 = vmul.f32 %v242, %v453
  %v534 = vmul.f32 %v243, %v452
  %v535 = vmul.f32 %v244, %v453
  %v536 = vmul.f32 %v245, %v452
  %v537 = vmul.f32 %v246, %v453
  %v538 = vmul.f32 %v247, %v452
  %v539 = vmul.f32 %v248, %v453
  %v540 = vmul.f32 %v249, %v452
  %v541 = vmul.f32 %v250, %v453
  %v542 = vmul.f32 %v251, %v452
  %v543 = vmul.f32 %v252, %v453
  %v544 = vmul.f32 %v253, %v452
  %v545 = vmul.f32 %v254, %v453
  %v546 = vmul.f32 %v255, %v452
  %v547 = vmul.f32 %v256, %v453
  %v548 = vmul.f32 %v257, %v452
  %v549 = vmul.f32 %v258, %v453
  %v550 = vmul.f32 %v259, %v452
  %v551 = vmul.f32 %v260, %v453
  %v552 = vmul.f32 %v261, %v452
  %v553 = vmul.f32 %v262, %v453
  %v554 = vmul.f32 %v263, %v452
  %v555 = vmul.f32 %v264, %v453
  %v556 = vmul.f32 %v265, %v452
  %v557 = vmul.f32 %v266, %v453
  %v558 = vmul.f32 %v267, %v452
  %v559 = vmul.f32 %v268, %v453
  %v560 = vmul.f32 %v269, %v452
  %v561 = vmul.f32 %v270, %v453
  %v562 = vmul.f32 %v271, %v452
  %v563 = vmul.f32 %v272, %v453
  %v564 = vmul.f32 %v273, %v452
  %v565 = vmul.f32 %v274, %v453
  %v566 = vmul.f32 %v275, %v452
  %v567 = vmul.f32 %v276, %v453
  %v568 = vmul.f32 %v277, %v452
  %v569 = vmul.f32 %v278, %v453
  %v570 = vmul.f32 %v279, %v452
  %v571 = vmul.f32 %v280, %v453
  %v572 = vmul.f32 %v281, %v452
  %v573 = vmul.f32 %v282, %v453
  %v574 = vmul.f32 %v283, %v452
  %v575 = vmul.f32 %v284, %v453
  %v576 = vmul.f32 %v285, %v452
  %v577 = vmul.f32 %v286, %v453
  %v578 = vmul.f32 %v287, %v452
  %v579 = vmul.f32 %v288, %v453
  %v580 = vmul.f32 %v289, %v452
  %v581 = vmul.f32 %v290, %v453
  %v582 = vmul.f32 %v291, %v452
  %v583 = vmul.f32 %v292, %v453
  %v584 = vmul.f32 %v293, %v452
  %v585 = vmul.f32 %v294, %v453
  %v586 = vmul.f32 %v295, %v452
  %v587 = vmul.f32 %v296, %v453
  %v588 = vmul.f32 %v297, %v452
  %v589 = vmul.f32 %v298, %v453
  %v590 = vmul.f32 %v299, %v452
  %v591 = vmul.f32 %v300, %v453
  %v592 = vmul.f32 %v301, %v452
  %v593 = vmul.f32 %v302, %v453
  %v594 = vmul.f32 %v303, %v452
  %v595 = vmul.f32 %v304, %v453
  %v596 = vmul.f32 %v305, %v452
  %v597 = vmul.f32 %v306, %v453
  %v598 = vmul.f32 %v307, %v452
  %v599 = vmul.f32 %v308, %v453
  %v600 = vmul.f32 %v309, %v452
  %v601 = vmul.f32 %v310, %v453
  %v602 = vmul.f32 %v311, %v452
  %v603 = vmul.f32 %v312, %v453
  %v604 = vmul.f32 %v313, %v452
  %v605 = vmul.f32 %v314, %v453
  %v606 = vmul.f32 %v315, %v452
  %v607 = vmul.f32 %v316, %v453
  %v608 = vmul.f32 %v317, %v452
  %v609 = vmul.f32 %v318, %v453
  %v610 = vmul.f32 %v319, %v452
  %v611 = vmul.f32 %v320, %v453
  %v612 = vmul.f32 %v321, %v452
  %v613 = vmul.f32 %v322, %v453
  %v614 = vmul.f32 %v323, %v452
  %v615 = vmul.f32 %v324, %v453
  %v616 = vmul.f32 %v325, %v452
  %v617 = vmul.f32 %v326, %v453
  %v618 = vmul.f32 %v327, %v452
  %v619 = vmul.f32 %v328, %v453
  %v620 = vmul.f32 %v329, %v452
  %v621 = vmul.f32 %v330, %v453
  %v622 = vmul.f32 %v331, %v452
  %v623 = vmul.f32 %v332, %v453
  %v624 = vmul.f32 %v333, %v452
  %v625 = vmul.f32 %v334, %v453
  %v626 = vmul.f32 %v335, %v452
  %v627 = vmul.f32 %v336, %v453
  %v628 = vmul.f32 %v337, %v452
  %v629 = vmul.f32 %v338, %v453
  %v630 = vmul.f32 %v339, %v452
  %v631 = vmul.f32 %v340, %v453
  %v632 = vmul.f32 %v341, %v452
  %v633 = vmul.f32 %v342, %v453
  %v634 = vmul.f32 %v343, %v452
  %v635 = vmul.f32 %v344, %v453
  %v636 = vmul.f32 %v345, %v452
  %v637 = vmul.f32 %v346, %v453
  %v638 = vmul.f32 %v347, %v452
  %v639 = vmul.f32 %v348, %v453
  %v640 = vmul.f32 %v349, %v452
  %v641 = vmul.f32 %v350, %v453
  %v642 = vmul.f32 %v351, %v452
  %v643 = vmul.f32 %v352, %v453
  %v644 = vmul.f32 %v353, %v452
  %v645 = vmul.f32 %v354, %v453
  %v646 = vmul.f32 %v355, %v452
  %v647 = vmul.f32 %v356, %v453
  %v648 = vmul.f32 %v357, %v452
  %v649 = vmul.f32 %v358, %v453
  %v650 = vmul.f32 %v359, %v452
  %v651 = vmul.f32 %v360, %v453
  %v652 = vmul.f32 %v361, %v452
  %v653 = vmul.f32 %v362, %v453
  %v654 = vmul.f32 %v363, %v452
  %v655 = vmul.f32 %v364, %v453
  %v656 = vmul.f32 %v365, %v452
  %v657 = vmul.f32 %v366, %v453
  %v658 = vmul.f32 %v367, %v452
  %v659 = vmul.f32 %v368, %v453
  %v660 = vmul.f32 %v369, %v452
  %v661 = vmul.f32 %v370, %v453
  %v662 = vmul.f32 %v371, %v452
  %v663 = vmul.f32 %v372, %v453
  %v664 = vmul.f32 %v373, %v452
  %v665 = vmul.f32 %v374, %v453
  %v666 = vmul.f32 %v375, %v452
  %v667 = vmul.f32 %v376, %v453
  %v668 = vmul.f32 %v377, %v452
  %v669 = vmul.f32 %v378, %v453
  %v670 = vmul.f32 %v379, %v452
  %v671 = vmul.f32 %v380, %v453
  %v672 = vmul.f32 %v381, %v452
  %v673 = vmul.f32 %v382, %v453
  %v674 = vmul.f32 %v383, %v452
  %v675 = vmul.f32 %v384, %v453
  %v676 = vmul.f32 %v385, %v452
  %v677 = vmul.f32 %v386, %v453
  %v678 = vmul.f32 %v387, %v452
  %v679 = vmul.f32 %v388, %v453
  %v680 = vmul.f32 %v389, %v452
  %v681 = vmul.f32 %v390, %v453
  %v682 = vmul.f32 %v391, %v452
  %v683 = vmul.f32 %v392, %v453
  %v684 = vmul.f32 %v393, %v452
  %v685 = vmul.f32 %v394, %v453
  %v686 = vmul.f32 %v395, %v452
  %v687 = vmul.f32 %v396, %v453
  %v688 = vmul.f32 %v397, %v452
  %v689 = vmul.f32 %v398, %v453
  %v690 = vmul.f32 %v399, %v452
  %v691 = vmul.f32 %v400, %v453
  %v692 = vmul.f32 %v401, %v452
  %v693 = vmul.f32 %v402, %v453
  %v694 = vmul.f32 %v403, %v452
  %v695 = vmul.f32 %v404, %v453
  %v696 = vmul.f32 %v405, %v452
  %v697 = vmul.f32 %v406, %v453
  %v698 = vmul.f32 %v407, %v452
  %v699 = vmul.f32 %v408, %v453
  %v700 = vmul.f32 %v409, %v452
  %v701 = vmul.f32 %v410, %v453
  %v702 = vmul.f32 %v411, %v452
  %v703 = vmul.f32 %v412, %v453
  %v704 = vmul.f32 %v413, %v452
  %v705 = vmul.f32 %v414, %v453
  %v706 = vmul.f32 %v415, %v452
  %v707 = vmul.f32 %v416, %v453
  %v708 = vmul.f32 %v417, %v452
  %v709 = vmul.f32 %v418, %v453
  %v710 = vmul.f32 %v419, %v452
  %v711 = vmul.f32 %v420, %v453
  %v712 = vmul.f32 %v421, %v452
  %v713 = vmul.f32 %v422, %v453
  %v714 = vmul.f32 %v423, %v452
  %v715 = vmul.f32 %v424, %v453
  %v716 = vmul.f32 %v425, %v452
  %v717 = vmul.f32 %v426, %v453
  %v718 = vmul.f32 %v427, %v452
  %v719 = vmul.f32 %v428, %v453
  %v720 = vmul.f32 %v429, %v452
  %v721 = vmul.f32 %v430, %v453
  %v722 = vmul.f32 %v431, %v452
  %v723 = vmul.f32 %v432, %v453
  %v724 = vmul.f32 %v433, %v452
  %v725 = vmul.f32 %v434, %v453
  %v726 = vmul.f32 %v435, %v452
  %v727 = vmul.f32 %v436, %v453
  %v728 = vmul.f32 %v437, %v452
  %v729 = vmul.f32 %v438, %v453
  %v730 = vmul.f32 %v439, %v452
  %v731 = vmul.f32 %v440, %v453
  %v732 = vmul.f32 %v441, %v452
  %v733 = vmul.f32 %v442, %v453
  %v734 = vmul.f32 %v443, %v452
  %v735 = vmul.f32 %v444, %v453
  %v736 = vmul.f32 %v445, %v452
  %v737 = vmul.f32 %v446, %v453
  %v738 = vmul.f32 %v447, %v452
  %v739 = vmul.f32 %v448, %v453
  %v740 = vmul.f32 %v449, %v452
  %v741 = vmul.f32 %v450, %v453
  %v742 = vld [vmem:[%s2] sm:$0x3]
  %v744 = vperm.slane %v742, 0
  %v745 = vperm.slane %v742, 1
  %v748 = vadd.f32 %v456, %v744
  %v749 = vadd.f32 %v457, %v745
  %v750 = vadd.f32 %v458, %v744
  %v751 = vadd.f32 %v459, %v745
  %v752 = vadd.f32 %v460, %v744
  %v753 = vadd.f32 %v461, %v745
  %v754 = vadd.f32 %v462, %v744
  %v755 = vadd.f32 %v463, %v745
  %v756 = vadd.f32 %v464, %v744
  %v757 = vadd.f32 %v465, %v745
  %v758 = vadd.f32 %v466, %v744
  %v759 = vadd.f32 %v467, %v745
  %v760 = vadd.f32 %v468, %v744
  %v761 = vadd.f32 %v469, %v745
  %v762 = vadd.f32 %v470, %v744
  %v763 = vadd.f32 %v471, %v745
  %v764 = vadd.f32 %v472, %v744
  %v765 = vadd.f32 %v473, %v745
  %v766 = vadd.f32 %v474, %v744
  %v767 = vadd.f32 %v475, %v745
  %v768 = vadd.f32 %v476, %v744
  %v769 = vadd.f32 %v477, %v745
  %v770 = vadd.f32 %v478, %v744
  %v771 = vadd.f32 %v479, %v745
  %v772 = vadd.f32 %v480, %v744
  %v773 = vadd.f32 %v481, %v745
  %v774 = vadd.f32 %v482, %v744
  %v775 = vadd.f32 %v483, %v745
  %v776 = vadd.f32 %v484, %v744
  %v777 = vadd.f32 %v485, %v745
  %v778 = vadd.f32 %v486, %v744
  %v779 = vadd.f32 %v487, %v745
  %v780 = vadd.f32 %v488, %v744
  %v781 = vadd.f32 %v489, %v745
  %v782 = vadd.f32 %v490, %v744
  %v783 = vadd.f32 %v491, %v745
  %v784 = vadd.f32 %v492, %v744
  %v785 = vadd.f32 %v493, %v745
  %v786 = vadd.f32 %v494, %v744
  %v787 = vadd.f32 %v495, %v745
  %v788 = vadd.f32 %v496, %v744
  %v789 = vadd.f32 %v497, %v745
  %v790 = vadd.f32 %v498, %v744
  %v791 = vadd.f32 %v499, %v745
  %v792 = vadd.f32 %v500, %v744
  %v793 = vadd.f32 %v501, %v745
  %v794 = vadd.f32 %v502, %v744
  %v795 = vadd.f32 %v503, %v745
  %v796 = vadd.f32 %v504, %v744
  %v797 = vadd.f32 %v505, %v745
  %v798 = vadd.f32 %v506, %v744
  %v799 = vadd.f32 %v507, %v745
  %v800 = vadd.f32 %v508, %v744
  %v801 = vadd.f32 %v509, %v745
  %v802 = vadd.f32 %v510, %v744
  %v803 = vadd.f32 %v511, %v745
  %v804 = vadd.f32 %v512, %v744
  %v805 = vadd.f32 %v513, %v745
  %v806 = vadd.f32 %v514, %v744
  %v807 = vadd.f32 %v515, %v745
  %v808 = vadd.f32 %v516, %v744
  %v809 = vadd.f32 %v517, %v745
  %v810 = vadd.f32 %v518, %v744
  %v811 = vadd.f32 %v519, %v745
  %v812 = vadd.f32 %v520, %v744
  %v813 = vadd.f32 %v521, %v745
  %v814 = vadd.f32 %v522, %v744
  %v815 = vadd.f32 %v523, %v745
  %v816 = vadd.f32 %v524, %v744
  %v817 = vadd.f32 %v525, %v745
  %v818 = vadd.f32 %v526, %v744
  %v819 = vadd.f32 %v527, %v745
  %v820 = vadd.f32 %v528, %v744
  %v821 = vadd.f32 %v529, %v745
  %v822 = vadd.f32 %v530, %v744
  %v823 = vadd.f32 %v531, %v745
  %v824 = vadd.f32 %v532, %v744
  %v825 = vadd.f32 %v533, %v745
  %v826 = vadd.f32 %v534, %v744
  %v827 = vadd.f32 %v535, %v745
  %v828 = vadd.f32 %v536, %v744
  %v829 = vadd.f32 %v537, %v745
  %v830 = vadd.f32 %v538, %v744
  %v831 = vadd.f32 %v539, %v745
  %v832 = vadd.f32 %v540, %v744
  %v833 = vadd.f32 %v541, %v745
  %v834 = vadd.f32 %v542, %v744
  %v835 = vadd.f32 %v543, %v745
  %v836 = vadd.f32 %v544, %v744
  %v837 = vadd.f32 %v545, %v745
  %v838 = vadd.f32 %v546, %v744
  %v839 = vadd.f32 %v547, %v745
  %v840 = vadd.f32 %v548, %v744
  %v841 = vadd.f32 %v549, %v745
  %v842 = vadd.f32 %v550, %v744
  %v843 = vadd.f32 %v551, %v745
  %v844 = vadd.f32 %v552, %v744
  %v845 = vadd.f32 %v553, %v745
  %v846 = vadd.f32 %v554, %v744
  %v847 = vadd.f32 %v555, %v745
  %v848 = vadd.f32 %v556, %v744
  %v849 = vadd.f32 %v557, %v745
  %v850 = vadd.f32 %v558, %v744
  %v851 = vadd.f32 %v559, %v745
  %v852 = vadd.f32 %v560, %v744
  %v853 = vadd.f32 %v561, %v745
  %v854 = vadd.f32 %v562, %v744
  %v855 = vadd.f32 %v563, %v745
  %v856 = vadd.f32 %v564, %v744
  %v857 = vadd.f32 %v565, %v745
  %v858 = vadd.f32 %v566, %v744
  %v859 = vadd.f32 %v567, %v745
  %v860 = vadd.f32 %v568, %v744
  %v861 = vadd.f32 %v569, %v745
  %v862 = vadd.f32 %v570, %v744
  %v863 = vadd.f32 %v571, %v745
  %v864 = vadd.f32 %v572, %v744
  %v865 = vadd.f32 %v573, %v745
  %v866 = vadd.f32 %v574, %v744
  %v867 = vadd.f32 %v575, %v745
  %v868 = vadd.f32 %v576, %v744
  %v869 = vadd.f32 %v577, %v745
  %v870 = vadd.f32 %v578, %v744
  %v871 = vadd.f32 %v579, %v745
  %v872 = vadd.f32 %v580, %v744
  %v873 = vadd.f32 %v581, %v745
  %v874 = vadd.f32 %v582, %v744
  %v875 = vadd.f32 %v583, %v745
  %v876 = vadd.f32 %v584, %v744
  %v877 = vadd.f32 %v585, %v745
  %v878 = vadd.f32 %v586, %v744
  %v879 = vadd.f32 %v587, %v745
  %v880 = vadd.f32 %v588, %v744
  %v881 = vadd.f32 %v589, %v745
  %v882 = vadd.f32 %v590, %v744
  %v883 = vadd.f32 %v591, %v745
  %v884 = vadd.f32 %v592, %v744
  %v885 = vadd.f32 %v593, %v745
  %v886 = vadd.f32 %v594, %v744
  %v887 = vadd.f32 %v595, %v745
  %v888 = vadd.f32 %v596, %v744
  %v889 = vadd.f32 %v597, %v745
  %v890 = vadd.f32 %v598, %v744
  %v891 = vadd.f32 %v599, %v745
  %v892 = vadd.f32 %v600, %v744
  %v893 = vadd.f32 %v601, %v745
  %v894 = vadd.f32 %v602, %v744
  %v895 = vadd.f32 %v603, %v745
  %v896 = vadd.f32 %v604, %v744
  %v897 = vadd.f32 %v605, %v745
  %v898 = vadd.f32 %v606, %v744
  %v899 = vadd.f32 %v607, %v745
  %v900 = vadd.f32 %v608, %v744
  %v901 = vadd.f32 %v609, %v745
  %v902 = vadd.f32 %v610, %v744
  %v903 = vadd.f32 %v611, %v745
  %v904 = vadd.f32 %v612, %v744
  %v905 = vadd.f32 %v613, %v745
  %v906 = vadd.f32 %v614, %v744
  %v907 = vadd.f32 %v615, %v745
  %v908 = vadd.f32 %v616, %v744
  %v909 = vadd.f32 %v617, %v745
  %v910 = vadd.f32 %v618, %v744
  %v911 = vadd.f32 %v619, %v745
  %v912 = vadd.f32 %v620, %v744
  %v913 = vadd.f32 %v621, %v745
  %v914 = vadd.f32 %v622, %v744
  %v915 = vadd.f32 %v623, %v745
  %v916 = vadd.f32 %v624, %v744
  %v917 = vadd.f32 %v625, %v745
  %v918 = vadd.f32 %v626, %v744
  %v919 = vadd.f32 %v627, %v745
  %v920 = vadd.f32 %v628, %v744
  %v921 = vadd.f32 %v629, %v745
  %v922 = vadd.f32 %v630, %v744
  %v923 = vadd.f32 %v631, %v745
  %v924 = vadd.f32 %v632, %v744
  %v925 = vadd.f32 %v633, %v745
  %v926 = vadd.f32 %v634, %v744
  %v927 = vadd.f32 %v635, %v745
  %v928 = vadd.f32 %v636, %v744
  %v929 = vadd.f32 %v637, %v745
  %v930 = vadd.f32 %v638, %v744
  %v931 = vadd.f32 %v639, %v745
  %v932 = vadd.f32 %v640, %v744
  %v933 = vadd.f32 %v641, %v745
  %v934 = vadd.f32 %v642, %v744
  %v935 = vadd.f32 %v643, %v745
  %v936 = vadd.f32 %v644, %v744
  %v937 = vadd.f32 %v645, %v745
  %v938 = vadd.f32 %v646, %v744
  %v939 = vadd.f32 %v647, %v745
  %v940 = vadd.f32 %v648, %v744
  %v941 = vadd.f32 %v649, %v745
  %v942 = vadd.f32 %v650, %v744
  %v943 = vadd.f32 %v651, %v745
  %v944 = vadd.f32 %v652, %v744
  %v945 = vadd.f32 %v653, %v745
  %v946 = vadd.f32 %v654, %v744
  %v947 = vadd.f32 %v655, %v745
  %v948 = vadd.f32 %v656, %v744
  %v949 = vadd.f32 %v657, %v745
  %v950 = vadd.f32 %v658, %v744
  %v951 = vadd.f32 %v659, %v745
  %v952 = vadd.f32 %v660, %v744
  %v953 = vadd.f32 %v661, %v745
  %v954 = vadd.f32 %v662, %v744
  %v955 = vadd.f32 %v663, %v745
  %v956 = vadd.f32 %v664, %v744
  %v957 = vadd.f32 %v665, %v745
  %v958 = vadd.f32 %v666, %v744
  %v959 = vadd.f32 %v667, %v745
  %v960 = vadd.f32 %v668, %v744
  %v961 = vadd.f32 %v669, %v745
  %v962 = vadd.f32 %v670, %v744
  %v963 = vadd.f32 %v671, %v745
  %v964 = vadd.f32 %v672, %v744
  %v965 = vadd.f32 %v673, %v745
  %v966 = vadd.f32 %v674, %v744
  %v967 = vadd.f32 %v675, %v745
  %v968 = vadd.f32 %v676, %v744
  %v969 = vadd.f32 %v677, %v745
  %v970 = vadd.f32 %v678, %v744
  %v971 = vadd.f32 %v679, %v745
  %v972 = vadd.f32 %v680, %v744
  %v973 = vadd.f32 %v681, %v745
  %v974 = vadd.f32 %v682, %v744
  %v975 = vadd.f32 %v683, %v745
  %v976 = vadd.f32 %v684, %v744
  %v977 = vadd.f32 %v685, %v745
  %v978 = vadd.f32 %v686, %v744
  %v979 = vadd.f32 %v687, %v745
  %v980 = vadd.f32 %v688, %v744
  %v981 = vadd.f32 %v689, %v745
  %v982 = vadd.f32 %v690, %v744
  %v983 = vadd.f32 %v691, %v745
  %v984 = vadd.f32 %v692, %v744
  %v985 = vadd.f32 %v693, %v745
  %v986 = vadd.f32 %v694, %v744
  %v987 = vadd.f32 %v695, %v745
  %v988 = vadd.f32 %v696, %v744
  %v989 = vadd.f32 %v697, %v745
  %v990 = vadd.f32 %v698, %v744
  %v991 = vadd.f32 %v699, %v745
  %v992 = vadd.f32 %v700, %v744
  %v993 = vadd.f32 %v701, %v745
  %v994 = vadd.f32 %v702, %v744
  %v995 = vadd.f32 %v703, %v745
  %v996 = vadd.f32 %v704, %v744
  %v997 = vadd.f32 %v705, %v745
  %v998 = vadd.f32 %v706, %v744
  %v999 = vadd.f32 %v707, %v745
  %v1000 = vadd.f32 %v708, %v744
  %v1001 = vadd.f32 %v709, %v745
  %v1002 = vadd.f32 %v710, %v744
  %v1003 = vadd.f32 %v711, %v745
  %v1004 = vadd.f32 %v712, %v744
  %v1005 = vadd.f32 %v713, %v745
  %v1006 = vadd.f32 %v714, %v744
  %v1007 = vadd.f32 %v715, %v745
  %v1008 = vadd.f32 %v716, %v744
  %v1009 = vadd.f32 %v717, %v745
  %v1010 = vadd.f32 %v718, %v744
  %v1011 = vadd.f32 %v719, %v745
  %v1012 = vadd.f32 %v720, %v744
  %v1013 = vadd.f32 %v721, %v745
  %v1014 = vadd.f32 %v722, %v744
  %v1015 = vadd.f32 %v723, %v745
  %v1016 = vadd.f32 %v724, %v744
  %v1017 = vadd.f32 %v725, %v745
  %v1018 = vadd.f32 %v726, %v744
  %v1019 = vadd.f32 %v727, %v745
  %v1020 = vadd.f32 %v728, %v744
  %v1021 = vadd.f32 %v729, %v745
  %v1022 = vadd.f32 %v730, %v744
  %v1023 = vadd.f32 %v731, %v745
  %v1024 = vadd.f32 %v732, %v744
  %v1025 = vadd.f32 %v733, %v745
  %v1026 = vadd.f32 %v734, %v744
  %v1027 = vadd.f32 %v735, %v745
  %v1028 = vadd.f32 %v736, %v744
  %v1029 = vadd.f32 %v737, %v745
  %v1030 = vadd.f32 %v738, %v744
  %v1031 = vadd.f32 %v739, %v745
  %v1032 = vadd.f32 %v740, %v744
  %v1033 = vadd.f32 %v741, %v745
  %v1034 = vmax.f32 %v748, 0.0
  %v1035 = vmax.f32 %v749, 0.0
  %v1036 = vmax.f32 %v750, 0.0
  %v1037 = vmax.f32 %v751, 0.0
  %v1038 = vmax.f32 %v752, 0.0
  %v1039 = vmax.f32 %v753, 0.0
  %v1040 = vmax.f32 %v754, 0.0
  %v1041 = vmax.f32 %v755, 0.0
  %v1042 = vmax.f32 %v756, 0.0
  %v1043 = vmax.f32 %v757, 0.0
  %v1044 = vmax.f32 %v758, 0.0
  %v1045 = vmax.f32 %v759, 0.0
  %v1046 = vmax.f32 %v760, 0.0
  %v1047 = vmax.f32 %v761, 0.0
  %v1048 = vmax.f32 %v762, 0.0
  %v1049 = vmax.f32 %v763, 0.0
  %v1050 = vmax.f32 %v764, 0.0
  %v1051 = vmax.f32 %v765, 0.0
  %v1052 = vmax.f32 %v766, 0.0
  %v1053 = vmax.f32 %v767, 0.0
  %v1054 = vmax.f32 %v768, 0.0
  %v1055 = vmax.f32 %v769, 0.0
  %v1056 = vmax.f32 %v770, 0.0
  %v1057 = vmax.f32 %v771, 0.0
  %v1058 = vmax.f32 %v772, 0.0
  %v1059 = vmax.f32 %v773, 0.0
  %v1060 = vmax.f32 %v774, 0.0
  %v1061 = vmax.f32 %v775, 0.0
  %v1062 = vmax.f32 %v776, 0.0
  %v1063 = vmax.f32 %v777, 0.0
  %v1064 = vmax.f32 %v778, 0.0
  %v1065 = vmax.f32 %v779, 0.0
  %v1066 = vmax.f32 %v780, 0.0
  %v1067 = vmax.f32 %v781, 0.0
  %v1068 = vmax.f32 %v782, 0.0
  %v1069 = vmax.f32 %v783, 0.0
  %v1070 = vmax.f32 %v784, 0.0
  %v1071 = vmax.f32 %v785, 0.0
  %v1072 = vmax.f32 %v786, 0.0
  %v1073 = vmax.f32 %v787, 0.0
  %v1074 = vmax.f32 %v788, 0.0
  %v1075 = vmax.f32 %v789, 0.0
  %v1076 = vmax.f32 %v790, 0.0
  %v1077 = vmax.f32 %v791, 0.0
  %v1078 = vmax.f32 %v792, 0.0
  %v1079 = vmax.f32 %v793, 0.0
  %v1080 = vmax.f32 %v794, 0.0
  %v1081 = vmax.f32 %v795, 0.0
  %v1082 = vmax.f32 %v796, 0.0
  %v1083 = vmax.f32 %v797, 0.0
  %v1084 = vmax.f32 %v798, 0.0
  %v1085 = vmax.f32 %v799, 0.0
  %v1086 = vmax.f32 %v800, 0.0
  %v1087 = vmax.f32 %v801, 0.0
  %v1088 = vmax.f32 %v802, 0.0
  %v1089 = vmax.f32 %v803, 0.0
  %v1090 = vmax.f32 %v804, 0.0
  %v1091 = vmax.f32 %v805, 0.0
  %v1092 = vmax.f32 %v806, 0.0
  %v1093 = vmax.f32 %v807, 0.0
  %v1094 = vmax.f32 %v808, 0.0
  %v1095 = vmax.f32 %v809, 0.0
  %v1096 = vmax.f32 %v810, 0.0
  %v1097 = vmax.f32 %v811, 0.0
  %v1098 = vmax.f32 %v812, 0.0
  %v1099 = vmax.f32 %v813, 0.0
  %v1100 = vmax.f32 %v814, 0.0
  %v1101 = vmax.f32 %v815, 0.0
  %v1102 = vmax.f32 %v816, 0.0
  %v1103 = vmax.f32 %v817, 0.0
  %v1104 = vmax.f32 %v818, 0.0
  %v1105 = vmax.f32 %v819, 0.0
  %v1106 = vmax.f32 %v820, 0.0
  %v1107 = vmax.f32 %v821, 0.0
  %v1108 = vmax.f32 %v822, 0.0
  %v1109 = vmax.f32 %v823, 0.0
  %v1110 = vmax.f32 %v824, 0.0
  %v1111 = vmax.f32 %v825, 0.0
  %v1112 = vmax.f32 %v826, 0.0
  %v1113 = vmax.f32 %v827, 0.0
  %v1114 = vmax.f32 %v828, 0.0
  %v1115 = vmax.f32 %v829, 0.0
  %v1116 = vmax.f32 %v830, 0.0
  %v1117 = vmax.f32 %v831, 0.0
  %v1118 = vmax.f32 %v832, 0.0
  %v1119 = vmax.f32 %v833, 0.0
  %v1120 = vmax.f32 %v834, 0.0
  %v1121 = vmax.f32 %v835, 0.0
  %v1122 = vmax.f32 %v836, 0.0
  %v1123 = vmax.f32 %v837, 0.0
  %v1124 = vmax.f32 %v838, 0.0
  %v1125 = vmax.f32 %v839, 0.0
  %v1126 = vmax.f32 %v840, 0.0
  %v1127 = vmax.f32 %v841, 0.0
  %v1128 = vmax.f32 %v842, 0.0
  %v1129 = vmax.f32 %v843, 0.0
  %v1130 = vmax.f32 %v844, 0.0
  %v1131 = vmax.f32 %v845, 0.0
  %v1132 = vmax.f32 %v846, 0.0
  %v1133 = vmax.f32 %v847, 0.0
  %v1134 = vmax.f32 %v848, 0.0
  %v1135 = vmax.f32 %v849, 0.0
  %v1136 = vmax.f32 %v850, 0.0
  %v1137 = vmax.f32 %v851, 0.0
  %v1138 = vmax.f32 %v852, 0.0
  %v1139 = vmax.f32 %v853, 0.0
  %v1140 = vmax.f32 %v854, 0.0
  %v1141 = vmax.f32 %v855, 0.0
  %v1142 = vmax.f32 %v856, 0.0
  %v1143 = vmax.f32 %v857, 0.0
  %v1144 = vmax.f32 %v858, 0.0
  %v1145 = vmax.f32 %v859, 0.0
  %v1146 = vmax.f32 %v860, 0.0
  %v1147 = vmax.f32 %v861, 0.0
  %v1148 = vmax.f32 %v862, 0.0
  %v1149 = vmax.f32 %v863, 0.0
  %v1150 = vmax.f32 %v864, 0.0
  %v1151 = vmax.f32 %v865, 0.0
  %v1152 = vmax.f32 %v866, 0.0
  %v1153 = vmax.f32 %v867, 0.0
  %v1154 = vmax.f32 %v868, 0.0
  %v1155 = vmax.f32 %v869, 0.0
  %v1156 = vmax.f32 %v870, 0.0
  %v1157 = vmax.f32 %v871, 0.0
  %v1158 = vmax.f32 %v872, 0.0
  %v1159 = vmax.f32 %v873, 0.0
  %v1160 = vmax.f32 %v874, 0.0
  %v1161 = vmax.f32 %v875, 0.0
  %v1162 = vmax.f32 %v876, 0.0
  %v1163 = vmax.f32 %v877, 0.0
  %v1164 = vmax.f32 %v878, 0.0
  %v1165 = vmax.f32 %v879, 0.0
  %v1166 = vmax.f32 %v880, 0.0
  %v1167 = vmax.f32 %v881, 0.0
  %v1168 = vmax.f32 %v882, 0.0
  %v1169 = vmax.f32 %v883, 0.0
  %v1170 = vmax.f32 %v884, 0.0
  %v1171 = vmax.f32 %v885, 0.0
  %v1172 = vmax.f32 %v886, 0.0
  %v1173 = vmax.f32 %v887, 0.0
  %v1174 = vmax.f32 %v888, 0.0
  %v1175 = vmax.f32 %v889, 0.0
  %v1176 = vmax.f32 %v890, 0.0
  %v1177 = vmax.f32 %v891, 0.0
  %v1178 = vmax.f32 %v892, 0.0
  %v1179 = vmax.f32 %v893, 0.0
  %v1180 = vmax.f32 %v894, 0.0
  %v1181 = vmax.f32 %v895, 0.0
  %v1182 = vmax.f32 %v896, 0.0
  %v1183 = vmax.f32 %v897, 0.0
  %v1184 = vmax.f32 %v898, 0.0
  %v1185 = vmax.f32 %v899, 0.0
  %v1186 = vmax.f32 %v900, 0.0
  %v1187 = vmax.f32 %v901, 0.0
  %v1188 = vmax.f32 %v902, 0.0
  %v1189 = vmax.f32 %v903, 0.0
  %v1190 = vmax.f32 %v904, 0.0
  %v1191 = vmax.f32 %v905, 0.0
  %v1192 = vmax.f32 %v906, 0.0
  %v1193 = vmax.f32 %v907, 0.0
  %v1194 = vmax.f32 %v908, 0.0
  %v1195 = vmax.f32 %v909, 0.0
  %v1196 = vmax.f32 %v910, 0.0
  %v1197 = vmax.f32 %v911, 0.0
  %v1198 = vmax.f32 %v912, 0.0
  %v1199 = vmax.f32 %v913, 0.0
  %v1200 = vmax.f32 %v914, 0.0
  %v1201 = vmax.f32 %v915, 0.0
  %v1202 = vmax.f32 %v916, 0.0
  %v1203 = vmax.f32 %v917, 0.0
  %v1204 = vmax.f32 %v918, 0.0
  %v1205 = vmax.f32 %v919, 0.0
  %v1206 = vmax.f32 %v920, 0.0
  %v1207 = vmax.f32 %v921, 0.0
  %v1208 = vmax.f32 %v922, 0.0
  %v1209 = vmax.f32 %v923, 0.0
  %v1210 = vmax.f32 %v924, 0.0
  %v1211 = vmax.f32 %v925, 0.0
  %v1212 = vmax.f32 %v926, 0.0
  %v1213 = vmax.f32 %v927, 0.0
  %v1214 = vmax.f32 %v928, 0.0
  %v1215 = vmax.f32 %v929, 0.0
  %v1216 = vmax.f32 %v930, 0.0
  %v1217 = vmax.f32 %v931, 0.0
  %v1218 = vmax.f32 %v932, 0.0
  %v1219 = vmax.f32 %v933, 0.0
  %v1220 = vmax.f32 %v934, 0.0
  %v1221 = vmax.f32 %v935, 0.0
  %v1222 = vmax.f32 %v936, 0.0
  %v1223 = vmax.f32 %v937, 0.0
  %v1224 = vmax.f32 %v938, 0.0
  %v1225 = vmax.f32 %v939, 0.0
  %v1226 = vmax.f32 %v940, 0.0
  %v1227 = vmax.f32 %v941, 0.0
  %v1228 = vmax.f32 %v942, 0.0
  %v1229 = vmax.f32 %v943, 0.0
  %v1230 = vmax.f32 %v944, 0.0
  %v1231 = vmax.f32 %v945, 0.0
  %v1232 = vmax.f32 %v946, 0.0
  %v1233 = vmax.f32 %v947, 0.0
  %v1234 = vmax.f32 %v948, 0.0
  %v1235 = vmax.f32 %v949, 0.0
  %v1236 = vmax.f32 %v950, 0.0
  %v1237 = vmax.f32 %v951, 0.0
  %v1238 = vmax.f32 %v952, 0.0
  %v1239 = vmax.f32 %v953, 0.0
  %v1240 = vmax.f32 %v954, 0.0
  %v1241 = vmax.f32 %v955, 0.0
  %v1242 = vmax.f32 %v956, 0.0
  %v1243 = vmax.f32 %v957, 0.0
  %v1244 = vmax.f32 %v958, 0.0
  %v1245 = vmax.f32 %v959, 0.0
  %v1246 = vmax.f32 %v960, 0.0
  %v1247 = vmax.f32 %v961, 0.0
  %v1248 = vmax.f32 %v962, 0.0
  %v1249 = vmax.f32 %v963, 0.0
  %v1250 = vmax.f32 %v964, 0.0
  %v1251 = vmax.f32 %v965, 0.0
  %v1252 = vmax.f32 %v966, 0.0
  %v1253 = vmax.f32 %v967, 0.0
  %v1254 = vmax.f32 %v968, 0.0
  %v1255 = vmax.f32 %v969, 0.0
  %v1256 = vmax.f32 %v970, 0.0
  %v1257 = vmax.f32 %v971, 0.0
  %v1258 = vmax.f32 %v972, 0.0
  %v1259 = vmax.f32 %v973, 0.0
  %v1260 = vmax.f32 %v974, 0.0
  %v1261 = vmax.f32 %v975, 0.0
  %v1262 = vmax.f32 %v976, 0.0
  %v1263 = vmax.f32 %v977, 0.0
  %v1264 = vmax.f32 %v978, 0.0
  %v1265 = vmax.f32 %v979, 0.0
  %v1266 = vmax.f32 %v980, 0.0
  %v1267 = vmax.f32 %v981, 0.0
  %v1268 = vmax.f32 %v982, 0.0
  %v1269 = vmax.f32 %v983, 0.0
  %v1270 = vmax.f32 %v984, 0.0
  %v1271 = vmax.f32 %v985, 0.0
  %v1272 = vmax.f32 %v986, 0.0
  %v1273 = vmax.f32 %v987, 0.0
  %v1274 = vmax.f32 %v988, 0.0
  %v1275 = vmax.f32 %v989, 0.0
  %v1276 = vmax.f32 %v990, 0.0
  %v1277 = vmax.f32 %v991, 0.0
  %v1278 = vmax.f32 %v992, 0.0
  %v1279 = vmax.f32 %v993, 0.0
  %v1280 = vmax.f32 %v994, 0.0
  %v1281 = vmax.f32 %v995, 0.0
  %v1282 = vmax.f32 %v996, 0.0
  %v1283 = vmax.f32 %v997, 0.0
  %v1284 = vmax.f32 %v998, 0.0
  %v1285 = vmax.f32 %v999, 0.0
  %v1286 = vmax.f32 %v1000, 0.0
  %v1287 = vmax.f32 %v1001, 0.0
  %v1288 = vmax.f32 %v1002, 0.0
  %v1289 = vmax.f32 %v1003, 0.0
  %v1290 = vmax.f32 %v1004, 0.0
  %v1291 = vmax.f32 %v1005, 0.0
  %v1292 = vmax.f32 %v1006, 0.0
  %v1293 = vmax.f32 %v1007, 0.0
  %v1294 = vmax.f32 %v1008, 0.0
  %v1295 = vmax.f32 %v1009, 0.0
  %v1296 = vmax.f32 %v1010, 0.0
  %v1297 = vmax.f32 %v1011, 0.0
  %v1298 = vmax.f32 %v1012, 0.0
  %v1299 = vmax.f32 %v1013, 0.0
  %v1300 = vmax.f32 %v1014, 0.0
  %v1301 = vmax.f32 %v1015, 0.0
  %v1302 = vmax.f32 %v1016, 0.0
  %v1303 = vmax.f32 %v1017, 0.0
  %v1304 = vmax.f32 %v1018, 0.0
  %v1305 = vmax.f32 %v1019, 0.0
  %v1306 = vmax.f32 %v1020, 0.0
  %v1307 = vmax.f32 %v1021, 0.0
  %v1308 = vmax.f32 %v1022, 0.0
  %v1309 = vmax.f32 %v1023, 0.0
  %v1310 = vmax.f32 %v1024, 0.0
  %v1311 = vmax.f32 %v1025, 0.0
  %v1312 = vmax.f32 %v1026, 0.0
  %v1313 = vmax.f32 %v1027, 0.0
  %v1314 = vmax.f32 %v1028, 0.0
  %v1315 = vmax.f32 %v1029, 0.0
  %v1316 = vmax.f32 %v1030, 0.0
  %v1317 = vmax.f32 %v1031, 0.0
  %v1318 = vmax.f32 %v1032, 0.0
  %v1319 = vmax.f32 %v1033, 0.0
  %v1320 = vpack.c.bf16 %v1036, %v1034
  %v1321 = vpack.c.bf16 %v1037, %v1035
  %v1322 = vpack.c.bf16 %v1040, %v1038
  %v1323 = vpack.c.bf16 %v1041, %v1039
  %v1324 = vpack.c.bf16 %v1044, %v1042
  %v1325 = vpack.c.bf16 %v1045, %v1043
  %v1326 = vpack.c.bf16 %v1048, %v1046
  %v1327 = vpack.c.bf16 %v1049, %v1047
  %v1328 = vpack.c.bf16 %v1052, %v1050
  %v1329 = vpack.c.bf16 %v1053, %v1051
  %v1330 = vpack.c.bf16 %v1056, %v1054
  %v1331 = vpack.c.bf16 %v1057, %v1055
  %v1332 = vpack.c.bf16 %v1060, %v1058
  %v1333 = vpack.c.bf16 %v1061, %v1059
  %v1334 = vpack.c.bf16 %v1064, %v1062
  %v1335 = vpack.c.bf16 %v1065, %v1063
  %v1336 = vpack.c.bf16 %v1068, %v1066
  %v1337 = vpack.c.bf16 %v1069, %v1067
  %v1338 = vpack.c.bf16 %v1072, %v1070
  %v1339 = vpack.c.bf16 %v1073, %v1071
  %v1340 = vpack.c.bf16 %v1076, %v1074
  %v1341 = vpack.c.bf16 %v1077, %v1075
  %v1342 = vpack.c.bf16 %v1080, %v1078
  %v1343 = vpack.c.bf16 %v1081, %v1079
  %v1344 = vpack.c.bf16 %v1084, %v1082
  %v1345 = vpack.c.bf16 %v1085, %v1083
  %v1346 = vpack.c.bf16 %v1088, %v1086
  %v1347 = vpack.c.bf16 %v1089, %v1087
  %v1348 = vpack.c.bf16 %v1092, %v1090
  %v1349 = vpack.c.bf16 %v1093, %v1091
  %v1350 = vpack.c.bf16 %v1096, %v1094
  %v1351 = vpack.c.bf16 %v1097, %v1095
  %v1352 = vpack.c.bf16 %v1100, %v1098
  %v1353 = vpack.c.bf16 %v1101, %v1099
  %v1354 = vpack.c.bf16 %v1104, %v1102
  %v1355 = vpack.c.bf16 %v1105, %v1103
  %v1356 = vpack.c.bf16 %v1108, %v1106
  %v1357 = vpack.c.bf16 %v1109, %v1107
  %v1358 = vpack.c.bf16 %v1112, %v1110
  %v1359 = vpack.c.bf16 %v1113, %v1111
  %v1360 = vpack.c.bf16 %v1116, %v1114
  %v1361 = vpack.c.bf16 %v1117, %v1115
  %v1362 = vpack.c.bf16 %v1120, %v1118
  %v1363 = vpack.c.bf16 %v1121, %v1119
  %v1364 = vpack.c.bf16 %v1124, %v1122
  %v1365 = vpack.c.bf16 %v1125, %v1123
  %v1366 = vpack.c.bf16 %v1128, %v1126
  %v1367 = vpack.c.bf16 %v1129, %v1127
  %v1368 = vpack.c.bf16 %v1132, %v1130
  %v1369 = vpack.c.bf16 %v1133, %v1131
  %v1370 = vpack.c.bf16 %v1136, %v1134
  %v1371 = vpack.c.bf16 %v1137, %v1135
  %v1372 = vpack.c.bf16 %v1140, %v1138
  %v1373 = vpack.c.bf16 %v1141, %v1139
  %v1374 = vpack.c.bf16 %v1144, %v1142
  %v1375 = vpack.c.bf16 %v1145, %v1143
  %v1376 = vpack.c.bf16 %v1148, %v1146
  %v1377 = vpack.c.bf16 %v1149, %v1147
  %v1378 = vpack.c.bf16 %v1152, %v1150
  %v1379 = vpack.c.bf16 %v1153, %v1151
  %v1380 = vpack.c.bf16 %v1156, %v1154
  %v1381 = vpack.c.bf16 %v1157, %v1155
  %v1382 = vpack.c.bf16 %v1160, %v1158
  %v1383 = vpack.c.bf16 %v1161, %v1159
  %v1384 = vpack.c.bf16 %v1164, %v1162
  %v1385 = vpack.c.bf16 %v1165, %v1163
  %v1386 = vpack.c.bf16 %v1168, %v1166
  %v1387 = vpack.c.bf16 %v1169, %v1167
  %v1388 = vpack.c.bf16 %v1172, %v1170
  %v1389 = vpack.c.bf16 %v1173, %v1171
  %v1390 = vpack.c.bf16 %v1176, %v1174
  %v1391 = vpack.c.bf16 %v1177, %v1175
  %v1392 = vpack.c.bf16 %v1180, %v1178
  %v1393 = vpack.c.bf16 %v1181, %v1179
  %v1394 = vpack.c.bf16 %v1184, %v1182
  %v1395 = vpack.c.bf16 %v1185, %v1183
  %v1396 = vpack.c.bf16 %v1188, %v1186
  %v1397 = vpack.c.bf16 %v1189, %v1187
  %v1398 = vpack.c.bf16 %v1192, %v1190
  %v1399 = vpack.c.bf16 %v1193, %v1191
  %v1400 = vpack.c.bf16 %v1196, %v1194
  %v1401 = vpack.c.bf16 %v1197, %v1195
  %v1402 = vpack.c.bf16 %v1200, %v1198
  %v1403 = vpack.c.bf16 %v1201, %v1199
  %v1404 = vpack.c.bf16 %v1204, %v1202
  %v1405 = vpack.c.bf16 %v1205, %v1203
  %v1406 = vpack.c.bf16 %v1208, %v1206
  %v1407 = vpack.c.bf16 %v1209, %v1207
  %v1408 = vpack.c.bf16 %v1212, %v1210
  %v1409 = vpack.c.bf16 %v1213, %v1211
  %v1410 = vpack.c.bf16 %v1216, %v1214
  %v1411 = vpack.c.bf16 %v1217, %v1215
  %v1412 = vpack.c.bf16 %v1220, %v1218
  %v1413 = vpack.c.bf16 %v1221, %v1219
  %v1414 = vpack.c.bf16 %v1224, %v1222
  %v1415 = vpack.c.bf16 %v1225, %v1223
  %v1416 = vpack.c.bf16 %v1228, %v1226
  %v1417 = vpack.c.bf16 %v1229, %v1227
  %v1418 = vpack.c.bf16 %v1232, %v1230
  %v1419 = vpack.c.bf16 %v1233, %v1231
  %v1420 = vpack.c.bf16 %v1236, %v1234
  %v1421 = vpack.c.bf16 %v1237, %v1235
  %v1422 = vpack.c.bf16 %v1240, %v1238
  %v1423 = vpack.c.bf16 %v1241, %v1239
  %v1424 = vpack.c.bf16 %v1244, %v1242
  %v1425 = vpack.c.bf16 %v1245, %v1243
  %v1426 = vpack.c.bf16 %v1248, %v1246
  %v1427 = vpack.c.bf16 %v1249, %v1247
  %v1428 = vpack.c.bf16 %v1252, %v1250
  %v1429 = vpack.c.bf16 %v1253, %v1251
  %v1430 = vpack.c.bf16 %v1256, %v1254
  %v1431 = vpack.c.bf16 %v1257, %v1255
  %v1432 = vpack.c.bf16 %v1260, %v1258
  %v1433 = vpack.c.bf16 %v1261, %v1259
  %v1434 = vpack.c.bf16 %v1264, %v1262
  %v1435 = vpack.c.bf16 %v1265, %v1263
  %v1436 = vpack.c.bf16 %v1268, %v1266
  %v1437 = vpack.c.bf16 %v1269, %v1267
  %v1438 = vpack.c.bf16 %v1272, %v1270
  %v1439 = vpack.c.bf16 %v1273, %v1271
  %v1440 = vpack.c.bf16 %v1276, %v1274
  %v1441 = vpack.c.bf16 %v1277, %v1275
  %v1442 = vpack.c.bf16 %v1280, %v1278
  %v1443 = vpack.c.bf16 %v1281, %v1279
  %v1444 = vpack.c.bf16 %v1284, %v1282
  %v1445 = vpack.c.bf16 %v1285, %v1283
  %v1446 = vpack.c.bf16 %v1288, %v1286
  %v1447 = vpack.c.bf16 %v1289, %v1287
  %v1448 = vpack.c.bf16 %v1292, %v1290
  %v1449 = vpack.c.bf16 %v1293, %v1291
  %v1450 = vpack.c.bf16 %v1296, %v1294
  %v1451 = vpack.c.bf16 %v1297, %v1295
  %v1452 = vpack.c.bf16 %v1300, %v1298
  %v1453 = vpack.c.bf16 %v1301, %v1299
  %v1454 = vpack.c.bf16 %v1304, %v1302
  %v1455 = vpack.c.bf16 %v1305, %v1303
  %v1456 = vpack.c.bf16 %v1308, %v1306
  %v1457 = vpack.c.bf16 %v1309, %v1307
  %v1458 = vpack.c.bf16 %v1312, %v1310
  %v1459 = vpack.c.bf16 %v1313, %v1311
  %v1460 = vpack.c.bf16 %v1316, %v1314
  %v1461 = vpack.c.bf16 %v1317, %v1315
  %v1462 = vpack.c.bf16 %v1318, %v1318
  %v1463 = vpack.c.bf16 %v1319, %v1319
  %v1464 = vld [vmem:[%s3] sm:$0xf]
  %v1465 = vld [vmem:[%s3 + $0x4] sm:$0xf]
  %v1466 = vld [vmem:[%s3 + $0x8] sm:$0xf]
  %v1467 = vld [vmem:[%s3 + $0xc] sm:$0xf]
  %v1468 = vld [vmem:[%s3 + $0x10] sm:$0xf]
  %v1469 = vld [vmem:[%s3 + $0x14] sm:$0xf]
  %v1470 = vld [vmem:[%s3 + $0x18] sm:$0xf]
  %v1471 = vld [vmem:[%s3 + $0x1c] sm:$0xf]
  %v1472 = vld [vmem:[%s3 + $0x20] sm:$0xf]
  %v1473 = vld [vmem:[%s3 + $0x24] sm:$0xf]
  %v1474 = vld [vmem:[%s3 + $0x28] sm:$0xf]
  %v1475 = vld [vmem:[%s3 + $0x2c] sm:$0xf]
  %v1476 = vld [vmem:[%s3 + $0x30] sm:$0xf]
  %v1477 = vld [vmem:[%s3 + $0x34] sm:$0xf]
  %v1478 = vld [vmem:[%s3 + $0x38] sm:$0xf]
  %v1479 = vld [vmem:[%s3 + $0x3c] sm:$0xf]
  %v1480 = vld [vmem:[%s3 + $0x40] sm:$0xf]
  %v1481 = vld [vmem:[%s3 + $0x44] sm:$0xf]
  %v1482 = vld [vmem:[%s4] sm:$0x1]
  %v1484 = vperm.slane %v1482, 0
  %v1504 = vunpack.c.l.b16 %v1464
  %v1505 = vunpack.c.l.b16 %v1465
  %v1506 = vunpack.c.l.b16 %v1466
  %v1507 = vunpack.c.l.b16 %v1467
  %v1508 = vunpack.c.l.b16 %v1468
  %v1509 = vunpack.c.l.b16 %v1469
  %v1510 = vunpack.c.l.b16 %v1470
  %v1511 = vunpack.c.l.b16 %v1471
  %v1512 = vunpack.c.l.b16 %v1472
  %v1513 = vunpack.c.l.b16 %v1473
  %v1514 = vunpack.c.l.b16 %v1474
  %v1515 = vunpack.c.l.b16 %v1475
  %v1516 = vunpack.c.l.b16 %v1476
  %v1517 = vunpack.c.l.b16 %v1477
  %v1518 = vunpack.c.l.b16 %v1478
  %v1519 = vunpack.c.l.b16 %v1479
  %v1520 = vunpack.c.l.b16 %v1480
  %v1521 = vunpack.c.l.b16 %v1481
  %v1522 = vpack.c.b16 %v1505, %v1504
  %v1523 = vpack.c.b16 %v1507, %v1506
  %v1524 = vpack.c.b16 %v1509, %v1508
  %v1525 = vpack.c.b16 %v1511, %v1510
  %v1526 = vpack.c.b16 %v1513, %v1512
  %v1527 = vpack.c.b16 %v1515, %v1514
  %v1528 = vpack.c.b16 %v1517, %v1516
  %v1529 = vpack.c.b16 %v1519, %v1518
  %v1530 = vpack.c.b16 %v1521, %v1520
  %vm1540 = vcmask 130048
  %v1542 = vsel %vm1540, %v1321, 0
  %v1545 = vsel %vm1540, %v1323, 0
  %v1548 = vsel %vm1540, %v1325, 0
  %v1551 = vsel %vm1540, %v1327, 0
  %v1554 = vsel %vm1540, %v1329, 0
  %v1557 = vsel %vm1540, %v1331, 0
  %v1560 = vsel %vm1540, %v1333, 0
  %v1563 = vsel %vm1540, %v1335, 0
  %v1566 = vsel %vm1540, %v1337, 0
  %v1569 = vsel %vm1540, %v1339, 0
  %v1572 = vsel %vm1540, %v1341, 0
  %v1575 = vsel %vm1540, %v1343, 0
  %v1578 = vsel %vm1540, %v1345, 0
  %v1581 = vsel %vm1540, %v1347, 0
  %v1584 = vsel %vm1540, %v1349, 0
  %v1587 = vsel %vm1540, %v1351, 0
  %v1590 = vsel %vm1540, %v1353, 0
  %v1593 = vsel %vm1540, %v1355, 0
  %v1596 = vsel %vm1540, %v1357, 0
  %v1599 = vsel %vm1540, %v1359, 0
  %v1602 = vsel %vm1540, %v1361, 0
  %v1605 = vsel %vm1540, %v1363, 0
  %v1608 = vsel %vm1540, %v1365, 0
  %v1611 = vsel %vm1540, %v1367, 0
  %v1614 = vsel %vm1540, %v1369, 0
  %v1617 = vsel %vm1540, %v1371, 0
  %v1620 = vsel %vm1540, %v1373, 0
  %v1623 = vsel %vm1540, %v1375, 0
  %v1626 = vsel %vm1540, %v1377, 0
  %v1629 = vsel %vm1540, %v1379, 0
  %v1632 = vsel %vm1540, %v1381, 0
  %v1635 = vsel %vm1540, %v1383, 0
  %v1638 = vsel %vm1540, %v1385, 0
  %v1641 = vsel %vm1540, %v1387, 0
  %v1644 = vsel %vm1540, %v1389, 0
  %v1647 = vsel %vm1540, %v1391, 0
  %v1650 = vsel %vm1540, %v1393, 0
  %v1653 = vsel %vm1540, %v1395, 0
  %v1656 = vsel %vm1540, %v1397, 0
  %v1659 = vsel %vm1540, %v1399, 0
  %v1662 = vsel %vm1540, %v1401, 0
  %v1665 = vsel %vm1540, %v1403, 0
  %v1668 = vsel %vm1540, %v1405, 0
  %v1671 = vsel %vm1540, %v1407, 0
  %v1674 = vsel %vm1540, %v1409, 0
  %v1677 = vsel %vm1540, %v1411, 0
  %v1680 = vsel %vm1540, %v1413, 0
  %v1683 = vsel %vm1540, %v1415, 0
  %v1686 = vsel %vm1540, %v1417, 0
  %v1689 = vsel %vm1540, %v1419, 0
  %v1692 = vsel %vm1540, %v1421, 0
  %v1695 = vsel %vm1540, %v1423, 0
  %v1698 = vsel %vm1540, %v1425, 0
  %v1701 = vsel %vm1540, %v1427, 0
  %v1704 = vsel %vm1540, %v1429, 0
  %v1707 = vsel %vm1540, %v1431, 0
  %v1710 = vsel %vm1540, %v1433, 0
  %v1713 = vsel %vm1540, %v1435, 0
  %v1716 = vsel %vm1540, %v1437, 0
  %v1719 = vsel %vm1540, %v1439, 0
  %v1722 = vsel %vm1540, %v1441, 0
  %v1725 = vsel %vm1540, %v1443, 0
  %v1728 = vsel %vm1540, %v1445, 0
  %v1731 = vsel %vm1540, %v1447, 0
  %v1734 = vsel %vm1540, %v1449, 0
  %v1737 = vsel %vm1540, %v1451, 0
  %v1740 = vsel %vm1540, %v1453, 0
  %v1743 = vsel %vm1540, %v1455, 0
  %v1746 = vsel %vm1540, %v1457, 0
  %v1749 = vsel %vm1540, %v1459, 0
  %v1752 = vsel %vm1540, %v1461, 0
  %v1755 = vsel %vm1540, %v1463, 0
  %1757 = vmatpush.bf16.msra.mxu0 %v1529
  %1758 = vmatpush.bf16.msra.mxu0 %v1528
  %1759 = vmatpush.bf16.msra.mxu0 %v1527
  %1760 = vmatpush.bf16.msra.mxu0 %v1526
  %1761 = vmatpush.bf16.msra.mxu0 %v1525
  %1762 = vmatpush.bf16.msra.mxu0 %v1524
  %1763 = vmatpush.bf16.msra.mxu0 %v1523
  %1764 = vmatpush.bf16.msra.mxu0 %v1522
  %1765 = vmatmul.bf16.gmra.mxu0 %v1320
  %v1766 = vpop.f32.mrf.mxu0
  %v1767 = vadd.f32 %v1484, %v1766
  %v1768 = vpop.f32.mrf.mxu0
  %v1769 = vadd.f32 %v1484, %v1768
  %1770 = vmatmul.bf16.gmra.mxu0 %v1322
  %v1771 = vpop.f32.mrf.mxu0
  %v1772 = vadd.f32 %v1484, %v1771
  %v1773 = vpop.f32.mrf.mxu0
  %v1774 = vadd.f32 %v1484, %v1773
  %1775 = vmatmul.bf16.gmra.mxu0 %v1324
  %v1776 = vpop.f32.mrf.mxu0
  %v1777 = vadd.f32 %v1484, %v1776
  %v1778 = vpop.f32.mrf.mxu0
  %v1779 = vadd.f32 %v1484, %v1778
  %1780 = vmatmul.bf16.gmra.mxu0 %v1326
  %v1781 = vpop.f32.mrf.mxu0
  %v1782 = vadd.f32 %v1484, %v1781
  %v1783 = vpop.f32.mrf.mxu0
  %v1784 = vadd.f32 %v1484, %v1783
  %1785 = vmatmul.bf16.gmra.mxu0 %v1328
  %v1786 = vpop.f32.mrf.mxu0
  %v1787 = vadd.f32 %v1484, %v1786
  %v1788 = vpop.f32.mrf.mxu0
  %v1789 = vadd.f32 %v1484, %v1788
  %1790 = vmatmul.bf16.gmra.mxu0 %v1330
  %v1791 = vpop.f32.mrf.mxu0
  %v1792 = vadd.f32 %v1484, %v1791
  %v1793 = vpop.f32.mrf.mxu0
  %v1794 = vadd.f32 %v1484, %v1793
  %1795 = vmatmul.bf16.gmra.mxu0 %v1332
  %v1796 = vpop.f32.mrf.mxu0
  %v1797 = vadd.f32 %v1484, %v1796
  %v1798 = vpop.f32.mrf.mxu0
  %v1799 = vadd.f32 %v1484, %v1798
  %1800 = vmatmul.bf16.gmra.mxu0 %v1334
  %v1801 = vpop.f32.mrf.mxu0
  %v1802 = vadd.f32 %v1484, %v1801
  %v1803 = vpop.f32.mrf.mxu0
  %v1804 = vadd.f32 %v1484, %v1803
  %1805 = vmatmul.bf16.gmra.mxu0 %v1336
  %v1806 = vpop.f32.mrf.mxu0
  %v1807 = vadd.f32 %v1484, %v1806
  %v1808 = vpop.f32.mrf.mxu0
  %v1809 = vadd.f32 %v1484, %v1808
  %1810 = vmatmul.bf16.gmra.mxu0 %v1338
  %v1811 = vpop.f32.mrf.mxu0
  %v1812 = vadd.f32 %v1484, %v1811
  %v1813 = vpop.f32.mrf.mxu0
  %v1814 = vadd.f32 %v1484, %v1813
  %1815 = vmatmul.bf16.gmra.mxu0 %v1340
  %v1816 = vpop.f32.mrf.mxu0
  %v1817 = vadd.f32 %v1484, %v1816
  %v1818 = vpop.f32.mrf.mxu0
  %v1819 = vadd.f32 %v1484, %v1818
  %1820 = vmatmul.bf16.gmra.mxu0 %v1342
  %v1821 = vpop.f32.mrf.mxu0
  %v1822 = vadd.f32 %v1484, %v1821
  %v1823 = vpop.f32.mrf.mxu0
  %v1824 = vadd.f32 %v1484, %v1823
  %1825 = vmatmul.bf16.gmra.mxu0 %v1344
  %v1826 = vpop.f32.mrf.mxu0
  %v1827 = vadd.f32 %v1484, %v1826
  %v1828 = vpop.f32.mrf.mxu0
  %v1829 = vadd.f32 %v1484, %v1828
  %1830 = vmatmul.bf16.gmra.mxu0 %v1346
  %v1831 = vpop.f32.mrf.mxu0
  %v1832 = vadd.f32 %v1484, %v1831
  %v1833 = vpop.f32.mrf.mxu0
  %v1834 = vadd.f32 %v1484, %v1833
  %1835 = vmatmul.bf16.gmra.mxu0 %v1348
  %v1836 = vpop.f32.mrf.mxu0
  %v1837 = vadd.f32 %v1484, %v1836
  %v1838 = vpop.f32.mrf.mxu0
  %v1839 = vadd.f32 %v1484, %v1838
  %1840 = vmatmul.bf16.gmra.mxu0 %v1350
  %v1841 = vpop.f32.mrf.mxu0
  %v1842 = vadd.f32 %v1484, %v1841
  %v1843 = vpop.f32.mrf.mxu0
  %v1844 = vadd.f32 %v1484, %v1843
  %1845 = vmatmul.bf16.gmra.mxu0 %v1352
  %v1846 = vpop.f32.mrf.mxu0
  %v1847 = vadd.f32 %v1484, %v1846
  %v1848 = vpop.f32.mrf.mxu0
  %v1849 = vadd.f32 %v1484, %v1848
  %1850 = vmatmul.bf16.gmra.mxu0 %v1354
  %v1851 = vpop.f32.mrf.mxu0
  %v1852 = vadd.f32 %v1484, %v1851
  %v1853 = vpop.f32.mrf.mxu0
  %v1854 = vadd.f32 %v1484, %v1853
  %1855 = vmatmul.bf16.gmra.mxu0 %v1356
  %v1856 = vpop.f32.mrf.mxu0
  %v1857 = vadd.f32 %v1484, %v1856
  %v1858 = vpop.f32.mrf.mxu0
  %v1859 = vadd.f32 %v1484, %v1858
  %1860 = vmatmul.bf16.gmra.mxu0 %v1358
  %v1861 = vpop.f32.mrf.mxu0
  %v1862 = vadd.f32 %v1484, %v1861
  %v1863 = vpop.f32.mrf.mxu0
  %v1864 = vadd.f32 %v1484, %v1863
  %1865 = vmatmul.bf16.gmra.mxu0 %v1360
  %v1866 = vpop.f32.mrf.mxu0
  %v1867 = vadd.f32 %v1484, %v1866
  %v1868 = vpop.f32.mrf.mxu0
  %v1869 = vadd.f32 %v1484, %v1868
  %1870 = vmatmul.bf16.gmra.mxu0 %v1362
  %v1871 = vpop.f32.mrf.mxu0
  %v1872 = vadd.f32 %v1484, %v1871
  %v1873 = vpop.f32.mrf.mxu0
  %v1874 = vadd.f32 %v1484, %v1873
  %1875 = vmatmul.bf16.gmra.mxu0 %v1364
  %v1876 = vpop.f32.mrf.mxu0
  %v1877 = vadd.f32 %v1484, %v1876
  %v1878 = vpop.f32.mrf.mxu0
  %v1879 = vadd.f32 %v1484, %v1878
  %1880 = vmatmul.bf16.gmra.mxu0 %v1366
  %v1881 = vpop.f32.mrf.mxu0
  %v1882 = vadd.f32 %v1484, %v1881
  %v1883 = vpop.f32.mrf.mxu0
  %v1884 = vadd.f32 %v1484, %v1883
  %1885 = vmatmul.bf16.gmra.mxu0 %v1368
  %v1886 = vpop.f32.mrf.mxu0
  %v1887 = vadd.f32 %v1484, %v1886
  %v1888 = vpop.f32.mrf.mxu0
  %v1889 = vadd.f32 %v1484, %v1888
  %1890 = vmatmul.bf16.gmra.mxu0 %v1370
  %v1891 = vpop.f32.mrf.mxu0
  %v1892 = vadd.f32 %v1484, %v1891
  %v1893 = vpop.f32.mrf.mxu0
  %v1894 = vadd.f32 %v1484, %v1893
  %1895 = vmatmul.bf16.gmra.mxu0 %v1372
  %v1896 = vpop.f32.mrf.mxu0
  %v1897 = vadd.f32 %v1484, %v1896
  %v1898 = vpop.f32.mrf.mxu0
  %v1899 = vadd.f32 %v1484, %v1898
  %1900 = vmatmul.bf16.gmra.mxu0 %v1374
  %v1901 = vpop.f32.mrf.mxu0
  %v1902 = vadd.f32 %v1484, %v1901
  %v1903 = vpop.f32.mrf.mxu0
  %v1904 = vadd.f32 %v1484, %v1903
  %1905 = vmatmul.bf16.gmra.mxu0 %v1376
  %v1906 = vpop.f32.mrf.mxu0
  %v1907 = vadd.f32 %v1484, %v1906
  %v1908 = vpop.f32.mrf.mxu0
  %v1909 = vadd.f32 %v1484, %v1908
  %1910 = vmatmul.bf16.gmra.mxu0 %v1378
  %v1911 = vpop.f32.mrf.mxu0
  %v1912 = vadd.f32 %v1484, %v1911
  %v1913 = vpop.f32.mrf.mxu0
  %v1914 = vadd.f32 %v1484, %v1913
  %1915 = vmatmul.bf16.gmra.mxu0 %v1380
  %v1916 = vpop.f32.mrf.mxu0
  %v1917 = vadd.f32 %v1484, %v1916
  %v1918 = vpop.f32.mrf.mxu0
  %v1919 = vadd.f32 %v1484, %v1918
  %1920 = vmatmul.bf16.gmra.mxu0 %v1382
  %v1921 = vpop.f32.mrf.mxu0
  %v1922 = vadd.f32 %v1484, %v1921
  %v1923 = vpop.f32.mrf.mxu0
  %v1924 = vadd.f32 %v1484, %v1923
  %1925 = vmatmul.bf16.gmra.mxu0 %v1384
  %v1926 = vpop.f32.mrf.mxu0
  %v1927 = vadd.f32 %v1484, %v1926
  %v1928 = vpop.f32.mrf.mxu0
  %v1929 = vadd.f32 %v1484, %v1928
  %1930 = vmatmul.bf16.gmra.mxu0 %v1386
  %v1931 = vpop.f32.mrf.mxu0
  %v1932 = vadd.f32 %v1484, %v1931
  %v1933 = vpop.f32.mrf.mxu0
  %v1934 = vadd.f32 %v1484, %v1933
  %1935 = vmatmul.bf16.gmra.mxu0 %v1388
  %v1936 = vpop.f32.mrf.mxu0
  %v1937 = vadd.f32 %v1484, %v1936
  %v1938 = vpop.f32.mrf.mxu0
  %v1939 = vadd.f32 %v1484, %v1938
  %1940 = vmatmul.bf16.gmra.mxu0 %v1390
  %v1941 = vpop.f32.mrf.mxu0
  %v1942 = vadd.f32 %v1484, %v1941
  %v1943 = vpop.f32.mrf.mxu0
  %v1944 = vadd.f32 %v1484, %v1943
  %1945 = vmatmul.bf16.gmra.mxu0 %v1392
  %v1946 = vpop.f32.mrf.mxu0
  %v1947 = vadd.f32 %v1484, %v1946
  %v1948 = vpop.f32.mrf.mxu0
  %v1949 = vadd.f32 %v1484, %v1948
  %1950 = vmatmul.bf16.gmra.mxu0 %v1394
  %v1951 = vpop.f32.mrf.mxu0
  %v1952 = vadd.f32 %v1484, %v1951
  %v1953 = vpop.f32.mrf.mxu0
  %v1954 = vadd.f32 %v1484, %v1953
  %1955 = vmatmul.bf16.gmra.mxu0 %v1396
  %v1956 = vpop.f32.mrf.mxu0
  %v1957 = vadd.f32 %v1484, %v1956
  %v1958 = vpop.f32.mrf.mxu0
  %v1959 = vadd.f32 %v1484, %v1958
  %1960 = vmatmul.bf16.gmra.mxu0 %v1398
  %v1961 = vpop.f32.mrf.mxu0
  %v1962 = vadd.f32 %v1484, %v1961
  %v1963 = vpop.f32.mrf.mxu0
  %v1964 = vadd.f32 %v1484, %v1963
  %1965 = vmatmul.bf16.gmra.mxu0 %v1400
  %v1966 = vpop.f32.mrf.mxu0
  %v1967 = vadd.f32 %v1484, %v1966
  %v1968 = vpop.f32.mrf.mxu0
  %v1969 = vadd.f32 %v1484, %v1968
  %1970 = vmatmul.bf16.gmra.mxu0 %v1402
  %v1971 = vpop.f32.mrf.mxu0
  %v1972 = vadd.f32 %v1484, %v1971
  %v1973 = vpop.f32.mrf.mxu0
  %v1974 = vadd.f32 %v1484, %v1973
  %1975 = vmatmul.bf16.gmra.mxu0 %v1404
  %v1976 = vpop.f32.mrf.mxu0
  %v1977 = vadd.f32 %v1484, %v1976
  %v1978 = vpop.f32.mrf.mxu0
  %v1979 = vadd.f32 %v1484, %v1978
  %1980 = vmatmul.bf16.gmra.mxu0 %v1406
  %v1981 = vpop.f32.mrf.mxu0
  %v1982 = vadd.f32 %v1484, %v1981
  %v1983 = vpop.f32.mrf.mxu0
  %v1984 = vadd.f32 %v1484, %v1983
  %1985 = vmatmul.bf16.gmra.mxu0 %v1408
  %v1986 = vpop.f32.mrf.mxu0
  %v1987 = vadd.f32 %v1484, %v1986
  %v1988 = vpop.f32.mrf.mxu0
  %v1989 = vadd.f32 %v1484, %v1988
  %1990 = vmatmul.bf16.gmra.mxu0 %v1410
  %v1991 = vpop.f32.mrf.mxu0
  %v1992 = vadd.f32 %v1484, %v1991
  %v1993 = vpop.f32.mrf.mxu0
  %v1994 = vadd.f32 %v1484, %v1993
  %1995 = vmatmul.bf16.gmra.mxu0 %v1412
  %v1996 = vpop.f32.mrf.mxu0
  %v1997 = vadd.f32 %v1484, %v1996
  %v1998 = vpop.f32.mrf.mxu0
  %v1999 = vadd.f32 %v1484, %v1998
  %2000 = vmatmul.bf16.gmra.mxu0 %v1414
  %v2001 = vpop.f32.mrf.mxu0
  %v2002 = vadd.f32 %v1484, %v2001
  %v2003 = vpop.f32.mrf.mxu0
  %v2004 = vadd.f32 %v1484, %v2003
  %2005 = vmatmul.bf16.gmra.mxu0 %v1416
  %v2006 = vpop.f32.mrf.mxu0
  %v2007 = vadd.f32 %v1484, %v2006
  %v2008 = vpop.f32.mrf.mxu0
  %v2009 = vadd.f32 %v1484, %v2008
  %2010 = vmatmul.bf16.gmra.mxu0 %v1418
  %v2011 = vpop.f32.mrf.mxu0
  %v2012 = vadd.f32 %v1484, %v2011
  %v2013 = vpop.f32.mrf.mxu0
  %v2014 = vadd.f32 %v1484, %v2013
  %2015 = vmatmul.bf16.gmra.mxu0 %v1420
  %v2016 = vpop.f32.mrf.mxu0
  %v2017 = vadd.f32 %v1484, %v2016
  %v2018 = vpop.f32.mrf.mxu0
  %v2019 = vadd.f32 %v1484, %v2018
  %2020 = vmatmul.bf16.gmra.mxu0 %v1422
  %v2021 = vpop.f32.mrf.mxu0
  %v2022 = vadd.f32 %v1484, %v2021
  %v2023 = vpop.f32.mrf.mxu0
  %v2024 = vadd.f32 %v1484, %v2023
  %2025 = vmatmul.bf16.gmra.mxu0 %v1424
  %v2026 = vpop.f32.mrf.mxu0
  %v2027 = vadd.f32 %v1484, %v2026
  %v2028 = vpop.f32.mrf.mxu0
  %v2029 = vadd.f32 %v1484, %v2028
  %2030 = vmatmul.bf16.gmra.mxu0 %v1426
  %v2031 = vpop.f32.mrf.mxu0
  %v2032 = vadd.f32 %v1484, %v2031
  %v2033 = vpop.f32.mrf.mxu0
  %v2034 = vadd.f32 %v1484, %v2033
  %2035 = vmatmul.bf16.gmra.mxu0 %v1428
  %v2036 = vpop.f32.mrf.mxu0
  %v2037 = vadd.f32 %v1484, %v2036
  %v2038 = vpop.f32.mrf.mxu0
  %v2039 = vadd.f32 %v1484, %v2038
  %2040 = vmatmul.bf16.gmra.mxu0 %v1430
  %v2041 = vpop.f32.mrf.mxu0
  %v2042 = vadd.f32 %v1484, %v2041
  %v2043 = vpop.f32.mrf.mxu0
  %v2044 = vadd.f32 %v1484, %v2043
  %2045 = vmatmul.bf16.gmra.mxu0 %v1432
  %v2046 = vpop.f32.mrf.mxu0
  %v2047 = vadd.f32 %v1484, %v2046
  %v2048 = vpop.f32.mrf.mxu0
  %v2049 = vadd.f32 %v1484, %v2048
  %2050 = vmatmul.bf16.gmra.mxu0 %v1434
  %v2051 = vpop.f32.mrf.mxu0
  %v2052 = vadd.f32 %v1484, %v2051
  %v2053 = vpop.f32.mrf.mxu0
  %v2054 = vadd.f32 %v1484, %v2053
  %2055 = vmatmul.bf16.gmra.mxu0 %v1436
  %v2056 = vpop.f32.mrf.mxu0
  %v2057 = vadd.f32 %v1484, %v2056
  %v2058 = vpop.f32.mrf.mxu0
  %v2059 = vadd.f32 %v1484, %v2058
  %2060 = vmatmul.bf16.gmra.mxu0 %v1438
  %v2061 = vpop.f32.mrf.mxu0
  %v2062 = vadd.f32 %v1484, %v2061
  %v2063 = vpop.f32.mrf.mxu0
  %v2064 = vadd.f32 %v1484, %v2063
  %2065 = vmatmul.bf16.gmra.mxu0 %v1440
  %v2066 = vpop.f32.mrf.mxu0
  %v2067 = vadd.f32 %v1484, %v2066
  %v2068 = vpop.f32.mrf.mxu0
  %v2069 = vadd.f32 %v1484, %v2068
  %2070 = vmatmul.bf16.gmra.mxu0 %v1442
  %v2071 = vpop.f32.mrf.mxu0
  %v2072 = vadd.f32 %v1484, %v2071
  %v2073 = vpop.f32.mrf.mxu0
  %v2074 = vadd.f32 %v1484, %v2073
  %2075 = vmatmul.bf16.gmra.mxu0 %v1444
  %v2076 = vpop.f32.mrf.mxu0
  %v2077 = vadd.f32 %v1484, %v2076
  %v2078 = vpop.f32.mrf.mxu0
  %v2079 = vadd.f32 %v1484, %v2078
  %2080 = vmatmul.bf16.gmra.mxu0 %v1446
  %v2081 = vpop.f32.mrf.mxu0
  %v2082 = vadd.f32 %v1484, %v2081
  %v2083 = vpop.f32.mrf.mxu0
  %v2084 = vadd.f32 %v1484, %v2083
  %2085 = vmatmul.bf16.gmra.mxu0 %v1448
  %v2086 = vpop.f32.mrf.mxu0
  %v2087 = vadd.f32 %v1484, %v2086
  %v2088 = vpop.f32.mrf.mxu0
  %v2089 = vadd.f32 %v1484, %v2088
  %2090 = vmatmul.bf16.gmra.mxu0 %v1450
  %v2091 = vpop.f32.mrf.mxu0
  %v2092 = vadd.f32 %v1484, %v2091
  %v2093 = vpop.f32.mrf.mxu0
  %v2094 = vadd.f32 %v1484, %v2093
  %2095 = vmatmul.bf16.gmra.mxu0 %v1452
  %v2096 = vpop.f32.mrf.mxu0
  %v2097 = vadd.f32 %v1484, %v2096
  %v2098 = vpop.f32.mrf.mxu0
  %v2099 = vadd.f32 %v1484, %v2098
  %2100 = vmatmul.bf16.gmra.mxu0 %v1454
  %v2101 = vpop.f32.mrf.mxu0
  %v2102 = vadd.f32 %v1484, %v2101
  %v2103 = vpop.f32.mrf.mxu0
  %v2104 = vadd.f32 %v1484, %v2103
  %2105 = vmatmul.bf16.gmra.mxu0 %v1456
  %v2106 = vpop.f32.mrf.mxu0
  %v2107 = vadd.f32 %v1484, %v2106
  %v2108 = vpop.f32.mrf.mxu0
  %v2109 = vadd.f32 %v1484, %v2108
  %2110 = vmatmul.bf16.gmra.mxu0 %v1458
  %v2111 = vpop.f32.mrf.mxu0
  %v2112 = vadd.f32 %v1484, %v2111
  %v2113 = vpop.f32.mrf.mxu0
  %v2114 = vadd.f32 %v1484, %v2113
  %2115 = vmatmul.bf16.gmra.mxu0 %v1460
  %v2116 = vpop.f32.mrf.mxu0
  %v2117 = vadd.f32 %v1484, %v2116
  %v2118 = vpop.f32.mrf.mxu0
  %v2119 = vadd.f32 %v1484, %v2118
  %2120 = vmatmul.bf16.gmra.mxu0 %v1462
  %v2121 = vpop.f32.mrf.mxu0
  %v2122 = vadd.f32 %v1484, %v2121
  %v2123 = vpop.f32.mrf.mxu0
  %2124 = vdwg.mxu0
  %2125 = vmatpush.bf16.msra.mxu0 0
  %2126 = vmatpush.bf16.msra.mxu0 0
  %2127 = vmatpush.bf16.msra.mxu0 0
  %2128 = vmatpush.bf16.msra.mxu0 0
  %2129 = vmatpush.bf16.msra.mxu0 0
  %2130 = vmatpush.bf16.msra.mxu0 0
  %2131 = vmatpush.bf16.msra.mxu0 0
  %2132 = vmatpush.bf16.msra.mxu0 %v1530
  %2133 = vmatmul.bf16.gmra.mxu0 %v1542
  %v2134 = vpop.f32.mrf.mxu0
  %v2135 = vadd.f32 %v1767, %v2134
  %v2136 = vpop.f32.mrf.mxu0
  %v2137 = vadd.f32 %v1769, %v2136
  %2138 = vmatmul.bf16.gmra.mxu0 %v1545
  %v2139 = vpop.f32.mrf.mxu0
  %v2140 = vadd.f32 %v1772, %v2139
  %v2141 = vpop.f32.mrf.mxu0
  %v2142 = vadd.f32 %v1774, %v2141
  %2143 = vmatmul.bf16.gmra.mxu0 %v1548
  %v2144 = vpop.f32.mrf.mxu0
  %v2145 = vadd.f32 %v1777, %v2144
  %v2146 = vpop.f32.mrf.mxu0
  %v2147 = vadd.f32 %v1779, %v2146
  %2148 = vmatmul.bf16.gmra.mxu0 %v1551
  %v2149 = vpop.f32.mrf.mxu0
  %v2150 = vadd.f32 %v1782, %v2149
  %v2151 = vpop.f32.mrf.mxu0
  %v2152 = vadd.f32 %v1784, %v2151
  %2153 = vmatmul.bf16.gmra.mxu0 %v1554
  %v2154 = vpop.f32.mrf.mxu0
  %v2155 = vadd.f32 %v1787, %v2154
  %v2156 = vpop.f32.mrf.mxu0
  %v2157 = vadd.f32 %v1789, %v2156
  %2158 = vmatmul.bf16.gmra.mxu0 %v1557
  %v2159 = vpop.f32.mrf.mxu0
  %v2160 = vadd.f32 %v1792, %v2159
  %v2161 = vpop.f32.mrf.mxu0
  %v2162 = vadd.f32 %v1794, %v2161
  %2163 = vmatmul.bf16.gmra.mxu0 %v1560
  %v2164 = vpop.f32.mrf.mxu0
  %v2165 = vadd.f32 %v1797, %v2164
  %v2166 = vpop.f32.mrf.mxu0
  %v2167 = vadd.f32 %v1799, %v2166
  %2168 = vmatmul.bf16.gmra.mxu0 %v1563
  %v2169 = vpop.f32.mrf.mxu0
  %v2170 = vadd.f32 %v1802, %v2169
  %v2171 = vpop.f32.mrf.mxu0
  %v2172 = vadd.f32 %v1804, %v2171
  %2173 = vmatmul.bf16.gmra.mxu0 %v1566
  %v2174 = vpop.f32.mrf.mxu0
  %v2175 = vadd.f32 %v1807, %v2174
  %v2176 = vpop.f32.mrf.mxu0
  %v2177 = vadd.f32 %v1809, %v2176
  %2178 = vmatmul.bf16.gmra.mxu0 %v1569
  %v2179 = vpop.f32.mrf.mxu0
  %v2180 = vadd.f32 %v1812, %v2179
  %v2181 = vpop.f32.mrf.mxu0
  %v2182 = vadd.f32 %v1814, %v2181
  %2183 = vmatmul.bf16.gmra.mxu0 %v1572
  %v2184 = vpop.f32.mrf.mxu0
  %v2185 = vadd.f32 %v1817, %v2184
  %v2186 = vpop.f32.mrf.mxu0
  %v2187 = vadd.f32 %v1819, %v2186
  %2188 = vmatmul.bf16.gmra.mxu0 %v1575
  %v2189 = vpop.f32.mrf.mxu0
  %v2190 = vadd.f32 %v1822, %v2189
  %v2191 = vpop.f32.mrf.mxu0
  %v2192 = vadd.f32 %v1824, %v2191
  %2193 = vmatmul.bf16.gmra.mxu0 %v1578
  %v2194 = vpop.f32.mrf.mxu0
  %v2195 = vadd.f32 %v1827, %v2194
  %v2196 = vpop.f32.mrf.mxu0
  %v2197 = vadd.f32 %v1829, %v2196
  %2198 = vmatmul.bf16.gmra.mxu0 %v1581
  %v2199 = vpop.f32.mrf.mxu0
  %v2200 = vadd.f32 %v1832, %v2199
  %v2201 = vpop.f32.mrf.mxu0
  %v2202 = vadd.f32 %v1834, %v2201
  %2203 = vmatmul.bf16.gmra.mxu0 %v1584
  %v2204 = vpop.f32.mrf.mxu0
  %v2205 = vadd.f32 %v1837, %v2204
  %v2206 = vpop.f32.mrf.mxu0
  %v2207 = vadd.f32 %v1839, %v2206
  %2208 = vmatmul.bf16.gmra.mxu0 %v1587
  %v2209 = vpop.f32.mrf.mxu0
  %v2210 = vadd.f32 %v1842, %v2209
  %v2211 = vpop.f32.mrf.mxu0
  %v2212 = vadd.f32 %v1844, %v2211
  %2213 = vmatmul.bf16.gmra.mxu0 %v1590
  %v2214 = vpop.f32.mrf.mxu0
  %v2215 = vadd.f32 %v1847, %v2214
  %v2216 = vpop.f32.mrf.mxu0
  %v2217 = vadd.f32 %v1849, %v2216
  %2218 = vmatmul.bf16.gmra.mxu0 %v1593
  %v2219 = vpop.f32.mrf.mxu0
  %v2220 = vadd.f32 %v1852, %v2219
  %v2221 = vpop.f32.mrf.mxu0
  %v2222 = vadd.f32 %v1854, %v2221
  %2223 = vmatmul.bf16.gmra.mxu0 %v1596
  %v2224 = vpop.f32.mrf.mxu0
  %v2225 = vadd.f32 %v1857, %v2224
  %v2226 = vpop.f32.mrf.mxu0
  %v2227 = vadd.f32 %v1859, %v2226
  %2228 = vmatmul.bf16.gmra.mxu0 %v1599
  %v2229 = vpop.f32.mrf.mxu0
  %v2230 = vadd.f32 %v1862, %v2229
  %v2231 = vpop.f32.mrf.mxu0
  %v2232 = vadd.f32 %v1864, %v2231
  %2233 = vmatmul.bf16.gmra.mxu0 %v1602
  %v2234 = vpop.f32.mrf.mxu0
  %v2235 = vadd.f32 %v1867, %v2234
  %v2236 = vpop.f32.mrf.mxu0
  %v2237 = vadd.f32 %v1869, %v2236
  %2238 = vmatmul.bf16.gmra.mxu0 %v1605
  %v2239 = vpop.f32.mrf.mxu0
  %v2240 = vadd.f32 %v1872, %v2239
  %v2241 = vpop.f32.mrf.mxu0
  %v2242 = vadd.f32 %v1874, %v2241
  %2243 = vmatmul.bf16.gmra.mxu0 %v1608
  %v2244 = vpop.f32.mrf.mxu0
  %v2245 = vadd.f32 %v1877, %v2244
  %v2246 = vpop.f32.mrf.mxu0
  %v2247 = vadd.f32 %v1879, %v2246
  %2248 = vmatmul.bf16.gmra.mxu0 %v1611
  %v2249 = vpop.f32.mrf.mxu0
  %v2250 = vadd.f32 %v1882, %v2249
  %v2251 = vpop.f32.mrf.mxu0
  %v2252 = vadd.f32 %v1884, %v2251
  %2253 = vmatmul.bf16.gmra.mxu0 %v1614
  %v2254 = vpop.f32.mrf.mxu0
  %v2255 = vadd.f32 %v1887, %v2254
  %v2256 = vpop.f32.mrf.mxu0
  %v2257 = vadd.f32 %v1889, %v2256
  %2258 = vmatmul.bf16.gmra.mxu0 %v1617
  %v2259 = vpop.f32.mrf.mxu0
  %v2260 = vadd.f32 %v1892, %v2259
  %v2261 = vpop.f32.mrf.mxu0
  %v2262 = vadd.f32 %v1894, %v2261
  %2263 = vmatmul.bf16.gmra.mxu0 %v1620
  %v2264 = vpop.f32.mrf.mxu0
  %v2265 = vadd.f32 %v1897, %v2264
  %v2266 = vpop.f32.mrf.mxu0
  %v2267 = vadd.f32 %v1899, %v2266
  %2268 = vmatmul.bf16.gmra.mxu0 %v1623
  %v2269 = vpop.f32.mrf.mxu0
  %v2270 = vadd.f32 %v1902, %v2269
  %v2271 = vpop.f32.mrf.mxu0
  %v2272 = vadd.f32 %v1904, %v2271
  %2273 = vmatmul.bf16.gmra.mxu0 %v1626
  %v2274 = vpop.f32.mrf.mxu0
  %v2275 = vadd.f32 %v1907, %v2274
  %v2276 = vpop.f32.mrf.mxu0
  %v2277 = vadd.f32 %v1909, %v2276
  %2278 = vmatmul.bf16.gmra.mxu0 %v1629
  %v2279 = vpop.f32.mrf.mxu0
  %v2280 = vadd.f32 %v1912, %v2279
  %v2281 = vpop.f32.mrf.mxu0
  %v2282 = vadd.f32 %v1914, %v2281
  %2283 = vmatmul.bf16.gmra.mxu0 %v1632
  %v2284 = vpop.f32.mrf.mxu0
  %v2285 = vadd.f32 %v1917, %v2284
  %v2286 = vpop.f32.mrf.mxu0
  %v2287 = vadd.f32 %v1919, %v2286
  %2288 = vmatmul.bf16.gmra.mxu0 %v1635
  %v2289 = vpop.f32.mrf.mxu0
  %v2290 = vadd.f32 %v1922, %v2289
  %v2291 = vpop.f32.mrf.mxu0
  %v2292 = vadd.f32 %v1924, %v2291
  %2293 = vmatmul.bf16.gmra.mxu0 %v1638
  %v2294 = vpop.f32.mrf.mxu0
  %v2295 = vadd.f32 %v1927, %v2294
  %v2296 = vpop.f32.mrf.mxu0
  %v2297 = vadd.f32 %v1929, %v2296
  %2298 = vmatmul.bf16.gmra.mxu0 %v1641
  %v2299 = vpop.f32.mrf.mxu0
  %v2300 = vadd.f32 %v1932, %v2299
  %v2301 = vpop.f32.mrf.mxu0
  %v2302 = vadd.f32 %v1934, %v2301
  %2303 = vmatmul.bf16.gmra.mxu0 %v1644
  %v2304 = vpop.f32.mrf.mxu0
  %v2305 = vadd.f32 %v1937, %v2304
  %v2306 = vpop.f32.mrf.mxu0
  %v2307 = vadd.f32 %v1939, %v2306
  %2308 = vmatmul.bf16.gmra.mxu0 %v1647
  %v2309 = vpop.f32.mrf.mxu0
  %v2310 = vadd.f32 %v1942, %v2309
  %v2311 = vpop.f32.mrf.mxu0
  %v2312 = vadd.f32 %v1944, %v2311
  %2313 = vmatmul.bf16.gmra.mxu0 %v1650
  %v2314 = vpop.f32.mrf.mxu0
  %v2315 = vadd.f32 %v1947, %v2314
  %v2316 = vpop.f32.mrf.mxu0
  %v2317 = vadd.f32 %v1949, %v2316
  %2318 = vmatmul.bf16.gmra.mxu0 %v1653
  %v2319 = vpop.f32.mrf.mxu0
  %v2320 = vadd.f32 %v1952, %v2319
  %v2321 = vpop.f32.mrf.mxu0
  %v2322 = vadd.f32 %v1954, %v2321
  %2323 = vmatmul.bf16.gmra.mxu0 %v1656
  %v2324 = vpop.f32.mrf.mxu0
  %v2325 = vadd.f32 %v1957, %v2324
  %v2326 = vpop.f32.mrf.mxu0
  %v2327 = vadd.f32 %v1959, %v2326
  %2328 = vmatmul.bf16.gmra.mxu0 %v1659
  %v2329 = vpop.f32.mrf.mxu0
  %v2330 = vadd.f32 %v1962, %v2329
  %v2331 = vpop.f32.mrf.mxu0
  %v2332 = vadd.f32 %v1964, %v2331
  %2333 = vmatmul.bf16.gmra.mxu0 %v1662
  %v2334 = vpop.f32.mrf.mxu0
  %v2335 = vadd.f32 %v1967, %v2334
  %v2336 = vpop.f32.mrf.mxu0
  %v2337 = vadd.f32 %v1969, %v2336
  %2338 = vmatmul.bf16.gmra.mxu0 %v1665
  %v2339 = vpop.f32.mrf.mxu0
  %v2340 = vadd.f32 %v1972, %v2339
  %v2341 = vpop.f32.mrf.mxu0
  %v2342 = vadd.f32 %v1974, %v2341
  %2343 = vmatmul.bf16.gmra.mxu0 %v1668
  %v2344 = vpop.f32.mrf.mxu0
  %v2345 = vadd.f32 %v1977, %v2344
  %v2346 = vpop.f32.mrf.mxu0
  %v2347 = vadd.f32 %v1979, %v2346
  %2348 = vmatmul.bf16.gmra.mxu0 %v1671
  %v2349 = vpop.f32.mrf.mxu0
  %v2350 = vadd.f32 %v1982, %v2349
  %v2351 = vpop.f32.mrf.mxu0
  %v2352 = vadd.f32 %v1984, %v2351
  %2353 = vmatmul.bf16.gmra.mxu0 %v1674
  %v2354 = vpop.f32.mrf.mxu0
  %v2355 = vadd.f32 %v1987, %v2354
  %v2356 = vpop.f32.mrf.mxu0
  %v2357 = vadd.f32 %v1989, %v2356
  %2358 = vmatmul.bf16.gmra.mxu0 %v1677
  %v2359 = vpop.f32.mrf.mxu0
  %v2360 = vadd.f32 %v1992, %v2359
  %v2361 = vpop.f32.mrf.mxu0
  %v2362 = vadd.f32 %v1994, %v2361
  %2363 = vmatmul.bf16.gmra.mxu0 %v1680
  %v2364 = vpop.f32.mrf.mxu0
  %v2365 = vadd.f32 %v1997, %v2364
  %v2366 = vpop.f32.mrf.mxu0
  %v2367 = vadd.f32 %v1999, %v2366
  %2368 = vmatmul.bf16.gmra.mxu0 %v1683
  %v2369 = vpop.f32.mrf.mxu0
  %v2370 = vadd.f32 %v2002, %v2369
  %v2371 = vpop.f32.mrf.mxu0
  %v2372 = vadd.f32 %v2004, %v2371
  %2373 = vmatmul.bf16.gmra.mxu0 %v1686
  %v2374 = vpop.f32.mrf.mxu0
  %v2375 = vadd.f32 %v2007, %v2374
  %v2376 = vpop.f32.mrf.mxu0
  %v2377 = vadd.f32 %v2009, %v2376
  %2378 = vmatmul.bf16.gmra.mxu0 %v1689
  %v2379 = vpop.f32.mrf.mxu0
  %v2380 = vadd.f32 %v2012, %v2379
  %v2381 = vpop.f32.mrf.mxu0
  %v2382 = vadd.f32 %v2014, %v2381
  %2383 = vmatmul.bf16.gmra.mxu0 %v1692
  %v2384 = vpop.f32.mrf.mxu0
  %v2385 = vadd.f32 %v2017, %v2384
  %v2386 = vpop.f32.mrf.mxu0
  %v2387 = vadd.f32 %v2019, %v2386
  %2388 = vmatmul.bf16.gmra.mxu0 %v1695
  %v2389 = vpop.f32.mrf.mxu0
  %v2390 = vadd.f32 %v2022, %v2389
  %v2391 = vpop.f32.mrf.mxu0
  %v2392 = vadd.f32 %v2024, %v2391
  %2393 = vmatmul.bf16.gmra.mxu0 %v1698
  %v2394 = vpop.f32.mrf.mxu0
  %v2395 = vadd.f32 %v2027, %v2394
  %v2396 = vpop.f32.mrf.mxu0
  %v2397 = vadd.f32 %v2029, %v2396
  %2398 = vmatmul.bf16.gmra.mxu0 %v1701
  %v2399 = vpop.f32.mrf.mxu0
  %v2400 = vadd.f32 %v2032, %v2399
  %v2401 = vpop.f32.mrf.mxu0
  %v2402 = vadd.f32 %v2034, %v2401
  %2403 = vmatmul.bf16.gmra.mxu0 %v1704
  %v2404 = vpop.f32.mrf.mxu0
  %v2405 = vadd.f32 %v2037, %v2404
  %v2406 = vpop.f32.mrf.mxu0
  %v2407 = vadd.f32 %v2039, %v2406
  %2408 = vmatmul.bf16.gmra.mxu0 %v1707
  %v2409 = vpop.f32.mrf.mxu0
  %v2410 = vadd.f32 %v2042, %v2409
  %v2411 = vpop.f32.mrf.mxu0
  %v2412 = vadd.f32 %v2044, %v2411
  %2413 = vmatmul.bf16.gmra.mxu0 %v1710
  %v2414 = vpop.f32.mrf.mxu0
  %v2415 = vadd.f32 %v2047, %v2414
  %v2416 = vpop.f32.mrf.mxu0
  %v2417 = vadd.f32 %v2049, %v2416
  %2418 = vmatmul.bf16.gmra.mxu0 %v1713
  %v2419 = vpop.f32.mrf.mxu0
  %v2420 = vadd.f32 %v2052, %v2419
  %v2421 = vpop.f32.mrf.mxu0
  %v2422 = vadd.f32 %v2054, %v2421
  %2423 = vmatmul.bf16.gmra.mxu0 %v1716
  %v2424 = vpop.f32.mrf.mxu0
  %v2425 = vadd.f32 %v2057, %v2424
  %v2426 = vpop.f32.mrf.mxu0
  %v2427 = vadd.f32 %v2059, %v2426
  %2428 = vmatmul.bf16.gmra.mxu0 %v1719
  %v2429 = vpop.f32.mrf.mxu0
  %v2430 = vadd.f32 %v2062, %v2429
  %v2431 = vpop.f32.mrf.mxu0
  %v2432 = vadd.f32 %v2064, %v2431
  %2433 = vmatmul.bf16.gmra.mxu0 %v1722
  %v2434 = vpop.f32.mrf.mxu0
  %v2435 = vadd.f32 %v2067, %v2434
  %v2436 = vpop.f32.mrf.mxu0
  %v2437 = vadd.f32 %v2069, %v2436
  %2438 = vmatmul.bf16.gmra.mxu0 %v1725
  %v2439 = vpop.f32.mrf.mxu0
  %v2440 = vadd.f32 %v2072, %v2439
  %v2441 = vpop.f32.mrf.mxu0
  %v2442 = vadd.f32 %v2074, %v2441
  %2443 = vmatmul.bf16.gmra.mxu0 %v1728
  %v2444 = vpop.f32.mrf.mxu0
  %v2445 = vadd.f32 %v2077, %v2444
  %v2446 = vpop.f32.mrf.mxu0
  %v2447 = vadd.f32 %v2079, %v2446
  %2448 = vmatmul.bf16.gmra.mxu0 %v1731
  %v2449 = vpop.f32.mrf.mxu0
  %v2450 = vadd.f32 %v2082, %v2449
  %v2451 = vpop.f32.mrf.mxu0
  %v2452 = vadd.f32 %v2084, %v2451
  %2453 = vmatmul.bf16.gmra.mxu0 %v1734
  %v2454 = vpop.f32.mrf.mxu0
  %v2455 = vadd.f32 %v2087, %v2454
  %v2456 = vpop.f32.mrf.mxu0
  %v2457 = vadd.f32 %v2089, %v2456
  %2458 = vmatmul.bf16.gmra.mxu0 %v1737
  %v2459 = vpop.f32.mrf.mxu0
  %v2460 = vadd.f32 %v2092, %v2459
  %v2461 = vpop.f32.mrf.mxu0
  %v2462 = vadd.f32 %v2094, %v2461
  %2463 = vmatmul.bf16.gmra.mxu0 %v1740
  %v2464 = vpop.f32.mrf.mxu0
  %v2465 = vadd.f32 %v2097, %v2464
  %v2466 = vpop.f32.mrf.mxu0
  %v2467 = vadd.f32 %v2099, %v2466
  %2468 = vmatmul.bf16.gmra.mxu0 %v1743
  %v2469 = vpop.f32.mrf.mxu0
  %v2470 = vadd.f32 %v2102, %v2469
  %v2471 = vpop.f32.mrf.mxu0
  %v2472 = vadd.f32 %v2104, %v2471
  %2473 = vmatmul.bf16.gmra.mxu0 %v1746
  %v2474 = vpop.f32.mrf.mxu0
  %v2475 = vadd.f32 %v2107, %v2474
  %v2476 = vpop.f32.mrf.mxu0
  %v2477 = vadd.f32 %v2109, %v2476
  %2478 = vmatmul.bf16.gmra.mxu0 %v1749
  %v2479 = vpop.f32.mrf.mxu0
  %v2480 = vadd.f32 %v2112, %v2479
  %v2481 = vpop.f32.mrf.mxu0
  %v2482 = vadd.f32 %v2114, %v2481
  %2483 = vmatmul.bf16.gmra.mxu0 %v1752
  %v2484 = vpop.f32.mrf.mxu0
  %v2485 = vadd.f32 %v2117, %v2484
  %v2486 = vpop.f32.mrf.mxu0
  %v2487 = vadd.f32 %v2119, %v2486
  %2488 = vmatmul.bf16.gmra.mxu0 %v1755
  %v2489 = vpop.f32.mrf.mxu0
  %v2490 = vadd.f32 %v2122, %v2489
  %v2491 = vpop.f32.mrf.mxu0
  %2492 = vdwg.mxu0
  %v2493 = vmax.f32 %v2135, 0.0
  %v2494 = vmax.f32 %v2137, 0.0
  %v2495 = vmax.f32 %v2140, 0.0
  %v2496 = vmax.f32 %v2142, 0.0
  %v2497 = vmax.f32 %v2145, 0.0
  %v2498 = vmax.f32 %v2147, 0.0
  %v2499 = vmax.f32 %v2150, 0.0
  %v2500 = vmax.f32 %v2152, 0.0
  %v2501 = vmax.f32 %v2155, 0.0
  %v2502 = vmax.f32 %v2157, 0.0
  %v2503 = vmax.f32 %v2160, 0.0
  %v2504 = vmax.f32 %v2162, 0.0
  %v2505 = vmax.f32 %v2165, 0.0
  %v2506 = vmax.f32 %v2167, 0.0
  %v2507 = vmax.f32 %v2170, 0.0
  %v2508 = vmax.f32 %v2172, 0.0
  %v2509 = vmax.f32 %v2175, 0.0
  %v2510 = vmax.f32 %v2177, 0.0
  %v2511 = vmax.f32 %v2180, 0.0
  %v2512 = vmax.f32 %v2182, 0.0
  %v2513 = vmax.f32 %v2185, 0.0
  %v2514 = vmax.f32 %v2187, 0.0
  %v2515 = vmax.f32 %v2190, 0.0
  %v2516 = vmax.f32 %v2192, 0.0
  %v2517 = vmax.f32 %v2195, 0.0
  %v2518 = vmax.f32 %v2197, 0.0
  %v2519 = vmax.f32 %v2200, 0.0
  %v2520 = vmax.f32 %v2202, 0.0
  %v2521 = vmax.f32 %v2205, 0.0
  %v2522 = vmax.f32 %v2207, 0.0
  %v2523 = vmax.f32 %v2210, 0.0
  %v2524 = vmax.f32 %v2212, 0.0
  %v2525 = vmax.f32 %v2215, 0.0
  %v2526 = vmax.f32 %v2217, 0.0
  %v2527 = vmax.f32 %v2220, 0.0
  %v2528 = vmax.f32 %v2222, 0.0
  %v2529 = vmax.f32 %v2225, 0.0
  %v2530 = vmax.f32 %v2227, 0.0
  %v2531 = vmax.f32 %v2230, 0.0
  %v2532 = vmax.f32 %v2232, 0.0
  %v2533 = vmax.f32 %v2235, 0.0
  %v2534 = vmax.f32 %v2237, 0.0
  %v2535 = vmax.f32 %v2240, 0.0
  %v2536 = vmax.f32 %v2242, 0.0
  %v2537 = vmax.f32 %v2245, 0.0
  %v2538 = vmax.f32 %v2247, 0.0
  %v2539 = vmax.f32 %v2250, 0.0
  %v2540 = vmax.f32 %v2252, 0.0
  %v2541 = vmax.f32 %v2255, 0.0
  %v2542 = vmax.f32 %v2257, 0.0
  %v2543 = vmax.f32 %v2260, 0.0
  %v2544 = vmax.f32 %v2262, 0.0
  %v2545 = vmax.f32 %v2265, 0.0
  %v2546 = vmax.f32 %v2267, 0.0
  %v2547 = vmax.f32 %v2270, 0.0
  %v2548 = vmax.f32 %v2272, 0.0
  %v2549 = vmax.f32 %v2275, 0.0
  %v2550 = vmax.f32 %v2277, 0.0
  %v2551 = vmax.f32 %v2280, 0.0
  %v2552 = vmax.f32 %v2282, 0.0
  %v2553 = vmax.f32 %v2285, 0.0
  %v2554 = vmax.f32 %v2287, 0.0
  %v2555 = vmax.f32 %v2290, 0.0
  %v2556 = vmax.f32 %v2292, 0.0
  %v2557 = vmax.f32 %v2295, 0.0
  %v2558 = vmax.f32 %v2297, 0.0
  %v2559 = vmax.f32 %v2300, 0.0
  %v2560 = vmax.f32 %v2302, 0.0
  %v2561 = vmax.f32 %v2305, 0.0
  %v2562 = vmax.f32 %v2307, 0.0
  %v2563 = vmax.f32 %v2310, 0.0
  %v2564 = vmax.f32 %v2312, 0.0
  %v2565 = vmax.f32 %v2315, 0.0
  %v2566 = vmax.f32 %v2317, 0.0
  %v2567 = vmax.f32 %v2320, 0.0
  %v2568 = vmax.f32 %v2322, 0.0
  %v2569 = vmax.f32 %v2325, 0.0
  %v2570 = vmax.f32 %v2327, 0.0
  %v2571 = vmax.f32 %v2330, 0.0
  %v2572 = vmax.f32 %v2332, 0.0
  %v2573 = vmax.f32 %v2335, 0.0
  %v2574 = vmax.f32 %v2337, 0.0
  %v2575 = vmax.f32 %v2340, 0.0
  %v2576 = vmax.f32 %v2342, 0.0
  %v2577 = vmax.f32 %v2345, 0.0
  %v2578 = vmax.f32 %v2347, 0.0
  %v2579 = vmax.f32 %v2350, 0.0
  %v2580 = vmax.f32 %v2352, 0.0
  %v2581 = vmax.f32 %v2355, 0.0
  %v2582 = vmax.f32 %v2357, 0.0
  %v2583 = vmax.f32 %v2360, 0.0
  %v2584 = vmax.f32 %v2362, 0.0
  %v2585 = vmax.f32 %v2365, 0.0
  %v2586 = vmax.f32 %v2367, 0.0
  %v2587 = vmax.f32 %v2370, 0.0
  %v2588 = vmax.f32 %v2372, 0.0
  %v2589 = vmax.f32 %v2375, 0.0
  %v2590 = vmax.f32 %v2377, 0.0
  %v2591 = vmax.f32 %v2380, 0.0
  %v2592 = vmax.f32 %v2382, 0.0
  %v2593 = vmax.f32 %v2385, 0.0
  %v2594 = vmax.f32 %v2387, 0.0
  %v2595 = vmax.f32 %v2390, 0.0
  %v2596 = vmax.f32 %v2392, 0.0
  %v2597 = vmax.f32 %v2395, 0.0
  %v2598 = vmax.f32 %v2397, 0.0
  %v2599 = vmax.f32 %v2400, 0.0
  %v2600 = vmax.f32 %v2402, 0.0
  %v2601 = vmax.f32 %v2405, 0.0
  %v2602 = vmax.f32 %v2407, 0.0
  %v2603 = vmax.f32 %v2410, 0.0
  %v2604 = vmax.f32 %v2412, 0.0
  %v2605 = vmax.f32 %v2415, 0.0
  %v2606 = vmax.f32 %v2417, 0.0
  %v2607 = vmax.f32 %v2420, 0.0
  %v2608 = vmax.f32 %v2422, 0.0
  %v2609 = vmax.f32 %v2425, 0.0
  %v2610 = vmax.f32 %v2427, 0.0
  %v2611 = vmax.f32 %v2430, 0.0
  %v2612 = vmax.f32 %v2432, 0.0
  %v2613 = vmax.f32 %v2435, 0.0
  %v2614 = vmax.f32 %v2437, 0.0
  %v2615 = vmax.f32 %v2440, 0.0
  %v2616 = vmax.f32 %v2442, 0.0
  %v2617 = vmax.f32 %v2445, 0.0
  %v2618 = vmax.f32 %v2447, 0.0
  %v2619 = vmax.f32 %v2450, 0.0
  %v2620 = vmax.f32 %v2452, 0.0
  %v2621 = vmax.f32 %v2455, 0.0
  %v2622 = vmax.f32 %v2457, 0.0
  %v2623 = vmax.f32 %v2460, 0.0
  %v2624 = vmax.f32 %v2462, 0.0
  %v2625 = vmax.f32 %v2465, 0.0
  %v2626 = vmax.f32 %v2467, 0.0
  %v2627 = vmax.f32 %v2470, 0.0
  %v2628 = vmax.f32 %v2472, 0.0
  %v2629 = vmax.f32 %v2475, 0.0
  %v2630 = vmax.f32 %v2477, 0.0
  %v2631 = vmax.f32 %v2480, 0.0
  %v2632 = vmax.f32 %v2482, 0.0
  %v2633 = vmax.f32 %v2485, 0.0
  %v2634 = vmax.f32 %v2487, 0.0
  %v2635 = vmax.f32 %v2490, 0.0
  %vm2636 = vcmask 261120
  %2637 = vst.msk [vmem:[%s5] sm:$0xff] %vm2636, %v2493
  %2638 = vst.msk [vmem:[%s5 + $0x8] sm:$0xff] %vm2636, %v2494
  %2639 = vst.msk [vmem:[%s5 + $0x10] sm:$0xff] %vm2636, %v2495
  %2640 = vst.msk [vmem:[%s5 + $0x18] sm:$0xff] %vm2636, %v2496
  %2641 = vst.msk [vmem:[%s5 + $0x20] sm:$0xff] %vm2636, %v2497
  %2642 = vst.msk [vmem:[%s5 + $0x28] sm:$0xff] %vm2636, %v2498
  %2643 = vst.msk [vmem:[%s5 + $0x30] sm:$0xff] %vm2636, %v2499
  %2644 = vst.msk [vmem:[%s5 + $0x38] sm:$0xff] %vm2636, %v2500
  %2645 = vst.msk [vmem:[%s5 + $0x40] sm:$0xff] %vm2636, %v2501
  %2646 = vst.msk [vmem:[%s5 + $0x48] sm:$0xff] %vm2636, %v2502
  %2647 = vst.msk [vmem:[%s5 + $0x50] sm:$0xff] %vm2636, %v2503
  %2648 = vst.msk [vmem:[%s5 + $0x58] sm:$0xff] %vm2636, %v2504
  %2649 = vst.msk [vmem:[%s5 + $0x60] sm:$0xff] %vm2636, %v2505
  %2650 = vst.msk [vmem:[%s5 + $0x68] sm:$0xff] %vm2636, %v2506
  %2651 = vst.msk [vmem:[%s5 + $0x70] sm:$0xff] %vm2636, %v2507
  %2652 = vst.msk [vmem:[%s5 + $0x78] sm:$0xff] %vm2636, %v2508
  %2653 = vst.msk [vmem:[%s5 + $0x80] sm:$0xff] %vm2636, %v2509
  %2654 = vst.msk [vmem:[%s5 + $0x88] sm:$0xff] %vm2636, %v2510
  %2655 = vst.msk [vmem:[%s5 + $0x90] sm:$0xff] %vm2636, %v2511
  %2656 = vst.msk [vmem:[%s5 + $0x98] sm:$0xff] %vm2636, %v2512
  %2657 = vst.msk [vmem:[%s5 + $0xa0] sm:$0xff] %vm2636, %v2513
  %2658 = vst.msk [vmem:[%s5 + $0xa8] sm:$0xff] %vm2636, %v2514
  %2659 = vst.msk [vmem:[%s5 + $0xb0] sm:$0xff] %vm2636, %v2515
  %2660 = vst.msk [vmem:[%s5 + $0xb8] sm:$0xff] %vm2636, %v2516
  %2661 = vst.msk [vmem:[%s5 + $0xc0] sm:$0xff] %vm2636, %v2517
  %2662 = vst.msk [vmem:[%s5 + $0xc8] sm:$0xff] %vm2636, %v2518
  %2663 = vst.msk [vmem:[%s5 + $0xd0] sm:$0xff] %vm2636, %v2519
  %2664 = vst.msk [vmem:[%s5 + $0xd8] sm:$0xff] %vm2636, %v2520
  %2665 = vst.msk [vmem:[%s5 + $0xe0] sm:$0xff] %vm2636, %v2521
  %2666 = vst.msk [vmem:[%s5 + $0xe8] sm:$0xff] %vm2636, %v2522
  %2667 = vst.msk [vmem:[%s5 + $0xf0] sm:$0xff] %vm2636, %v2523
  %2668 = vst.msk [vmem:[%s5 + $0xf8] sm:$0xff] %vm2636, %v2524
  %2669 = vst.msk [vmem:[%s5 + $0x100] sm:$0xff] %vm2636, %v2525
  %2670 = vst.msk [vmem:[%s5 + $0x108] sm:$0xff] %vm2636, %v2526
  %2671 = vst.msk [vmem:[%s5 + $0x110] sm:$0xff] %vm2636, %v2527
  %2672 = vst.msk [vmem:[%s5 + $0x118] sm:$0xff] %vm2636, %v2528
  %2673 = vst.msk [vmem:[%s5 + $0x120] sm:$0xff] %vm2636, %v2529
  %2674 = vst.msk [vmem:[%s5 + $0x128] sm:$0xff] %vm2636, %v2530
  %2675 = vst.msk [vmem:[%s5 + $0x130] sm:$0xff] %vm2636, %v2531
  %2676 = vst.msk [vmem:[%s5 + $0x138] sm:$0xff] %vm2636, %v2532
  %2677 = vst.msk [vmem:[%s5 + $0x140] sm:$0xff] %vm2636, %v2533
  %2678 = vst.msk [vmem:[%s5 + $0x148] sm:$0xff] %vm2636, %v2534
  %2679 = vst.msk [vmem:[%s5 + $0x150] sm:$0xff] %vm2636, %v2535
  %2680 = vst.msk [vmem:[%s5 + $0x158] sm:$0xff] %vm2636, %v2536
  %2681 = vst.msk [vmem:[%s5 + $0x160] sm:$0xff] %vm2636, %v2537
  %2682 = vst.msk [vmem:[%s5 + $0x168] sm:$0xff] %vm2636, %v2538
  %2683 = vst.msk [vmem:[%s5 + $0x170] sm:$0xff] %vm2636, %v2539
  %2684 = vst.msk [vmem:[%s5 + $0x178] sm:$0xff] %vm2636, %v2540
  %2685 = vst.msk [vmem:[%s5 + $0x180] sm:$0xff] %vm2636, %v2541
  %2686 = vst.msk [vmem:[%s5 + $0x188] sm:$0xff] %vm2636, %v2542
  %2687 = vst.msk [vmem:[%s5 + $0x190] sm:$0xff] %vm2636, %v2543
  %2688 = vst.msk [vmem:[%s5 + $0x198] sm:$0xff] %vm2636, %v2544
  %2689 = vst.msk [vmem:[%s5 + $0x1a0] sm:$0xff] %vm2636, %v2545
  %2690 = vst.msk [vmem:[%s5 + $0x1a8] sm:$0xff] %vm2636, %v2546
  %2691 = vst.msk [vmem:[%s5 + $0x1b0] sm:$0xff] %vm2636, %v2547
  %2692 = vst.msk [vmem:[%s5 + $0x1b8] sm:$0xff] %vm2636, %v2548
  %2693 = vst.msk [vmem:[%s5 + $0x1c0] sm:$0xff] %vm2636, %v2549
  %2694 = vst.msk [vmem:[%s5 + $0x1c8] sm:$0xff] %vm2636, %v2550
  %2695 = vst.msk [vmem:[%s5 + $0x1d0] sm:$0xff] %vm2636, %v2551
  %2696 = vst.msk [vmem:[%s5 + $0x1d8] sm:$0xff] %vm2636, %v2552
  %2697 = vst.msk [vmem:[%s5 + $0x1e0] sm:$0xff] %vm2636, %v2553
  %2698 = vst.msk [vmem:[%s5 + $0x1e8] sm:$0xff] %vm2636, %v2554
  %2699 = vst.msk [vmem:[%s5 + $0x1f0] sm:$0xff] %vm2636, %v2555
  %2700 = vst.msk [vmem:[%s5 + $0x1f8] sm:$0xff] %vm2636, %v2556
  %2701 = vst.msk [vmem:[%s5 + $0x200] sm:$0xff] %vm2636, %v2557
  %2702 = vst.msk [vmem:[%s5 + $0x208] sm:$0xff] %vm2636, %v2558
  %2703 = vst.msk [vmem:[%s5 + $0x210] sm:$0xff] %vm2636, %v2559
  %2704 = vst.msk [vmem:[%s5 + $0x218] sm:$0xff] %vm2636, %v2560
  %2705 = vst.msk [vmem:[%s5 + $0x220] sm:$0xff] %vm2636, %v2561
  %2706 = vst.msk [vmem:[%s5 + $0x228] sm:$0xff] %vm2636, %v2562
  %2707 = vst.msk [vmem:[%s5 + $0x230] sm:$0xff] %vm2636, %v2563
  %2708 = vst.msk [vmem:[%s5 + $0x238] sm:$0xff] %vm2636, %v2564
  %2709 = vst.msk [vmem:[%s5 + $0x240] sm:$0xff] %vm2636, %v2565
  %2710 = vst.msk [vmem:[%s5 + $0x248] sm:$0xff] %vm2636, %v2566
  %2711 = vst.msk [vmem:[%s5 + $0x250] sm:$0xff] %vm2636, %v2567
  %2712 = vst.msk [vmem:[%s5 + $0x258] sm:$0xff] %vm2636, %v2568
  %2713 = vst.msk [vmem:[%s5 + $0x260] sm:$0xff] %vm2636, %v2569
  %2714 = vst.msk [vmem:[%s5 + $0x268] sm:$0xff] %vm2636, %v2570
  %2715 = vst.msk [vmem:[%s5 + $0x270] sm:$0xff] %vm2636, %v2571
  %2716 = vst.msk [vmem:[%s5 + $0x278] sm:$0xff] %vm2636, %v2572
  %2717 = vst.msk [vmem:[%s5 + $0x280] sm:$0xff] %vm2636, %v2573
  %2718 = vst.msk [vmem:[%s5 + $0x288] sm:$0xff] %vm2636, %v2574
  %2719 = vst.msk [vmem:[%s5 + $0x290] sm:$0xff] %vm2636, %v2575
  %2720 = vst.msk [vmem:[%s5 + $0x298] sm:$0xff] %vm2636, %v2576
  %2721 = vst.msk [vmem:[%s5 + $0x2a0] sm:$0xff] %vm2636, %v2577
  %2722 = vst.msk [vmem:[%s5 + $0x2a8] sm:$0xff] %vm2636, %v2578
  %2723 = vst.msk [vmem:[%s5 + $0x2b0] sm:$0xff] %vm2636, %v2579
  %2724 = vst.msk [vmem:[%s5 + $0x2b8] sm:$0xff] %vm2636, %v2580
  %2725 = vst.msk [vmem:[%s5 + $0x2c0] sm:$0xff] %vm2636, %v2581
  %2726 = vst.msk [vmem:[%s5 + $0x2c8] sm:$0xff] %vm2636, %v2582
  %2727 = vst.msk [vmem:[%s5 + $0x2d0] sm:$0xff] %vm2636, %v2583
  %2728 = vst.msk [vmem:[%s5 + $0x2d8] sm:$0xff] %vm2636, %v2584
  %2729 = vst.msk [vmem:[%s5 + $0x2e0] sm:$0xff] %vm2636, %v2585
  %2730 = vst.msk [vmem:[%s5 + $0x2e8] sm:$0xff] %vm2636, %v2586
  %2731 = vst.msk [vmem:[%s5 + $0x2f0] sm:$0xff] %vm2636, %v2587
  %2732 = vst.msk [vmem:[%s5 + $0x2f8] sm:$0xff] %vm2636, %v2588
  %2733 = vst.msk [vmem:[%s5 + $0x300] sm:$0xff] %vm2636, %v2589
  %2734 = vst.msk [vmem:[%s5 + $0x308] sm:$0xff] %vm2636, %v2590
  %2735 = vst.msk [vmem:[%s5 + $0x310] sm:$0xff] %vm2636, %v2591
  %2736 = vst.msk [vmem:[%s5 + $0x318] sm:$0xff] %vm2636, %v2592
  %2737 = vst.msk [vmem:[%s5 + $0x320] sm:$0xff] %vm2636, %v2593
  %2738 = vst.msk [vmem:[%s5 + $0x328] sm:$0xff] %vm2636, %v2594
  %2739 = vst.msk [vmem:[%s5 + $0x330] sm:$0xff] %vm2636, %v2595
  %2740 = vst.msk [vmem:[%s5 + $0x338] sm:$0xff] %vm2636, %v2596
  %2741 = vst.msk [vmem:[%s5 + $0x340] sm:$0xff] %vm2636, %v2597
  %2742 = vst.msk [vmem:[%s5 + $0x348] sm:$0xff] %vm2636, %v2598
  %2743 = vst.msk [vmem:[%s5 + $0x350] sm:$0xff] %vm2636, %v2599
  %2744 = vst.msk [vmem:[%s5 + $0x358] sm:$0xff] %vm2636, %v2600
  %2745 = vst.msk [vmem:[%s5 + $0x360] sm:$0xff] %vm2636, %v2601
  %2746 = vst.msk [vmem:[%s5 + $0x368] sm:$0xff] %vm2636, %v2602
  %2747 = vst.msk [vmem:[%s5 + $0x370] sm:$0xff] %vm2636, %v2603
  %2748 = vst.msk [vmem:[%s5 + $0x378] sm:$0xff] %vm2636, %v2604
  %2749 = vst.msk [vmem:[%s5 + $0x380] sm:$0xff] %vm2636, %v2605
  %2750 = vst.msk [vmem:[%s5 + $0x388] sm:$0xff] %vm2636, %v2606
  %2751 = vst.msk [vmem:[%s5 + $0x390] sm:$0xff] %vm2636, %v2607
  %2752 = vst.msk [vmem:[%s5 + $0x398] sm:$0xff] %vm2636, %v2608
  %2753 = vst.msk [vmem:[%s5 + $0x3a0] sm:$0xff] %vm2636, %v2609
  %2754 = vst.msk [vmem:[%s5 + $0x3a8] sm:$0xff] %vm2636, %v2610
  %2755 = vst.msk [vmem:[%s5 + $0x3b0] sm:$0xff] %vm2636, %v2611
  %2756 = vst.msk [vmem:[%s5 + $0x3b8] sm:$0xff] %vm2636, %v2612
  %2757 = vst.msk [vmem:[%s5 + $0x3c0] sm:$0xff] %vm2636, %v2613
  %2758 = vst.msk [vmem:[%s5 + $0x3c8] sm:$0xff] %vm2636, %v2614
  %2759 = vst.msk [vmem:[%s5 + $0x3d0] sm:$0xff] %vm2636, %v2615
  %2760 = vst.msk [vmem:[%s5 + $0x3d8] sm:$0xff] %vm2636, %v2616
  %2761 = vst.msk [vmem:[%s5 + $0x3e0] sm:$0xff] %vm2636, %v2617
  %2762 = vst.msk [vmem:[%s5 + $0x3e8] sm:$0xff] %vm2636, %v2618
  %2763 = vst.msk [vmem:[%s5 + $0x3f0] sm:$0xff] %vm2636, %v2619
  %2764 = vst.msk [vmem:[%s5 + $0x3f8] sm:$0xff] %vm2636, %v2620
  %2765 = vst.msk [vmem:[%s5 + $0x400] sm:$0xff] %vm2636, %v2621
  %2766 = vst.msk [vmem:[%s5 + $0x408] sm:$0xff] %vm2636, %v2622
  %2767 = vst.msk [vmem:[%s5 + $0x410] sm:$0xff] %vm2636, %v2623
  %2768 = vst.msk [vmem:[%s5 + $0x418] sm:$0xff] %vm2636, %v2624
  %2769 = vst.msk [vmem:[%s5 + $0x420] sm:$0xff] %vm2636, %v2625
  %2770 = vst.msk [vmem:[%s5 + $0x428] sm:$0xff] %vm2636, %v2626
  %2771 = vst.msk [vmem:[%s5 + $0x430] sm:$0xff] %vm2636, %v2627
  %2772 = vst.msk [vmem:[%s5 + $0x438] sm:$0xff] %vm2636, %v2628
  %2773 = vst.msk [vmem:[%s5 + $0x440] sm:$0xff] %vm2636, %v2629
  %2774 = vst.msk [vmem:[%s5 + $0x448] sm:$0xff] %vm2636, %v2630
  %2775 = vst.msk [vmem:[%s5 + $0x450] sm:$0xff] %vm2636, %v2631
  %2776 = vst.msk [vmem:[%s5 + $0x458] sm:$0xff] %vm2636, %v2632
  %2777 = vst.msk [vmem:[%s5 + $0x460] sm:$0xff] %vm2636, %v2633
  %2778 = vst.msk [vmem:[%s5 + $0x468] sm:$0xff] %vm2636, %v2634
  %2779 = vst.msk [vmem:[%s5 + $0x470] sm:$0xff] %vm2636, %v2635
  // Predicated region
  $region22: #{assault_value_forward.8} parent=0 // pred_check
    _
  $region23: #{assault_value_forward.8} parent=0 // pred_check_branch
    %2781 = sbr.rel (0) target = $region25
  $region24: #{assault_value_forward.8} parent=0 // pred_region
    _
  $region25: #{assault_value_forward.8} parent=0 // pred_fallthru
    _
  // Predicated region
  $region26: #{assault_value_forward.8} parent=0 // pred_check
    _
  $region27: #{assault_value_forward.8} parent=0 // pred_check_branch
    %2783 = sbr.rel (0) target = $region29
  $region28: #{assault_value_forward.8} parent=0 // pred_region
    _
  $region29: #{assault_value_forward.8} parent=0 // pred_fallthru
    _

// kernel: assault_value_forward.9
$region0: #{assault_value_forward.9}
  #allocation0 [shape = 'u32[]', space=smem, size = 0x4, offset = 0x4, fixed_abs, tag = 'smem constant byte address 0x4 - core index']
  #allocation1 [shape = 'u32[72,128]{1,0:T(1,128)}', space=vmem, size = 0x9000, scoped, tag = 'internal scratch']
  %s0 = inlined_call_operand.vmem [shape: bf16[256,288], index: 0, kind: input, shape index: {}]
  %s1 = inlined_call_operand.vmem [shape: bf16[288,32], index: 1, kind: input, shape index: {}]
  %s2 = inlined_call_operand.vmem [shape: f32[1,32], index: 2, kind: input, shape index: {}]
  %s3 = inlined_call_operand.vmem [shape: f32[256,32], index: 3, kind: output, shape index: {}]
  %s4 = sld [smem:[#allocation0]]
  $region22: #{assault_value_forward.9} parent=0
    _
  %s6 = ssub.s32 1, %s4
  %s7 = scalar_select 0, %s6, %s4
  // Predicated region
  $region2: #{assault_value_forward.9} parent=0 // pred_check
    _
  $region3: #{assault_value_forward.9} parent=0 // pred_check_branch
    %9 = sbr.rel (0) target = $region5
  $region4: #{assault_value_forward.9} parent=0 // pred_region
    _
  $region5: #{assault_value_forward.9} parent=0 // pred_fallthru
    _
  // Predicated region
  $region6: #{assault_value_forward.9} parent=0 // pred_check
    _
  $region7: #{assault_value_forward.9} parent=0 // pred_check_branch
    %11 = sbr.rel (0) target = $region9
  $region8: #{assault_value_forward.9} parent=0 // pred_region
    _
  $region9: #{assault_value_forward.9} parent=0 // pred_fallthru
    _
  // Predicated region
  $region10: #{assault_value_forward.9} parent=0 // pred_check
    _
  $region11: #{assault_value_forward.9} parent=0 // pred_check_branch
    %13 = sbr.rel (0) target = $region13
  $region12: #{assault_value_forward.9} parent=0 // pred_region
    _
  $region13: #{assault_value_forward.9} parent=0 // pred_fallthru
    _
  %v15 = vld [vmem:[%s0] sm:$0xff]
  %v16 = vld [vmem:[%s0 + $0x8] sm:$0xf]
  %v17 = vld [vmem:[%s0 + $0xc] sm:$0xff]
  %v18 = vld [vmem:[%s0 + $0x14] sm:$0xf]
  %v19 = vld [vmem:[%s0 + $0x18] sm:$0xff]
  %v20 = vld [vmem:[%s0 + $0x20] sm:$0xf]
  %v21 = vld [vmem:[%s0 + $0x24] sm:$0xff]
  %v22 = vld [vmem:[%s0 + $0x2c] sm:$0xf]
  %v23 = vld [vmem:[%s0 + $0x30] sm:$0xff]
  %v24 = vld [vmem:[%s0 + $0x38] sm:$0xf]
  %v25 = vld [vmem:[%s0 + $0x3c] sm:$0xff]
  %v26 = vld [vmem:[%s0 + $0x44] sm:$0xf]
  %v27 = vld [vmem:[%s0 + $0x48] sm:$0xff]
  %v28 = vld [vmem:[%s0 + $0x50] sm:$0xf]
  %v29 = vld [vmem:[%s0 + $0x54] sm:$0xff]
  %v30 = vld [vmem:[%s0 + $0x5c] sm:$0xf]
  %v31 = vld [vmem:[%s0 + $0x60] sm:$0xff]
  %v32 = vld [vmem:[%s0 + $0x68] sm:$0xf]
  %v33 = vld [vmem:[%s0 + $0x6c] sm:$0xff]
  %v34 = vld [vmem:[%s0 + $0x74] sm:$0xf]
  %v35 = vld [vmem:[%s0 + $0x78] sm:$0xff]
  %v36 = vld [vmem:[%s0 + $0x80] sm:$0xf]
  %v37 = vld [vmem:[%s0 + $0x84] sm:$0xff]
  %v38 = vld [vmem:[%s0 + $0x8c] sm:$0xf]
  %v39 = vld [vmem:[%s0 + $0x90] sm:$0xff]
  %v40 = vld [vmem:[%s0 + $0x98] sm:$0xf]
  %v41 = vld [vmem:[%s0 + $0x9c] sm:$0xff]
  %v42 = vld [vmem:[%s0 + $0xa4] sm:$0xf]
  %v43 = vld [vmem:[%s0 + $0xa8] sm:$0xff]
  %v44 = vld [vmem:[%s0 + $0xb0] sm:$0xf]
  %v45 = vld [vmem:[%s0 + $0xb4] sm:$0xff]
  %v46 = vld [vmem:[%s0 + $0xbc] sm:$0xf]
  %v47 = vld [vmem:[%s0 + $0xc0] sm:$0xff]
  %v48 = vld [vmem:[%s0 + $0xc8] sm:$0xf]
  %v49 = vld [vmem:[%s0 + $0xcc] sm:$0xff]
  %v50 = vld [vmem:[%s0 + $0xd4] sm:$0xf]
  %v51 = vld [vmem:[%s0 + $0xd8] sm:$0xff]
  %v52 = vld [vmem:[%s0 + $0xe0] sm:$0xf]
  %v53 = vld [vmem:[%s0 + $0xe4] sm:$0xff]
  %v54 = vld [vmem:[%s0 + $0xec] sm:$0xf]
  %v55 = vld [vmem:[%s0 + $0xf0] sm:$0xff]
  %v56 = vld [vmem:[%s0 + $0xf8] sm:$0xf]
  %v57 = vld [vmem:[%s0 + $0xfc] sm:$0xff]
  %v58 = vld [vmem:[%s0 + $0x104] sm:$0xf]
  %v59 = vld [vmem:[%s0 + $0x108] sm:$0xff]
  %v60 = vld [vmem:[%s0 + $0x110] sm:$0xf]
  %v61 = vld [vmem:[%s0 + $0x114] sm:$0xff]
  %v62 = vld [vmem:[%s0 + $0x11c] sm:$0xf]
  %v63 = vld [vmem:[%s0 + $0x120] sm:$0xff]
  %v64 = vld [vmem:[%s0 + $0x128] sm:$0xf]
  %v65 = vld [vmem:[%s0 + $0x12c] sm:$0xff]
  %v66 = vld [vmem:[%s0 + $0x134] sm:$0xf]
  %v67 = vld [vmem:[%s0 + $0x138] sm:$0xff]
  %v68 = vld [vmem:[%s0 + $0x140] sm:$0xf]
  %v69 = vld [vmem:[%s0 + $0x144] sm:$0xff]
  %v70 = vld [vmem:[%s0 + $0x14c] sm:$0xf]
  %v71 = vld [vmem:[%s0 + $0x150] sm:$0xff]
  %v72 = vld [vmem:[%s0 + $0x158] sm:$0xf]
  %v73 = vld [vmem:[%s0 + $0x15c] sm:$0xff]
  %v74 = vld [vmem:[%s0 + $0x164] sm:$0xf]
  %v75 = vld [vmem:[%s0 + $0x168] sm:$0xff]
  %v76 = vld [vmem:[%s0 + $0x170] sm:$0xf]
  %v77 = vld [vmem:[%s0 + $0x174] sm:$0xff]
  %v78 = vld [vmem:[%s0 + $0x17c] sm:$0xf]
  %v79 = vld [vmem:[%s1] sm:$0xf]
  %v80 = vld [vmem:[%s1 + $0x4] sm:$0xf]
  %v81 = vld [vmem:[%s1 + $0x8] sm:$0xf]
  %v82 = vld [vmem:[%s1 + $0xc] sm:$0xf]
  %v83 = vld [vmem:[%s1 + $0x10] sm:$0xf]
  %v84 = vld [vmem:[%s1 + $0x14] sm:$0xf]
  %v85 = vld [vmem:[%s1 + $0x18] sm:$0xf]
  %v86 = vld [vmem:[%s1 + $0x1c] sm:$0xf]
  %v87 = vld [vmem:[%s1 + $0x20] sm:$0xf]
  %v88 = vld [vmem:[%s1 + $0x24] sm:$0xf]
  %v89 = vld [vmem:[%s1 + $0x28] sm:$0xf]
  %v90 = vld [vmem:[%s1 + $0x2c] sm:$0xf]
  %v91 = vld [vmem:[%s1 + $0x30] sm:$0xf]
  %v92 = vld [vmem:[%s1 + $0x34] sm:$0xf]
  %v93 = vld [vmem:[%s1 + $0x38] sm:$0xf]
  %v94 = vld [vmem:[%s1 + $0x3c] sm:$0xf]
  %v95 = vld [vmem:[%s1 + $0x40] sm:$0xf]
  %v96 = vld [vmem:[%s1 + $0x44] sm:$0xf]
  %v97 = vld [vmem:[%s1 + $0x48] sm:$0xf]
  %v98 = vld [vmem:[%s1 + $0x4c] sm:$0xf]
  %v99 = vld [vmem:[%s1 + $0x50] sm:$0xf]
  %v100 = vld [vmem:[%s1 + $0x54] sm:$0xf]
  %v101 = vld [vmem:[%s1 + $0x58] sm:$0xf]
  %v102 = vld [vmem:[%s1 + $0x5c] sm:$0xf]
  %v103 = vld [vmem:[%s1 + $0x60] sm:$0xf]
  %v104 = vld [vmem:[%s1 + $0x64] sm:$0xf]
  %v105 = vld [vmem:[%s1 + $0x68] sm:$0xf]
  %v106 = vld [vmem:[%s1 + $0x6c] sm:$0xf]
  %v107 = vld [vmem:[%s1 + $0x70] sm:$0xf]
  %v108 = vld [vmem:[%s1 + $0x74] sm:$0xf]
  %v109 = vld [vmem:[%s1 + $0x78] sm:$0xf]
  %v110 = vld [vmem:[%s1 + $0x7c] sm:$0xf]
  %v111 = vld [vmem:[%s1 + $0x80] sm:$0xf]
  %v112 = vld [vmem:[%s1 + $0x84] sm:$0xf]
  %v113 = vld [vmem:[%s1 + $0x88] sm:$0xf]
  %v114 = vld [vmem:[%s1 + $0x8c] sm:$0xf]
  %v115 = vld [vmem:[%s2] sm:$0x1]
  %v117 = vperm.slane %v115, 0
  %v183 = vunpack.c.l.b16 %v15
  %v184 = vunpack.c.h.b16 %v15
  %v185 = vunpack.c.l.b16 %v16
  %v186 = vunpack.c.l.b16 %v17
  %v187 = vunpack.c.h.b16 %v17
  %v188 = vunpack.c.l.b16 %v18
  %v189 = vunpack.c.l.b16 %v19
  %v190 = vunpack.c.h.b16 %v19
  %v191 = vunpack.c.l.b16 %v20
  %v192 = vunpack.c.l.b16 %v21
  %v193 = vunpack.c.h.b16 %v21
  %v194 = vunpack.c.l.b16 %v22
  %v195 = vunpack.c.l.b16 %v23
  %v196 = vunpack.c.h.b16 %v23
  %v197 = vunpack.c.l.b16 %v24
  %v198 = vunpack.c.l.b16 %v25
  %v199 = vunpack.c.h.b16 %v25
  %v200 = vunpack.c.l.b16 %v26
  %v201 = vunpack.c.l.b16 %v27
  %v202 = vunpack.c.h.b16 %v27
  %v203 = vunpack.c.l.b16 %v28
  %v204 = vunpack.c.l.b16 %v29
  %v205 = vunpack.c.h.b16 %v29
  %v206 = vunpack.c.l.b16 %v30
  %v207 = vunpack.c.l.b16 %v31
  %v208 = vunpack.c.h.b16 %v31
  %v209 = vunpack.c.l.b16 %v32
  %v210 = vunpack.c.l.b16 %v33
  %v211 = vunpack.c.h.b16 %v33
  %v212 = vunpack.c.l.b16 %v34
  %v213 = vunpack.c.l.b16 %v35
  %v214 = vunpack.c.h.b16 %v35
  %v215 = vunpack.c.l.b16 %v36
  %v216 = vunpack.c.l.b16 %v37
  %v217 = vunpack.c.h.b16 %v37
  %v218 = vunpack.c.l.b16 %v38
  %v219 = vunpack.c.l.b16 %v39
  %v220 = vunpack.c.h.b16 %v39
  %v221 = vunpack.c.l.b16 %v40
  %v222 = vunpack.c.l.b16 %v41
  %v223 = vunpack.c.h.b16 %v41
  %v224 = vunpack.c.l.b16 %v42
  %v225 = vunpack.c.l.b16 %v43
  %v226 = vunpack.c.h.b16 %v43
  %v227 = vunpack.c.l.b16 %v44
  %v228 = vunpack.c.l.b16 %v45
  %v229 = vunpack.c.h.b16 %v45
  %v230 = vunpack.c.l.b16 %v46
  %v231 = vunpack.c.l.b16 %v47
  %v232 = vunpack.c.h.b16 %v47
  %v233 = vunpack.c.l.b16 %v48
  %v234 = vunpack.c.l.b16 %v49
  %v235 = vunpack.c.h.b16 %v49
  %v236 = vunpack.c.l.b16 %v50
  %v237 = vunpack.c.l.b16 %v51
  %v238 = vunpack.c.h.b16 %v51
  %v239 = vunpack.c.l.b16 %v52
  %v240 = vunpack.c.l.b16 %v53
  %v241 = vunpack.c.h.b16 %v53
  %v242 = vunpack.c.l.b16 %v54
  %v243 = vunpack.c.l.b16 %v55
  %v244 = vunpack.c.h.b16 %v55
  %v245 = vunpack.c.l.b16 %v56
  %v246 = vunpack.c.l.b16 %v57
  %v247 = vunpack.c.h.b16 %v57
  %v248 = vunpack.c.l.b16 %v58
  %v249 = vunpack.c.l.b16 %v59
  %v250 = vunpack.c.h.b16 %v59
  %v251 = vunpack.c.l.b16 %v60
  %v252 = vunpack.c.l.b16 %v61
  %v253 = vunpack.c.h.b16 %v61
  %v254 = vunpack.c.l.b16 %v62
  %v255 = vunpack.c.l.b16 %v63
  %v256 = vunpack.c.h.b16 %v63
  %v257 = vunpack.c.l.b16 %v64
  %v258 = vunpack.c.l.b16 %v65
  %v259 = vunpack.c.h.b16 %v65
  %v260 = vunpack.c.l.b16 %v66
  %v261 = vunpack.c.l.b16 %v67
  %v262 = vunpack.c.h.b16 %v67
  %v263 = vunpack.c.l.b16 %v68
  %v264 = vunpack.c.l.b16 %v69
  %v265 = vunpack.c.h.b16 %v69
  %v266 = vunpack.c.l.b16 %v70
  %v267 = vunpack.c.l.b16 %v71
  %v268 = vunpack.c.h.b16 %v71
  %v269 = vunpack.c.l.b16 %v72
  %v270 = vunpack.c.l.b16 %v73
  %v271 = vunpack.c.h.b16 %v73
  %v272 = vunpack.c.l.b16 %v74
  %v273 = vunpack.c.l.b16 %v75
  %v274 = vunpack.c.h.b16 %v75
  %v275 = vunpack.c.l.b16 %v76
  %v276 = vunpack.c.l.b16 %v77
  %v277 = vunpack.c.h.b16 %v77
  %v278 = vunpack.c.l.b16 %v78
  %v279 = vpack.c.b16 %v186, %v183
  %v280 = vpack.c.b16 %v187, %v184
  %v281 = vpack.c.b16 %v188, %v185
  %v282 = vpack.c.b16 %v192, %v189
  %v283 = vpack.c.b16 %v193, %v190
  %v284 = vpack.c.b16 %v194, %v191
  %v285 = vpack.c.b16 %v198, %v195
  %v286 = vpack.c.b16 %v199, %v196
  %v287 = vpack.c.b16 %v200, %v197
  %v288 = vpack.c.b16 %v204, %v201
  %v289 = vpack.c.b16 %v205, %v202
  %v290 = vpack.c.b16 %v206, %v203
  %v291 = vpack.c.b16 %v210, %v207
  %v292 = vpack.c.b16 %v211, %v208
  %v293 = vpack.c.b16 %v212, %v209
  %v294 = vpack.c.b16 %v216, %v213
  %v295 = vpack.c.b16 %v217, %v214
  %v296 = vpack.c.b16 %v218, %v215
  %v297 = vpack.c.b16 %v222, %v219
  %v298 = vpack.c.b16 %v223, %v220
  %v299 = vpack.c.b16 %v224, %v221
  %v300 = vpack.c.b16 %v228, %v225
  %v301 = vpack.c.b16 %v229, %v226
  %v302 = vpack.c.b16 %v230, %v227
  %v303 = vpack.c.b16 %v234, %v231
  %v304 = vpack.c.b16 %v235, %v232
  %v305 = vpack.c.b16 %v236, %v233
  %v306 = vpack.c.b16 %v240, %v237
  %v307 = vpack.c.b16 %v241, %v238
  %v308 = vpack.c.b16 %v242, %v239
  %v309 = vpack.c.b16 %v246, %v243
  %v310 = vpack.c.b16 %v247, %v244
  %v311 = vpack.c.b16 %v248, %v245
  %v312 = vpack.c.b16 %v252, %v249
  %v313 = vpack.c.b16 %v253, %v250
  %v314 = vpack.c.b16 %v254, %v251
  %v315 = vpack.c.b16 %v258, %v255
  %v316 = vpack.c.b16 %v259, %v256
  %v317 = vpack.c.b16 %v260, %v257
  %v318 = vpack.c.b16 %v264, %v261
  %v319 = vpack.c.b16 %v265, %v262
  %v320 = vpack.c.b16 %v266, %v263
  %v321 = vpack.c.b16 %v270, %v267
  %v322 = vpack.c.b16 %v271, %v268
  %v323 = vpack.c.b16 %v272, %v269
  %v324 = vpack.c.b16 %v276, %v273
  %v325 = vpack.c.b16 %v277, %v274
  %v326 = vpack.c.b16 %v278, %v275
  %v395 = vunpack.c.l.b16 %v79
  %v396 = vunpack.c.l.b16 %v80
  %v397 = vunpack.c.l.b16 %v81
  %v398 = vunpack.c.l.b16 %v82
  %v399 = vunpack.c.l.b16 %v83
  %v400 = vunpack.c.l.b16 %v84
  %v401 = vunpack.c.l.b16 %v85
  %v402 = vunpack.c.l.b16 %v86
  %v403 = vunpack.c.l.b16 %v87
  %v404 = vunpack.c.l.b16 %v88
  %v405 = vunpack.c.l.b16 %v89
  %v406 = vunpack.c.l.b16 %v90
  %v407 = vunpack.c.l.b16 %v91
  %v408 = vunpack.c.l.b16 %v92
  %v409 = vunpack.c.l.b16 %v93
  %v410 = vunpack.c.l.b16 %v94
  %v411 = vunpack.c.l.b16 %v95
  %v412 = vunpack.c.l.b16 %v96
  %v413 = vunpack.c.l.b16 %v97
  %v414 = vunpack.c.l.b16 %v98
  %v415 = vunpack.c.l.b16 %v99
  %v416 = vunpack.c.l.b16 %v100
  %v417 = vunpack.c.l.b16 %v101
  %v418 = vunpack.c.l.b16 %v102
  %v419 = vunpack.c.l.b16 %v103
  %v420 = vunpack.c.l.b16 %v104
  %v421 = vunpack.c.l.b16 %v105
  %v422 = vunpack.c.l.b16 %v106
  %v423 = vunpack.c.l.b16 %v107
  %v424 = vunpack.c.l.b16 %v108
  %v425 = vunpack.c.l.b16 %v109
  %v426 = vunpack.c.l.b16 %v110
  %v427 = vunpack.c.l.b16 %v111
  %v428 = vunpack.c.l.b16 %v112
  %v429 = vunpack.c.l.b16 %v113
  %v430 = vunpack.c.l.b16 %v114
  %v431 = vpack.c.b16 %v396, %v395
  %v432 = vpack.c.b16 %v398, %v397
  %v433 = vpack.c.b16 %v400, %v399
  %v434 = vpack.c.b16 %v402, %v401
  %v435 = vpack.c.b16 %v404, %v403
  %v436 = vpack.c.b16 %v406, %v405
  %v437 = vpack.c.b16 %v408, %v407
  %v438 = vpack.c.b16 %v410, %v409
  %v439 = vpack.c.b16 %v412, %v411
  %v440 = vpack.c.b16 %v414, %v413
  %v441 = vpack.c.b16 %v416, %v415
  %v442 = vpack.c.b16 %v418, %v417
  %v443 = vpack.c.b16 %v420, %v419
  %v444 = vpack.c.b16 %v422, %v421
  %v445 = vpack.c.b16 %v424, %v423
  %v446 = vpack.c.b16 %v426, %v425
  %v447 = vpack.c.b16 %v428, %v427
  %v448 = vpack.c.b16 %v430, %v429
  %vm467 = vcmask 261120
  %v469 = vsel %vm467, %v281, 0
  %v472 = vsel %vm467, %v284, 0
  %v475 = vsel %vm467, %v287, 0
  %v478 = vsel %vm467, %v290, 0
  %v481 = vsel %vm467, %v293, 0
  %v484 = vsel %vm467, %v296, 0
  %v487 = vsel %vm467, %v299, 0
  %v490 = vsel %vm467, %v302, 0
  %v493 = vsel %vm467, %v305, 0
  %v496 = vsel %vm467, %v308, 0
  %v499 = vsel %vm467, %v311, 0
  %v502 = vsel %vm467, %v314, 0
  %v505 = vsel %vm467, %v317, 0
  %v508 = vsel %vm467, %v320, 0
  %v511 = vsel %vm467, %v323, 0
  %v514 = vsel %vm467, %v326, 0
  %516 = vmatpush.bf16.msra.mxu0 %v438
  %517 = vmatpush.bf16.msra.mxu0 %v437
  %518 = vmatpush.bf16.msra.mxu0 %v436
  %519 = vmatpush.bf16.msra.mxu0 %v435
  %520 = vmatpush.bf16.msra.mxu0 %v434
  %521 = vmatpush.bf16.msra.mxu0 %v433
  %522 = vmatpush.bf16.msra.mxu0 %v432
  %523 = vmatpush.bf16.msra.mxu0 %v431
  %524 = vmatmul.bf16.gmra.mxu0 %v279
  %v525 = vpop.f32.mrf.mxu0
  %v526 = vadd.f32 %v117, %v525
  %v527 = vpop.f32.mrf.mxu0
  %v528 = vadd.f32 %v117, %v527
  %529 = vmatmul.bf16.gmra.mxu0 %v282
  %v530 = vpop.f32.mrf.mxu0
  %v531 = vadd.f32 %v117, %v530
  %v532 = vpop.f32.mrf.mxu0
  %v533 = vadd.f32 %v117, %v532
  %534 = vmatmul.bf16.gmra.mxu0 %v285
  %v535 = vpop.f32.mrf.mxu0
  %v536 = vadd.f32 %v117, %v535
  %v537 = vpop.f32.mrf.mxu0
  %v538 = vadd.f32 %v117, %v537
  %539 = vmatmul.bf16.gmra.mxu0 %v288
  %v540 = vpop.f32.mrf.mxu0
  %v541 = vadd.f32 %v117, %v540
  %v542 = vpop.f32.mrf.mxu0
  %v543 = vadd.f32 %v117, %v542
  %544 = vmatmul.bf16.gmra.mxu0 %v291
  %v545 = vpop.f32.mrf.mxu0
  %v546 = vadd.f32 %v117, %v545
  %v547 = vpop.f32.mrf.mxu0
  %v548 = vadd.f32 %v117, %v547
  %549 = vmatmul.bf16.gmra.mxu0 %v294
  %v550 = vpop.f32.mrf.mxu0
  %v551 = vadd.f32 %v117, %v550
  %v552 = vpop.f32.mrf.mxu0
  %v553 = vadd.f32 %v117, %v552
  %554 = vmatmul.bf16.gmra.mxu0 %v297
  %v555 = vpop.f32.mrf.mxu0
  %v556 = vadd.f32 %v117, %v555
  %v557 = vpop.f32.mrf.mxu0
  %v558 = vadd.f32 %v117, %v557
  %559 = vmatmul.bf16.gmra.mxu0 %v300
  %v560 = vpop.f32.mrf.mxu0
  %v561 = vadd.f32 %v117, %v560
  %v562 = vpop.f32.mrf.mxu0
  %v563 = vadd.f32 %v117, %v562
  %564 = vmatmul.bf16.gmra.mxu0 %v303
  %v565 = vpop.f32.mrf.mxu0
  %v566 = vadd.f32 %v117, %v565
  %v567 = vpop.f32.mrf.mxu0
  %v568 = vadd.f32 %v117, %v567
  %569 = vmatmul.bf16.gmra.mxu0 %v306
  %v570 = vpop.f32.mrf.mxu0
  %v571 = vadd.f32 %v117, %v570
  %v572 = vpop.f32.mrf.mxu0
  %v573 = vadd.f32 %v117, %v572
  %574 = vmatmul.bf16.gmra.mxu0 %v309
  %v575 = vpop.f32.mrf.mxu0
  %v576 = vadd.f32 %v117, %v575
  %v577 = vpop.f32.mrf.mxu0
  %v578 = vadd.f32 %v117, %v577
  %579 = vmatmul.bf16.gmra.mxu0 %v312
  %v580 = vpop.f32.mrf.mxu0
  %v581 = vadd.f32 %v117, %v580
  %v582 = vpop.f32.mrf.mxu0
  %v583 = vadd.f32 %v117, %v582
  %584 = vmatmul.bf16.gmra.mxu0 %v315
  %v585 = vpop.f32.mrf.mxu0
  %v586 = vadd.f32 %v117, %v585
  %v587 = vpop.f32.mrf.mxu0
  %v588 = vadd.f32 %v117, %v587
  %589 = vmatmul.bf16.gmra.mxu0 %v318
  %v590 = vpop.f32.mrf.mxu0
  %v591 = vadd.f32 %v117, %v590
  %v592 = vpop.f32.mrf.mxu0
  %v593 = vadd.f32 %v117, %v592
  %594 = vmatmul.bf16.gmra.mxu0 %v321
  %v595 = vpop.f32.mrf.mxu0
  %v596 = vadd.f32 %v117, %v595
  %v597 = vpop.f32.mrf.mxu0
  %v598 = vadd.f32 %v117, %v597
  %599 = vmatmul.bf16.gmra.mxu0 %v324
  %v600 = vpop.f32.mrf.mxu0
  %v601 = vadd.f32 %v117, %v600
  %v602 = vpop.f32.mrf.mxu0
  %v603 = vadd.f32 %v117, %v602
  %604 = vdwg.mxu0
  %605 = vmatpush.bf16.msra.mxu0 %v446
  %606 = vmatpush.bf16.msra.mxu0 %v445
  %607 = vmatpush.bf16.msra.mxu0 %v444
  %608 = vmatpush.bf16.msra.mxu0 %v443
  %609 = vmatpush.bf16.msra.mxu0 %v442
  %610 = vmatpush.bf16.msra.mxu0 %v441
  %611 = vmatpush.bf16.msra.mxu0 %v440
  %612 = vmatpush.bf16.msra.mxu0 %v439
  %613 = vmatmul.bf16.gmra.mxu0 %v280
  %v614 = vpop.f32.mrf.mxu0
  %v615 = vadd.f32 %v526, %v614
  %v616 = vpop.f32.mrf.mxu0
  %v617 = vadd.f32 %v528, %v616
  %618 = vmatmul.bf16.gmra.mxu0 %v283
  %v619 = vpop.f32.mrf.mxu0
  %v620 = vadd.f32 %v531, %v619
  %v621 = vpop.f32.mrf.mxu0
  %v622 = vadd.f32 %v533, %v621
  %623 = vmatmul.bf16.gmra.mxu0 %v286
  %v624 = vpop.f32.mrf.mxu0
  %v625 = vadd.f32 %v536, %v624
  %v626 = vpop.f32.mrf.mxu0
  %v627 = vadd.f32 %v538, %v626
  %628 = vmatmul.bf16.gmra.mxu0 %v289
  %v629 = vpop.f32.mrf.mxu0
  %v630 = vadd.f32 %v541, %v629
  %v631 = vpop.f32.mrf.mxu0
  %v632 = vadd.f32 %v543, %v631
  %633 = vmatmul.bf16.gmra.mxu0 %v292
  %v634 = vpop.f32.mrf.mxu0
  %v635 = vadd.f32 %v546, %v634
  %v636 = vpop.f32.mrf.mxu0
  %v637 = vadd.f32 %v548, %v636
  %638 = vmatmul.bf16.gmra.mxu0 %v295
  %v639 = vpop.f32.mrf.mxu0
  %v640 = vadd.f32 %v551, %v639
  %v641 = vpop.f32.mrf.mxu0
  %v642 = vadd.f32 %v553, %v641
  %643 = vmatmul.bf16.gmra.mxu0 %v298
  %v644 = vpop.f32.mrf.mxu0
  %v645 = vadd.f32 %v556, %v644
  %v646 = vpop.f32.mrf.mxu0
  %v647 = vadd.f32 %v558, %v646
  %648 = vmatmul.bf16.gmra.mxu0 %v301
  %v649 = vpop.f32.mrf.mxu0
  %v650 = vadd.f32 %v561, %v649
  %v651 = vpop.f32.mrf.mxu0
  %v652 = vadd.f32 %v563, %v651
  %653 = vmatmul.bf16.gmra.mxu0 %v304
  %v654 = vpop.f32.mrf.mxu0
  %v655 = vadd.f32 %v566, %v654
  %v656 = vpop.f32.mrf.mxu0
  %v657 = vadd.f32 %v568, %v656
  %658 = vmatmul.bf16.gmra.mxu0 %v307
  %v659 = vpop.f32.mrf.mxu0
  %v660 = vadd.f32 %v571, %v659
  %v661 = vpop.f32.mrf.mxu0
  %v662 = vadd.f32 %v573, %v661
  %663 = vmatmul.bf16.gmra.mxu0 %v310
  %v664 = vpop.f32.mrf.mxu0
  %v665 = vadd.f32 %v576, %v664
  %v666 = vpop.f32.mrf.mxu0
  %v667 = vadd.f32 %v578, %v666
  %668 = vmatmul.bf16.gmra.mxu0 %v313
  %v669 = vpop.f32.mrf.mxu0
  %v670 = vadd.f32 %v581, %v669
  %v671 = vpop.f32.mrf.mxu0
  %v672 = vadd.f32 %v583, %v671
  %673 = vmatmul.bf16.gmra.mxu0 %v316
  %v674 = vpop.f32.mrf.mxu0
  %v675 = vadd.f32 %v586, %v674
  %v676 = vpop.f32.mrf.mxu0
  %v677 = vadd.f32 %v588, %v676
  %678 = vmatmul.bf16.gmra.mxu0 %v319
  %v679 = vpop.f32.mrf.mxu0
  %v680 = vadd.f32 %v591, %v679
  %v681 = vpop.f32.mrf.mxu0
  %v682 = vadd.f32 %v593, %v681
  %683 = vmatmul.bf16.gmra.mxu0 %v322
  %v684 = vpop.f32.mrf.mxu0
  %v685 = vadd.f32 %v596, %v684
  %v686 = vpop.f32.mrf.mxu0
  %v687 = vadd.f32 %v598, %v686
  %688 = vmatmul.bf16.gmra.mxu0 %v325
  %v689 = vpop.f32.mrf.mxu0
  %v690 = vadd.f32 %v601, %v689
  %v691 = vpop.f32.mrf.mxu0
  %v692 = vadd.f32 %v603, %v691
  %693 = vdwg.mxu0
  %694 = vmatpush.bf16.msra.mxu0 0
  %695 = vmatpush.bf16.msra.mxu0 0
  %696 = vmatpush.bf16.msra.mxu0 0
  %697 = vmatpush.bf16.msra.mxu0 0
  %698 = vmatpush.bf16.msra.mxu0 0
  %699 = vmatpush.bf16.msra.mxu0 0
  %700 = vmatpush.bf16.msra.mxu0 %v448
  %701 = vmatpush.bf16.msra.mxu0 %v447
  %702 = vmatmul.bf16.gmra.mxu0 %v469
  %v703 = vpop.f32.mrf.mxu0
  %v704 = vadd.f32 %v615, %v703
  %v705 = vpop.f32.mrf.mxu0
  %v706 = vadd.f32 %v617, %v705
  %707 = vmatmul.bf16.gmra.mxu0 %v472
  %v708 = vpop.f32.mrf.mxu0
  %v709 = vadd.f32 %v620, %v708
  %v710 = vpop.f32.mrf.mxu0
  %v711 = vadd.f32 %v622, %v710
  %712 = vmatmul.bf16.gmra.mxu0 %v475
  %v713 = vpop.f32.mrf.mxu0
  %v714 = vadd.f32 %v625, %v713
  %v715 = vpop.f32.mrf.mxu0
  %v716 = vadd.f32 %v627, %v715
  %717 = vmatmul.bf16.gmra.mxu0 %v478
  %v718 = vpop.f32.mrf.mxu0
  %v719 = vadd.f32 %v630, %v718
  %v720 = vpop.f32.mrf.mxu0
  %v721 = vadd.f32 %v632, %v720
  %722 = vmatmul.bf16.gmra.mxu0 %v481
  %v723 = vpop.f32.mrf.mxu0
  %v724 = vadd.f32 %v635, %v723
  %v725 = vpop.f32.mrf.mxu0
  %v726 = vadd.f32 %v637, %v725
  %727 = vmatmul.bf16.gmra.mxu0 %v484
  %v728 = vpop.f32.mrf.mxu0
  %v729 = vadd.f32 %v640, %v728
  %v730 = vpop.f32.mrf.mxu0
  %v731 = vadd.f32 %v642, %v730
  %732 = vmatmul.bf16.gmra.mxu0 %v487
  %v733 = vpop.f32.mrf.mxu0
  %v734 = vadd.f32 %v645, %v733
  %v735 = vpop.f32.mrf.mxu0
  %v736 = vadd.f32 %v647, %v735
  %737 = vmatmul.bf16.gmra.mxu0 %v490
  %v738 = vpop.f32.mrf.mxu0
  %v739 = vadd.f32 %v650, %v738
  %v740 = vpop.f32.mrf.mxu0
  %v741 = vadd.f32 %v652, %v740
  %742 = vmatmul.bf16.gmra.mxu0 %v493
  %v743 = vpop.f32.mrf.mxu0
  %v744 = vadd.f32 %v655, %v743
  %v745 = vpop.f32.mrf.mxu0
  %v746 = vadd.f32 %v657, %v745
  %747 = vmatmul.bf16.gmra.mxu0 %v496
  %v748 = vpop.f32.mrf.mxu0
  %v749 = vadd.f32 %v660, %v748
  %v750 = vpop.f32.mrf.mxu0
  %v751 = vadd.f32 %v662, %v750
  %752 = vmatmul.bf16.gmra.mxu0 %v499
  %v753 = vpop.f32.mrf.mxu0
  %v754 = vadd.f32 %v665, %v753
  %v755 = vpop.f32.mrf.mxu0
  %v756 = vadd.f32 %v667, %v755
  %757 = vmatmul.bf16.gmra.mxu0 %v502
  %v758 = vpop.f32.mrf.mxu0
  %v759 = vadd.f32 %v670, %v758
  %v760 = vpop.f32.mrf.mxu0
  %v761 = vadd.f32 %v672, %v760
  %762 = vmatmul.bf16.gmra.mxu0 %v505
  %v763 = vpop.f32.mrf.mxu0
  %v764 = vadd.f32 %v675, %v763
  %v765 = vpop.f32.mrf.mxu0
  %v766 = vadd.f32 %v677, %v765
  %767 = vmatmul.bf16.gmra.mxu0 %v508
  %v768 = vpop.f32.mrf.mxu0
  %v769 = vadd.f32 %v680, %v768
  %v770 = vpop.f32.mrf.mxu0
  %v771 = vadd.f32 %v682, %v770
  %772 = vmatmul.bf16.gmra.mxu0 %v511
  %v773 = vpop.f32.mrf.mxu0
  %v774 = vadd.f32 %v685, %v773
  %v775 = vpop.f32.mrf.mxu0
  %v776 = vadd.f32 %v687, %v775
  %777 = vmatmul.bf16.gmra.mxu0 %v514
  %v778 = vpop.f32.mrf.mxu0
  %v779 = vadd.f32 %v690, %v778
  %v780 = vpop.f32.mrf.mxu0
  %v781 = vadd.f32 %v692, %v780
  %782 = vdwg.mxu0
  %783 = vst.msk [vmem:[%s3] sm:$0xff] %vm467, %v704
  %784 = vst.msk [vmem:[%s3 + $0x8] sm:$0xff] %vm467, %v706
  %785 = vst.msk [vmem:[%s3 + $0x10] sm:$0xff] %vm467, %v709
  %786 = vst.msk [vmem:[%s3 + $0x18] sm:$0xff] %vm467, %v711
  %787 = vst.msk [vmem:[%s3 + $0x20] sm:$0xff] %vm467, %v714
  %788 = vst.msk [vmem:[%s3 + $0x28] sm:$0xff] %vm467, %v716
  %789 = vst.msk [vmem:[%s3 + $0x30] sm:$0xff] %vm467, %v719
  %790 = vst.msk [vmem:[%s3 + $0x38] sm:$0xff] %vm467, %v721
  %791 = vst.msk [vmem:[%s3 + $0x40] sm:$0xff] %vm467, %v724
  %792 = vst.msk [vmem:[%s3 + $0x48] sm:$0xff] %vm467, %v726
  %793 = vst.msk [vmem:[%s3 + $0x50] sm:$0xff] %vm467, %v729
  %794 = vst.msk [vmem:[%s3 + $0x58] sm:$0xff] %vm467, %v731
  %795 = vst.msk [vmem:[%s3 + $0x60] sm:$0xff] %vm467, %v734
  %796 = vst.msk [vmem:[%s3 + $0x68] sm:$0xff] %vm467, %v736
  %797 = vst.msk [vmem:[%s3 + $0x70] sm:$0xff] %vm467, %v739
  %798 = vst.msk [vmem:[%s3 + $0x78] sm:$0xff] %vm467, %v741
  %799 = vst.msk [vmem:[%s3 + $0x80] sm:$0xff] %vm467, %v744
  %800 = vst.msk [vmem:[%s3 + $0x88] sm:$0xff] %vm467, %v746
  %801 = vst.msk [vmem:[%s3 + $0x90] sm:$0xff] %vm467, %v749
  %802 = vst.msk [vmem:[%s3 + $0x98] sm:$0xff] %vm467, %v751
  %803 = vst.msk [vmem:[%s3 + $0xa0] sm:$0xff] %vm467, %v754
  %804 = vst.msk [vmem:[%s3 + $0xa8] sm:$0xff] %vm467, %v756
  %805 = vst.msk [vmem:[%s3 + $0xb0] sm:$0xff] %vm467, %v759
  %806 = vst.msk [vmem:[%s3 + $0xb8] sm:$0xff] %vm467, %v761
  %807 = vst.msk [vmem:[%s3 + $0xc0] sm:$0xff] %vm467, %v764
  %808 = vst.msk [vmem:[%s3 + $0xc8] sm:$0xff] %vm467, %v766
  %809 = vst.msk [vmem:[%s3 + $0xd0] sm:$0xff] %vm467, %v769
  %810 = vst.msk [vmem:[%s3 + $0xd8] sm:$0xff] %vm467, %v771
  %811 = vst.msk [vmem:[%s3 + $0xe0] sm:$0xff] %vm467, %v774
  %812 = vst.msk [vmem:[%s3 + $0xe8] sm:$0xff] %vm467, %v776
  %813 = vst.msk [vmem:[%s3 + $0xf0] sm:$0xff] %vm467, %v779
  %814 = vst.msk [vmem:[%s3 + $0xf8] sm:$0xff] %vm467, %v781
  // Predicated region
  $region14: #{assault_value_forward.9} parent=0 // pred_check
    _
  $region15: #{assault_value_forward.9} parent=0 // pred_check_branch
    %816 = sbr.rel (0) target = $region17
  $region16: #{assault_value_forward.9} parent=0 // pred_region
    _
  $region17: #{assault_value_forward.9} parent=0 // pred_fallthru
    _
  // Predicated region
  $region18: #{assault_value_forward.9} parent=0 // pred_check
    _
  $region19: #{assault_value_forward.9} parent=0 // pred_check_branch
    %818 = sbr.rel (0) target = $region21
  $region20: #{assault_value_forward.9} parent=0 // pred_region
    _
  $region21: #{assault_value_forward.9} parent=0 // pred_fallthru
    _

// kernel: tile.33
$region0: #{tile.33}
  #allocation0 [shape = 's32[1]{0}', space=sflag, size = 0x4, scoped, tag = 'scoped memory for tile.33']
  %s0 = inlined_call_operand.vmem [shape: f32[32], index: 0, kind: input, shape index: {}]
  %s1 = inlined_call_operand.vmem [shape: f32[25,32], index: 1, kind: output, shape index: {}]
  // Predicated region
  $region2: #{tile.33} parent=0 // pred_check
    _
  $region3: #{tile.33} parent=0 // pred_check_branch
    %3 = sbr.rel (0) target = $region5
  $region4: #{tile.33} parent=0 // pred_region
    _
  $region5: #{tile.33} parent=0 // pred_fallthru
    _
  %v4 = vld [vmem:[%s0] ss:$0 sm:$0xff]
  %5 = vst [vmem:[%s1] sm:$0xff] %v4
  %s6 = scalar_lea.vmem %s1, 8
  %7 = vst [vmem:[%s6] sm:$0xff] %v4
  %s8 = scalar_lea.vmem %s1, 16
  %9 = vst [vmem:[%s8] sm:$0xff] %v4
  %s10 = scalar_lea.vmem %s1, 24
  %11 = vst [vmem:[%s10] sm:$0xff] %v4

// kernel: assault_value_forward.10
$region0: #{assault_value_forward.10}
  #allocation0 [shape = 'u32[]', space=smem, size = 0x4, offset = 0x4, fixed_abs, tag = 'smem constant byte address 0x4 - core index']
  #allocation1 [shape = 'u32[72,128]{1,0:T(1,128)}', space=vmem, size = 0x9000, scoped, tag = 'internal scratch']
  %s0 = inlined_call_operand.vmem [shape: bf16[16,800], index: 0, kind: input, shape index: {}]
  %s1 = inlined_call_operand.vmem [shape: f32[1,800], index: 1, kind: input, shape index: {}]
  %s2 = inlined_call_operand.vmem [shape: f32[1,800], index: 2, kind: input, shape index: {}]
  %s3 = inlined_call_operand.vmem [shape: bf16[800,32], index: 3, kind: input, shape index: {}]
  %s4 = inlined_call_operand.vmem [shape: f32[1,32], index: 4, kind: input, shape index: {}]
  %s5 = inlined_call_operand.vmem [shape: f32[16,32], index: 5, kind: output, shape index: {}]
  %s6 = sld [smem:[#allocation0]]
  $region30: #{assault_value_forward.10} parent=0
    _
  %s8 = ssub.s32 1, %s6
  %s9 = scalar_select 0, %s8, %s6
  // Predicated region
  $region2: #{assault_value_forward.10} parent=0 // pred_check
    _
  $region3: #{assault_value_forward.10} parent=0 // pred_check_branch
    %11 = sbr.rel (0) target = $region5
  $region4: #{assault_value_forward.10} parent=0 // pred_region
    _
  $region5: #{assault_value_forward.10} parent=0 // pred_fallthru
    _
  // Predicated region
  $region6: #{assault_value_forward.10} parent=0 // pred_check
    _
  $region7: #{assault_value_forward.10} parent=0 // pred_check_branch
    %13 = sbr.rel (0) target = $region9
  $region8: #{assault_value_forward.10} parent=0 // pred_region
    _
  $region9: #{assault_value_forward.10} parent=0 // pred_fallthru
    _
  // Predicated region
  $region10: #{assault_value_forward.10} parent=0 // pred_check
    _
  $region11: #{assault_value_forward.10} parent=0 // pred_check_branch
    %15 = sbr.rel (0) target = $region13
  $region12: #{assault_value_forward.10} parent=0 // pred_region
    _
  $region13: #{assault_value_forward.10} parent=0 // pred_fallthru
    _
  // Predicated region
  $region14: #{assault_value_forward.10} parent=0 // pred_check
    _
  $region15: #{assault_value_forward.10} parent=0 // pred_check_branch
    %17 = sbr.rel (0) target = $region17
  $region16: #{assault_value_forward.10} parent=0 // pred_region
    _
  $region17: #{assault_value_forward.10} parent=0 // pred_fallthru
    _
  // Predicated region
  $region18: #{assault_value_forward.10} parent=0 // pred_check
    _
  $region19: #{assault_value_forward.10} parent=0 // pred_check_branch
    %19 = sbr.rel (0) target = $region21
  $region20: #{assault_value_forward.10} parent=0 // pred_region
    _
  $region21: #{assault_value_forward.10} parent=0 // pred_fallthru
    _
  %v21 = vld [vmem:[%s0] sm:$0xff]
  %v22 = vld [vmem:[%s0 + $0x8] sm:$0xff]
  %v23 = vld [vmem:[%s0 + $0x10] sm:$0xff]
  %v24 = vld [vmem:[%s0 + $0x18] sm:$0xf]
  %v25 = vld [vmem:[%s0 + $0x1c] sm:$0xff]
  %v26 = vld [vmem:[%s0 + $0x24] sm:$0xff]
  %v27 = vld [vmem:[%s0 + $0x2c] sm:$0xff]
  %v28 = vld [vmem:[%s0 + $0x34] sm:$0xf]
  %v29 = vld [vmem:[%s1] sm:$0x7f]
  %v30 = vunpack.c.l.bf16 %v21
  %v31 = vunpack.c.h.bf16 %v21
  %v32 = vunpack.c.l.bf16 %v22
  %v33 = vunpack.c.h.bf16 %v22
  %v34 = vunpack.c.l.bf16 %v23
  %v35 = vunpack.c.h.bf16 %v23
  %v36 = vunpack.c.l.bf16 %v24
  %v37 = vunpack.c.l.bf16 %v25
  %v38 = vunpack.c.h.bf16 %v25
  %v39 = vunpack.c.l.bf16 %v26
  %v40 = vunpack.c.h.bf16 %v26
  %v41 = vunpack.c.l.bf16 %v27
  %v42 = vunpack.c.h.bf16 %v27
  %v43 = vunpack.c.l.bf16 %v28
  %v45 = vperm.slane %v29, 0
  %v46 = vperm.slane %v29, 1
  %v47 = vperm.slane %v29, 2
  %v48 = vperm.slane %v29, 3
  %v49 = vperm.slane %v29, 4
  %v50 = vperm.slane %v29, 5
  %v51 = vperm.slane %v29, 6
  %v59 = vmul.f32 %v30, %v45
  %v60 = vmul.f32 %v31, %v46
  %v61 = vmul.f32 %v32, %v47
  %v62 = vmul.f32 %v33, %v48
  %v63 = vmul.f32 %v34, %v49
  %v64 = vmul.f32 %v35, %v50
  %v65 = vmul.f32 %v36, %v51
  %v66 = vmul.f32 %v37, %v45
  %v67 = vmul.f32 %v38, %v46
  %v68 = vmul.f32 %v39, %v47
  %v69 = vmul.f32 %v40, %v48
  %v70 = vmul.f32 %v41, %v49
  %v71 = vmul.f32 %v42, %v50
  %v72 = vmul.f32 %v43, %v51
  %v73 = vld [vmem:[%s2] sm:$0x7f]
  %v75 = vperm.slane %v73, 0
  %v76 = vperm.slane %v73, 1
  %v77 = vperm.slane %v73, 2
  %v78 = vperm.slane %v73, 3
  %v79 = vperm.slane %v73, 4
  %v80 = vperm.slane %v73, 5
  %v81 = vperm.slane %v73, 6
  %v89 = vadd.f32 %v59, %v75
  %v90 = vadd.f32 %v60, %v76
  %v91 = vadd.f32 %v61, %v77
  %v92 = vadd.f32 %v62, %v78
  %v93 = vadd.f32 %v63, %v79
  %v94 = vadd.f32 %v64, %v80
  %v95 = vadd.f32 %v65, %v81
  %v96 = vadd.f32 %v66, %v75
  %v97 = vadd.f32 %v67, %v76
  %v98 = vadd.f32 %v68, %v77
  %v99 = vadd.f32 %v69, %v78
  %v100 = vadd.f32 %v70, %v79
  %v101 = vadd.f32 %v71, %v80
  %v102 = vadd.f32 %v72, %v81
  %v103 = vmax.f32 %v89, 0.0
  %v104 = vmax.f32 %v90, 0.0
  %v105 = vmax.f32 %v91, 0.0
  %v106 = vmax.f32 %v92, 0.0
  %v107 = vmax.f32 %v93, 0.0
  %v108 = vmax.f32 %v94, 0.0
  %v109 = vmax.f32 %v95, 0.0
  %v110 = vmax.f32 %v96, 0.0
  %v111 = vmax.f32 %v97, 0.0
  %v112 = vmax.f32 %v98, 0.0
  %v113 = vmax.f32 %v99, 0.0
  %v114 = vmax.f32 %v100, 0.0
  %v115 = vmax.f32 %v101, 0.0
  %v116 = vmax.f32 %v102, 0.0
  %v117 = vpack.c.bf16 %v110, %v103
  %v118 = vpack.c.bf16 %v111, %v104
  %v119 = vpack.c.bf16 %v112, %v105
  %v120 = vpack.c.bf16 %v113, %v106
  %v121 = vpack.c.bf16 %v114, %v107
  %v122 = vpack.c.bf16 %v115, %v108
  %v123 = vpack.c.bf16 %v116, %v109
  %v124 = vld [vmem:[%s3] sm:$0xf]
  %v125 = vld [vmem:[%s3 + $0x4] sm:$0xf]
  %v126 = vld [vmem:[%s3 + $0x8] sm:$0xf]
  %v127 = vld [vmem:[%s3 + $0xc] sm:$0xf]
  %v128 = vld [vmem:[%s3 + $0x10] sm:$0xf]
  %v129 = vld [vmem:[%s3 + $0x14] sm:$0xf]
  %v130 = vld [vmem:[%s3 + $0x18] sm:$0xf]
  %v131 = vld [vmem:[%s3 + $0x1c] sm:$0xf]
  %v132 = vld [vmem:[%s3 + $0x20] sm:$0xf]
  %v133 = vld [vmem:[%s3 + $0x24] sm:$0xf]
  %v134 = vld [vmem:[%s3 + $0x28] sm:$0xf]
  %v135 = vld [vmem:[%s3 + $0x2c] sm:$0xf]
  %v136 = vld [vmem:[%s3 + $0x30] sm:$0xf]
  %v137 = vld [vmem:[%s3 + $0x34] sm:$0xf]
  %v138 = vld [vmem:[%s3 + $0x38] sm:$0xf]
  %v139 = vld [vmem:[%s3 + $0x3c] sm:$0xf]
  %v140 = vld [vmem:[%s3 + $0x40] sm:$0xf]
  %v141 = vld [vmem:[%s3 + $0x44] sm:$0xf]
  %v142 = vld [vmem:[%s3 + $0x48] sm:$0xf]
  %v143 = vld [vmem:[%s3 + $0x4c] sm:$0xf]
  %v144 = vld [vmem:[%s3 + $0x50] sm:$0xf]
  %v145 = vld [vmem:[%s3 + $0x54] sm:$0xf]
  %v146 = vld [vmem:[%s3 + $0x58] sm:$0xf]
  %v147 = vld [vmem:[%s3 + $0x5c] sm:$0xf]
  %v148 = vld [vmem:[%s3 + $0x60] sm:$0xf]
  %v149 = vld [vmem:[%s3 + $0x64] sm:$0xf]
  %v150 = vld [vmem:[%s3 + $0x68] sm:$0xf]
  %v151 = vld [vmem:[%s3 + $0x6c] sm:$0xf]
  %v152 = vld [vmem:[%s3 + $0x70] sm:$0xf]
  %v153 = vld [vmem:[%s3 + $0x74] sm:$0xf]
  %v154 = vld [vmem:[%s3 + $0x78] sm:$0xf]
  %v155 = vld [vmem:[%s3 + $0x7c] sm:$0xf]
  %v156 = vld [vmem:[%s3 + $0x80] sm:$0xf]
  %v157 = vld [vmem:[%s3 + $0x84] sm:$0xf]
  %v158 = vld [vmem:[%s3 + $0x88] sm:$0xf]
  %v159 = vld [vmem:[%s3 + $0x8c] sm:$0xf]
  %v160 = vld [vmem:[%s3 + $0x90] sm:$0xf]
  %v161 = vld [vmem:[%s3 + $0x94] sm:$0xf]
  %v162 = vld [vmem:[%s3 + $0x98] sm:$0xf]
  %v163 = vld [vmem:[%s3 + $0x9c] sm:$0xf]
  %v164 = vld [vmem:[%s3 + $0xa0] sm:$0xf]
  %v165 = vld [vmem:[%s3 + $0xa4] sm:$0xf]
  %v166 = vld [vmem:[%s3 + $0xa8] sm:$0xf]
  %v167 = vld [vmem:[%s3 + $0xac] sm:$0xf]
  %v168 = vld [vmem:[%s3 + $0xb0] sm:$0xf]
  %v169 = vld [vmem:[%s3 + $0xb4] sm:$0xf]
  %v170 = vld [vmem:[%s3 + $0xb8] sm:$0xf]
  %v171 = vld [vmem:[%s3 + $0xbc] sm:$0xf]
  %v172 = vld [vmem:[%s3 + $0xc0] sm:$0xf]
  %v173 = vld [vmem:[%s3 + $0xc4] sm:$0xf]
  %v174 = vld [vmem:[%s3 + $0xc8] sm:$0xf]
  %v175 = vld [vmem:[%s3 + $0xcc] sm:$0xf]
  %v176 = vld [vmem:[%s3 + $0xd0] sm:$0xf]
  %v177 = vld [vmem:[%s3 + $0xd4] sm:$0xf]
  %v178 = vld [vmem:[%s3 + $0xd8] sm:$0xf]
  %v179 = vld [vmem:[%s3 + $0xdc] sm:$0xf]
  %v180 = vld [vmem:[%s3 + $0xe0] sm:$0xf]
  %v181 = vld [vmem:[%s3 + $0xe4] sm:$0xf]
  %v182 = vld [vmem:[%s3 + $0xe8] sm:$0xf]
  %v183 = vld [vmem:[%s3 + $0xec] sm:$0xf]
  %v184 = vld [vmem:[%s3 + $0xf0] sm:$0xf]
  %v185 = vld [vmem:[%s3 + $0xf4] sm:$0xf]
  %v186 = vld [vmem:[%s3 + $0xf8] sm:$0xf]
  %v187 = vld [vmem:[%s3 + $0xfc] sm:$0xf]
  %v188 = vld [vmem:[%s3 + $0x100] sm:$0xf]
  %v189 = vld [vmem:[%s3 + $0x104] sm:$0xf]
  %v190 = vld [vmem:[%s3 + $0x108] sm:$0xf]
  %v191 = vld [vmem:[%s3 + $0x10c] sm:$0xf]
  %v192 = vld [vmem:[%s3 + $0x110] sm:$0xf]
  %v193 = vld [vmem:[%s3 + $0x114] sm:$0xf]
  %v194 = vld [vmem:[%s3 + $0x118] sm:$0xf]
  %v195 = vld [vmem:[%s3 + $0x11c] sm:$0xf]
  %v196 = vld [vmem:[%s3 + $0x120] sm:$0xf]
  %v197 = vld [vmem:[%s3 + $0x124] sm:$0xf]
  %v198 = vld [vmem:[%s3 + $0x128] sm:$0xf]
  %v199 = vld [vmem:[%s3 + $0x12c] sm:$0xf]
  %v200 = vld [vmem:[%s3 + $0x130] sm:$0xf]
  %v201 = vld [vmem:[%s3 + $0x134] sm:$0xf]
  %v202 = vld [vmem:[%s3 + $0x138] sm:$0xf]
  %v203 = vld [vmem:[%s3 + $0x13c] sm:$0xf]
  %v204 = vld [vmem:[%s3 + $0x140] sm:$0xf]
  %v205 = vld [vmem:[%s3 + $0x144] sm:$0xf]
  %v206 = vld [vmem:[%s3 + $0x148] sm:$0xf]
  %v207 = vld [vmem:[%s3 + $0x14c] sm:$0xf]
  %v208 = vld [vmem:[%s3 + $0x150] sm:$0xf]
  %v209 = vld [vmem:[%s3 + $0x154] sm:$0xf]
  %v210 = vld [vmem:[%s3 + $0x158] sm:$0xf]
  %v211 = vld [vmem:[%s3 + $0x15c] sm:$0xf]
  %v212 = vld [vmem:[%s3 + $0x160] sm:$0xf]
  %v213 = vld [vmem:[%s3 + $0x164] sm:$0xf]
  %v214 = vld [vmem:[%s3 + $0x168] sm:$0xf]
  %v215 = vld [vmem:[%s3 + $0x16c] sm:$0xf]
  %v216 = vld [vmem:[%s3 + $0x170] sm:$0xf]
  %v217 = vld [vmem:[%s3 + $0x174] sm:$0xf]
  %v218 = vld [vmem:[%s3 + $0x178] sm:$0xf]
  %v219 = vld [vmem:[%s3 + $0x17c] sm:$0xf]
  %v220 = vld [vmem:[%s3 + $0x180] sm:$0xf]
  %v221 = vld [vmem:[%s3 + $0x184] sm:$0xf]
  %v222 = vld [vmem:[%s3 + $0x188] sm:$0xf]
  %v223 = vld [vmem:[%s3 + $0x18c] sm:$0xf]
  %v224 = vld [vmem:[%s4] sm:$0x1]
  %v226 = vperm.slane %v224, 0
  %v328 = vunpack.c.l.b16 %v124
  %v329 = vunpack.c.l.b16 %v125
  %v330 = vunpack.c.l.b16 %v126
  %v331 = vunpack.c.l.b16 %v127
  %v332 = vunpack.c.l.b16 %v128
  %v333 = vunpack.c.l.b16 %v129
  %v334 = vunpack.c.l.b16 %v130
  %v335 = vunpack.c.l.b16 %v131
  %v336 = vunpack.c.l.b16 %v132
  %v337 = vunpack.c.l.b16 %v133
  %v338 = vunpack.c.l.b16 %v134
  %v339 = vunpack.c.l.b16 %v135
  %v340 = vunpack.c.l.b16 %v136
  %v341 = vunpack.c.l.b16 %v137
  %v342 = vunpack.c.l.b16 %v138
  %v343 = vunpack.c.l.b16 %v139
  %v344 = vunpack.c.l.b16 %v140
  %v345 = vunpack.c.l.b16 %v141
  %v346 = vunpack.c.l.b16 %v142
  %v347 = vunpack.c.l.b16 %v143
  %v348 = vunpack.c.l.b16 %v144
  %v349 = vunpack.c.l.b16 %v145
  %v350 = vunpack.c.l.b16 %v146
  %v351 = vunpack.c.l.b16 %v147
  %v352 = vunpack.c.l.b16 %v148
  %v353 = vunpack.c.l.b16 %v149
  %v354 = vunpack.c.l.b16 %v150
  %v355 = vunpack.c.l.b16 %v151
  %v356 = vunpack.c.l.b16 %v152
  %v357 = vunpack.c.l.b16 %v153
  %v358 = vunpack.c.l.b16 %v154
  %v359 = vunpack.c.l.b16 %v155
  %v360 = vunpack.c.l.b16 %v156
  %v361 = vunpack.c.l.b16 %v157
  %v362 = vunpack.c.l.b16 %v158
  %v363 = vunpack.c.l.b16 %v159
  %v364 = vunpack.c.l.b16 %v160
  %v365 = vunpack.c.l.b16 %v161
  %v366 = vunpack.c.l.b16 %v162
  %v367 = vunpack.c.l.b16 %v163
  %v368 = vunpack.c.l.b16 %v164
  %v369 = vunpack.c.l.b16 %v165
  %v370 = vunpack.c.l.b16 %v166
  %v371 = vunpack.c.l.b16 %v167
  %v372 = vunpack.c.l.b16 %v168
  %v373 = vunpack.c.l.b16 %v169
  %v374 = vunpack.c.l.b16 %v170
  %v375 = vunpack.c.l.b16 %v171
  %v376 = vunpack.c.l.b16 %v172
  %v377 = vunpack.c.l.b16 %v173
  %v378 = vunpack.c.l.b16 %v174
  %v379 = vunpack.c.l.b16 %v175
  %v380 = vunpack.c.l.b16 %v176
  %v381 = vunpack.c.l.b16 %v177
  %v382 = vunpack.c.l.b16 %v178
  %v383 = vunpack.c.l.b16 %v179
  %v384 = vunpack.c.l.b16 %v180
  %v385 = vunpack.c.l.b16 %v181
  %v386 = vunpack.c.l.b16 %v182
  %v387 = vunpack.c.l.b16 %v183
  %v388 = vunpack.c.l.b16 %v184
  %v389 = vunpack.c.l.b16 %v185
  %v390 = vunpack.c.l.b16 %v186
  %v391 = vunpack.c.l.b16 %v187
  %v392 = vunpack.c.l.b16 %v188
  %v393 = vunpack.c.l.b16 %v189
  %v394 = vunpack.c.l.b16 %v190
  %v395 = vunpack.c.l.b16 %v191
  %v396 = vunpack.c.l.b16 %v192
  %v397 = vunpack.c.l.b16 %v193
  %v398 = vunpack.c.l.b16 %v194
  %v399 = vunpack.c.l.b16 %v195
  %v400 = vunpack.c.l.b16 %v196
  %v401 = vunpack.c.l.b16 %v197
  %v402 = vunpack.c.l.b16 %v198
  %v403 = vunpack.c.l.b16 %v199
  %v404 = vunpack.c.l.b16 %v200
  %v405 = vunpack.c.l.b16 %v201
  %v406 = vunpack.c.l.b16 %v202
  %v407 = vunpack.c.l.b16 %v203
  %v408 = vunpack.c.l.b16 %v204
  %v409 = vunpack.c.l.b16 %v205
  %v410 = vunpack.c.l.b16 %v206
  %v411 = vunpack.c.l.b16 %v207
  %v412 = vunpack.c.l.b16 %v208
  %v413 = vunpack.c.l.b16 %v209
  %v414 = vunpack.c.l.b16 %v210
  %v415 = vunpack.c.l.b16 %v211
  %v416 = vunpack.c.l.b16 %v212
  %v417 = vunpack.c.l.b16 %v213
  %v418 = vunpack.c.l.b16 %v214
  %v419 = vunpack.c.l.b16 %v215
  %v420 = vunpack.c.l.b16 %v216
  %v421 = vunpack.c.l.b16 %v217
  %v422 = vunpack.c.l.b16 %v218
  %v423 = vunpack.c.l.b16 %v219
  %v424 = vunpack.c.l.b16 %v220
  %v425 = vunpack.c.l.b16 %v221
  %v426 = vunpack.c.l.b16 %v222
  %v427 = vunpack.c.l.b16 %v223
  %v428 = vpack.c.b16 %v329, %v328
  %v429 = vpack.c.b16 %v331, %v330
  %v430 = vpack.c.b16 %v333, %v332
  %v431 = vpack.c.b16 %v335, %v334
  %v432 = vpack.c.b16 %v337, %v336
  %v433 = vpack.c.b16 %v339, %v338
  %v434 = vpack.c.b16 %v341, %v340
  %v435 = vpack.c.b16 %v343, %v342
  %v436 = vpack.c.b16 %v345, %v344
  %v437 = vpack.c.b16 %v347, %v346
  %v438 = vpack.c.b16 %v349, %v348
  %v439 = vpack.c.b16 %v351, %v350
  %v440 = vpack.c.b16 %v353, %v352
  %v441 = vpack.c.b16 %v355, %v354
  %v442 = vpack.c.b16 %v357, %v356
  %v443 = vpack.c.b16 %v359, %v358
  %v444 = vpack.c.b16 %v361, %v360
  %v445 = vpack.c.b16 %v363, %v362
  %v446 = vpack.c.b16 %v365, %v364
  %v447 = vpack.c.b16 %v367, %v366
  %v448 = vpack.c.b16 %v369, %v368
  %v449 = vpack.c.b16 %v371, %v370
  %v450 = vpack.c.b16 %v373, %v372
  %v451 = vpack.c.b16 %v375, %v374
  %v452 = vpack.c.b16 %v377, %v376
  %v453 = vpack.c.b16 %v379, %v378
  %v454 = vpack.c.b16 %v381, %v380
  %v455 = vpack.c.b16 %v383, %v382
  %v456 = vpack.c.b16 %v385, %v384
  %v457 = vpack.c.b16 %v387, %v386
  %v458 = vpack.c.b16 %v389, %v388
  %v459 = vpack.c.b16 %v391, %v390
  %v460 = vpack.c.b16 %v393, %v392
  %v461 = vpack.c.b16 %v395, %v394
  %v462 = vpack.c.b16 %v397, %v396
  %v463 = vpack.c.b16 %v399, %v398
  %v464 = vpack.c.b16 %v401, %v400
  %v465 = vpack.c.b16 %v403, %v402
  %v466 = vpack.c.b16 %v405, %v404
  %v467 = vpack.c.b16 %v407, %v406
  %v468 = vpack.c.b16 %v409, %v408
  %v469 = vpack.c.b16 %v411, %v410
  %v470 = vpack.c.b16 %v413, %v412
  %v471 = vpack.c.b16 %v415, %v414
  %v472 = vpack.c.b16 %v417, %v416
  %v473 = vpack.c.b16 %v419, %v418
  %v474 = vpack.c.b16 %v421, %v420
  %v475 = vpack.c.b16 %v423, %v422
  %v476 = vpack.c.b16 %v425, %v424
  %v477 = vpack.c.b16 %v427, %v426
  %vm528 = vcmask 261120
  %v530 = vsel %vm528, %v123, 0
  %532 = vmatpush.bf16.msra.mxu0 %v435
  %533 = vmatpush.bf16.msra.mxu0 %v434
  %534 = vmatpush.bf16.msra.mxu0 %v433
  %535 = vmatpush.bf16.msra.mxu0 %v432
  %536 = vmatpush.bf16.msra.mxu0 %v431
  %537 = vmatpush.bf16.msra.mxu0 %v430
  %538 = vmatpush.bf16.msra.mxu0 %v429
  %539 = vmatpush.bf16.msra.mxu0 %v428
  %540 = vmatmul.bf16.gmra.mxu0 %v117
  %v541 = vpop.f32.mrf.mxu0
  %v542 = vadd.f32 %v226, %v541
  %v543 = vpop.f32.mrf.mxu0
  %v544 = vadd.f32 %v226, %v543
  %545 = vdwg.mxu0
  %546 = vmatpush.bf16.msra.mxu0 %v443
  %547 = vmatpush.bf16.msra.mxu0 %v442
  %548 = vmatpush.bf16.msra.mxu0 %v441
  %549 = vmatpush.bf16.msra.mxu0 %v440
  %550 = vmatpush.bf16.msra.mxu0 %v439
  %551 = vmatpush.bf16.msra.mxu0 %v438
  %552 = vmatpush.bf16.msra.mxu0 %v437
  %553 = vmatpush.bf16.msra.mxu0 %v436
  %554 = vmatmul.bf16.gmra.mxu0 %v118
  %v555 = vpop.f32.mrf.mxu0
  %v556 = vadd.f32 %v542, %v555
  %v557 = vpop.f32.mrf.mxu0
  %v558 = vadd.f32 %v544, %v557
  %559 = vdwg.mxu0
  %560 = vmatpush.bf16.msra.mxu0 %v451
  %561 = vmatpush.bf16.msra.mxu0 %v450
  %562 = vmatpush.bf16.msra.mxu0 %v449
  %563 = vmatpush.bf16.msra.mxu0 %v448
  %564 = vmatpush.bf16.msra.mxu0 %v447
  %565 = vmatpush.bf16.msra.mxu0 %v446
  %566 = vmatpush.bf16.msra.mxu0 %v445
  %567 = vmatpush.bf16.msra.mxu0 %v444
  %568 = vmatmul.bf16.gmra.mxu0 %v119
  %v569 = vpop.f32.mrf.mxu0
  %v570 = vadd.f32 %v556, %v569
  %v571 = vpop.f32.mrf.mxu0
  %v572 = vadd.f32 %v558, %v571
  %573 = vdwg.mxu0
  %574 = vmatpush.bf16.msra.mxu0 %v459
  %575 = vmatpush.bf16.msra.mxu0 %v458
  %576 = vmatpush.bf16.msra.mxu0 %v457
  %577 = vmatpush.bf16.msra.mxu0 %v456
  %578 = vmatpush.bf16.msra.mxu0 %v455
  %579 = vmatpush.bf16.msra.mxu0 %v454
  %580 = vmatpush.bf16.msra.mxu0 %v453
  %581 = vmatpush.bf16.msra.mxu0 %v452
  %582 = vmatmul.bf16.gmra.mxu0 %v120
  %v583 = vpop.f32.mrf.mxu0
  %v584 = vadd.f32 %v570, %v583
  %v585 = vpop.f32.mrf.mxu0
  %v586 = vadd.f32 %v572, %v585
  %587 = vdwg.mxu0
  %588 = vmatpush.bf16.msra.mxu0 %v467
  %589 = vmatpush.bf16.msra.mxu0 %v466
  %590 = vmatpush.bf16.msra.mxu0 %v465
  %591 = vmatpush.bf16.msra.mxu0 %v464
  %592 = vmatpush.bf16.msra.mxu0 %v463
  %593 = vmatpush.bf16.msra.mxu0 %v462
  %594 = vmatpush.bf16.msra.mxu0 %v461
  %595 = vmatpush.bf16.msra.mxu0 %v460
  %596 = vmatmul.bf16.gmra.mxu0 %v121
  %v597 = vpop.f32.mrf.mxu0
  %v598 = vadd.f32 %v584, %v597
  %v599 = vpop.f32.mrf.mxu0
  %v600 = vadd.f32 %v586, %v599
  %601 = vdwg.mxu0
  %602 = vmatpush.bf16.msra.mxu0 %v475
  %603 = vmatpush.bf16.msra.mxu0 %v474
  %604 = vmatpush.bf16.msra.mxu0 %v473
  %605 = vmatpush.bf16.msra.mxu0 %v472
  %606 = vmatpush.bf16.msra.mxu0 %v471
  %607 = vmatpush.bf16.msra.mxu0 %v470
  %608 = vmatpush.bf16.msra.mxu0 %v469
  %609 = vmatpush.bf16.msra.mxu0 %v468
  %610 = vmatmul.bf16.gmra.mxu0 %v122
  %v611 = vpop.f32.mrf.mxu0
  %v612 = vadd.f32 %v598, %v611
  %v613 = vpop.f32.mrf.mxu0
  %v614 = vadd.f32 %v600, %v613
  %615 = vdwg.mxu0
  %616 = vmatpush.bf16.msra.mxu0 0
  %617 = vmatpush.bf16.msra.mxu0 0
  %618 = vmatpush.bf16.msra.mxu0 0
  %619 = vmatpush.bf16.msra.mxu0 0
  %620 = vmatpush.bf16.msra.mxu0 0
  %621 = vmatpush.bf16.msra.mxu0 0
  %622 = vmatpush.bf16.msra.mxu0 %v477
  %623 = vmatpush.bf16.msra.mxu0 %v476
  %624 = vmatmul.bf16.gmra.mxu0 %v530
  %v625 = vpop.f32.mrf.mxu0
  %v626 = vadd.f32 %v612, %v625
  %v627 = vpop.f32.mrf.mxu0
  %v628 = vadd.f32 %v614, %v627
  %629 = vdwg.mxu0
  %v630 = vmax.f32 %v626, 0.0
  %v631 = vmax.f32 %v628, 0.0
  %632 = vst.msk [vmem:[%s5] sm:$0xff] %vm528, %v630
  %633 = vst.msk [vmem:[%s5 + $0x8] sm:$0xff] %vm528, %v631
  // Predicated region
  $region22: #{assault_value_forward.10} parent=0 // pred_check
    _
  $region23: #{assault_value_forward.10} parent=0 // pred_check_branch
    %635 = sbr.rel (0) target = $region25
  $region24: #{assault_value_forward.10} parent=0 // pred_region
    _
  $region25: #{assault_value_forward.10} parent=0 // pred_fallthru
    _
  // Predicated region
  $region26: #{assault_value_forward.10} parent=0 // pred_check
    _
  $region27: #{assault_value_forward.10} parent=0 // pred_check_branch
    %637 = sbr.rel (0) target = $region29
  $region28: #{assault_value_forward.10} parent=0 // pred_region
    _
  $region29: #{assault_value_forward.10} parent=0 // pred_fallthru
    _

// kernel: assault_value_forward.11
$region0: #{assault_value_forward.11}
  #allocation0 [shape = 'u32[]', space=smem, size = 0x4, offset = 0x4, fixed_abs, tag = 'smem constant byte address 0x4 - core index']
  #allocation1 [shape = 'u32[72,128]{1,0:T(1,128)}', space=vmem, size = 0x9000, scoped, tag = 'internal scratch']
  %s0 = inlined_call_operand.vmem [shape: bf16[8,256], index: 0, kind: input, shape index: {}]
  %s1 = inlined_call_operand.vmem [shape: bf16[256,32], index: 1, kind: input, shape index: {}]
  %s2 = inlined_call_operand.vmem [shape: f32[1,32], index: 2, kind: input, shape index: {}]
  %s3 = inlined_call_operand.vmem [shape: f32[1,32], index: 3, kind: input, shape index: {}]
  %s4 = inlined_call_operand.vmem [shape: f32[8,1], index: 4, kind: output, shape index: {}]
  %s5 = sld [smem:[#allocation0]]
  $region26: #{assault_value_forward.11} parent=0
    _
  %s7 = ssub.s32 1, %s5
  %s8 = scalar_select 0, %s7, %s5
  // Predicated region
  $region2: #{assault_value_forward.11} parent=0 // pred_check
    _
  $region3: #{assault_value_forward.11} parent=0 // pred_check_branch
    %10 = sbr.rel (0) target = $region5
  $region4: #{assault_value_forward.11} parent=0 // pred_region
    _
  $region5: #{assault_value_forward.11} parent=0 // pred_fallthru
    _
  // Predicated region
  $region6: #{assault_value_forward.11} parent=0 // pred_check
    _
  $region7: #{assault_value_forward.11} parent=0 // pred_check_branch
    %12 = sbr.rel (0) target = $region9
  $region8: #{assault_value_forward.11} parent=0 // pred_region
    _
  $region9: #{assault_value_forward.11} parent=0 // pred_fallthru
    _
  // Predicated region
  $region10: #{assault_value_forward.11} parent=0 // pred_check
    _
  $region11: #{assault_value_forward.11} parent=0 // pred_check_branch
    %14 = sbr.rel (0) target = $region13
  $region12: #{assault_value_forward.11} parent=0 // pred_region
    _
  $region13: #{assault_value_forward.11} parent=0 // pred_fallthru
    _
  // Predicated region
  $region14: #{assault_value_forward.11} parent=0 // pred_check
    _
  $region15: #{assault_value_forward.11} parent=0 // pred_check_branch
    %16 = sbr.rel (0) target = $region17
  $region16: #{assault_value_forward.11} parent=0 // pred_region
    _
  $region17: #{assault_value_forward.11} parent=0 // pred_fallthru
    _
  %v17 = vld [vmem:[%s0] sm:$0xff]
  %v18 = vld [vmem:[%s1] sm:$0xf]
  %v19 = vld [vmem:[%s1 + $0x4] sm:$0xf]
  %v20 = vld [vmem:[%s1 + $0x8] sm:$0xf]
  %v21 = vld [vmem:[%s1 + $0xc] sm:$0xf]
  %v22 = vld [vmem:[%s1 + $0x10] sm:$0xf]
  %v23 = vld [vmem:[%s1 + $0x14] sm:$0xf]
  %v24 = vld [vmem:[%s1 + $0x18] sm:$0xf]
  %v25 = vld [vmem:[%s1 + $0x1c] sm:$0xf]
  %v26 = vld [vmem:[%s1 + $0x20] sm:$0xf]
  %v27 = vld [vmem:[%s1 + $0x24] sm:$0xf]
  %v28 = vld [vmem:[%s1 + $0x28] sm:$0xf]
  %v29 = vld [vmem:[%s1 + $0x2c] sm:$0xf]
  %v30 = vld [vmem:[%s1 + $0x30] sm:$0xf]
  %v31 = vld [vmem:[%s1 + $0x34] sm:$0xf]
  %v32 = vld [vmem:[%s1 + $0x38] sm:$0xf]
  %v33 = vld [vmem:[%s1 + $0x3c] sm:$0xf]
  %v34 = vld [vmem:[%s1 + $0x40] sm:$0xf]
  %v35 = vld [vmem:[%s1 + $0x44] sm:$0xf]
  %v36 = vld [vmem:[%s1 + $0x48] sm:$0xf]
  %v37 = vld [vmem:[%s1 + $0x4c] sm:$0xf]
  %v38 = vld [vmem:[%s1 + $0x50] sm:$0xf]
  %v39 = vld [vmem:[%s1 + $0x54] sm:$0xf]
  %v40 = vld [vmem:[%s1 + $0x58] sm:$0xf]
  %v41 = vld [vmem:[%s1 + $0x5c] sm:$0xf]
  %v42 = vld [vmem:[%s1 + $0x60] sm:$0xf]
  %v43 = vld [vmem:[%s1 + $0x64] sm:$0xf]
  %v44 = vld [vmem:[%s1 + $0x68] sm:$0xf]
  %v45 = vld [vmem:[%s1 + $0x6c] sm:$0xf]
  %v46 = vld [vmem:[%s1 + $0x70] sm:$0xf]
  %v47 = vld [vmem:[%s1 + $0x74] sm:$0xf]
  %v48 = vld [vmem:[%s1 + $0x78] sm:$0xf]
  %v49 = vld [vmem:[%s1 + $0x7c] sm:$0xf]
  %v50 = vld [vmem:[%s2] sm:$0x1]
  %v52 = vperm.slane %v50, 0
  %v55 = vunpack.c.l.b16 %v17
  %v56 = vunpack.c.h.b16 %v17
  %v57 = vpack.c.b16 %v55, %v55
  %v58 = vpack.c.b16 %v56, %v56
  %v93 = vunpack.c.l.b16 %v18
  %v94 = vunpack.c.l.b16 %v19
  %v95 = vunpack.c.l.b16 %v20
  %v96 = vunpack.c.l.b16 %v21
  %v97 = vunpack.c.l.b16 %v22
  %v98 = vunpack.c.l.b16 %v23
  %v99 = vunpack.c.l.b16 %v24
  %v100 = vunpack.c.l.b16 %v25
  %v101 = vunpack.c.l.b16 %v26
  %v102 = vunpack.c.l.b16 %v27
  %v103 = vunpack.c.l.b16 %v28
  %v104 = vunpack.c.l.b16 %v29
  %v105 = vunpack.c.l.b16 %v30
  %v106 = vunpack.c.l.b16 %v31
  %v107 = vunpack.c.l.b16 %v32
  %v108 = vunpack.c.l.b16 %v33
  %v109 = vunpack.c.l.b16 %v34
  %v110 = vunpack.c.l.b16 %v35
  %v111 = vunpack.c.l.b16 %v36
  %v112 = vunpack.c.l.b16 %v37
  %v113 = vunpack.c.l.b16 %v38
  %v114 = vunpack.c.l.b16 %v39
  %v115 = vunpack.c.l.b16 %v40
  %v116 = vunpack.c.l.b16 %v41
  %v117 = vunpack.c.l.b16 %v42
  %v118 = vunpack.c.l.b16 %v43
  %v119 = vunpack.c.l.b16 %v44
  %v120 = vunpack.c.l.b16 %v45
  %v121 = vunpack.c.l.b16 %v46
  %v122 = vunpack.c.l.b16 %v47
  %v123 = vunpack.c.l.b16 %v48
  %v124 = vunpack.c.l.b16 %v49
  %v125 = vpack.c.b16 %v94, %v93
  %v126 = vpack.c.b16 %v96, %v95
  %v127 = vpack.c.b16 %v98, %v97
  %v128 = vpack.c.b16 %v100, %v99
  %v129 = vpack.c.b16 %v102, %v101
  %v130 = vpack.c.b16 %v104, %v103
  %v131 = vpack.c.b16 %v106, %v105
  %v132 = vpack.c.b16 %v108, %v107
  %v133 = vpack.c.b16 %v110, %v109
  %v134 = vpack.c.b16 %v112, %v111
  %v135 = vpack.c.b16 %v114, %v113
  %v136 = vpack.c.b16 %v116, %v115
  %v137 = vpack.c.b16 %v118, %v117
  %v138 = vpack.c.b16 %v120, %v119
  %v139 = vpack.c.b16 %v122, %v121
  %v140 = vpack.c.b16 %v124, %v123
  %157 = vmatpush.bf16.msra.mxu0 %v132
  %158 = vmatpush.bf16.msra.mxu0 %v131
  %159 = vmatpush.bf16.msra.mxu0 %v130
  %160 = vmatpush.bf16.msra.mxu0 %v129
  %161 = vmatpush.bf16.msra.mxu0 %v128
  %162 = vmatpush.bf16.msra.mxu0 %v127
  %163 = vmatpush.bf16.msra.mxu0 %v126
  %164 = vmatpush.bf16.msra.mxu0 %v125
  %165 = vmatmul.bf16.gmra.mxu0 %v57
  %v166 = vpop.f32.mrf.mxu0
  %v167 = vadd.f32 %v52, %v166
  %v168 = vpop.f32.mrf.mxu0
  %169 = vdwg.mxu0
  %170 = vmatpush.bf16.msra.mxu0 %v140
  %171 = vmatpush.bf16.msra.mxu0 %v139
  %172 = vmatpush.bf16.msra.mxu0 %v138
  %173 = vmatpush.bf16.msra.mxu0 %v137
  %174 = vmatpush.bf16.msra.mxu0 %v136
  %175 = vmatpush.bf16.msra.mxu0 %v135
  %176 = vmatpush.bf16.msra.mxu0 %v134
  %177 = vmatpush.bf16.msra.mxu0 %v133
  %178 = vmatmul.bf16.gmra.mxu0 %v58
  %v179 = vpop.f32.mrf.mxu0
  %v180 = vadd.f32 %v167, %v179
  %v181 = vpop.f32.mrf.mxu0
  %182 = vdwg.mxu0
  %v183 = vmax.f32 %v180, 0.0
  %v184 = vld [vmem:[%s3] sm:$0x1]
  %v186 = vperm.slane %v184, 0
  %v188 = vmul.f32 %v183, %v186
  %vm189 = vcmask 261120
  %v190 = vsel %vm189, %v188, 0.0
  %191 = vadd.xlane.f32.xlu0 %v190
  %v192 = vpop.xlane.xlu0 %191
  %vm193 = vcmask 7168
  %194 = vst.msk [vmem:[%s4] sm:$0xff] %vm193, %v192
  // Predicated region
  $region18: #{assault_value_forward.11} parent=0 // pred_check
    _
  $region19: #{assault_value_forward.11} parent=0 // pred_check_branch
    %196 = sbr.rel (0) target = $region21
  $region20: #{assault_value_forward.11} parent=0 // pred_region
    _
  $region21: #{assault_value_forward.11} parent=0 // pred_fallthru
    _
  // Predicated region
  $region22: #{assault_value_forward.11} parent=0 // pred_check
    _
  $region23: #{assault_value_forward.11} parent=0 // pred_check_branch
    %198 = sbr.rel (0) target = $region25
  $region24: #{assault_value_forward.11} parent=0 // pred_region
    _
  $region25: #{assault_value_forward.11} parent=0 // pred_fallthru
    _

</llo_original>
